<compile_context>
chip_gen: v7x
topology: tpu7x:2x2x1
jax: 0.10.0
libtpu: 0.0.40
codegen_flags: <defaults>
</compile_context>

<pallas_src>
import functools

import jax
import jax.numpy as jnp
from jax import lax
from jax.experimental import pallas as pl
from jax.experimental.pallas import tpu as pltpu


_NEG_BIG = -1e30  # large-negative mask value (avoids -inf - -inf NaN hazards)


def _bf16(x):
    return x.astype(jnp.bfloat16)


# ------------------------- in-kernel compute helpers ------------------------ #

def _attend(q_all, k_all, v_all, wo, *, masked, h, d):
    """Per-head attention on already-projected activations.

    q_all: (n, h*d) f32 (already scaled by 1/sqrt(d)); k_all/v_all: (N, h*d).
    wo: (h*d, dim) bf16. Returns (n, dim) f32.
    """
    n = q_all.shape[0]
    N = k_all.shape[0]

    if masked:
        row = lax.broadcasted_iota(jnp.int32, (n, N), 0)
        col = lax.broadcasted_iota(jnp.int32, (n, N), 1)
        causal = col > row

    ctx_parts = []
    for i in range(h):                       # static unrolled loop; lane slices
        lo, hi = i * d, (i + 1) * d
        q_h = q_all[:, lo:hi]                # (n, d)
        k_h = k_all[:, lo:hi]                # (N, d)
        v_h = v_all[:, lo:hi]                # (N, d)

        # scores: contract last dims directly (no materialized transpose).
        s = lax.dot_general(q_h, k_h, (((1,), (1,)), ((), ())),
                            preferred_element_type=jnp.float32)     # (n, N)
        if masked:
            s = jnp.where(causal, _NEG_BIG, s)

        # softmax over keys (torch softmax(dim=1) on an (n, N) score matrix).
        m = jnp.max(s, axis=-1, keepdims=True)
        e = jnp.exp(s - m)
        p = e * pl.reciprocal(jnp.sum(e, axis=-1, keepdims=True), approx=True)

        ctx_parts.append(jnp.dot(p, v_h, preferred_element_type=jnp.float32))

    ctx = jnp.concatenate(ctx_parts, axis=1)                         # (n, h*d)
    # concat(heads) @ W_o as ONE full-width matmul.
    return jnp.dot(_bf16(ctx), wo, preferred_element_type=jnp.float32)


def _mha_self(x, wqkv, wo, *, masked, h, d):
    """Self-attention: fused (dim, 3*dim) QKV projection."""
    dim = x.shape[1]
    scale = 1.0 / jnp.sqrt(jnp.float32(d))
    qkv = jnp.dot(_bf16(x), wqkv, preferred_element_type=jnp.float32)  # (n, 3*dim)
    q = qkv[:, :dim] * scale          # fold 1/sqrt(d_k) into q
    k = qkv[:, dim:2 * dim]
    v = qkv[:, 2 * dim:3 * dim]
    return _attend(q, k, v, wo, masked=masked, h=h, d=d)


def _mha_cross(x_q, x_kv, wq, wkv, wo, *, h, d):
    """Cross-attention: separate q projection, fused (dim, 2*dim) KV projection."""
    dim = x_q.shape[1]
    scale = 1.0 / jnp.sqrt(jnp.float32(d))
    q = jnp.dot(_bf16(x_q), wq, preferred_element_type=jnp.float32) * scale
    kv = jnp.dot(_bf16(x_kv), wkv, preferred_element_type=jnp.float32)  # (N, 2*dim)
    k = kv[:, :dim]
    v = kv[:, dim:2 * dim]
    return _attend(q, k, v, wo, masked=False, h=h, d=d)


def _layernorm(x, g, b):
    mean = jnp.mean(x, axis=1, keepdims=True)
    var = jnp.mean(jnp.square(x - mean), axis=1, keepdims=True)
    return (x - mean) * lax.rsqrt(var + 1e-5) * g + b


def _ffn(x, w1, b1, w2, b2):
    hid = jnp.dot(_bf16(x), w1, preferred_element_type=jnp.float32) + b1
    hid = jnp.maximum(hid, 0.0)
    return jnp.dot(_bf16(hid), w2, preferred_element_type=jnp.float32) + b2


# ------------------------------ fused kernel -------------------------------- #

def _transformer_kernel(
        # inputs (initial activations)
        enc_in_ref, dec_in_ref,
        # encoder-layer weights (per grid step = per layer)
        e_wqkv, e_wo, e_ln1g, e_ln1b, e_w1, e_b1, e_w2, e_b2, e_ln2g, e_ln2b,
        # decoder-layer weights
        d_wqkv1, d_wo1, d_ln1g, d_ln1b, d_wq2, d_wkv2, d_wo2,
        d_w1, d_b1, d_w2, d_b2, d_ln2g, d_ln2b,
        # final projection
        lin_w, lin_b,
        # output
        out_ref,
        # scratch (activation carries, persist across grid steps)
        enc_act, dec_act,
        *, h, d):
    l = pl.program_id(0)

    @pl.when(l == 0)
    def _():
        enc_act[...] = enc_in_ref[...]
        dec_act[...] = dec_in_ref[...]

    # ------------------------------ encoder layer --------------------------- #
    x = enc_act[...]
    att = _mha_self(x, e_wqkv[...], e_wo[...], masked=False, h=h, d=d)
    out1 = att + x
    norm1 = _layernorm(out1, e_ln1g[...], e_ln1b[...])
    feed1 = _ffn(norm1, e_w1[...], e_b1[...], e_w2[...], e_b2[...]) + out1
    enc_out = _layernorm(feed1, e_ln2g[...], e_ln2b[...])
    enc_act[...] = enc_out

    # ------------------------------ decoder layer --------------------------- #
    y = dec_act[...]
    s_att = _mha_self(y, d_wqkv1[...], d_wo1[...], masked=True, h=h, d=d)
    d_out1 = s_att + y
    d_norm1 = _layernorm(d_out1, d_ln1g[...], d_ln1b[...])
    c_att = _mha_cross(d_norm1, enc_out, d_wq2[...], d_wkv2[...], d_wo2[...],
                       h=h, d=d)
    d_out2 = c_att + d_norm1
    d_feed = _ffn(d_out2, d_w1[...], d_b1[...], d_w2[...], d_b2[...]) + d_out2
    dec_out = _layernorm(d_feed, d_ln2g[...], d_ln2b[...])
    dec_act[...] = dec_out

    # ------------------- final linear + softmax (last step) ----------------- #
    @pl.when(l == pl.num_programs(0) - 1)
    def _():
        z = jnp.dot(_bf16(dec_out), lin_w[...],
                    preferred_element_type=jnp.float32) + lin_b[...]
        m = jnp.max(z, axis=1, keepdims=True)
        e = jnp.exp(z - m)
        out_ref[...] = e / jnp.sum(e, axis=1, keepdims=True)   # exact softmax


# -------------------------------- wrapper ------------------------------------ #

def _stacked_spec(a):
    """(layers, r, c) weight -> per-layer (r, c) block, leading dim squeezed."""
    _, r, c = a.shape
    return pl.BlockSpec((None, r, c), lambda l: (l, 0, 0))


def _const_spec(a):
    """Non-stacked 2-D array: same (full) block every grid step."""
    return pl.BlockSpec(a.shape, lambda l: (0, 0))


def transformer_forward(params, x_ids, y_ids, pe_enc, pe_dec, *, h):
    emb = params["embedding"]
    enc_in = emb[x_ids] + pe_enc          # (seq_x, dim) f32   (JAX glue)
    dec_in = emb[y_ids] + pe_dec          # (seq_y, dim) f32

    layers = params["e_wqkv"].shape[0]
    dim = emb.shape[1]
    d = dim // h
    n_dec = dec_in.shape[0]

    weight_names = [
        "e_wqkv", "e_wo", "e_ln1g", "e_ln1b", "e_w1", "e_b1", "e_w2", "e_b2",
        "e_ln2g", "e_ln2b",
        "d_wqkv1", "d_wo1", "d_ln1g", "d_ln1b", "d_wq2", "d_wkv2", "d_wo2",
        "d_w1", "d_b1", "d_w2", "d_b2", "d_ln2g", "d_ln2b",
    ]
    stacked = [params[name] for name in weight_names]

    in_specs = ([_const_spec(enc_in), _const_spec(dec_in)]
                + [_stacked_spec(w) for w in stacked]
                + [_const_spec(params["lin_w"]), _const_spec(params["lin_b"])])

    kernel = functools.partial(_transformer_kernel, h=h, d=d)

    return pl.pallas_call(
        kernel,
        out_shape=jax.ShapeDtypeStruct((n_dec, dim), jnp.float32),
        grid_spec=pltpu.PrefetchScalarGridSpec(
            num_scalar_prefetch=0,
            grid=(layers,),
            in_specs=in_specs,
            out_specs=pl.BlockSpec((n_dec, dim), lambda l: (0, 0)),
            scratch_shapes=[pltpu.VMEM(enc_in.shape, jnp.float32),
                            pltpu.VMEM((n_dec, dim), jnp.float32)]),
        compiler_params=pltpu.CompilerParams(
            dimension_semantics=("arbitrary",)),   # sequential layer carry
    )(enc_in, dec_in, *stacked, params["lin_w"], params["lin_b"])


# --------------------------- model glue / init -------------------------------- #

def pos_encoding(seq, dim):
    # Matches the torch module: exponent 2*i/dim for BOTH sin (even i) and cos (odd i).
    p = jnp.arange(seq, dtype=jnp.float32)[:, None]
    i = jnp.arange(dim, dtype=jnp.float32)[None, :]
    angle = p / (10000.0 ** (2.0 * i / dim))
    even = (jnp.arange(dim)[None, :] % 2) == 0
    return jnp.where(even, jnp.sin(angle), jnp.cos(angle))


def init_params(key, vocab_size, dim, h, inner, layers):
    d = dim // h
    keys = iter(jax.random.split(key, 2048))
    nxt = lambda: next(keys)

    def attn_proj():
        # concat over heads of rand(dim, d)/sqrt(d)  ==  rand(dim, dim)/sqrt(d)
        return jax.random.uniform(nxt(), (dim, dim)) / jnp.sqrt(jnp.float32(d))

    def out_proj():
        return jax.random.uniform(nxt(), (dim, dim)) / jnp.sqrt(jnp.float32(dim))

    def linear(fan_in, fan_out):
        bound = 1.0 / (float(fan_in) ** 0.5)
        w = jax.random.uniform(nxt(), (fan_in, fan_out), minval=-bound, maxval=bound)
        b = jax.random.uniform(nxt(), (1, fan_out), minval=-bound, maxval=bound)
        return w, b

    def encoder_layer():
        w1, b1 = linear(dim, inner)
        w2, b2 = linear(inner, dim)
        return {
            "wqkv": jnp.concatenate([attn_proj(), attn_proj(), attn_proj()], axis=1),
            "wo": out_proj(),
            "ln1g": jnp.ones((1, dim), jnp.float32),
            "ln1b": jnp.zeros((1, dim), jnp.float32),
            "w1": w1, "b1": b1, "w2": w2, "b2": b2,
            "ln2g": jnp.ones((1, dim), jnp.float32),
            "ln2b": jnp.zeros((1, dim), jnp.float32),
        }

    def decoder_layer():
        w1, b1 = linear(dim, inner)
        w2, b2 = linear(inner, dim)
        return {
            "wqkv1": jnp.concatenate([attn_proj(), attn_proj(), attn_proj()], axis=1),
            "wo1": out_proj(),
            "ln1g": jnp.ones((1, dim), jnp.float32),
            "ln1b": jnp.zeros((1, dim), jnp.float32),
            "wq2": attn_proj(),
            "wkv2": jnp.concatenate([attn_proj(), attn_proj()], axis=1),
            "wo2": out_proj(),
            "w1": w1, "b1": b1, "w2": w2, "b2": b2,
            "ln2g": jnp.ones((1, dim), jnp.float32),
            "ln2b": jnp.zeros((1, dim), jnp.float32),
        }

    enc_layers = [encoder_layer() for _ in range(layers)]
    dec_layers = [decoder_layer() for _ in range(layers)]

    # Matmul weights live in HBM as bf16 (halves weight DMA); LN params,
    # biases and the embedding stay f32.
    bf16_keys = {"wqkv", "wo", "w1", "w2", "wqkv1", "wo1", "wq2", "wkv2", "wo2"}

    params = {"embedding": jax.random.normal(nxt(), (vocab_size, dim),
                                             dtype=jnp.float32)}
    for name in enc_layers[0]:
        stk = jnp.stack([p[name] for p in enc_layers])
        params["e_" + name] = stk.astype(jnp.bfloat16) if name in bf16_keys else stk
    for name in dec_layers[0]:
        stk = jnp.stack([p[name] for p in dec_layers])
        params["d_" + name] = stk.astype(jnp.bfloat16) if name in bf16_keys else stk

    lin_w, lin_b = linear(dim, dim)
    params["lin_w"] = lin_w.astype(jnp.bfloat16)
    params["lin_b"] = lin_b
    return params


# ---------------------------------- main -------------------------------------- #

if __name__ == "__main__":
    # dim=128 / inner=256 keep every HBM-visible tensor lane-dense.
    vocab_size, dim, h, inner, layers = 32, 128, 8, 256, 2
    seq_x, seq_y = 8, 8

    key = jax.random.PRNGKey(0)
    k_params, k_x, k_y = jax.random.split(key, 3)
    params = init_params(k_params, vocab_size, dim, h, inner, layers)

    x_ids = jax.random.randint(k_x, (seq_x,), 0, vocab_size)
    y_ids = jax.random.randint(k_y, (seq_y,), 0, vocab_size)

    # Positional-encoding tables precomputed once, outside the forward path.
    pe_x = pos_encoding(seq_x, dim)
    pe_y = pos_encoding(seq_y, dim)

    fwd = jax.jit(functools.partial(transformer_forward, h=h))
    out = fwd(params, x_ids, y_ids, pe_x, pe_y)
    out = jax.block_until_ready(out)

    assert out.shape == (seq_y, dim)
    assert bool(jnp.all(jnp.isfinite(out)))
    # final softmax is over dim=1 -> rows sum to 1 (exact division used there)
    assert bool(jnp.allclose(jnp.sum(out, axis=1), 1.0, atol=1e-4))
    print("KERNEL_OK")
</pallas_src>

<mosaic_0001>
module attributes {stable_mosaic.version = 11 : i64} {
  func.func @_transformer_kernel(%arg0: i32, %arg1: memref<8x128xf32, #tpu.memory_space<vmem>>, %arg2: memref<8x128xf32, #tpu.memory_space<vmem>>, %arg3: memref<1x128x384xbf16, #tpu.memory_space<vmem>>, %arg4: memref<1x128x128xbf16, #tpu.memory_space<vmem>>, %arg5: memref<1x1x128xf32, #tpu.memory_space<vmem>>, %arg6: memref<1x1x128xf32, #tpu.memory_space<vmem>>, %arg7: memref<1x128x256xbf16, #tpu.memory_space<vmem>>, %arg8: memref<1x1x256xf32, #tpu.memory_space<vmem>>, %arg9: memref<1x256x128xbf16, #tpu.memory_space<vmem>>, %arg10: memref<1x1x128xf32, #tpu.memory_space<vmem>>, %arg11: memref<1x1x128xf32, #tpu.memory_space<vmem>>, %arg12: memref<1x1x128xf32, #tpu.memory_space<vmem>>, %arg13: memref<1x128x384xbf16, #tpu.memory_space<vmem>>, %arg14: memref<1x128x128xbf16, #tpu.memory_space<vmem>>, %arg15: memref<1x1x128xf32, #tpu.memory_space<vmem>>, %arg16: memref<1x1x128xf32, #tpu.memory_space<vmem>>, %arg17: memref<1x128x128xbf16, #tpu.memory_space<vmem>>, %arg18: memref<1x128x256xbf16, #tpu.memory_space<vmem>>, %arg19: memref<1x128x128xbf16, #tpu.memory_space<vmem>>, %arg20: memref<1x128x256xbf16, #tpu.memory_space<vmem>>, %arg21: memref<1x1x256xf32, #tpu.memory_space<vmem>>, %arg22: memref<1x256x128xbf16, #tpu.memory_space<vmem>>, %arg23: memref<1x1x128xf32, #tpu.memory_space<vmem>>, %arg24: memref<1x1x128xf32, #tpu.memory_space<vmem>>, %arg25: memref<1x1x128xf32, #tpu.memory_space<vmem>>, %arg26: memref<128x128xbf16, #tpu.memory_space<vmem>>, %arg27: memref<1x128xf32, #tpu.memory_space<vmem>>, %arg28: memref<8x128xf32, #tpu.memory_space<vmem>>, %arg29: memref<8x128xf32, #tpu.memory_space<vmem>>, %arg30: memref<8x128xf32, #tpu.memory_space<vmem>>) attributes {dimension_semantics = [#tpu.dimension_semantics<arbitrary>], iteration_bounds = array<i64: 2>, scalar_prefetch = 0 : i64, scratch_operands = 2 : i64, tpu.core_type = #tpu.core_type<tc>, window_params = [{pipeline_mode = #tpu.pipeline_mode<synchronous>, transform_indices = @transform_0, window_bounds = array<i64: 8, 128>}, {pipeline_mode = #tpu.pipeline_mode<synchronous>, transform_indices = @transform_1, window_bounds = array<i64: 8, 128>}, {transform_indices = @transform_2, window_bounds = array<i64: 1, 128, 384>}, {transform_indices = @transform_3, window_bounds = array<i64: 1, 128, 128>}, {transform_indices = @transform_4, window_bounds = array<i64: 1, 1, 128>}, {transform_indices = @transform_5, window_bounds = array<i64: 1, 1, 128>}, {transform_indices = @transform_6, window_bounds = array<i64: 1, 128, 256>}, {transform_indices = @transform_7, window_bounds = array<i64: 1, 1, 256>}, {transform_indices = @transform_8, window_bounds = array<i64: 1, 256, 128>}, {transform_indices = @transform_9, window_bounds = array<i64: 1, 1, 128>}, {transform_indices = @transform_10, window_bounds = array<i64: 1, 1, 128>}, {transform_indices = @transform_11, window_bounds = array<i64: 1, 1, 128>}, {transform_indices = @transform_12, window_bounds = array<i64: 1, 128, 384>}, {transform_indices = @transform_13, window_bounds = array<i64: 1, 128, 128>}, {transform_indices = @transform_14, window_bounds = array<i64: 1, 1, 128>}, {transform_indices = @transform_15, window_bounds = array<i64: 1, 1, 128>}, {transform_indices = @transform_16, window_bounds = array<i64: 1, 128, 128>}, {transform_indices = @transform_17, window_bounds = array<i64: 1, 128, 256>}, {transform_indices = @transform_18, window_bounds = array<i64: 1, 128, 128>}, {transform_indices = @transform_19, window_bounds = array<i64: 1, 128, 256>}, {transform_indices = @transform_20, window_bounds = array<i64: 1, 1, 256>}, {transform_indices = @transform_21, window_bounds = array<i64: 1, 256, 128>}, {transform_indices = @transform_22, window_bounds = array<i64: 1, 1, 128>}, {transform_indices = @transform_23, window_bounds = array<i64: 1, 1, 128>}, {transform_indices = @transform_24, window_bounds = array<i64: 1, 1, 128>}, {pipeline_mode = #tpu.pipeline_mode<synchronous>, transform_indices = @transform_25, window_bounds = array<i64: 128, 128>}, {pipeline_mode = #tpu.pipeline_mode<synchronous>, transform_indices = @transform_26, window_bounds = array<i64: 1, 128>}, {pipeline_mode = #tpu.pipeline_mode<synchronous>, transform_indices = @transform_27, window_bounds = array<i64: 8, 128>}]} {
    %c0_i32 = arith.constant 0 : i32
    %0 = arith.cmpi eq, %arg0, %c0_i32 : i32
    %1 = arith.extui %0 : i1 to i32
    %c0_i32_0 = arith.constant 0 : i32
    %2 = arith.cmpi ne, %1, %c0_i32_0 : i32
    scf.if %2 {
      %c0_220 = arith.constant 0 : index
      %c0_221 = arith.constant 0 : index
      %585 = vector.load %arg1[%c0_220, %c0_221] : memref<8x128xf32, #tpu.memory_space<vmem>>, vector<8x128xf32>
      %c0_222 = arith.constant 0 : index
      %c0_223 = arith.constant 0 : index
      %586 = vector.load %arg29[%c0_222, %c0_223] : memref<8x128xf32, #tpu.memory_space<vmem>>, vector<8x128xf32>
      tpu.vector_store %arg29[%c0_222, %c0_223], %585 {strides = array<i32>} : memref<8x128xf32, #tpu.memory_space<vmem>>, vector<8x128xf32>,
      %c0_224 = arith.constant 0 : index
      %c0_225 = arith.constant 0 : index
      %587 = vector.load %arg2[%c0_224, %c0_225] : memref<8x128xf32, #tpu.memory_space<vmem>>, vector<8x128xf32>
      %c0_226 = arith.constant 0 : index
      %c0_227 = arith.constant 0 : index
      %588 = vector.load %arg30[%c0_226, %c0_227] : memref<8x128xf32, #tpu.memory_space<vmem>>, vector<8x128xf32>
      tpu.vector_store %arg30[%c0_226, %c0_227], %587 {strides = array<i32>} : memref<8x128xf32, #tpu.memory_space<vmem>>, vector<8x128xf32>,
    } else {
    }
    %c0 = arith.constant 0 : index
    %c0_1 = arith.constant 0 : index
    %3 = vector.load %arg29[%c0, %c0_1] : memref<8x128xf32, #tpu.memory_space<vmem>>, vector<8x128xf32>
    %c0_2 = arith.constant 0 : index
    %c0_3 = arith.constant 0 : index
    %c0_4 = arith.constant 0 : index
    %4 = vector.load %arg3[%c0_2, %c0_3, %c0_4] : memref<1x128x384xbf16, #tpu.memory_space<vmem>>, vector<1x128x384xbf16>
    %5 = vector.shape_cast %4 : vector<1x128x384xbf16> to vector<128x384xbf16>
    %c0_5 = arith.constant 0 : index
    %c0_6 = arith.constant 0 : index
    %c0_7 = arith.constant 0 : index
    %6 = vector.load %arg4[%c0_5, %c0_6, %c0_7] : memref<1x128x128xbf16, #tpu.memory_space<vmem>>, vector<1x128x128xbf16>
    %7 = vector.shape_cast %6 : vector<1x128x128xbf16> to vector<128x128xbf16>
    %cst = arith.constant 1.600000e+01 : f32
    %8 = math.sqrt %cst : f32
    %cst_8 = arith.constant 1.000000e+00 : f32
    %9 = arith.divf %cst_8, %8 : f32
    %10 = arith.truncf %3 : vector<8x128xf32> to vector<8x128xbf16>
    %cst_9 = arith.constant dense<0.000000e+00> : vector<8x384xf32>
    %11 = tpu.matmul %10, %5, %cst_9 {dimension_numbers = #tpu.dot_dimension_numbers<[1], [0], [0], [1], [0, 0, 1, 1], [], []>} : vector<8x128xbf16>, vector<128x384xbf16>, vector<8x384xf32> -> vector<8x384xf32>
    %12 = vector.extract_strided_slice %11 {offsets = [0, 0], sizes = [8, 128], strides = [1, 1]} : vector<8x384xf32> to vector<8x128xf32>
    %13 = vector.broadcast %9 : f32 to vector<8x128xf32>
    %14 = arith.mulf %12, %13 : vector<8x128xf32>
    %15 = vector.extract_strided_slice %11 {offsets = [0, 128], sizes = [8, 128], strides = [1, 1]} : vector<8x384xf32> to vector<8x128xf32>
    %16 = vector.extract_strided_slice %11 {offsets = [0, 256], sizes = [8, 128], strides = [1, 1]} : vector<8x384xf32> to vector<8x128xf32>
    %17 = vector.extract_strided_slice %14 {offsets = [0, 0], sizes = [8, 16], strides = [1, 1]} : vector<8x128xf32> to vector<8x16xf32>
    %18 = vector.extract_strided_slice %15 {offsets = [0, 0], sizes = [8, 16], strides = [1, 1]} : vector<8x128xf32> to vector<8x16xf32>
    %19 = vector.extract_strided_slice %16 {offsets = [0, 0], sizes = [8, 16], strides = [1, 1]} : vector<8x128xf32> to vector<8x16xf32>
    %cst_10 = arith.constant dense<0.000000e+00> : vector<8x8xf32>
    %20 = tpu.matmul %17, %18, %cst_10 {dimension_numbers = #tpu.dot_dimension_numbers<[1], [1], [0], [0], [0, 0, 1, 0], [], []>} : vector<8x16xf32>, vector<8x16xf32>, vector<8x8xf32> -> vector<8x8xf32>
    %cst_11 = arith.constant dense<0xFF800000> : vector<8xf32>
    %21 = vector.multi_reduction <maximumf>, %20, %cst_11 [1] : vector<8x8xf32> to vector<8xf32>
    %22 = vector.shape_cast %21 : vector<8xf32> to vector<8x1xf32>
    %23 = vector.broadcast %22 : vector<8x1xf32> to vector<8x8xf32>
    %24 = arith.subf %20, %23 : vector<8x8xf32>
    %25 = math.exp %24 : vector<8x8xf32>
    %cst_12 = arith.constant dense<0.000000e+00> : vector<8xf32>
    %26 = vector.multi_reduction <add>, %25, %cst_12 [1] : vector<8x8xf32> to vector<8xf32>
    %27 = vector.shape_cast %26 : vector<8xf32> to vector<8x1xf32>
    %28 = tpu.reciprocal %27 {approx = true} : vector<8x1xf32> -> vector<8x1xf32>
    %29 = vector.broadcast %28 : vector<8x1xf32> to vector<8x8xf32>
    %30 = arith.mulf %25, %29 : vector<8x8xf32>
    %cst_13 = arith.constant dense<0.000000e+00> : vector<8x16xf32>
    %31 = tpu.matmul %30, %19, %cst_13 {dimension_numbers = #tpu.dot_dimension_numbers<[1], [0], [0], [1], [0, 0, 1, 1], [], []>} : vector<8x8xf32>, vector<8x16xf32>, vector<8x16xf32> -> vector<8x16xf32>
    %32 = vector.extract_strided_slice %14 {offsets = [0, 16], sizes = [8, 16], strides = [1, 1]} : vector<8x128xf32> to vector<8x16xf32>
    %33 = vector.extract_strided_slice %15 {offsets = [0, 16], sizes = [8, 16], strides = [1, 1]} : vector<8x128xf32> to vector<8x16xf32>
    %34 = vector.extract_strided_slice %16 {offsets = [0, 16], sizes = [8, 16], strides = [1, 1]} : vector<8x128xf32> to vector<8x16xf32>
    %cst_14 = arith.constant dense<0.000000e+00> : vector<8x8xf32>
    %35 = tpu.matmul %32, %33, %cst_14 {dimension_numbers = #tpu.dot_dimension_numbers<[1], [1], [0], [0], [0, 0, 1, 0], [], []>} : vector<8x16xf32>, vector<8x16xf32>, vector<8x8xf32> -> vector<8x8xf32>
    %cst_15 = arith.constant dense<0xFF800000> : vector<8xf32>
    %36 = vector.multi_reduction <maximumf>, %35, %cst_15 [1] : vector<8x8xf32> to vector<8xf32>
    %37 = vector.shape_cast %36 : vector<8xf32> to vector<8x1xf32>
    %38 = vector.broadcast %37 : vector<8x1xf32> to vector<8x8xf32>
    %39 = arith.subf %35, %38 : vector<8x8xf32>
    %40 = math.exp %39 : vector<8x8xf32>
    %cst_16 = arith.constant dense<0.000000e+00> : vector<8xf32>
    %41 = vector.multi_reduction <add>, %40, %cst_16 [1] : vector<8x8xf32> to vector<8xf32>
    %42 = vector.shape_cast %41 : vector<8xf32> to vector<8x1xf32>
    %43 = tpu.reciprocal %42 {approx = true} : vector<8x1xf32> -> vector<8x1xf32>
    %44 = vector.broadcast %43 : vector<8x1xf32> to vector<8x8xf32>
    %45 = arith.mulf %40, %44 : vector<8x8xf32>
    %cst_17 = arith.constant dense<0.000000e+00> : vector<8x16xf32>
    %46 = tpu.matmul %45, %34, %cst_17 {dimension_numbers = #tpu.dot_dimension_numbers<[1], [0], [0], [1], [0, 0, 1, 1], [], []>} : vector<8x8xf32>, vector<8x16xf32>, vector<8x16xf32> -> vector<8x16xf32>
    %47 = vector.extract_strided_slice %14 {offsets = [0, 32], sizes = [8, 16], strides = [1, 1]} : vector<8x128xf32> to vector<8x16xf32>
    %48 = vector.extract_strided_slice %15 {offsets = [0, 32], sizes = [8, 16], strides = [1, 1]} : vector<8x128xf32> to vector<8x16xf32>
    %49 = vector.extract_strided_slice %16 {offsets = [0, 32], sizes = [8, 16], strides = [1, 1]} : vector<8x128xf32> to vector<8x16xf32>
    %cst_18 = arith.constant dense<0.000000e+00> : vector<8x8xf32>
    %50 = tpu.matmul %47, %48, %cst_18 {dimension_numbers = #tpu.dot_dimension_numbers<[1], [1], [0], [0], [0, 0, 1, 0], [], []>} : vector<8x16xf32>, vector<8x16xf32>, vector<8x8xf32> -> vector<8x8xf32>
    %cst_19 = arith.constant dense<0xFF800000> : vector<8xf32>
    %51 = vector.multi_reduction <maximumf>, %50, %cst_19 [1] : vector<8x8xf32> to vector<8xf32>
    %52 = vector.shape_cast %51 : vector<8xf32> to vector<8x1xf32>
    %53 = vector.broadcast %52 : vector<8x1xf32> to vector<8x8xf32>
    %54 = arith.subf %50, %53 : vector<8x8xf32>
    %55 = math.exp %54 : vector<8x8xf32>
    %cst_20 = arith.constant dense<0.000000e+00> : vector<8xf32>
    %56 = vector.multi_reduction <add>, %55, %cst_20 [1] : vector<8x8xf32> to vector<8xf32>
    %57 = vector.shape_cast %56 : vector<8xf32> to vector<8x1xf32>
    %58 = tpu.reciprocal %57 {approx = true} : vector<8x1xf32> -> vector<8x1xf32>
    %59 = vector.broadcast %58 : vector<8x1xf32> to vector<8x8xf32>
    %60 = arith.mulf %55, %59 : vector<8x8xf32>
    %cst_21 = arith.constant dense<0.000000e+00> : vector<8x16xf32>
    %61 = tpu.matmul %60, %49, %cst_21 {dimension_numbers = #tpu.dot_dimension_numbers<[1], [0], [0], [1], [0, 0, 1, 1], [], []>} : vector<8x8xf32>, vector<8x16xf32>, vector<8x16xf32> -> vector<8x16xf32>
    %62 = vector.extract_strided_slice %14 {offsets = [0, 48], sizes = [8, 16], strides = [1, 1]} : vector<8x128xf32> to vector<8x16xf32>
    %63 = vector.extract_strided_slice %15 {offsets = [0, 48], sizes = [8, 16], strides = [1, 1]} : vector<8x128xf32> to vector<8x16xf32>
    %64 = vector.extract_strided_slice %16 {offsets = [0, 48], sizes = [8, 16], strides = [1, 1]} : vector<8x128xf32> to vector<8x16xf32>
    %cst_22 = arith.constant dense<0.000000e+00> : vector<8x8xf32>
    %65 = tpu.matmul %62, %63, %cst_22 {dimension_numbers = #tpu.dot_dimension_numbers<[1], [1], [0], [0], [0, 0, 1, 0], [], []>} : vector<8x16xf32>, vector<8x16xf32>, vector<8x8xf32> -> vector<8x8xf32>
    %cst_23 = arith.constant dense<0xFF800000> : vector<8xf32>
    %66 = vector.multi_reduction <maximumf>, %65, %cst_23 [1] : vector<8x8xf32> to vector<8xf32>
    %67 = vector.shape_cast %66 : vector<8xf32> to vector<8x1xf32>
    %68 = vector.broadcast %67 : vector<8x1xf32> to vector<8x8xf32>
    %69 = arith.subf %65, %68 : vector<8x8xf32>
    %70 = math.exp %69 : vector<8x8xf32>
    %cst_24 = arith.constant dense<0.000000e+00> : vector<8xf32>
    %71 = vector.multi_reduction <add>, %70, %cst_24 [1] : vector<8x8xf32> to vector<8xf32>
    %72 = vector.shape_cast %71 : vector<8xf32> to vector<8x1xf32>
    %73 = tpu.reciprocal %72 {approx = true} : vector<8x1xf32> -> vector<8x1xf32>
    %74 = vector.broadcast %73 : vector<8x1xf32> to vector<8x8xf32>
    %75 = arith.mulf %70, %74 : vector<8x8xf32>
    %cst_25 = arith.constant dense<0.000000e+00> : vector<8x16xf32>
    %76 = tpu.matmul %75, %64, %cst_25 {dimension_numbers = #tpu.dot_dimension_numbers<[1], [0], [0], [1], [0, 0, 1, 1], [], []>} : vector<8x8xf32>, vector<8x16xf32>, vector<8x16xf32> -> vector<8x16xf32>
    %77 = vector.extract_strided_slice %14 {offsets = [0, 64], sizes = [8, 16], strides = [1, 1]} : vector<8x128xf32> to vector<8x16xf32>
    %78 = vector.extract_strided_slice %15 {offsets = [0, 64], sizes = [8, 16], strides = [1, 1]} : vector<8x128xf32> to vector<8x16xf32>
    %79 = vector.extract_strided_slice %16 {offsets = [0, 64], sizes = [8, 16], strides = [1, 1]} : vector<8x128xf32> to vector<8x16xf32>
    %cst_26 = arith.constant dense<0.000000e+00> : vector<8x8xf32>
    %80 = tpu.matmul %77, %78, %cst_26 {dimension_numbers = #tpu.dot_dimension_numbers<[1], [1], [0], [0], [0, 0, 1, 0], [], []>} : vector<8x16xf32>, vector<8x16xf32>, vector<8x8xf32> -> vector<8x8xf32>
    %cst_27 = arith.constant dense<0xFF800000> : vector<8xf32>
    %81 = vector.multi_reduction <maximumf>, %80, %cst_27 [1] : vector<8x8xf32> to vector<8xf32>
    %82 = vector.shape_cast %81 : vector<8xf32> to vector<8x1xf32>
    %83 = vector.broadcast %82 : vector<8x1xf32> to vector<8x8xf32>
    %84 = arith.subf %80, %83 : vector<8x8xf32>
    %85 = math.exp %84 : vector<8x8xf32>
    %cst_28 = arith.constant dense<0.000000e+00> : vector<8xf32>
    %86 = vector.multi_reduction <add>, %85, %cst_28 [1] : vector<8x8xf32> to vector<8xf32>
    %87 = vector.shape_cast %86 : vector<8xf32> to vector<8x1xf32>
    %88 = tpu.reciprocal %87 {approx = true} : vector<8x1xf32> -> vector<8x1xf32>
    %89 = vector.broadcast %88 : vector<8x1xf32> to vector<8x8xf32>
    %90 = arith.mulf %85, %89 : vector<8x8xf32>
    %cst_29 = arith.constant dense<0.000000e+00> : vector<8x16xf32>
    %91 = tpu.matmul %90, %79, %cst_29 {dimension_numbers = #tpu.dot_dimension_numbers<[1], [0], [0], [1], [0, 0, 1, 1], [], []>} : vector<8x8xf32>, vector<8x16xf32>, vector<8x16xf32> -> vector<8x16xf32>
    %92 = vector.extract_strided_slice %14 {offsets = [0, 80], sizes = [8, 16], strides = [1, 1]} : vector<8x128xf32> to vector<8x16xf32>
    %93 = vector.extract_strided_slice %15 {offsets = [0, 80], sizes = [8, 16], strides = [1, 1]} : vector<8x128xf32> to vector<8x16xf32>
    %94 = vector.extract_strided_slice %16 {offsets = [0, 80], sizes = [8, 16], strides = [1, 1]} : vector<8x128xf32> to vector<8x16xf32>
    %cst_30 = arith.constant dense<0.000000e+00> : vector<8x8xf32>
    %95 = tpu.matmul %92, %93, %cst_30 {dimension_numbers = #tpu.dot_dimension_numbers<[1], [1], [0], [0], [0, 0, 1, 0], [], []>} : vector<8x16xf32>, vector<8x16xf32>, vector<8x8xf32> -> vector<8x8xf32>
    %cst_31 = arith.constant dense<0xFF800000> : vector<8xf32>
    %96 = vector.multi_reduction <maximumf>, %95, %cst_31 [1] : vector<8x8xf32> to vector<8xf32>
    %97 = vector.shape_cast %96 : vector<8xf32> to vector<8x1xf32>
    %98 = vector.broadcast %97 : vector<8x1xf32> to vector<8x8xf32>
    %99 = arith.subf %95, %98 : vector<8x8xf32>
    %100 = math.exp %99 : vector<8x8xf32>
    %cst_32 = arith.constant dense<0.000000e+00> : vector<8xf32>
    %101 = vector.multi_reduction <add>, %100, %cst_32 [1] : vector<8x8xf32> to vector<8xf32>
    %102 = vector.shape_cast %101 : vector<8xf32> to vector<8x1xf32>
    %103 = tpu.reciprocal %102 {approx = true} : vector<8x1xf32> -> vector<8x1xf32>
    %104 = vector.broadcast %103 : vector<8x1xf32> to vector<8x8xf32>
    %105 = arith.mulf %100, %104 : vector<8x8xf32>
    %cst_33 = arith.constant dense<0.000000e+00> : vector<8x16xf32>
    %106 = tpu.matmul %105, %94, %cst_33 {dimension_numbers = #tpu.dot_dimension_numbers<[1], [0], [0], [1], [0, 0, 1, 1], [], []>} : vector<8x8xf32>, vector<8x16xf32>, vector<8x16xf32> -> vector<8x16xf32>
    %107 = vector.extract_strided_slice %14 {offsets = [0, 96], sizes = [8, 16], strides = [1, 1]} : vector<8x128xf32> to vector<8x16xf32>
    %108 = vector.extract_strided_slice %15 {offsets = [0, 96], sizes = [8, 16], strides = [1, 1]} : vector<8x128xf32> to vector<8x16xf32>
    %109 = vector.extract_strided_slice %16 {offsets = [0, 96], sizes = [8, 16], strides = [1, 1]} : vector<8x128xf32> to vector<8x16xf32>
    %cst_34 = arith.constant dense<0.000000e+00> : vector<8x8xf32>
    %110 = tpu.matmul %107, %108, %cst_34 {dimension_numbers = #tpu.dot_dimension_numbers<[1], [1], [0], [0], [0, 0, 1, 0], [], []>} : vector<8x16xf32>, vector<8x16xf32>, vector<8x8xf32> -> vector<8x8xf32>
    %cst_35 = arith.constant dense<0xFF800000> : vector<8xf32>
    %111 = vector.multi_reduction <maximumf>, %110, %cst_35 [1] : vector<8x8xf32> to vector<8xf32>
    %112 = vector.shape_cast %111 : vector<8xf32> to vector<8x1xf32>
    %113 = vector.broadcast %112 : vector<8x1xf32> to vector<8x8xf32>
    %114 = arith.subf %110, %113 : vector<8x8xf32>
    %115 = math.exp %114 : vector<8x8xf32>
    %cst_36 = arith.constant dense<0.000000e+00> : vector<8xf32>
    %116 = vector.multi_reduction <add>, %115, %cst_36 [1] : vector<8x8xf32> to vector<8xf32>
    %117 = vector.shape_cast %116 : vector<8xf32> to vector<8x1xf32>
    %118 = tpu.reciprocal %117 {approx = true} : vector<8x1xf32> -> vector<8x1xf32>
    %119 = vector.broadcast %118 : vector<8x1xf32> to vector<8x8xf32>
    %120 = arith.mulf %115, %119 : vector<8x8xf32>
    %cst_37 = arith.constant dense<0.000000e+00> : vector<8x16xf32>
    %121 = tpu.matmul %120, %109, %cst_37 {dimension_numbers = #tpu.dot_dimension_numbers<[1], [0], [0], [1], [0, 0, 1, 1], [], []>} : vector<8x8xf32>, vector<8x16xf32>, vector<8x16xf32> -> vector<8x16xf32>
    %122 = vector.extract_strided_slice %14 {offsets = [0, 112], sizes = [8, 16], strides = [1, 1]} : vector<8x128xf32> to vector<8x16xf32>
    %123 = vector.extract_strided_slice %15 {offsets = [0, 112], sizes = [8, 16], strides = [1, 1]} : vector<8x128xf32> to vector<8x16xf32>
    %124 = vector.extract_strided_slice %16 {offsets = [0, 112], sizes = [8, 16], strides = [1, 1]} : vector<8x128xf32> to vector<8x16xf32>
    %cst_38 = arith.constant dense<0.000000e+00> : vector<8x8xf32>
    %125 = tpu.matmul %122, %123, %cst_38 {dimension_numbers = #tpu.dot_dimension_numbers<[1], [1], [0], [0], [0, 0, 1, 0], [], []>} : vector<8x16xf32>, vector<8x16xf32>, vector<8x8xf32> -> vector<8x8xf32>
    %cst_39 = arith.constant dense<0xFF800000> : vector<8xf32>
    %126 = vector.multi_reduction <maximumf>, %125, %cst_39 [1] : vector<8x8xf32> to vector<8xf32>
    %127 = vector.shape_cast %126 : vector<8xf32> to vector<8x1xf32>
    %128 = vector.broadcast %127 : vector<8x1xf32> to vector<8x8xf32>
    %129 = arith.subf %125, %128 : vector<8x8xf32>
    %130 = math.exp %129 : vector<8x8xf32>
    %cst_40 = arith.constant dense<0.000000e+00> : vector<8xf32>
    %131 = vector.multi_reduction <add>, %130, %cst_40 [1] : vector<8x8xf32> to vector<8xf32>
    %132 = vector.shape_cast %131 : vector<8xf32> to vector<8x1xf32>
    %133 = tpu.reciprocal %132 {approx = true} : vector<8x1xf32> -> vector<8x1xf32>
    %134 = vector.broadcast %133 : vector<8x1xf32> to vector<8x8xf32>
    %135 = arith.mulf %130, %134 : vector<8x8xf32>
    %cst_41 = arith.constant dense<0.000000e+00> : vector<8x16xf32>
    %136 = tpu.matmul %135, %124, %cst_41 {dimension_numbers = #tpu.dot_dimension_numbers<[1], [0], [0], [1], [0, 0, 1, 1], [], []>} : vector<8x8xf32>, vector<8x16xf32>, vector<8x16xf32> -> vector<8x16xf32>
    %137 = tpu.concatenate %31, %46, %61, %76, %91, %106, %121, %136 in 1 : vector<8x16xf32>, vector<8x16xf32>, vector<8x16xf32>, vector<8x16xf32>, vector<8x16xf32>, vector<8x16xf32>, vector<8x16xf32>, vector<8x16xf32> -> vector<8x128xf32>
    %138 = arith.truncf %137 : vector<8x128xf32> to vector<8x128xbf16>
    %cst_42 = arith.constant dense<0.000000e+00> : vector<8x128xf32>
    %139 = tpu.matmul %138, %7, %cst_42 {dimension_numbers = #tpu.dot_dimension_numbers<[1], [0], [0], [1], [0, 0, 1, 1], [], []>} : vector<8x128xbf16>, vector<128x128xbf16>, vector<8x128xf32> -> vector<8x128xf32>
    %140 = arith.addf %139, %3 : vector<8x128xf32>
    %c0_43 = arith.constant 0 : index
    %c0_44 = arith.constant 0 : index
    %c0_45 = arith.constant 0 : index
    %141 = vector.load %arg5[%c0_43, %c0_44, %c0_45] : memref<1x1x128xf32, #tpu.memory_space<vmem>>, vector<1x1x128xf32>
    %142 = vector.shape_cast %141 : vector<1x1x128xf32> to vector<1x128xf32>
    %c0_46 = arith.constant 0 : index
    %c0_47 = arith.constant 0 : index
    %c0_48 = arith.constant 0 : index
    %143 = vector.load %arg6[%c0_46, %c0_47, %c0_48] : memref<1x1x128xf32, #tpu.memory_space<vmem>>, vector<1x1x128xf32>
    %144 = vector.shape_cast %143 : vector<1x1x128xf32> to vector<1x128xf32>
    %cst_49 = arith.constant dense<0.000000e+00> : vector<8xf32>
    %145 = vector.multi_reduction <add>, %140, %cst_49 [1] : vector<8x128xf32> to vector<8xf32>
    %146 = vector.shape_cast %145 : vector<8xf32> to vector<8x1xf32>
    %cst_50 = arith.constant 1.280000e+02 : f32
    %147 = vector.broadcast %cst_50 : f32 to vector<8x1xf32>
    %148 = arith.divf %146, %147 : vector<8x1xf32>
    %149 = vector.broadcast %148 : vector<8x1xf32> to vector<8x128xf32>
    %150 = arith.subf %140, %149 : vector<8x128xf32>
    %151 = arith.mulf %150, %150 : vector<8x128xf32>
    %cst_51 = arith.constant dense<0.000000e+00> : vector<8xf32>
    %152 = vector.multi_reduction <add>, %151, %cst_51 [1] : vector<8x128xf32> to vector<8xf32>
    %153 = vector.shape_cast %152 : vector<8xf32> to vector<8x1xf32>
    %cst_52 = arith.constant 1.280000e+02 : f32
    %154 = vector.broadcast %cst_52 : f32 to vector<8x1xf32>
    %155 = arith.divf %153, %154 : vector<8x1xf32>
    %156 = vector.broadcast %148 : vector<8x1xf32> to vector<8x128xf32>
    %157 = arith.subf %140, %156 : vector<8x128xf32>
    %cst_53 = arith.constant 9.99999974E-6 : f32
    %158 = vector.broadcast %cst_53 : f32 to vector<8x1xf32>
    %159 = arith.addf %155, %158 : vector<8x1xf32>
    %160 = math.rsqrt %159 : vector<8x1xf32>
    %161 = vector.broadcast %160 : vector<8x1xf32> to vector<8x128xf32>
    %162 = arith.mulf %157, %161 : vector<8x128xf32>
    %163 = vector.broadcast %142 : vector<1x128xf32> to vector<8x128xf32>
    %164 = arith.mulf %162, %163 : vector<8x128xf32>
    %165 = vector.broadcast %144 : vector<1x128xf32> to vector<8x128xf32>
    %166 = arith.addf %164, %165 : vector<8x128xf32>
    %c0_54 = arith.constant 0 : index
    %c0_55 = arith.constant 0 : index
    %c0_56 = arith.constant 0 : index
    %167 = vector.load %arg7[%c0_54, %c0_55, %c0_56] : memref<1x128x256xbf16, #tpu.memory_space<vmem>>, vector<1x128x256xbf16>
    %168 = vector.shape_cast %167 : vector<1x128x256xbf16> to vector<128x256xbf16>
    %c0_57 = arith.constant 0 : index
    %c0_58 = arith.constant 0 : index
    %c0_59 = arith.constant 0 : index
    %169 = vector.load %arg8[%c0_57, %c0_58, %c0_59] : memref<1x1x256xf32, #tpu.memory_space<vmem>>, vector<1x1x256xf32>
    %170 = vector.shape_cast %169 : vector<1x1x256xf32> to vector<1x256xf32>
    %c0_60 = arith.constant 0 : index
    %c0_61 = arith.constant 0 : index
    %c0_62 = arith.constant 0 : index
    %171 = vector.load %arg9[%c0_60, %c0_61, %c0_62] : memref<1x256x128xbf16, #tpu.memory_space<vmem>>, vector<1x256x128xbf16>
    %172 = vector.shape_cast %171 : vector<1x256x128xbf16> to vector<256x128xbf16>
    %c0_63 = arith.constant 0 : index
    %c0_64 = arith.constant 0 : index
    %c0_65 = arith.constant 0 : index
    %173 = vector.load %arg10[%c0_63, %c0_64, %c0_65] : memref<1x1x128xf32, #tpu.memory_space<vmem>>, vector<1x1x128xf32>
    %174 = vector.shape_cast %173 : vector<1x1x128xf32> to vector<1x128xf32>
    %175 = arith.truncf %166 : vector<8x128xf32> to vector<8x128xbf16>
    %cst_66 = arith.constant dense<0.000000e+00> : vector<8x256xf32>
    %176 = tpu.matmul %175, %168, %cst_66 {dimension_numbers = #tpu.dot_dimension_numbers<[1], [0], [0], [1], [0, 0, 1, 1], [], []>} : vector<8x128xbf16>, vector<128x256xbf16>, vector<8x256xf32> -> vector<8x256xf32>
    %177 = vector.broadcast %170 : vector<1x256xf32> to vector<8x256xf32>
    %178 = arith.addf %176, %177 : vector<8x256xf32>
    %cst_67 = arith.constant 0.000000e+00 : f32
    %179 = vector.broadcast %cst_67 : f32 to vector<8x256xf32>
    %180 = arith.maximumf %178, %179 : vector<8x256xf32>
    %181 = arith.truncf %180 : vector<8x256xf32> to vector<8x256xbf16>
    %cst_68 = arith.constant dense<0.000000e+00> : vector<8x128xf32>
    %182 = tpu.matmul %181, %172, %cst_68 {dimension_numbers = #tpu.dot_dimension_numbers<[1], [0], [0], [1], [0, 0, 1, 1], [], []>} : vector<8x256xbf16>, vector<256x128xbf16>, vector<8x128xf32> -> vector<8x128xf32>
    %183 = vector.broadcast %174 : vector<1x128xf32> to vector<8x128xf32>
    %184 = arith.addf %182, %183 : vector<8x128xf32>
    %185 = arith.addf %184, %140 : vector<8x128xf32>
    %c0_69 = arith.constant 0 : index
    %c0_70 = arith.constant 0 : index
    %c0_71 = arith.constant 0 : index
    %186 = vector.load %arg11[%c0_69, %c0_70, %c0_71] : memref<1x1x128xf32, #tpu.memory_space<vmem>>, vector<1x1x128xf32>
    %187 = vector.shape_cast %186 : vector<1x1x128xf32> to vector<1x128xf32>
    %c0_72 = arith.constant 0 : index
    %c0_73 = arith.constant 0 : index
    %c0_74 = arith.constant 0 : index
    %188 = vector.load %arg12[%c0_72, %c0_73, %c0_74] : memref<1x1x128xf32, #tpu.memory_space<vmem>>, vector<1x1x128xf32>
    %189 = vector.shape_cast %188 : vector<1x1x128xf32> to vector<1x128xf32>
    %cst_75 = arith.constant dense<0.000000e+00> : vector<8xf32>
    %190 = vector.multi_reduction <add>, %185, %cst_75 [1] : vector<8x128xf32> to vector<8xf32>
    %191 = vector.shape_cast %190 : vector<8xf32> to vector<8x1xf32>
    %cst_76 = arith.constant 1.280000e+02 : f32
    %192 = vector.broadcast %cst_76 : f32 to vector<8x1xf32>
    %193 = arith.divf %191, %192 : vector<8x1xf32>
    %194 = vector.broadcast %193 : vector<8x1xf32> to vector<8x128xf32>
    %195 = arith.subf %185, %194 : vector<8x128xf32>
    %196 = arith.mulf %195, %195 : vector<8x128xf32>
    %cst_77 = arith.constant dense<0.000000e+00> : vector<8xf32>
    %197 = vector.multi_reduction <add>, %196, %cst_77 [1] : vector<8x128xf32> to vector<8xf32>
    %198 = vector.shape_cast %197 : vector<8xf32> to vector<8x1xf32>
    %cst_78 = arith.constant 1.280000e+02 : f32
    %199 = vector.broadcast %cst_78 : f32 to vector<8x1xf32>
    %200 = arith.divf %198, %199 : vector<8x1xf32>
    %201 = vector.broadcast %193 : vector<8x1xf32> to vector<8x128xf32>
    %202 = arith.subf %185, %201 : vector<8x128xf32>
    %cst_79 = arith.constant 9.99999974E-6 : f32
    %203 = vector.broadcast %cst_79 : f32 to vector<8x1xf32>
    %204 = arith.addf %200, %203 : vector<8x1xf32>
    %205 = math.rsqrt %204 : vector<8x1xf32>
    %206 = vector.broadcast %205 : vector<8x1xf32> to vector<8x128xf32>
    %207 = arith.mulf %202, %206 : vector<8x128xf32>
    %208 = vector.broadcast %187 : vector<1x128xf32> to vector<8x128xf32>
    %209 = arith.mulf %207, %208 : vector<8x128xf32>
    %210 = vector.broadcast %189 : vector<1x128xf32> to vector<8x128xf32>
    %211 = arith.addf %209, %210 : vector<8x128xf32>
    %c0_80 = arith.constant 0 : index
    %c0_81 = arith.constant 0 : index
    %212 = vector.load %arg29[%c0_80, %c0_81] : memref<8x128xf32, #tpu.memory_space<vmem>>, vector<8x128xf32>
    tpu.vector_store %arg29[%c0_80, %c0_81], %211 {strides = array<i32>} : memref<8x128xf32, #tpu.memory_space<vmem>>, vector<8x128xf32>,
    %c0_82 = arith.constant 0 : index
    %c0_83 = arith.constant 0 : index
    %213 = vector.load %arg30[%c0_82, %c0_83] : memref<8x128xf32, #tpu.memory_space<vmem>>, vector<8x128xf32>
    %c0_84 = arith.constant 0 : index
    %c0_85 = arith.constant 0 : index
    %c0_86 = arith.constant 0 : index
    %214 = vector.load %arg13[%c0_84, %c0_85, %c0_86] : memref<1x128x384xbf16, #tpu.memory_space<vmem>>, vector<1x128x384xbf16>
    %215 = vector.shape_cast %214 : vector<1x128x384xbf16> to vector<128x384xbf16>
    %c0_87 = arith.constant 0 : index
    %c0_88 = arith.constant 0 : index
    %c0_89 = arith.constant 0 : index
    %216 = vector.load %arg14[%c0_87, %c0_88, %c0_89] : memref<1x128x128xbf16, #tpu.memory_space<vmem>>, vector<1x128x128xbf16>
    %217 = vector.shape_cast %216 : vector<1x128x128xbf16> to vector<128x128xbf16>
    %cst_90 = arith.constant 1.600000e+01 : f32
    %218 = math.sqrt %cst_90 : f32
    %cst_91 = arith.constant 1.000000e+00 : f32
    %219 = arith.divf %cst_91, %218 : f32
    %220 = arith.truncf %213 : vector<8x128xf32> to vector<8x128xbf16>
    %cst_92 = arith.constant dense<0.000000e+00> : vector<8x384xf32>
    %221 = tpu.matmul %220, %215, %cst_92 {dimension_numbers = #tpu.dot_dimension_numbers<[1], [0], [0], [1], [0, 0, 1, 1], [], []>} : vector<8x128xbf16>, vector<128x384xbf16>, vector<8x384xf32> -> vector<8x384xf32>
    %222 = vector.extract_strided_slice %221 {offsets = [0, 0], sizes = [8, 128], strides = [1, 1]} : vector<8x384xf32> to vector<8x128xf32>
    %223 = vector.broadcast %219 : f32 to vector<8x128xf32>
    %224 = arith.mulf %222, %223 : vector<8x128xf32>
    %225 = vector.extract_strided_slice %221 {offsets = [0, 128], sizes = [8, 128], strides = [1, 1]} : vector<8x384xf32> to vector<8x128xf32>
    %226 = vector.extract_strided_slice %221 {offsets = [0, 256], sizes = [8, 128], strides = [1, 1]} : vector<8x384xf32> to vector<8x128xf32>
    %227 = tpu.iota {dimensions = array<i32: 0>} : vector<8x8xi32>
    %228 = tpu.iota {dimensions = array<i32: 1>} : vector<8x8xi32>
    %229 = arith.cmpi sgt, %228, %227 : vector<8x8xi32>
    %230 = vector.extract_strided_slice %224 {offsets = [0, 0], sizes = [8, 16], strides = [1, 1]} : vector<8x128xf32> to vector<8x16xf32>
    %231 = vector.extract_strided_slice %225 {offsets = [0, 0], sizes = [8, 16], strides = [1, 1]} : vector<8x128xf32> to vector<8x16xf32>
    %232 = vector.extract_strided_slice %226 {offsets = [0, 0], sizes = [8, 16], strides = [1, 1]} : vector<8x128xf32> to vector<8x16xf32>
    %cst_93 = arith.constant dense<0.000000e+00> : vector<8x8xf32>
    %233 = tpu.matmul %230, %231, %cst_93 {dimension_numbers = #tpu.dot_dimension_numbers<[1], [1], [0], [0], [0, 0, 1, 0], [], []>} : vector<8x16xf32>, vector<8x16xf32>, vector<8x8xf32> -> vector<8x8xf32>
    %cst_94 = arith.constant -1.000000e+30 : f32
    %234 = vector.broadcast %cst_94 : f32 to vector<8x8xf32>
    %235 = arith.select %229, %234, %233 : vector<8x8xi1>, vector<8x8xf32>
    %cst_95 = arith.constant dense<0xFF800000> : vector<8xf32>
    %236 = vector.multi_reduction <maximumf>, %235, %cst_95 [1] : vector<8x8xf32> to vector<8xf32>
    %237 = vector.shape_cast %236 : vector<8xf32> to vector<8x1xf32>
    %238 = vector.broadcast %237 : vector<8x1xf32> to vector<8x8xf32>
    %239 = arith.subf %235, %238 : vector<8x8xf32>
    %240 = math.exp %239 : vector<8x8xf32>
    %cst_96 = arith.constant dense<0.000000e+00> : vector<8xf32>
    %241 = vector.multi_reduction <add>, %240, %cst_96 [1] : vector<8x8xf32> to vector<8xf32>
    %242 = vector.shape_cast %241 : vector<8xf32> to vector<8x1xf32>
    %243 = tpu.reciprocal %242 {approx = true} : vector<8x1xf32> -> vector<8x1xf32>
    %244 = vector.broadcast %243 : vector<8x1xf32> to vector<8x8xf32>
    %245 = arith.mulf %240, %244 : vector<8x8xf32>
    %cst_97 = arith.constant dense<0.000000e+00> : vector<8x16xf32>
    %246 = tpu.matmul %245, %232, %cst_97 {dimension_numbers = #tpu.dot_dimension_numbers<[1], [0], [0], [1], [0, 0, 1, 1], [], []>} : vector<8x8xf32>, vector<8x16xf32>, vector<8x16xf32> -> vector<8x16xf32>
    %247 = vector.extract_strided_slice %224 {offsets = [0, 16], sizes = [8, 16], strides = [1, 1]} : vector<8x128xf32> to vector<8x16xf32>
    %248 = vector.extract_strided_slice %225 {offsets = [0, 16], sizes = [8, 16], strides = [1, 1]} : vector<8x128xf32> to vector<8x16xf32>
    %249 = vector.extract_strided_slice %226 {offsets = [0, 16], sizes = [8, 16], strides = [1, 1]} : vector<8x128xf32> to vector<8x16xf32>
    %cst_98 = arith.constant dense<0.000000e+00> : vector<8x8xf32>
    %250 = tpu.matmul %247, %248, %cst_98 {dimension_numbers = #tpu.dot_dimension_numbers<[1], [1], [0], [0], [0, 0, 1, 0], [], []>} : vector<8x16xf32>, vector<8x16xf32>, vector<8x8xf32> -> vector<8x8xf32>
    %cst_99 = arith.constant -1.000000e+30 : f32
    %251 = vector.broadcast %cst_99 : f32 to vector<8x8xf32>
    %252 = arith.select %229, %251, %250 : vector<8x8xi1>, vector<8x8xf32>
    %cst_100 = arith.constant dense<0xFF800000> : vector<8xf32>
    %253 = vector.multi_reduction <maximumf>, %252, %cst_100 [1] : vector<8x8xf32> to vector<8xf32>
    %254 = vector.shape_cast %253 : vector<8xf32> to vector<8x1xf32>
    %255 = vector.broadcast %254 : vector<8x1xf32> to vector<8x8xf32>
    %256 = arith.subf %252, %255 : vector<8x8xf32>
    %257 = math.exp %256 : vector<8x8xf32>
    %cst_101 = arith.constant dense<0.000000e+00> : vector<8xf32>
    %258 = vector.multi_reduction <add>, %257, %cst_101 [1] : vector<8x8xf32> to vector<8xf32>
    %259 = vector.shape_cast %258 : vector<8xf32> to vector<8x1xf32>
    %260 = tpu.reciprocal %259 {approx = true} : vector<8x1xf32> -> vector<8x1xf32>
    %261 = vector.broadcast %260 : vector<8x1xf32> to vector<8x8xf32>
    %262 = arith.mulf %257, %261 : vector<8x8xf32>
    %cst_102 = arith.constant dense<0.000000e+00> : vector<8x16xf32>
    %263 = tpu.matmul %262, %249, %cst_102 {dimension_numbers = #tpu.dot_dimension_numbers<[1], [0], [0], [1], [0, 0, 1, 1], [], []>} : vector<8x8xf32>, vector<8x16xf32>, vector<8x16xf32> -> vector<8x16xf32>
    %264 = vector.extract_strided_slice %224 {offsets = [0, 32], sizes = [8, 16], strides = [1, 1]} : vector<8x128xf32> to vector<8x16xf32>
    %265 = vector.extract_strided_slice %225 {offsets = [0, 32], sizes = [8, 16], strides = [1, 1]} : vector<8x128xf32> to vector<8x16xf32>
    %266 = vector.extract_strided_slice %226 {offsets = [0, 32], sizes = [8, 16], strides = [1, 1]} : vector<8x128xf32> to vector<8x16xf32>
    %cst_103 = arith.constant dense<0.000000e+00> : vector<8x8xf32>
    %267 = tpu.matmul %264, %265, %cst_103 {dimension_numbers = #tpu.dot_dimension_numbers<[1], [1], [0], [0], [0, 0, 1, 0], [], []>} : vector<8x16xf32>, vector<8x16xf32>, vector<8x8xf32> -> vector<8x8xf32>
    %cst_104 = arith.constant -1.000000e+30 : f32
    %268 = vector.broadcast %cst_104 : f32 to vector<8x8xf32>
    %269 = arith.select %229, %268, %267 : vector<8x8xi1>, vector<8x8xf32>
    %cst_105 = arith.constant dense<0xFF800000> : vector<8xf32>
    %270 = vector.multi_reduction <maximumf>, %269, %cst_105 [1] : vector<8x8xf32> to vector<8xf32>
    %271 = vector.shape_cast %270 : vector<8xf32> to vector<8x1xf32>
    %272 = vector.broadcast %271 : vector<8x1xf32> to vector<8x8xf32>
    %273 = arith.subf %269, %272 : vector<8x8xf32>
    %274 = math.exp %273 : vector<8x8xf32>
    %cst_106 = arith.constant dense<0.000000e+00> : vector<8xf32>
    %275 = vector.multi_reduction <add>, %274, %cst_106 [1] : vector<8x8xf32> to vector<8xf32>
    %276 = vector.shape_cast %275 : vector<8xf32> to vector<8x1xf32>
    %277 = tpu.reciprocal %276 {approx = true} : vector<8x1xf32> -> vector<8x1xf32>
    %278 = vector.broadcast %277 : vector<8x1xf32> to vector<8x8xf32>
    %279 = arith.mulf %274, %278 : vector<8x8xf32>
    %cst_107 = arith.constant dense<0.000000e+00> : vector<8x16xf32>
    %280 = tpu.matmul %279, %266, %cst_107 {dimension_numbers = #tpu.dot_dimension_numbers<[1], [0], [0], [1], [0, 0, 1, 1], [], []>} : vector<8x8xf32>, vector<8x16xf32>, vector<8x16xf32> -> vector<8x16xf32>
    %281 = vector.extract_strided_slice %224 {offsets = [0, 48], sizes = [8, 16], strides = [1, 1]} : vector<8x128xf32> to vector<8x16xf32>
    %282 = vector.extract_strided_slice %225 {offsets = [0, 48], sizes = [8, 16], strides = [1, 1]} : vector<8x128xf32> to vector<8x16xf32>
    %283 = vector.extract_strided_slice %226 {offsets = [0, 48], sizes = [8, 16], strides = [1, 1]} : vector<8x128xf32> to vector<8x16xf32>
    %cst_108 = arith.constant dense<0.000000e+00> : vector<8x8xf32>
    %284 = tpu.matmul %281, %282, %cst_108 {dimension_numbers = #tpu.dot_dimension_numbers<[1], [1], [0], [0], [0, 0, 1, 0], [], []>} : vector<8x16xf32>, vector<8x16xf32>, vector<8x8xf32> -> vector<8x8xf32>
    %cst_109 = arith.constant -1.000000e+30 : f32
    %285 = vector.broadcast %cst_109 : f32 to vector<8x8xf32>
    %286 = arith.select %229, %285, %284 : vector<8x8xi1>, vector<8x8xf32>
    %cst_110 = arith.constant dense<0xFF800000> : vector<8xf32>
    %287 = vector.multi_reduction <maximumf>, %286, %cst_110 [1] : vector<8x8xf32> to vector<8xf32>
    %288 = vector.shape_cast %287 : vector<8xf32> to vector<8x1xf32>
    %289 = vector.broadcast %288 : vector<8x1xf32> to vector<8x8xf32>
    %290 = arith.subf %286, %289 : vector<8x8xf32>
    %291 = math.exp %290 : vector<8x8xf32>
    %cst_111 = arith.constant dense<0.000000e+00> : vector<8xf32>
    %292 = vector.multi_reduction <add>, %291, %cst_111 [1] : vector<8x8xf32> to vector<8xf32>
    %293 = vector.shape_cast %292 : vector<8xf32> to vector<8x1xf32>
    %294 = tpu.reciprocal %293 {approx = true} : vector<8x1xf32> -> vector<8x1xf32>
    %295 = vector.broadcast %294 : vector<8x1xf32> to vector<8x8xf32>
    %296 = arith.mulf %291, %295 : vector<8x8xf32>
    %cst_112 = arith.constant dense<0.000000e+00> : vector<8x16xf32>
    %297 = tpu.matmul %296, %283, %cst_112 {dimension_numbers = #tpu.dot_dimension_numbers<[1], [0], [0], [1], [0, 0, 1, 1], [], []>} : vector<8x8xf32>, vector<8x16xf32>, vector<8x16xf32> -> vector<8x16xf32>
    %298 = vector.extract_strided_slice %224 {offsets = [0, 64], sizes = [8, 16], strides = [1, 1]} : vector<8x128xf32> to vector<8x16xf32>
    %299 = vector.extract_strided_slice %225 {offsets = [0, 64], sizes = [8, 16], strides = [1, 1]} : vector<8x128xf32> to vector<8x16xf32>
    %300 = vector.extract_strided_slice %226 {offsets = [0, 64], sizes = [8, 16], strides = [1, 1]} : vector<8x128xf32> to vector<8x16xf32>
    %cst_113 = arith.constant dense<0.000000e+00> : vector<8x8xf32>
    %301 = tpu.matmul %298, %299, %cst_113 {dimension_numbers = #tpu.dot_dimension_numbers<[1], [1], [0], [0], [0, 0, 1, 0], [], []>} : vector<8x16xf32>, vector<8x16xf32>, vector<8x8xf32> -> vector<8x8xf32>
    %cst_114 = arith.constant -1.000000e+30 : f32
    %302 = vector.broadcast %cst_114 : f32 to vector<8x8xf32>
    %303 = arith.select %229, %302, %301 : vector<8x8xi1>, vector<8x8xf32>
    %cst_115 = arith.constant dense<0xFF800000> : vector<8xf32>
    %304 = vector.multi_reduction <maximumf>, %303, %cst_115 [1] : vector<8x8xf32> to vector<8xf32>
    %305 = vector.shape_cast %304 : vector<8xf32> to vector<8x1xf32>
    %306 = vector.broadcast %305 : vector<8x1xf32> to vector<8x8xf32>
    %307 = arith.subf %303, %306 : vector<8x8xf32>
    %308 = math.exp %307 : vector<8x8xf32>
    %cst_116 = arith.constant dense<0.000000e+00> : vector<8xf32>
    %309 = vector.multi_reduction <add>, %308, %cst_116 [1] : vector<8x8xf32> to vector<8xf32>
    %310 = vector.shape_cast %309 : vector<8xf32> to vector<8x1xf32>
    %311 = tpu.reciprocal %310 {approx = true} : vector<8x1xf32> -> vector<8x1xf32>
    %312 = vector.broadcast %311 : vector<8x1xf32> to vector<8x8xf32>
    %313 = arith.mulf %308, %312 : vector<8x8xf32>
    %cst_117 = arith.constant dense<0.000000e+00> : vector<8x16xf32>
    %314 = tpu.matmul %313, %300, %cst_117 {dimension_numbers = #tpu.dot_dimension_numbers<[1], [0], [0], [1], [0, 0, 1, 1], [], []>} : vector<8x8xf32>, vector<8x16xf32>, vector<8x16xf32> -> vector<8x16xf32>
    %315 = vector.extract_strided_slice %224 {offsets = [0, 80], sizes = [8, 16], strides = [1, 1]} : vector<8x128xf32> to vector<8x16xf32>
    %316 = vector.extract_strided_slice %225 {offsets = [0, 80], sizes = [8, 16], strides = [1, 1]} : vector<8x128xf32> to vector<8x16xf32>
    %317 = vector.extract_strided_slice %226 {offsets = [0, 80], sizes = [8, 16], strides = [1, 1]} : vector<8x128xf32> to vector<8x16xf32>
    %cst_118 = arith.constant dense<0.000000e+00> : vector<8x8xf32>
    %318 = tpu.matmul %315, %316, %cst_118 {dimension_numbers = #tpu.dot_dimension_numbers<[1], [1], [0], [0], [0, 0, 1, 0], [], []>} : vector<8x16xf32>, vector<8x16xf32>, vector<8x8xf32> -> vector<8x8xf32>
    %cst_119 = arith.constant -1.000000e+30 : f32
    %319 = vector.broadcast %cst_119 : f32 to vector<8x8xf32>
    %320 = arith.select %229, %319, %318 : vector<8x8xi1>, vector<8x8xf32>
    %cst_120 = arith.constant dense<0xFF800000> : vector<8xf32>
    %321 = vector.multi_reduction <maximumf>, %320, %cst_120 [1] : vector<8x8xf32> to vector<8xf32>
    %322 = vector.shape_cast %321 : vector<8xf32> to vector<8x1xf32>
    %323 = vector.broadcast %322 : vector<8x1xf32> to vector<8x8xf32>
    %324 = arith.subf %320, %323 : vector<8x8xf32>
    %325 = math.exp %324 : vector<8x8xf32>
    %cst_121 = arith.constant dense<0.000000e+00> : vector<8xf32>
    %326 = vector.multi_reduction <add>, %325, %cst_121 [1] : vector<8x8xf32> to vector<8xf32>
    %327 = vector.shape_cast %326 : vector<8xf32> to vector<8x1xf32>
    %328 = tpu.reciprocal %327 {approx = true} : vector<8x1xf32> -> vector<8x1xf32>
    %329 = vector.broadcast %328 : vector<8x1xf32> to vector<8x8xf32>
    %330 = arith.mulf %325, %329 : vector<8x8xf32>
    %cst_122 = arith.constant dense<0.000000e+00> : vector<8x16xf32>
    %331 = tpu.matmul %330, %317, %cst_122 {dimension_numbers = #tpu.dot_dimension_numbers<[1], [0], [0], [1], [0, 0, 1, 1], [], []>} : vector<8x8xf32>, vector<8x16xf32>, vector<8x16xf32> -> vector<8x16xf32>
    %332 = vector.extract_strided_slice %224 {offsets = [0, 96], sizes = [8, 16], strides = [1, 1]} : vector<8x128xf32> to vector<8x16xf32>
    %333 = vector.extract_strided_slice %225 {offsets = [0, 96], sizes = [8, 16], strides = [1, 1]} : vector<8x128xf32> to vector<8x16xf32>
    %334 = vector.extract_strided_slice %226 {offsets = [0, 96], sizes = [8, 16], strides = [1, 1]} : vector<8x128xf32> to vector<8x16xf32>
    %cst_123 = arith.constant dense<0.000000e+00> : vector<8x8xf32>
    %335 = tpu.matmul %332, %333, %cst_123 {dimension_numbers = #tpu.dot_dimension_numbers<[1], [1], [0], [0], [0, 0, 1, 0], [], []>} : vector<8x16xf32>, vector<8x16xf32>, vector<8x8xf32> -> vector<8x8xf32>
    %cst_124 = arith.constant -1.000000e+30 : f32
    %336 = vector.broadcast %cst_124 : f32 to vector<8x8xf32>
    %337 = arith.select %229, %336, %335 : vector<8x8xi1>, vector<8x8xf32>
    %cst_125 = arith.constant dense<0xFF800000> : vector<8xf32>
    %338 = vector.multi_reduction <maximumf>, %337, %cst_125 [1] : vector<8x8xf32> to vector<8xf32>
    %339 = vector.shape_cast %338 : vector<8xf32> to vector<8x1xf32>
    %340 = vector.broadcast %339 : vector<8x1xf32> to vector<8x8xf32>
    %341 = arith.subf %337, %340 : vector<8x8xf32>
    %342 = math.exp %341 : vector<8x8xf32>
    %cst_126 = arith.constant dense<0.000000e+00> : vector<8xf32>
    %343 = vector.multi_reduction <add>, %342, %cst_126 [1] : vector<8x8xf32> to vector<8xf32>
    %344 = vector.shape_cast %343 : vector<8xf32> to vector<8x1xf32>
    %345 = tpu.reciprocal %344 {approx = true} : vector<8x1xf32> -> vector<8x1xf32>
    %346 = vector.broadcast %345 : vector<8x1xf32> to vector<8x8xf32>
    %347 = arith.mulf %342, %346 : vector<8x8xf32>
    %cst_127 = arith.constant dense<0.000000e+00> : vector<8x16xf32>
    %348 = tpu.matmul %347, %334, %cst_127 {dimension_numbers = #tpu.dot_dimension_numbers<[1], [0], [0], [1], [0, 0, 1, 1], [], []>} : vector<8x8xf32>, vector<8x16xf32>, vector<8x16xf32> -> vector<8x16xf32>
    %349 = vector.extract_strided_slice %224 {offsets = [0, 112], sizes = [8, 16], strides = [1, 1]} : vector<8x128xf32> to vector<8x16xf32>
    %350 = vector.extract_strided_slice %225 {offsets = [0, 112], sizes = [8, 16], strides = [1, 1]} : vector<8x128xf32> to vector<8x16xf32>
    %351 = vector.extract_strided_slice %226 {offsets = [0, 112], sizes = [8, 16], strides = [1, 1]} : vector<8x128xf32> to vector<8x16xf32>
    %cst_128 = arith.constant dense<0.000000e+00> : vector<8x8xf32>
    %352 = tpu.matmul %349, %350, %cst_128 {dimension_numbers = #tpu.dot_dimension_numbers<[1], [1], [0], [0], [0, 0, 1, 0], [], []>} : vector<8x16xf32>, vector<8x16xf32>, vector<8x8xf32> -> vector<8x8xf32>
    %cst_129 = arith.constant -1.000000e+30 : f32
    %353 = vector.broadcast %cst_129 : f32 to vector<8x8xf32>
    %354 = arith.select %229, %353, %352 : vector<8x8xi1>, vector<8x8xf32>
    %cst_130 = arith.constant dense<0xFF800000> : vector<8xf32>
    %355 = vector.multi_reduction <maximumf>, %354, %cst_130 [1] : vector<8x8xf32> to vector<8xf32>
    %356 = vector.shape_cast %355 : vector<8xf32> to vector<8x1xf32>
    %357 = vector.broadcast %356 : vector<8x1xf32> to vector<8x8xf32>
    %358 = arith.subf %354, %357 : vector<8x8xf32>
    %359 = math.exp %358 : vector<8x8xf32>
    %cst_131 = arith.constant dense<0.000000e+00> : vector<8xf32>
    %360 = vector.multi_reduction <add>, %359, %cst_131 [1] : vector<8x8xf32> to vector<8xf32>
    %361 = vector.shape_cast %360 : vector<8xf32> to vector<8x1xf32>
    %362 = tpu.reciprocal %361 {approx = true} : vector<8x1xf32> -> vector<8x1xf32>
    %363 = vector.broadcast %362 : vector<8x1xf32> to vector<8x8xf32>
    %364 = arith.mulf %359, %363 : vector<8x8xf32>
    %cst_132 = arith.constant dense<0.000000e+00> : vector<8x16xf32>
    %365 = tpu.matmul %364, %351, %cst_132 {dimension_numbers = #tpu.dot_dimension_numbers<[1], [0], [0], [1], [0, 0, 1, 1], [], []>} : vector<8x8xf32>, vector<8x16xf32>, vector<8x16xf32> -> vector<8x16xf32>
    %366 = tpu.concatenate %246, %263, %280, %297, %314, %331, %348, %365 in 1 : vector<8x16xf32>, vector<8x16xf32>, vector<8x16xf32>, vector<8x16xf32>, vector<8x16xf32>, vector<8x16xf32>, vector<8x16xf32>, vector<8x16xf32> -> vector<8x128xf32>
    %367 = arith.truncf %366 : vector<8x128xf32> to vector<8x128xbf16>
    %cst_133 = arith.constant dense<0.000000e+00> : vector<8x128xf32>
    %368 = tpu.matmul %367, %217, %cst_133 {dimension_numbers = #tpu.dot_dimension_numbers<[1], [0], [0], [1], [0, 0, 1, 1], [], []>} : vector<8x128xbf16>, vector<128x128xbf16>, vector<8x128xf32> -> vector<8x128xf32>
    %369 = arith.addf %368, %213 : vector<8x128xf32>
    %c0_134 = arith.constant 0 : index
    %c0_135 = arith.constant 0 : index
    %c0_136 = arith.constant 0 : index
    %370 = vector.load %arg15[%c0_134, %c0_135, %c0_136] : memref<1x1x128xf32, #tpu.memory_space<vmem>>, vector<1x1x128xf32>
    %371 = vector.shape_cast %370 : vector<1x1x128xf32> to vector<1x128xf32>
    %c0_137 = arith.constant 0 : index
    %c0_138 = arith.constant 0 : index
    %c0_139 = arith.constant 0 : index
    %372 = vector.load %arg16[%c0_137, %c0_138, %c0_139] : memref<1x1x128xf32, #tpu.memory_space<vmem>>, vector<1x1x128xf32>
    %373 = vector.shape_cast %372 : vector<1x1x128xf32> to vector<1x128xf32>
    %cst_140 = arith.constant dense<0.000000e+00> : vector<8xf32>
    %374 = vector.multi_reduction <add>, %369, %cst_140 [1] : vector<8x128xf32> to vector<8xf32>
    %375 = vector.shape_cast %374 : vector<8xf32> to vector<8x1xf32>
    %cst_141 = arith.constant 1.280000e+02 : f32
    %376 = vector.broadcast %cst_141 : f32 to vector<8x1xf32>
    %377 = arith.divf %375, %376 : vector<8x1xf32>
    %378 = vector.broadcast %377 : vector<8x1xf32> to vector<8x128xf32>
    %379 = arith.subf %369, %378 : vector<8x128xf32>
    %380 = arith.mulf %379, %379 : vector<8x128xf32>
    %cst_142 = arith.constant dense<0.000000e+00> : vector<8xf32>
    %381 = vector.multi_reduction <add>, %380, %cst_142 [1] : vector<8x128xf32> to vector<8xf32>
    %382 = vector.shape_cast %381 : vector<8xf32> to vector<8x1xf32>
    %cst_143 = arith.constant 1.280000e+02 : f32
    %383 = vector.broadcast %cst_143 : f32 to vector<8x1xf32>
    %384 = arith.divf %382, %383 : vector<8x1xf32>
    %385 = vector.broadcast %377 : vector<8x1xf32> to vector<8x128xf32>
    %386 = arith.subf %369, %385 : vector<8x128xf32>
    %cst_144 = arith.constant 9.99999974E-6 : f32
    %387 = vector.broadcast %cst_144 : f32 to vector<8x1xf32>
    %388 = arith.addf %384, %387 : vector<8x1xf32>
    %389 = math.rsqrt %388 : vector<8x1xf32>
    %390 = vector.broadcast %389 : vector<8x1xf32> to vector<8x128xf32>
    %391 = arith.mulf %386, %390 : vector<8x128xf32>
    %392 = vector.broadcast %371 : vector<1x128xf32> to vector<8x128xf32>
    %393 = arith.mulf %391, %392 : vector<8x128xf32>
    %394 = vector.broadcast %373 : vector<1x128xf32> to vector<8x128xf32>
    %395 = arith.addf %393, %394 : vector<8x128xf32>
    %c0_145 = arith.constant 0 : index
    %c0_146 = arith.constant 0 : index
    %c0_147 = arith.constant 0 : index
    %396 = vector.load %arg17[%c0_145, %c0_146, %c0_147] : memref<1x128x128xbf16, #tpu.memory_space<vmem>>, vector<1x128x128xbf16>
    %397 = vector.shape_cast %396 : vector<1x128x128xbf16> to vector<128x128xbf16>
    %c0_148 = arith.constant 0 : index
    %c0_149 = arith.constant 0 : index
    %c0_150 = arith.constant 0 : index
    %398 = vector.load %arg18[%c0_148, %c0_149, %c0_150] : memref<1x128x256xbf16, #tpu.memory_space<vmem>>, vector<1x128x256xbf16>
    %399 = vector.shape_cast %398 : vector<1x128x256xbf16> to vector<128x256xbf16>
    %c0_151 = arith.constant 0 : index
    %c0_152 = arith.constant 0 : index
    %c0_153 = arith.constant 0 : index
    %400 = vector.load %arg19[%c0_151, %c0_152, %c0_153] : memref<1x128x128xbf16, #tpu.memory_space<vmem>>, vector<1x128x128xbf16>
    %401 = vector.shape_cast %400 : vector<1x128x128xbf16> to vector<128x128xbf16>
    %cst_154 = arith.constant 1.600000e+01 : f32
    %402 = math.sqrt %cst_154 : f32
    %cst_155 = arith.constant 1.000000e+00 : f32
    %403 = arith.divf %cst_155, %402 : f32
    %404 = arith.truncf %395 : vector<8x128xf32> to vector<8x128xbf16>
    %cst_156 = arith.constant dense<0.000000e+00> : vector<8x128xf32>
    %405 = tpu.matmul %404, %397, %cst_156 {dimension_numbers = #tpu.dot_dimension_numbers<[1], [0], [0], [1], [0, 0, 1, 1], [], []>} : vector<8x128xbf16>, vector<128x128xbf16>, vector<8x128xf32> -> vector<8x128xf32>
    %406 = vector.broadcast %403 : f32 to vector<8x128xf32>
    %407 = arith.mulf %405, %406 : vector<8x128xf32>
    %408 = arith.truncf %211 : vector<8x128xf32> to vector<8x128xbf16>
    %cst_157 = arith.constant dense<0.000000e+00> : vector<8x256xf32>
    %409 = tpu.matmul %408, %399, %cst_157 {dimension_numbers = #tpu.dot_dimension_numbers<[1], [0], [0], [1], [0, 0, 1, 1], [], []>} : vector<8x128xbf16>, vector<128x256xbf16>, vector<8x256xf32> -> vector<8x256xf32>
    %410 = vector.extract_strided_slice %409 {offsets = [0, 0], sizes = [8, 128], strides = [1, 1]} : vector<8x256xf32> to vector<8x128xf32>
    %411 = vector.extract_strided_slice %409 {offsets = [0, 128], sizes = [8, 128], strides = [1, 1]} : vector<8x256xf32> to vector<8x128xf32>
    %412 = vector.extract_strided_slice %407 {offsets = [0, 0], sizes = [8, 16], strides = [1, 1]} : vector<8x128xf32> to vector<8x16xf32>
    %413 = vector.extract_strided_slice %410 {offsets = [0, 0], sizes = [8, 16], strides = [1, 1]} : vector<8x128xf32> to vector<8x16xf32>
    %414 = vector.extract_strided_slice %411 {offsets = [0, 0], sizes = [8, 16], strides = [1, 1]} : vector<8x128xf32> to vector<8x16xf32>
    %cst_158 = arith.constant dense<0.000000e+00> : vector<8x8xf32>
    %415 = tpu.matmul %412, %413, %cst_158 {dimension_numbers = #tpu.dot_dimension_numbers<[1], [1], [0], [0], [0, 0, 1, 0], [], []>} : vector<8x16xf32>, vector<8x16xf32>, vector<8x8xf32> -> vector<8x8xf32>
    %cst_159 = arith.constant dense<0xFF800000> : vector<8xf32>
    %416 = vector.multi_reduction <maximumf>, %415, %cst_159 [1] : vector<8x8xf32> to vector<8xf32>
    %417 = vector.shape_cast %416 : vector<8xf32> to vector<8x1xf32>
    %418 = vector.broadcast %417 : vector<8x1xf32> to vector<8x8xf32>
    %419 = arith.subf %415, %418 : vector<8x8xf32>
    %420 = math.exp %419 : vector<8x8xf32>
    %cst_160 = arith.constant dense<0.000000e+00> : vector<8xf32>
    %421 = vector.multi_reduction <add>, %420, %cst_160 [1] : vector<8x8xf32> to vector<8xf32>
    %422 = vector.shape_cast %421 : vector<8xf32> to vector<8x1xf32>
    %423 = tpu.reciprocal %422 {approx = true} : vector<8x1xf32> -> vector<8x1xf32>
    %424 = vector.broadcast %423 : vector<8x1xf32> to vector<8x8xf32>
    %425 = arith.mulf %420, %424 : vector<8x8xf32>
    %cst_161 = arith.constant dense<0.000000e+00> : vector<8x16xf32>
    %426 = tpu.matmul %425, %414, %cst_161 {dimension_numbers = #tpu.dot_dimension_numbers<[1], [0], [0], [1], [0, 0, 1, 1], [], []>} : vector<8x8xf32>, vector<8x16xf32>, vector<8x16xf32> -> vector<8x16xf32>
    %427 = vector.extract_strided_slice %407 {offsets = [0, 16], sizes = [8, 16], strides = [1, 1]} : vector<8x128xf32> to vector<8x16xf32>
    %428 = vector.extract_strided_slice %410 {offsets = [0, 16], sizes = [8, 16], strides = [1, 1]} : vector<8x128xf32> to vector<8x16xf32>
    %429 = vector.extract_strided_slice %411 {offsets = [0, 16], sizes = [8, 16], strides = [1, 1]} : vector<8x128xf32> to vector<8x16xf32>
    %cst_162 = arith.constant dense<0.000000e+00> : vector<8x8xf32>
    %430 = tpu.matmul %427, %428, %cst_162 {dimension_numbers = #tpu.dot_dimension_numbers<[1], [1], [0], [0], [0, 0, 1, 0], [], []>} : vector<8x16xf32>, vector<8x16xf32>, vector<8x8xf32> -> vector<8x8xf32>
    %cst_163 = arith.constant dense<0xFF800000> : vector<8xf32>
    %431 = vector.multi_reduction <maximumf>, %430, %cst_163 [1] : vector<8x8xf32> to vector<8xf32>
    %432 = vector.shape_cast %431 : vector<8xf32> to vector<8x1xf32>
    %433 = vector.broadcast %432 : vector<8x1xf32> to vector<8x8xf32>
    %434 = arith.subf %430, %433 : vector<8x8xf32>
    %435 = math.exp %434 : vector<8x8xf32>
    %cst_164 = arith.constant dense<0.000000e+00> : vector<8xf32>
    %436 = vector.multi_reduction <add>, %435, %cst_164 [1] : vector<8x8xf32> to vector<8xf32>
    %437 = vector.shape_cast %436 : vector<8xf32> to vector<8x1xf32>
    %438 = tpu.reciprocal %437 {approx = true} : vector<8x1xf32> -> vector<8x1xf32>
    %439 = vector.broadcast %438 : vector<8x1xf32> to vector<8x8xf32>
    %440 = arith.mulf %435, %439 : vector<8x8xf32>
    %cst_165 = arith.constant dense<0.000000e+00> : vector<8x16xf32>
    %441 = tpu.matmul %440, %429, %cst_165 {dimension_numbers = #tpu.dot_dimension_numbers<[1], [0], [0], [1], [0, 0, 1, 1], [], []>} : vector<8x8xf32>, vector<8x16xf32>, vector<8x16xf32> -> vector<8x16xf32>
    %442 = vector.extract_strided_slice %407 {offsets = [0, 32], sizes = [8, 16], strides = [1, 1]} : vector<8x128xf32> to vector<8x16xf32>
    %443 = vector.extract_strided_slice %410 {offsets = [0, 32], sizes = [8, 16], strides = [1, 1]} : vector<8x128xf32> to vector<8x16xf32>
    %444 = vector.extract_strided_slice %411 {offsets = [0, 32], sizes = [8, 16], strides = [1, 1]} : vector<8x128xf32> to vector<8x16xf32>
    %cst_166 = arith.constant dense<0.000000e+00> : vector<8x8xf32>
    %445 = tpu.matmul %442, %443, %cst_166 {dimension_numbers = #tpu.dot_dimension_numbers<[1], [1], [0], [0], [0, 0, 1, 0], [], []>} : vector<8x16xf32>, vector<8x16xf32>, vector<8x8xf32> -> vector<8x8xf32>
    %cst_167 = arith.constant dense<0xFF800000> : vector<8xf32>
    %446 = vector.multi_reduction <maximumf>, %445, %cst_167 [1] : vector<8x8xf32> to vector<8xf32>
    %447 = vector.shape_cast %446 : vector<8xf32> to vector<8x1xf32>
    %448 = vector.broadcast %447 : vector<8x1xf32> to vector<8x8xf32>
    %449 = arith.subf %445, %448 : vector<8x8xf32>
    %450 = math.exp %449 : vector<8x8xf32>
    %cst_168 = arith.constant dense<0.000000e+00> : vector<8xf32>
    %451 = vector.multi_reduction <add>, %450, %cst_168 [1] : vector<8x8xf32> to vector<8xf32>
    %452 = vector.shape_cast %451 : vector<8xf32> to vector<8x1xf32>
    %453 = tpu.reciprocal %452 {approx = true} : vector<8x1xf32> -> vector<8x1xf32>
    %454 = vector.broadcast %453 : vector<8x1xf32> to vector<8x8xf32>
    %455 = arith.mulf %450, %454 : vector<8x8xf32>
    %cst_169 = arith.constant dense<0.000000e+00> : vector<8x16xf32>
    %456 = tpu.matmul %455, %444, %cst_169 {dimension_numbers = #tpu.dot_dimension_numbers<[1], [0], [0], [1], [0, 0, 1, 1], [], []>} : vector<8x8xf32>, vector<8x16xf32>, vector<8x16xf32> -> vector<8x16xf32>
    %457 = vector.extract_strided_slice %407 {offsets = [0, 48], sizes = [8, 16], strides = [1, 1]} : vector<8x128xf32> to vector<8x16xf32>
    %458 = vector.extract_strided_slice %410 {offsets = [0, 48], sizes = [8, 16], strides = [1, 1]} : vector<8x128xf32> to vector<8x16xf32>
    %459 = vector.extract_strided_slice %411 {offsets = [0, 48], sizes = [8, 16], strides = [1, 1]} : vector<8x128xf32> to vector<8x16xf32>
    %cst_170 = arith.constant dense<0.000000e+00> : vector<8x8xf32>
    %460 = tpu.matmul %457, %458, %cst_170 {dimension_numbers = #tpu.dot_dimension_numbers<[1], [1], [0], [0], [0, 0, 1, 0], [], []>} : vector<8x16xf32>, vector<8x16xf32>, vector<8x8xf32> -> vector<8x8xf32>
    %cst_171 = arith.constant dense<0xFF800000> : vector<8xf32>
    %461 = vector.multi_reduction <maximumf>, %460, %cst_171 [1] : vector<8x8xf32> to vector<8xf32>
    %462 = vector.shape_cast %461 : vector<8xf32> to vector<8x1xf32>
    %463 = vector.broadcast %462 : vector<8x1xf32> to vector<8x8xf32>
    %464 = arith.subf %460, %463 : vector<8x8xf32>
    %465 = math.exp %464 : vector<8x8xf32>
    %cst_172 = arith.constant dense<0.000000e+00> : vector<8xf32>
    %466 = vector.multi_reduction <add>, %465, %cst_172 [1] : vector<8x8xf32> to vector<8xf32>
    %467 = vector.shape_cast %466 : vector<8xf32> to vector<8x1xf32>
    %468 = tpu.reciprocal %467 {approx = true} : vector<8x1xf32> -> vector<8x1xf32>
    %469 = vector.broadcast %468 : vector<8x1xf32> to vector<8x8xf32>
    %470 = arith.mulf %465, %469 : vector<8x8xf32>
    %cst_173 = arith.constant dense<0.000000e+00> : vector<8x16xf32>
    %471 = tpu.matmul %470, %459, %cst_173 {dimension_numbers = #tpu.dot_dimension_numbers<[1], [0], [0], [1], [0, 0, 1, 1], [], []>} : vector<8x8xf32>, vector<8x16xf32>, vector<8x16xf32> -> vector<8x16xf32>
    %472 = vector.extract_strided_slice %407 {offsets = [0, 64], sizes = [8, 16], strides = [1, 1]} : vector<8x128xf32> to vector<8x16xf32>
    %473 = vector.extract_strided_slice %410 {offsets = [0, 64], sizes = [8, 16], strides = [1, 1]} : vector<8x128xf32> to vector<8x16xf32>
    %474 = vector.extract_strided_slice %411 {offsets = [0, 64], sizes = [8, 16], strides = [1, 1]} : vector<8x128xf32> to vector<8x16xf32>
    %cst_174 = arith.constant dense<0.000000e+00> : vector<8x8xf32>
    %475 = tpu.matmul %472, %473, %cst_174 {dimension_numbers = #tpu.dot_dimension_numbers<[1], [1], [0], [0], [0, 0, 1, 0], [], []>} : vector<8x16xf32>, vector<8x16xf32>, vector<8x8xf32> -> vector<8x8xf32>
    %cst_175 = arith.constant dense<0xFF800000> : vector<8xf32>
    %476 = vector.multi_reduction <maximumf>, %475, %cst_175 [1] : vector<8x8xf32> to vector<8xf32>
    %477 = vector.shape_cast %476 : vector<8xf32> to vector<8x1xf32>
    %478 = vector.broadcast %477 : vector<8x1xf32> to vector<8x8xf32>
    %479 = arith.subf %475, %478 : vector<8x8xf32>
    %480 = math.exp %479 : vector<8x8xf32>
    %cst_176 = arith.constant dense<0.000000e+00> : vector<8xf32>
    %481 = vector.multi_reduction <add>, %480, %cst_176 [1] : vector<8x8xf32> to vector<8xf32>
    %482 = vector.shape_cast %481 : vector<8xf32> to vector<8x1xf32>
    %483 = tpu.reciprocal %482 {approx = true} : vector<8x1xf32> -> vector<8x1xf32>
    %484 = vector.broadcast %483 : vector<8x1xf32> to vector<8x8xf32>
    %485 = arith.mulf %480, %484 : vector<8x8xf32>
    %cst_177 = arith.constant dense<0.000000e+00> : vector<8x16xf32>
    %486 = tpu.matmul %485, %474, %cst_177 {dimension_numbers = #tpu.dot_dimension_numbers<[1], [0], [0], [1], [0, 0, 1, 1], [], []>} : vector<8x8xf32>, vector<8x16xf32>, vector<8x16xf32> -> vector<8x16xf32>
    %487 = vector.extract_strided_slice %407 {offsets = [0, 80], sizes = [8, 16], strides = [1, 1]} : vector<8x128xf32> to vector<8x16xf32>
    %488 = vector.extract_strided_slice %410 {offsets = [0, 80], sizes = [8, 16], strides = [1, 1]} : vector<8x128xf32> to vector<8x16xf32>
    %489 = vector.extract_strided_slice %411 {offsets = [0, 80], sizes = [8, 16], strides = [1, 1]} : vector<8x128xf32> to vector<8x16xf32>
    %cst_178 = arith.constant dense<0.000000e+00> : vector<8x8xf32>
    %490 = tpu.matmul %487, %488, %cst_178 {dimension_numbers = #tpu.dot_dimension_numbers<[1], [1], [0], [0], [0, 0, 1, 0], [], []>} : vector<8x16xf32>, vector<8x16xf32>, vector<8x8xf32> -> vector<8x8xf32>
    %cst_179 = arith.constant dense<0xFF800000> : vector<8xf32>
    %491 = vector.multi_reduction <maximumf>, %490, %cst_179 [1] : vector<8x8xf32> to vector<8xf32>
    %492 = vector.shape_cast %491 : vector<8xf32> to vector<8x1xf32>
    %493 = vector.broadcast %492 : vector<8x1xf32> to vector<8x8xf32>
    %494 = arith.subf %490, %493 : vector<8x8xf32>
    %495 = math.exp %494 : vector<8x8xf32>
    %cst_180 = arith.constant dense<0.000000e+00> : vector<8xf32>
    %496 = vector.multi_reduction <add>, %495, %cst_180 [1] : vector<8x8xf32> to vector<8xf32>
    %497 = vector.shape_cast %496 : vector<8xf32> to vector<8x1xf32>
    %498 = tpu.reciprocal %497 {approx = true} : vector<8x1xf32> -> vector<8x1xf32>
    %499 = vector.broadcast %498 : vector<8x1xf32> to vector<8x8xf32>
    %500 = arith.mulf %495, %499 : vector<8x8xf32>
    %cst_181 = arith.constant dense<0.000000e+00> : vector<8x16xf32>
    %501 = tpu.matmul %500, %489, %cst_181 {dimension_numbers = #tpu.dot_dimension_numbers<[1], [0], [0], [1], [0, 0, 1, 1], [], []>} : vector<8x8xf32>, vector<8x16xf32>, vector<8x16xf32> -> vector<8x16xf32>
    %502 = vector.extract_strided_slice %407 {offsets = [0, 96], sizes = [8, 16], strides = [1, 1]} : vector<8x128xf32> to vector<8x16xf32>
    %503 = vector.extract_strided_slice %410 {offsets = [0, 96], sizes = [8, 16], strides = [1, 1]} : vector<8x128xf32> to vector<8x16xf32>
    %504 = vector.extract_strided_slice %411 {offsets = [0, 96], sizes = [8, 16], strides = [1, 1]} : vector<8x128xf32> to vector<8x16xf32>
    %cst_182 = arith.constant dense<0.000000e+00> : vector<8x8xf32>
    %505 = tpu.matmul %502, %503, %cst_182 {dimension_numbers = #tpu.dot_dimension_numbers<[1], [1], [0], [0], [0, 0, 1, 0], [], []>} : vector<8x16xf32>, vector<8x16xf32>, vector<8x8xf32> -> vector<8x8xf32>
    %cst_183 = arith.constant dense<0xFF800000> : vector<8xf32>
    %506 = vector.multi_reduction <maximumf>, %505, %cst_183 [1] : vector<8x8xf32> to vector<8xf32>
    %507 = vector.shape_cast %506 : vector<8xf32> to vector<8x1xf32>
    %508 = vector.broadcast %507 : vector<8x1xf32> to vector<8x8xf32>
    %509 = arith.subf %505, %508 : vector<8x8xf32>
    %510 = math.exp %509 : vector<8x8xf32>
    %cst_184 = arith.constant dense<0.000000e+00> : vector<8xf32>
    %511 = vector.multi_reduction <add>, %510, %cst_184 [1] : vector<8x8xf32> to vector<8xf32>
    %512 = vector.shape_cast %511 : vector<8xf32> to vector<8x1xf32>
    %513 = tpu.reciprocal %512 {approx = true} : vector<8x1xf32> -> vector<8x1xf32>
    %514 = vector.broadcast %513 : vector<8x1xf32> to vector<8x8xf32>
    %515 = arith.mulf %510, %514 : vector<8x8xf32>
    %cst_185 = arith.constant dense<0.000000e+00> : vector<8x16xf32>
    %516 = tpu.matmul %515, %504, %cst_185 {dimension_numbers = #tpu.dot_dimension_numbers<[1], [0], [0], [1], [0, 0, 1, 1], [], []>} : vector<8x8xf32>, vector<8x16xf32>, vector<8x16xf32> -> vector<8x16xf32>
    %517 = vector.extract_strided_slice %407 {offsets = [0, 112], sizes = [8, 16], strides = [1, 1]} : vector<8x128xf32> to vector<8x16xf32>
    %518 = vector.extract_strided_slice %410 {offsets = [0, 112], sizes = [8, 16], strides = [1, 1]} : vector<8x128xf32> to vector<8x16xf32>
    %519 = vector.extract_strided_slice %411 {offsets = [0, 112], sizes = [8, 16], strides = [1, 1]} : vector<8x128xf32> to vector<8x16xf32>
    %cst_186 = arith.constant dense<0.000000e+00> : vector<8x8xf32>
    %520 = tpu.matmul %517, %518, %cst_186 {dimension_numbers = #tpu.dot_dimension_numbers<[1], [1], [0], [0], [0, 0, 1, 0], [], []>} : vector<8x16xf32>, vector<8x16xf32>, vector<8x8xf32> -> vector<8x8xf32>
    %cst_187 = arith.constant dense<0xFF800000> : vector<8xf32>
    %521 = vector.multi_reduction <maximumf>, %520, %cst_187 [1] : vector<8x8xf32> to vector<8xf32>
    %522 = vector.shape_cast %521 : vector<8xf32> to vector<8x1xf32>
    %523 = vector.broadcast %522 : vector<8x1xf32> to vector<8x8xf32>
    %524 = arith.subf %520, %523 : vector<8x8xf32>
    %525 = math.exp %524 : vector<8x8xf32>
    %cst_188 = arith.constant dense<0.000000e+00> : vector<8xf32>
    %526 = vector.multi_reduction <add>, %525, %cst_188 [1] : vector<8x8xf32> to vector<8xf32>
    %527 = vector.shape_cast %526 : vector<8xf32> to vector<8x1xf32>
    %528 = tpu.reciprocal %527 {approx = true} : vector<8x1xf32> -> vector<8x1xf32>
    %529 = vector.broadcast %528 : vector<8x1xf32> to vector<8x8xf32>
    %530 = arith.mulf %525, %529 : vector<8x8xf32>
    %cst_189 = arith.constant dense<0.000000e+00> : vector<8x16xf32>
    %531 = tpu.matmul %530, %519, %cst_189 {dimension_numbers = #tpu.dot_dimension_numbers<[1], [0], [0], [1], [0, 0, 1, 1], [], []>} : vector<8x8xf32>, vector<8x16xf32>, vector<8x16xf32> -> vector<8x16xf32>
    %532 = tpu.concatenate %426, %441, %456, %471, %486, %501, %516, %531 in 1 : vector<8x16xf32>, vector<8x16xf32>, vector<8x16xf32>, vector<8x16xf32>, vector<8x16xf32>, vector<8x16xf32>, vector<8x16xf32>, vector<8x16xf32> -> vector<8x128xf32>
    %533 = arith.truncf %532 : vector<8x128xf32> to vector<8x128xbf16>
    %cst_190 = arith.constant dense<0.000000e+00> : vector<8x128xf32>
    %534 = tpu.matmul %533, %401, %cst_190 {dimension_numbers = #tpu.dot_dimension_numbers<[1], [0], [0], [1], [0, 0, 1, 1], [], []>} : vector<8x128xbf16>, vector<128x128xbf16>, vector<8x128xf32> -> vector<8x128xf32>
    %535 = arith.addf %534, %395 : vector<8x128xf32>
    %c0_191 = arith.constant 0 : index
    %c0_192 = arith.constant 0 : index
    %c0_193 = arith.constant 0 : index
    %536 = vector.load %arg20[%c0_191, %c0_192, %c0_193] : memref<1x128x256xbf16, #tpu.memory_space<vmem>>, vector<1x128x256xbf16>
    %537 = vector.shape_cast %536 : vector<1x128x256xbf16> to vector<128x256xbf16>
    %c0_194 = arith.constant 0 : index
    %c0_195 = arith.constant 0 : index
    %c0_196 = arith.constant 0 : index
    %538 = vector.load %arg21[%c0_194, %c0_195, %c0_196] : memref<1x1x256xf32, #tpu.memory_space<vmem>>, vector<1x1x256xf32>
    %539 = vector.shape_cast %538 : vector<1x1x256xf32> to vector<1x256xf32>
    %c0_197 = arith.constant 0 : index
    %c0_198 = arith.constant 0 : index
    %c0_199 = arith.constant 0 : index
    %540 = vector.load %arg22[%c0_197, %c0_198, %c0_199] : memref<1x256x128xbf16, #tpu.memory_space<vmem>>, vector<1x256x128xbf16>
    %541 = vector.shape_cast %540 : vector<1x256x128xbf16> to vector<256x128xbf16>
    %c0_200 = arith.constant 0 : index
    %c0_201 = arith.constant 0 : index
    %c0_202 = arith.constant 0 : index
    %542 = vector.load %arg23[%c0_200, %c0_201, %c0_202] : memref<1x1x128xf32, #tpu.memory_space<vmem>>, vector<1x1x128xf32>
    %543 = vector.shape_cast %542 : vector<1x1x128xf32> to vector<1x128xf32>
    %544 = arith.truncf %535 : vector<8x128xf32> to vector<8x128xbf16>
    %cst_203 = arith.constant dense<0.000000e+00> : vector<8x256xf32>
    %545 = tpu.matmul %544, %537, %cst_203 {dimension_numbers = #tpu.dot_dimension_numbers<[1], [0], [0], [1], [0, 0, 1, 1], [], []>} : vector<8x128xbf16>, vector<128x256xbf16>, vector<8x256xf32> -> vector<8x256xf32>
    %546 = vector.broadcast %539 : vector<1x256xf32> to vector<8x256xf32>
    %547 = arith.addf %545, %546 : vector<8x256xf32>
    %cst_204 = arith.constant 0.000000e+00 : f32
    %548 = vector.broadcast %cst_204 : f32 to vector<8x256xf32>
    %549 = arith.maximumf %547, %548 : vector<8x256xf32>
    %550 = arith.truncf %549 : vector<8x256xf32> to vector<8x256xbf16>
    %cst_205 = arith.constant dense<0.000000e+00> : vector<8x128xf32>
    %551 = tpu.matmul %550, %541, %cst_205 {dimension_numbers = #tpu.dot_dimension_numbers<[1], [0], [0], [1], [0, 0, 1, 1], [], []>} : vector<8x256xbf16>, vector<256x128xbf16>, vector<8x128xf32> -> vector<8x128xf32>
    %552 = vector.broadcast %543 : vector<1x128xf32> to vector<8x128xf32>
    %553 = arith.addf %551, %552 : vector<8x128xf32>
    %554 = arith.addf %553, %535 : vector<8x128xf32>
    %c0_206 = arith.constant 0 : index
    %c0_207 = arith.constant 0 : index
    %c0_208 = arith.constant 0 : index
    %555 = vector.load %arg24[%c0_206, %c0_207, %c0_208] : memref<1x1x128xf32, #tpu.memory_space<vmem>>, vector<1x1x128xf32>
    %556 = vector.shape_cast %555 : vector<1x1x128xf32> to vector<1x128xf32>
    %c0_209 = arith.constant 0 : index
    %c0_210 = arith.constant 0 : index
    %c0_211 = arith.constant 0 : index
    %557 = vector.load %arg25[%c0_209, %c0_210, %c0_211] : memref<1x1x128xf32, #tpu.memory_space<vmem>>, vector<1x1x128xf32>
    %558 = vector.shape_cast %557 : vector<1x1x128xf32> to vector<1x128xf32>
    %cst_212 = arith.constant dense<0.000000e+00> : vector<8xf32>
    %559 = vector.multi_reduction <add>, %554, %cst_212 [1] : vector<8x128xf32> to vector<8xf32>
    %560 = vector.shape_cast %559 : vector<8xf32> to vector<8x1xf32>
    %cst_213 = arith.constant 1.280000e+02 : f32
    %561 = vector.broadcast %cst_213 : f32 to vector<8x1xf32>
    %562 = arith.divf %560, %561 : vector<8x1xf32>
    %563 = vector.broadcast %562 : vector<8x1xf32> to vector<8x128xf32>
    %564 = arith.subf %554, %563 : vector<8x128xf32>
    %565 = arith.mulf %564, %564 : vector<8x128xf32>
    %cst_214 = arith.constant dense<0.000000e+00> : vector<8xf32>
    %566 = vector.multi_reduction <add>, %565, %cst_214 [1] : vector<8x128xf32> to vector<8xf32>
    %567 = vector.shape_cast %566 : vector<8xf32> to vector<8x1xf32>
    %cst_215 = arith.constant 1.280000e+02 : f32
    %568 = vector.broadcast %cst_215 : f32 to vector<8x1xf32>
    %569 = arith.divf %567, %568 : vector<8x1xf32>
    %570 = vector.broadcast %562 : vector<8x1xf32> to vector<8x128xf32>
    %571 = arith.subf %554, %570 : vector<8x128xf32>
    %cst_216 = arith.constant 9.99999974E-6 : f32
    %572 = vector.broadcast %cst_216 : f32 to vector<8x1xf32>
    %573 = arith.addf %569, %572 : vector<8x1xf32>
    %574 = math.rsqrt %573 : vector<8x1xf32>
    %575 = vector.broadcast %574 : vector<8x1xf32> to vector<8x128xf32>
    %576 = arith.mulf %571, %575 : vector<8x128xf32>
    %577 = vector.broadcast %556 : vector<1x128xf32> to vector<8x128xf32>
    %578 = arith.mulf %576, %577 : vector<8x128xf32>
    %579 = vector.broadcast %558 : vector<1x128xf32> to vector<8x128xf32>
    %580 = arith.addf %578, %579 : vector<8x128xf32>
    %c0_217 = arith.constant 0 : index
    %c0_218 = arith.constant 0 : index
    %581 = vector.load %arg30[%c0_217, %c0_218] : memref<8x128xf32, #tpu.memory_space<vmem>>, vector<8x128xf32>
    tpu.vector_store %arg30[%c0_217, %c0_218], %580 {strides = array<i32>} : memref<8x128xf32, #tpu.memory_space<vmem>>, vector<8x128xf32>,
    %c1_i32 = arith.constant 1 : i32
    %582 = arith.cmpi eq, %arg0, %c1_i32 : i32
    %583 = arith.extui %582 : i1 to i32
    %c0_i32_219 = arith.constant 0 : i32
    %584 = arith.cmpi ne, %583, %c0_i32_219 : i32
    scf.if %584 {
      %585 = arith.truncf %580 : vector<8x128xf32> to vector<8x128xbf16>
      %c0_220 = arith.constant 0 : index
      %c0_221 = arith.constant 0 : index
      %586 = vector.load %arg26[%c0_220, %c0_221] : memref<128x128xbf16, #tpu.memory_space<vmem>>, vector<128x128xbf16>
      %cst_222 = arith.constant dense<0.000000e+00> : vector<8x128xf32>
      %587 = tpu.matmul %585, %586, %cst_222 {dimension_numbers = #tpu.dot_dimension_numbers<[1], [0], [0], [1], [0, 0, 1, 1], [], []>} : vector<8x128xbf16>, vector<128x128xbf16>, vector<8x128xf32> -> vector<8x128xf32>
      %c0_223 = arith.constant 0 : index
      %c0_224 = arith.constant 0 : index
      %588 = vector.load %arg27[%c0_223, %c0_224] : memref<1x128xf32, #tpu.memory_space<vmem>>, vector<1x128xf32>
      %589 = vector.broadcast %588 : vector<1x128xf32> to vector<8x128xf32>
      %590 = arith.addf %587, %589 : vector<8x128xf32>
      %cst_225 = arith.constant dense<0xFF800000> : vector<8xf32>
      %591 = vector.multi_reduction <maximumf>, %590, %cst_225 [1] : vector<8x128xf32> to vector<8xf32>
      %592 = vector.shape_cast %591 : vector<8xf32> to vector<8x1xf32>
      %593 = vector.broadcast %592 : vector<8x1xf32> to vector<8x128xf32>
      %594 = arith.subf %590, %593 : vector<8x128xf32>
      %595 = math.exp %594 : vector<8x128xf32>
      %cst_226 = arith.constant dense<0.000000e+00> : vector<8xf32>
      %596 = vector.multi_reduction <add>, %595, %cst_226 [1] : vector<8x128xf32> to vector<8xf32>
      %597 = vector.shape_cast %596 : vector<8xf32> to vector<8x1xf32>
      %598 = vector.broadcast %597 : vector<8x1xf32> to vector<8x128xf32>
      %599 = arith.divf %595, %598 : vector<8x128xf32>
      %c0_227 = arith.constant 0 : index
      %c0_228 = arith.constant 0 : index
      %600 = vector.load %arg28[%c0_227, %c0_228] : memref<8x128xf32, #tpu.memory_space<vmem>>, vector<8x128xf32>
      tpu.vector_store %arg28[%c0_227, %c0_228], %599 {strides = array<i32>} : memref<8x128xf32, #tpu.memory_space<vmem>>, vector<8x128xf32>,
    } else {
    }
    return
  }
  func.func @transform_0(%arg0: i32) -> (i32, i32) {
    %c0_i32 = arith.constant 0 : i32
    %c0_i32_0 = arith.constant 0 : i32
    %c0_i32_1 = arith.constant 0 : i32
    return %c0_i32, %c0_i32_0 : i32, i32
  }
  func.func @transform_1(%arg0: i32) -> (i32, i32) {
    %c0_i32 = arith.constant 0 : i32
    %c0_i32_0 = arith.constant 0 : i32
    %c0_i32_1 = arith.constant 0 : i32
    return %c0_i32, %c0_i32_0 : i32, i32
  }
  func.func @transform_2(%arg0: i32) -> (i32, i32, i32) {
    %c0_i32 = arith.constant 0 : i32
    %c0_i32_0 = arith.constant 0 : i32
    %c0_i32_1 = arith.constant 0 : i32
    return %arg0, %c0_i32, %c0_i32_0 : i32, i32, i32
  }
  func.func @transform_3(%arg0: i32) -> (i32, i32, i32) {
    %c0_i32 = arith.constant 0 : i32
    %c0_i32_0 = arith.constant 0 : i32
    %c0_i32_1 = arith.constant 0 : i32
    return %arg0, %c0_i32, %c0_i32_0 : i32, i32, i32
  }
  func.func @transform_4(%arg0: i32) -> (i32, i32, i32) {
    %c0_i32 = arith.constant 0 : i32
    %c0_i32_0 = arith.constant 0 : i32
    %c0_i32_1 = arith.constant 0 : i32
    return %arg0, %c0_i32, %c0_i32_0 : i32, i32, i32
  }
  func.func @transform_5(%arg0: i32) -> (i32, i32, i32) {
    %c0_i32 = arith.constant 0 : i32
    %c0_i32_0 = arith.constant 0 : i32
    %c0_i32_1 = arith.constant 0 : i32
    return %arg0, %c0_i32, %c0_i32_0 : i32, i32, i32
  }
  func.func @transform_6(%arg0: i32) -> (i32, i32, i32) {
    %c0_i32 = arith.constant 0 : i32
    %c0_i32_0 = arith.constant 0 : i32
    %c0_i32_1 = arith.constant 0 : i32
    return %arg0, %c0_i32, %c0_i32_0 : i32, i32, i32
  }
  func.func @transform_7(%arg0: i32) -> (i32, i32, i32) {
    %c0_i32 = arith.constant 0 : i32
    %c0_i32_0 = arith.constant 0 : i32
    %c0_i32_1 = arith.constant 0 : i32
    return %arg0, %c0_i32, %c0_i32_0 : i32, i32, i32
  }
  func.func @transform_8(%arg0: i32) -> (i32, i32, i32) {
    %c0_i32 = arith.constant 0 : i32
    %c0_i32_0 = arith.constant 0 : i32
    %c0_i32_1 = arith.constant 0 : i32
    return %arg0, %c0_i32, %c0_i32_0 : i32, i32, i32
  }
  func.func @transform_9(%arg0: i32) -> (i32, i32, i32) {
    %c0_i32 = arith.constant 0 : i32
    %c0_i32_0 = arith.constant 0 : i32
    %c0_i32_1 = arith.constant 0 : i32
    return %arg0, %c0_i32, %c0_i32_0 : i32, i32, i32
  }
  func.func @transform_10(%arg0: i32) -> (i32, i32, i32) {
    %c0_i32 = arith.constant 0 : i32
    %c0_i32_0 = arith.constant 0 : i32
    %c0_i32_1 = arith.constant 0 : i32
    return %arg0, %c0_i32, %c0_i32_0 : i32, i32, i32
  }
  func.func @transform_11(%arg0: i32) -> (i32, i32, i32) {
    %c0_i32 = arith.constant 0 : i32
    %c0_i32_0 = arith.constant 0 : i32
    %c0_i32_1 = arith.constant 0 : i32
    return %arg0, %c0_i32, %c0_i32_0 : i32, i32, i32
  }
  func.func @transform_12(%arg0: i32) -> (i32, i32, i32) {
    %c0_i32 = arith.constant 0 : i32
    %c0_i32_0 = arith.constant 0 : i32
    %c0_i32_1 = arith.constant 0 : i32
    return %arg0, %c0_i32, %c0_i32_0 : i32, i32, i32
  }
  func.func @transform_13(%arg0: i32) -> (i32, i32, i32) {
    %c0_i32 = arith.constant 0 : i32
    %c0_i32_0 = arith.constant 0 : i32
    %c0_i32_1 = arith.constant 0 : i32
    return %arg0, %c0_i32, %c0_i32_0 : i32, i32, i32
  }
  func.func @transform_14(%arg0: i32) -> (i32, i32, i32) {
    %c0_i32 = arith.constant 0 : i32
    %c0_i32_0 = arith.constant 0 : i32
    %c0_i32_1 = arith.constant 0 : i32
    return %arg0, %c0_i32, %c0_i32_0 : i32, i32, i32
  }
  func.func @transform_15(%arg0: i32) -> (i32, i32, i32) {
    %c0_i32 = arith.constant 0 : i32
    %c0_i32_0 = arith.constant 0 : i32
    %c0_i32_1 = arith.constant 0 : i32
    return %arg0, %c0_i32, %c0_i32_0 : i32, i32, i32
  }
  func.func @transform_16(%arg0: i32) -> (i32, i32, i32) {
    %c0_i32 = arith.constant 0 : i32
    %c0_i32_0 = arith.constant 0 : i32
    %c0_i32_1 = arith.constant 0 : i32
    return %arg0, %c0_i32, %c0_i32_0 : i32, i32, i32
  }
  func.func @transform_17(%arg0: i32) -> (i32, i32, i32) {
    %c0_i32 = arith.constant 0 : i32
    %c0_i32_0 = arith.constant 0 : i32
    %c0_i32_1 = arith.constant 0 : i32
    return %arg0, %c0_i32, %c0_i32_0 : i32, i32, i32
  }
  func.func @transform_18(%arg0: i32) -> (i32, i32, i32) {
    %c0_i32 = arith.constant 0 : i32
    %c0_i32_0 = arith.constant 0 : i32
    %c0_i32_1 = arith.constant 0 : i32
    return %arg0, %c0_i32, %c0_i32_0 : i32, i32, i32
  }
  func.func @transform_19(%arg0: i32) -> (i32, i32, i32) {
    %c0_i32 = arith.constant 0 : i32
    %c0_i32_0 = arith.constant 0 : i32
    %c0_i32_1 = arith.constant 0 : i32
    return %arg0, %c0_i32, %c0_i32_0 : i32, i32, i32
  }
  func.func @transform_20(%arg0: i32) -> (i32, i32, i32) {
    %c0_i32 = arith.constant 0 : i32
    %c0_i32_0 = arith.constant 0 : i32
    %c0_i32_1 = arith.constant 0 : i32
    return %arg0, %c0_i32, %c0_i32_0 : i32, i32, i32
  }
  func.func @transform_21(%arg0: i32) -> (i32, i32, i32) {
    %c0_i32 = arith.constant 0 : i32
    %c0_i32_0 = arith.constant 0 : i32
    %c0_i32_1 = arith.constant 0 : i32
    return %arg0, %c0_i32, %c0_i32_0 : i32, i32, i32
  }
  func.func @transform_22(%arg0: i32) -> (i32, i32, i32) {
    %c0_i32 = arith.constant 0 : i32
    %c0_i32_0 = arith.constant 0 : i32
    %c0_i32_1 = arith.constant 0 : i32
    return %arg0, %c0_i32, %c0_i32_0 : i32, i32, i32
  }
  func.func @transform_23(%arg0: i32) -> (i32, i32, i32) {
    %c0_i32 = arith.constant 0 : i32
    %c0_i32_0 = arith.constant 0 : i32
    %c0_i32_1 = arith.constant 0 : i32
    return %arg0, %c0_i32, %c0_i32_0 : i32, i32, i32
  }
  func.func @transform_24(%arg0: i32) -> (i32, i32, i32) {
    %c0_i32 = arith.constant 0 : i32
    %c0_i32_0 = arith.constant 0 : i32
    %c0_i32_1 = arith.constant 0 : i32
    return %arg0, %c0_i32, %c0_i32_0 : i32, i32, i32
  }
  func.func @transform_25(%arg0: i32) -> (i32, i32) {
    %c0_i32 = arith.constant 0 : i32
    %c0_i32_0 = arith.constant 0 : i32
    %c0_i32_1 = arith.constant 0 : i32
    return %c0_i32, %c0_i32_0 : i32, i32
  }
  func.func @transform_26(%arg0: i32) -> (i32, i32) {
    %c0_i32 = arith.constant 0 : i32
    %c0_i32_0 = arith.constant 0 : i32
    %c0_i32_1 = arith.constant 0 : i32
    return %c0_i32, %c0_i32_0 : i32, i32
  }
  func.func @transform_27(%arg0: i32) -> (i32, i32) {
    %c0_i32 = arith.constant 0 : i32
    %c0_i32_0 = arith.constant 0 : i32
    %c0_i32_1 = arith.constant 0 : i32
    return %c0_i32, %c0_i32_0 : i32, i32
  }
}

</mosaic_0001>

<llo_original>
// kernel: transformer_forward.1
$region0: #{transformer_forward.1}
  #allocation0 [shape = 'u32[]', space=smem, size = 0x4, offset = 0x4, fixed_abs, tag = 'smem constant byte address 0x4 - core index']
  #allocation1 [shape = 'u32[144,128]{1,0:T(1,128)}', space=vmem, size = 0x12000, scoped, tag = 'internal scratch']
  #allocation2 [shape = 'f32[8,128]{1,0:T(8,128)}', space=vmem, size = 0x1000, scoped, tag = 'scratch operand']
  #allocation3 [shape = 'f32[8,128]{1,0:T(8,128)}', space=vmem, size = 0x1000, scoped, tag = 'scratch operand']
  %s0 = inlined_call_operand.vmem [shape: f32[8,128], index: 0, kind: input, shape index: {}]
  %s1 = inlined_call_operand.vmem [shape: f32[8,128], index: 1, kind: input, shape index: {}]
  %s2 = inlined_call_operand.hbm [shape: bf16[2,128,384], index: 2, kind: input, shape index: {}]
  %s3 = inlined_call_operand.hbm [shape: bf16[2,128,128], index: 3, kind: input, shape index: {}]
  %s4 = inlined_call_operand.vmem [shape: f32[2,1,128], index: 4, kind: input, shape index: {}]
  %s5 = inlined_call_operand.vmem [shape: f32[2,1,128], index: 5, kind: input, shape index: {}]
  %s6 = inlined_call_operand.vmem [shape: bf16[2,128,256], index: 6, kind: input, shape index: {}]
  %s7 = inlined_call_operand.vmem [shape: f32[2,1,256], index: 7, kind: input, shape index: {}]
  %s8 = inlined_call_operand.hbm [shape: bf16[2,256,128], index: 8, kind: input, shape index: {}]
  %s9 = inlined_call_operand.vmem [shape: f32[2,1,128], index: 9, kind: input, shape index: {}]
  %s10 = inlined_call_operand.vmem [shape: f32[2,1,128], index: 10, kind: input, shape index: {}]
  %s11 = inlined_call_operand.vmem [shape: f32[2,1,128], index: 11, kind: input, shape index: {}]
  %s12 = inlined_call_operand.hbm [shape: bf16[2,128,384], index: 12, kind: input, shape index: {}]
  %s13 = inlined_call_operand.hbm [shape: bf16[2,128,128], index: 13, kind: input, shape index: {}]
  %s14 = inlined_call_operand.vmem [shape: f32[2,1,128], index: 14, kind: input, shape index: {}]
  %s15 = inlined_call_operand.vmem [shape: f32[2,1,128], index: 15, kind: input, shape index: {}]
  %s16 = inlined_call_operand.hbm [shape: bf16[2,128,128], index: 16, kind: input, shape index: {}]
  %s17 = inlined_call_operand.hbm [shape: bf16[2,128,256], index: 17, kind: input, shape index: {}]
  %s18 = inlined_call_operand.hbm [shape: bf16[2,128,128], index: 18, kind: input, shape index: {}]
  %s19 = inlined_call_operand.hbm [shape: bf16[2,128,256], index: 19, kind: input, shape index: {}]
  %s20 = inlined_call_operand.vmem [shape: f32[2,1,256], index: 20, kind: input, shape index: {}]
  %s21 = inlined_call_operand.hbm [shape: bf16[2,256,128], index: 21, kind: input, shape index: {}]
  %s22 = inlined_call_operand.hbm [shape: f32[2,1,128], index: 22, kind: input, shape index: {}]
  %s23 = inlined_call_operand.hbm [shape: f32[2,1,128], index: 23, kind: input, shape index: {}]
  %s24 = inlined_call_operand.hbm [shape: f32[2,1,128], index: 24, kind: input, shape index: {}]
  %s25 = inlined_call_operand.hbm [shape: bf16[128,128], index: 25, kind: input, shape index: {}]
  %s26 = inlined_call_operand.vmem [shape: f32[1,128], index: 26, kind: input, shape index: {}]
  %s27 = inlined_call_operand.hbm [shape: f32[8,128], index: 27, kind: output, shape index: {}]
  %s28 = sld [smem:[#allocation0]]
  $region205: #{transformer_forward.1} parent=0
    _
  %s30 = ssub.s32 1, %s28
  %s31 = scalar_select 0, %s30, %s28
  $region1: #{transformer_forward.1} parent=0
    #allocation4 [shape = 'u8[196608]{0}', space=vmem, size = 0x30000, scoped, tag = 'input window, operand 2']
    #allocation5 [shape = 's32[2]{0}', space=sflag, size = 0x8, scoped, tag = 'scoped memory for transformer_forward.1']
    #allocation6 [shape = 's32[2]{0}', space=sflag, size = 0x8, scoped, tag = 'scoped memory for transformer_forward.1']
    #allocation7 [shape = 'u8[65536]{0}', space=vmem, size = 0x10000, scoped, tag = 'input window, operand 3']
    #allocation8 [shape = 's32[2]{0}', space=sflag, size = 0x8, scoped, tag = 'scoped memory for transformer_forward.1']
    #allocation9 [shape = 'u8[131072]{0}', space=vmem, size = 0x20000, scoped, tag = 'input window, operand 8']
    #allocation10 [shape = 'u8[196608]{0}', space=vmem, size = 0x30000, scoped, tag = 'input window, operand 12']
    #allocation11 [shape = 's32[2]{0}', space=sflag, size = 0x8, scoped, tag = 'scoped memory for transformer_forward.1']
    #allocation12 [shape = 'u8[65536]{0}', space=vmem, size = 0x10000, scoped, tag = 'input window, operand 13']
    #allocation13 [shape = 'u8[65536]{0}', space=vmem, size = 0x10000, scoped, tag = 'input window, operand 16']
    #allocation14 [shape = 's32[2]{0}', space=sflag, size = 0x8, scoped, tag = 'scoped memory for transformer_forward.1']
    #allocation15 [shape = 'u8[131072]{0}', space=vmem, size = 0x20000, scoped, tag = 'input window, operand 17']
    #allocation16 [shape = 'u8[65536]{0}', space=vmem, size = 0x10000, scoped, tag = 'input window, operand 18']
    #allocation17 [shape = 's32[2]{0}', space=sflag, size = 0x8, scoped, tag = 'scoped memory for transformer_forward.1']
    #allocation18 [shape = 'u8[131072]{0}', space=vmem, size = 0x20000, scoped, tag = 'input window, operand 19']
    #allocation19 [shape = 'u8[131072]{0}', space=vmem, size = 0x20000, scoped, tag = 'input window, operand 21']
    #allocation20 [shape = 's32[2]{0}', space=sflag, size = 0x8, scoped, tag = 'scoped memory for transformer_forward.1']
    #allocation21 [shape = 'u8[1024]{0}', space=vmem, size = 0x400, scoped, tag = 'input window, operand 22']
    #allocation22 [shape = 'u8[1024]{0}', space=vmem, size = 0x400, scoped, tag = 'input window, operand 23']
    #allocation23 [shape = 's32[2]{0}', space=sflag, size = 0x8, scoped, tag = 'scoped memory for transformer_forward.1']
    #allocation24 [shape = 'u8[1024]{0}', space=vmem, size = 0x400, scoped, tag = 'input window, operand 24']
    #allocation25 [shape = 'u8[32768]{0}', space=vmem, size = 0x8000, scoped, tag = 'input window, operand 25, single buffered']
    #allocation26 [shape = 's32[1]{0}', space=sflag, size = 0x4, scoped, tag = 'scoped memory for transformer_forward.1']
    #allocation27 [shape = 'u8[4096]{0}', space=vmem, size = 0x1000, scoped, tag = 'output window, operand 0, single buffered']
    %32 = vsyncpa [#allocation5], 0
    %s33 = scalar_lea.sflag [#allocation5], 1
    %34 = vsyncpa %s33, 0
    %35 = vsyncpa [#allocation8], 0
    %s36 = scalar_lea.sflag [#allocation8], 1
    %37 = vsyncpa %s36, 0
    %38 = vsyncpa [#allocation11], 0
    %s39 = scalar_lea.sflag [#allocation11], 1
    %40 = vsyncpa %s39, 0
    %41 = vsyncpa [#allocation14], 0
    %s42 = scalar_lea.sflag [#allocation14], 1
    %43 = vsyncpa %s42, 0
    %44 = vsyncpa [#allocation17], 0
    %s45 = scalar_lea.sflag [#allocation17], 1
    %46 = vsyncpa %s45, 0
    %47 = vsyncpa [#allocation20], 0
    %s48 = scalar_lea.sflag [#allocation20], 1
    %49 = vsyncpa %s48, 0
    %50 = vsyncpa [#allocation23], 0
    %s51 = scalar_lea.sflag [#allocation23], 1
    %52 = vsyncpa %s51, 0
    %53 = vsyncpa [#allocation26], 0
    %54 = vsyncpa [#allocation6], 0
    loop: start=0, step=1, limit=4
    $region2: #{transformer_forward.1} parent=1 // loop_pre_header
      _
    $region3: #{transformer_forward.1} parent=1 // loop_header
      %s56 = sphi 0, %s60
      %p57 = scmp.ge.s32.totalorder %s56, 4
      %s64 = sphi 0, %s64
      %s66 = sphi 0, %s64
      %s67 = sphi 0, %s66
      %s81 = sphi 0, %s67
      %s85 = sphi 0, %s85
      %s87 = sphi 0, %s85
      %s88 = sphi 0, %s87
      %s102 = sphi 0, %s88
      %s108 = sphi 0, %s110
      %s111 = sphi 0, %s108
      %s112 = sphi 0, %s111
      %s128 = sphi 0, %s112
      %s134 = sphi 0, %s136
      %s137 = sphi 0, %s134
      %s138 = sphi 0, %s137
      %s154 = sphi 0, %s138
      %s160 = sphi 0, %s162
      %s163 = sphi 0, %s160
      %s164 = sphi 0, %s163
      %s180 = sphi 0, %s164
      %s186 = sphi 0, %s188
      %s189 = sphi 0, %s186
      %s190 = sphi 0, %s189
      %s206 = sphi 0, %s190
      %s212 = sphi 0, %s214
      %s215 = sphi 0, %s212
      %s216 = sphi 0, %s215
      %s232 = sphi 0, %s216
      %s238 = sphi 0, %s240
      %s241 = sphi 0, %s238
      %s242 = sphi 0, %s241
      %s258 = sphi 0, %s242
      %s264 = sphi 0, %s266
      %s267 = sphi 0, %s264
      %s268 = sphi 0, %s267
      %s284 = sphi 0, %s268
      %s290 = sphi 0, %s292
      %s293 = sphi 0, %s290
      %s294 = sphi 0, %s293
      %s310 = sphi 0, %s294
      %s316 = sphi 0, %s318
      %s319 = sphi 0, %s316
      %s320 = sphi 0, %s319
      %s336 = sphi 0, %s320
      %s342 = sphi 0, %s344
      %s345 = sphi 0, %s342
      %s346 = sphi 0, %s345
      %s362 = sphi 0, %s346
      %s368 = sphi 0, %s370
      %s371 = sphi 0, %s368
      %s372 = sphi 0, %s371
      %s388 = sphi 0, %s372
      %s394 = sphi 0, %s396
      %s397 = sphi 0, %s394
      %s398 = sphi 0, %s397
      %s414 = sphi 0, %s398
      %s420 = sphi 0, %s422
      %s423 = sphi 0, %s420
      %s424 = sphi 0, %s423
      %s440 = sphi 0, %s424
      %s446 = sphi 0, %s448
      %s449 = sphi 0, %s446
      %s450 = sphi 0, %s449
      %s466 = sphi 0, %s450
      %s472 = sphi 0, %s474
      %s475 = sphi 0, %s472
      %s476 = sphi 0, %s475
      %s492 = sphi 0, %s476
      %s498 = sphi 0, %s500
      %s501 = sphi 0, %s498
      %s502 = sphi 0, %s501
      %s518 = sphi 0, %s502
      %s524 = sphi 0, %s526
      %s527 = sphi 0, %s524
      %s528 = sphi 0, %s527
      %s544 = sphi 0, %s528
      %s550 = sphi 0, %s552
      %s553 = sphi 0, %s550
      %s554 = sphi 0, %s553
      %s570 = sphi 0, %s554
      %s576 = sphi 0, %s578
      %s579 = sphi 0, %s576
      %s580 = sphi 0, %s579
      %s596 = sphi 0, %s580
      %s602 = sphi 0, %s604
      %s605 = sphi 0, %s602
      %s606 = sphi 0, %s605
      %s622 = sphi 0, %s606
      %s628 = sphi 0, %s630
      %s631 = sphi 0, %s628
      %s632 = sphi 0, %s631
      %s648 = sphi 0, %s632
      %s654 = sphi 0, %s656
      %s657 = sphi 0, %s654
      %s658 = sphi 0, %s657
      %s674 = sphi 0, %s658
      %s680 = sphi 0, %s682
      %s683 = sphi 0, %s680
      %s684 = sphi 0, %s683
      %s700 = sphi 0, %s684
      %s704 = sphi 0, %s704
      %s706 = sphi 0, %s704
      %s707 = sphi 0, %s706
      %s721 = sphi 0, %s707
      %s725 = sphi 0, %s725
      %s727 = sphi 0, %s725
      %s728 = sphi 0, %s727
      %s742 = sphi 0, %s728
      %s746 = sphi 0, %s746
      %s748 = sphi 0, %s746
      %s749 = sphi 0, %s748
      %s763 = sphi 0, %s749
    $region4: #{transformer_forward.1} parent=1 // loop_header_branch
      %59 = sbr.rel (%p57) target = $region8
    $region5: #{transformer_forward.1} parent=1 // loop_body
      %s61 = ssub.s32 %s56, 1
      %s62 = ssub.s32 %s56, 2
      %s63 = sadd.s32 %s56, 1
      %s65 = sadd.s32 %s64, 1
      %p68 = scmp.eq.s32.totalorder %s56, 1
      %p69 = scmp.ne.s32.totalorder %s64, %s66
      %p70 = scmp.eq.s32.totalorder %s56, 0
      %p71 = por %p69, %p70
      %p72 = scmp.ne.s32.totalorder %s64, %s66
      %p73 = scmp.eq.s32.totalorder %s61, 1
      %p74 = por %p72, %p73
      %p75 = scmp.ne.s32.totalorder %s66, %s67
      %p76 = scmp.eq.s32.totalorder %s61, 0
      %p77 = por %p75, %p76
      %p78 = scmp.ne.s32.totalorder %s66, %s67
      %p79 = scmp.eq.s32.totalorder %s62, 1
      %p80 = por %p78, %p79
      %p82 = scmp.ne.s32.totalorder %s67, %s81
      %p83 = scmp.eq.s32.totalorder %s62, 0
      %p84 = por %p82, %p83
      %s86 = sadd.s32 %s85, 1
      %p89 = scmp.eq.s32.totalorder %s56, 1
      %p90 = scmp.ne.s32.totalorder %s85, %s87
      %p91 = scmp.eq.s32.totalorder %s56, 0
      %p92 = por %p90, %p91
      %p93 = scmp.ne.s32.totalorder %s85, %s87
      %p94 = scmp.eq.s32.totalorder %s61, 1
      %p95 = por %p93, %p94
      %p96 = scmp.ne.s32.totalorder %s87, %s88
      %p97 = scmp.eq.s32.totalorder %s61, 0
      %p98 = por %p96, %p97
      %p99 = scmp.ne.s32.totalorder %s87, %s88
      %p100 = scmp.eq.s32.totalorder %s62, 1
      %p101 = por %p99, %p100
      %p103 = scmp.ne.s32.totalorder %s88, %s102
      %p104 = scmp.eq.s32.totalorder %s62, 0
      %p105 = por %p103, %p104
      %s106 = ssub.s32 %s56, %s63
      %p107 = scmp.eq.s32.totalorder %s106, 0
      %s109 = sadd.s32 %s108, 1
      %s110 = scalar_select %p107, %s108, %s109
      %p113 = pneg %p107
      %p114 = scmp.eq.s32.totalorder %s56, 1
      %p115 = por %p113, %p114
      %p116 = scmp.ne.s32.totalorder %s108, %s111
      %p117 = scmp.eq.s32.totalorder %s56, 0
      %p118 = por %p116, %p117
      %p119 = scmp.ne.s32.totalorder %s108, %s111
      %p120 = scmp.eq.s32.totalorder %s61, 1
      %p121 = por %p119, %p120
      %p122 = scmp.ne.s32.totalorder %s111, %s112
      %p123 = scmp.eq.s32.totalorder %s61, 0
      %p124 = por %p122, %p123
      %p125 = scmp.ne.s32.totalorder %s111, %s112
      %p126 = scmp.eq.s32.totalorder %s62, 1
      %p127 = por %p125, %p126
      %p129 = scmp.ne.s32.totalorder %s112, %s128
      %p130 = scmp.eq.s32.totalorder %s62, 0
      %p131 = por %p129, %p130
      %s132 = ssub.s32 %s56, %s63
      %p133 = scmp.eq.s32.totalorder %s132, 0
      %s135 = sadd.s32 %s134, 1
      %s136 = scalar_select %p133, %s134, %s135
      %p139 = pneg %p133
      %p140 = scmp.eq.s32.totalorder %s56, 1
      %p141 = por %p139, %p140
      %p142 = scmp.ne.s32.totalorder %s134, %s137
      %p143 = scmp.eq.s32.totalorder %s56, 0
      %p144 = por %p142, %p143
      %p145 = scmp.ne.s32.totalorder %s134, %s137
      %p146 = scmp.eq.s32.totalorder %s61, 1
      %p147 = por %p145, %p146
      %p148 = scmp.ne.s32.totalorder %s137, %s138
      %p149 = scmp.eq.s32.totalorder %s61, 0
      %p150 = por %p148, %p149
      %p151 = scmp.ne.s32.totalorder %s137, %s138
      %p152 = scmp.eq.s32.totalorder %s62, 1
      %p153 = por %p151, %p152
      %p155 = scmp.ne.s32.totalorder %s138, %s154
      %p156 = scmp.eq.s32.totalorder %s62, 0
      %p157 = por %p155, %p156
      %s158 = ssub.s32 %s56, %s63
      %p159 = scmp.eq.s32.totalorder %s158, 0
      %s161 = sadd.s32 %s160, 1
      %s162 = scalar_select %p159, %s160, %s161
      %p165 = pneg %p159
      %p166 = scmp.eq.s32.totalorder %s56, 1
      %p167 = por %p165, %p166
      %p168 = scmp.ne.s32.totalorder %s160, %s163
      %p169 = scmp.eq.s32.totalorder %s56, 0
      %p170 = por %p168, %p169
      %p171 = scmp.ne.s32.totalorder %s160, %s163
      %p172 = scmp.eq.s32.totalorder %s61, 1
      %p173 = por %p171, %p172
      %p174 = scmp.ne.s32.totalorder %s163, %s164
      %p175 = scmp.eq.s32.totalorder %s61, 0
      %p176 = por %p174, %p175
      %p177 = scmp.ne.s32.totalorder %s163, %s164
      %p178 = scmp.eq.s32.totalorder %s62, 1
      %p179 = por %p177, %p178
      %p181 = scmp.ne.s32.totalorder %s164, %s180
      %p182 = scmp.eq.s32.totalorder %s62, 0
      %p183 = por %p181, %p182
      %s184 = ssub.s32 %s56, %s63
      %p185 = scmp.eq.s32.totalorder %s184, 0
      %s187 = sadd.s32 %s186, 1
      %s188 = scalar_select %p185, %s186, %s187
      %p191 = pneg %p185
      %p192 = scmp.eq.s32.totalorder %s56, 1
      %p193 = por %p191, %p192
      %p194 = scmp.ne.s32.totalorder %s186, %s189
      %p195 = scmp.eq.s32.totalorder %s56, 0
      %p196 = por %p194, %p195
      %p197 = scmp.ne.s32.totalorder %s186, %s189
      %p198 = scmp.eq.s32.totalorder %s61, 1
      %p199 = por %p197, %p198
      %p200 = scmp.ne.s32.totalorder %s189, %s190
      %p201 = scmp.eq.s32.totalorder %s61, 0
      %p202 = por %p200, %p201
      %p203 = scmp.ne.s32.totalorder %s189, %s190
      %p204 = scmp.eq.s32.totalorder %s62, 1
      %p205 = por %p203, %p204
      %p207 = scmp.ne.s32.totalorder %s190, %s206
      %p208 = scmp.eq.s32.totalorder %s62, 0
      %p209 = por %p207, %p208
      %s210 = ssub.s32 %s56, %s63
      %p211 = scmp.eq.s32.totalorder %s210, 0
      %s213 = sadd.s32 %s212, 1
      %s214 = scalar_select %p211, %s212, %s213
      %p217 = pneg %p211
      %p218 = scmp.eq.s32.totalorder %s56, 1
      %p219 = por %p217, %p218
      %p220 = scmp.ne.s32.totalorder %s212, %s215
      %p221 = scmp.eq.s32.totalorder %s56, 0
      %p222 = por %p220, %p221
      %p223 = scmp.ne.s32.totalorder %s212, %s215
      %p224 = scmp.eq.s32.totalorder %s61, 1
      %p225 = por %p223, %p224
      %p226 = scmp.ne.s32.totalorder %s215, %s216
      %p227 = scmp.eq.s32.totalorder %s61, 0
      %p228 = por %p226, %p227
      %p229 = scmp.ne.s32.totalorder %s215, %s216
      %p230 = scmp.eq.s32.totalorder %s62, 1
      %p231 = por %p229, %p230
      %p233 = scmp.ne.s32.totalorder %s216, %s232
      %p234 = scmp.eq.s32.totalorder %s62, 0
      %p235 = por %p233, %p234
      %s236 = ssub.s32 %s56, %s63
      %p237 = scmp.eq.s32.totalorder %s236, 0
      %s239 = sadd.s32 %s238, 1
      %s240 = scalar_select %p237, %s238, %s239
      %p243 = pneg %p237
      %p244 = scmp.eq.s32.totalorder %s56, 1
      %p245 = por %p243, %p244
      %p246 = scmp.ne.s32.totalorder %s238, %s241
      %p247 = scmp.eq.s32.totalorder %s56, 0
      %p248 = por %p246, %p247
      %p249 = scmp.ne.s32.totalorder %s238, %s241
      %p250 = scmp.eq.s32.totalorder %s61, 1
      %p251 = por %p249, %p250
      %p252 = scmp.ne.s32.totalorder %s241, %s242
      %p253 = scmp.eq.s32.totalorder %s61, 0
      %p254 = por %p252, %p253
      %p255 = scmp.ne.s32.totalorder %s241, %s242
      %p256 = scmp.eq.s32.totalorder %s62, 1
      %p257 = por %p255, %p256
      %p259 = scmp.ne.s32.totalorder %s242, %s258
      %p260 = scmp.eq.s32.totalorder %s62, 0
      %p261 = por %p259, %p260
      %s262 = ssub.s32 %s56, %s63
      %p263 = scmp.eq.s32.totalorder %s262, 0
      %s265 = sadd.s32 %s264, 1
      %s266 = scalar_select %p263, %s264, %s265
      %p269 = pneg %p263
      %p270 = scmp.eq.s32.totalorder %s56, 1
      %p271 = por %p269, %p270
      %p272 = scmp.ne.s32.totalorder %s264, %s267
      %p273 = scmp.eq.s32.totalorder %s56, 0
      %p274 = por %p272, %p273
      %p275 = scmp.ne.s32.totalorder %s264, %s267
      %p276 = scmp.eq.s32.totalorder %s61, 1
      %p277 = por %p275, %p276
      %p278 = scmp.ne.s32.totalorder %s267, %s268
      %p279 = scmp.eq.s32.totalorder %s61, 0
      %p280 = por %p278, %p279
      %p281 = scmp.ne.s32.totalorder %s267, %s268
      %p282 = scmp.eq.s32.totalorder %s62, 1
      %p283 = por %p281, %p282
      %p285 = scmp.ne.s32.totalorder %s268, %s284
      %p286 = scmp.eq.s32.totalorder %s62, 0
      %p287 = por %p285, %p286
      %s288 = ssub.s32 %s56, %s63
      %p289 = scmp.eq.s32.totalorder %s288, 0
      %s291 = sadd.s32 %s290, 1
      %s292 = scalar_select %p289, %s290, %s291
      %p295 = pneg %p289
      %p296 = scmp.eq.s32.totalorder %s56, 1
      %p297 = por %p295, %p296
      %p298 = scmp.ne.s32.totalorder %s290, %s293
      %p299 = scmp.eq.s32.totalorder %s56, 0
      %p300 = por %p298, %p299
      %p301 = scmp.ne.s32.totalorder %s290, %s293
      %p302 = scmp.eq.s32.totalorder %s61, 1
      %p303 = por %p301, %p302
      %p304 = scmp.ne.s32.totalorder %s293, %s294
      %p305 = scmp.eq.s32.totalorder %s61, 0
      %p306 = por %p304, %p305
      %p307 = scmp.ne.s32.totalorder %s293, %s294
      %p308 = scmp.eq.s32.totalorder %s62, 1
      %p309 = por %p307, %p308
      %p311 = scmp.ne.s32.totalorder %s294, %s310
      %p312 = scmp.eq.s32.totalorder %s62, 0
      %p313 = por %p311, %p312
      %s314 = ssub.s32 %s56, %s63
      %p315 = scmp.eq.s32.totalorder %s314, 0
      %s317 = sadd.s32 %s316, 1
      %s318 = scalar_select %p315, %s316, %s317
      %p321 = pneg %p315
      %p322 = scmp.eq.s32.totalorder %s56, 1
      %p323 = por %p321, %p322
      %p324 = scmp.ne.s32.totalorder %s316, %s319
      %p325 = scmp.eq.s32.totalorder %s56, 0
      %p326 = por %p324, %p325
      %p327 = scmp.ne.s32.totalorder %s316, %s319
      %p328 = scmp.eq.s32.totalorder %s61, 1
      %p329 = por %p327, %p328
      %p330 = scmp.ne.s32.totalorder %s319, %s320
      %p331 = scmp.eq.s32.totalorder %s61, 0
      %p332 = por %p330, %p331
      %p333 = scmp.ne.s32.totalorder %s319, %s320
      %p334 = scmp.eq.s32.totalorder %s62, 1
      %p335 = por %p333, %p334
      %p337 = scmp.ne.s32.totalorder %s320, %s336
      %p338 = scmp.eq.s32.totalorder %s62, 0
      %p339 = por %p337, %p338
      %s340 = ssub.s32 %s56, %s63
      %p341 = scmp.eq.s32.totalorder %s340, 0
      %s343 = sadd.s32 %s342, 1
      %s344 = scalar_select %p341, %s342, %s343
      %p347 = pneg %p341
      %p348 = scmp.eq.s32.totalorder %s56, 1
      %p349 = por %p347, %p348
      %p350 = scmp.ne.s32.totalorder %s342, %s345
      %p351 = scmp.eq.s32.totalorder %s56, 0
      %p352 = por %p350, %p351
      %p353 = scmp.ne.s32.totalorder %s342, %s345
      %p354 = scmp.eq.s32.totalorder %s61, 1
      %p355 = por %p353, %p354
      %p356 = scmp.ne.s32.totalorder %s345, %s346
      %p357 = scmp.eq.s32.totalorder %s61, 0
      %p358 = por %p356, %p357
      %p359 = scmp.ne.s32.totalorder %s345, %s346
      %p360 = scmp.eq.s32.totalorder %s62, 1
      %p361 = por %p359, %p360
      %p363 = scmp.ne.s32.totalorder %s346, %s362
      %p364 = scmp.eq.s32.totalorder %s62, 0
      %p365 = por %p363, %p364
      %s366 = ssub.s32 %s56, %s63
      %p367 = scmp.eq.s32.totalorder %s366, 0
      %s369 = sadd.s32 %s368, 1
      %s370 = scalar_select %p367, %s368, %s369
      %p373 = pneg %p367
      %p374 = scmp.eq.s32.totalorder %s56, 1
      %p375 = por %p373, %p374
      %p376 = scmp.ne.s32.totalorder %s368, %s371
      %p377 = scmp.eq.s32.totalorder %s56, 0
      %p378 = por %p376, %p377
      %p379 = scmp.ne.s32.totalorder %s368, %s371
      %p380 = scmp.eq.s32.totalorder %s61, 1
      %p381 = por %p379, %p380
      %p382 = scmp.ne.s32.totalorder %s371, %s372
      %p383 = scmp.eq.s32.totalorder %s61, 0
      %p384 = por %p382, %p383
      %p385 = scmp.ne.s32.totalorder %s371, %s372
      %p386 = scmp.eq.s32.totalorder %s62, 1
      %p387 = por %p385, %p386
      %p389 = scmp.ne.s32.totalorder %s372, %s388
      %p390 = scmp.eq.s32.totalorder %s62, 0
      %p391 = por %p389, %p390
      %s392 = ssub.s32 %s56, %s63
      %p393 = scmp.eq.s32.totalorder %s392, 0
      %s395 = sadd.s32 %s394, 1
      %s396 = scalar_select %p393, %s394, %s395
      %p399 = pneg %p393
      %p400 = scmp.eq.s32.totalorder %s56, 1
      %p401 = por %p399, %p400
      %p402 = scmp.ne.s32.totalorder %s394, %s397
      %p403 = scmp.eq.s32.totalorder %s56, 0
      %p404 = por %p402, %p403
      %p405 = scmp.ne.s32.totalorder %s394, %s397
      %p406 = scmp.eq.s32.totalorder %s61, 1
      %p407 = por %p405, %p406
      %p408 = scmp.ne.s32.totalorder %s397, %s398
      %p409 = scmp.eq.s32.totalorder %s61, 0
      %p410 = por %p408, %p409
      %p411 = scmp.ne.s32.totalorder %s397, %s398
      %p412 = scmp.eq.s32.totalorder %s62, 1
      %p413 = por %p411, %p412
      %p415 = scmp.ne.s32.totalorder %s398, %s414
      %p416 = scmp.eq.s32.totalorder %s62, 0
      %p417 = por %p415, %p416
      %s418 = ssub.s32 %s56, %s63
      %p419 = scmp.eq.s32.totalorder %s418, 0
      %s421 = sadd.s32 %s420, 1
      %s422 = scalar_select %p419, %s420, %s421
      %p425 = pneg %p419
      %p426 = scmp.eq.s32.totalorder %s56, 1
      %p427 = por %p425, %p426
      %p428 = scmp.ne.s32.totalorder %s420, %s423
      %p429 = scmp.eq.s32.totalorder %s56, 0
      %p430 = por %p428, %p429
      %p431 = scmp.ne.s32.totalorder %s420, %s423
      %p432 = scmp.eq.s32.totalorder %s61, 1
      %p433 = por %p431, %p432
      %p434 = scmp.ne.s32.totalorder %s423, %s424
      %p435 = scmp.eq.s32.totalorder %s61, 0
      %p436 = por %p434, %p435
      %p437 = scmp.ne.s32.totalorder %s423, %s424
      %p438 = scmp.eq.s32.totalorder %s62, 1
      %p439 = por %p437, %p438
      %p441 = scmp.ne.s32.totalorder %s424, %s440
      %p442 = scmp.eq.s32.totalorder %s62, 0
      %p443 = por %p441, %p442
      %s444 = ssub.s32 %s56, %s63
      %p445 = scmp.eq.s32.totalorder %s444, 0
      %s447 = sadd.s32 %s446, 1
      %s448 = scalar_select %p445, %s446, %s447
      %p451 = pneg %p445
      %p452 = scmp.eq.s32.totalorder %s56, 1
      %p453 = por %p451, %p452
      %p454 = scmp.ne.s32.totalorder %s446, %s449
      %p455 = scmp.eq.s32.totalorder %s56, 0
      %p456 = por %p454, %p455
      %p457 = scmp.ne.s32.totalorder %s446, %s449
      %p458 = scmp.eq.s32.totalorder %s61, 1
      %p459 = por %p457, %p458
      %p460 = scmp.ne.s32.totalorder %s449, %s450
      %p461 = scmp.eq.s32.totalorder %s61, 0
      %p462 = por %p460, %p461
      %p463 = scmp.ne.s32.totalorder %s449, %s450
      %p464 = scmp.eq.s32.totalorder %s62, 1
      %p465 = por %p463, %p464
      %p467 = scmp.ne.s32.totalorder %s450, %s466
      %p468 = scmp.eq.s32.totalorder %s62, 0
      %p469 = por %p467, %p468
      %s470 = ssub.s32 %s56, %s63
      %p471 = scmp.eq.s32.totalorder %s470, 0
      %s473 = sadd.s32 %s472, 1
      %s474 = scalar_select %p471, %s472, %s473
      %p477 = pneg %p471
      %p478 = scmp.eq.s32.totalorder %s56, 1
      %p479 = por %p477, %p478
      %p480 = scmp.ne.s32.totalorder %s472, %s475
      %p481 = scmp.eq.s32.totalorder %s56, 0
      %p482 = por %p480, %p481
      %p483 = scmp.ne.s32.totalorder %s472, %s475
      %p484 = scmp.eq.s32.totalorder %s61, 1
      %p485 = por %p483, %p484
      %p486 = scmp.ne.s32.totalorder %s475, %s476
      %p487 = scmp.eq.s32.totalorder %s61, 0
      %p488 = por %p486, %p487
      %p489 = scmp.ne.s32.totalorder %s475, %s476
      %p490 = scmp.eq.s32.totalorder %s62, 1
      %p491 = por %p489, %p490
      %p493 = scmp.ne.s32.totalorder %s476, %s492
      %p494 = scmp.eq.s32.totalorder %s62, 0
      %p495 = por %p493, %p494
      %s496 = ssub.s32 %s56, %s63
      %p497 = scmp.eq.s32.totalorder %s496, 0
      %s499 = sadd.s32 %s498, 1
      %s500 = scalar_select %p497, %s498, %s499
      %p503 = pneg %p497
      %p504 = scmp.eq.s32.totalorder %s56, 1
      %p505 = por %p503, %p504
      %p506 = scmp.ne.s32.totalorder %s498, %s501
      %p507 = scmp.eq.s32.totalorder %s56, 0
      %p508 = por %p506, %p507
      %p509 = scmp.ne.s32.totalorder %s498, %s501
      %p510 = scmp.eq.s32.totalorder %s61, 1
      %p511 = por %p509, %p510
      %p512 = scmp.ne.s32.totalorder %s501, %s502
      %p513 = scmp.eq.s32.totalorder %s61, 0
      %p514 = por %p512, %p513
      %p515 = scmp.ne.s32.totalorder %s501, %s502
      %p516 = scmp.eq.s32.totalorder %s62, 1
      %p517 = por %p515, %p516
      %p519 = scmp.ne.s32.totalorder %s502, %s518
      %p520 = scmp.eq.s32.totalorder %s62, 0
      %p521 = por %p519, %p520
      %s522 = ssub.s32 %s56, %s63
      %p523 = scmp.eq.s32.totalorder %s522, 0
      %s525 = sadd.s32 %s524, 1
      %s526 = scalar_select %p523, %s524, %s525
      %p529 = pneg %p523
      %p530 = scmp.eq.s32.totalorder %s56, 1
      %p531 = por %p529, %p530
      %p532 = scmp.ne.s32.totalorder %s524, %s527
      %p533 = scmp.eq.s32.totalorder %s56, 0
      %p534 = por %p532, %p533
      %p535 = scmp.ne.s32.totalorder %s524, %s527
      %p536 = scmp.eq.s32.totalorder %s61, 1
      %p537 = por %p535, %p536
      %p538 = scmp.ne.s32.totalorder %s527, %s528
      %p539 = scmp.eq.s32.totalorder %s61, 0
      %p540 = por %p538, %p539
      %p541 = scmp.ne.s32.totalorder %s527, %s528
      %p542 = scmp.eq.s32.totalorder %s62, 1
      %p543 = por %p541, %p542
      %p545 = scmp.ne.s32.totalorder %s528, %s544
      %p546 = scmp.eq.s32.totalorder %s62, 0
      %p547 = por %p545, %p546
      %s548 = ssub.s32 %s56, %s63
      %p549 = scmp.eq.s32.totalorder %s548, 0
      %s551 = sadd.s32 %s550, 1
      %s552 = scalar_select %p549, %s550, %s551
      %p555 = pneg %p549
      %p556 = scmp.eq.s32.totalorder %s56, 1
      %p557 = por %p555, %p556
      %p558 = scmp.ne.s32.totalorder %s550, %s553
      %p559 = scmp.eq.s32.totalorder %s56, 0
      %p560 = por %p558, %p559
      %p561 = scmp.ne.s32.totalorder %s550, %s553
      %p562 = scmp.eq.s32.totalorder %s61, 1
      %p563 = por %p561, %p562
      %p564 = scmp.ne.s32.totalorder %s553, %s554
      %p565 = scmp.eq.s32.totalorder %s61, 0
      %p566 = por %p564, %p565
      %p567 = scmp.ne.s32.totalorder %s553, %s554
      %p568 = scmp.eq.s32.totalorder %s62, 1
      %p569 = por %p567, %p568
      %p571 = scmp.ne.s32.totalorder %s554, %s570
      %p572 = scmp.eq.s32.totalorder %s62, 0
      %p573 = por %p571, %p572
      %s574 = ssub.s32 %s56, %s63
      %p575 = scmp.eq.s32.totalorder %s574, 0
      %s577 = sadd.s32 %s576, 1
      %s578 = scalar_select %p575, %s576, %s577
      %p581 = pneg %p575
      %p582 = scmp.eq.s32.totalorder %s56, 1
      %p583 = por %p581, %p582
      %p584 = scmp.ne.s32.totalorder %s576, %s579
      %p585 = scmp.eq.s32.totalorder %s56, 0
      %p586 = por %p584, %p585
      %p587 = scmp.ne.s32.totalorder %s576, %s579
      %p588 = scmp.eq.s32.totalorder %s61, 1
      %p589 = por %p587, %p588
      %p590 = scmp.ne.s32.totalorder %s579, %s580
      %p591 = scmp.eq.s32.totalorder %s61, 0
      %p592 = por %p590, %p591
      %p593 = scmp.ne.s32.totalorder %s579, %s580
      %p594 = scmp.eq.s32.totalorder %s62, 1
      %p595 = por %p593, %p594
      %p597 = scmp.ne.s32.totalorder %s580, %s596
      %p598 = scmp.eq.s32.totalorder %s62, 0
      %p599 = por %p597, %p598
      %s600 = ssub.s32 %s56, %s63
      %p601 = scmp.eq.s32.totalorder %s600, 0
      %s603 = sadd.s32 %s602, 1
      %s604 = scalar_select %p601, %s602, %s603
      %p607 = pneg %p601
      %p608 = scmp.eq.s32.totalorder %s56, 1
      %p609 = por %p607, %p608
      %p610 = scmp.ne.s32.totalorder %s602, %s605
      %p611 = scmp.eq.s32.totalorder %s56, 0
      %p612 = por %p610, %p611
      %p613 = scmp.ne.s32.totalorder %s602, %s605
      %p614 = scmp.eq.s32.totalorder %s61, 1
      %p615 = por %p613, %p614
      %p616 = scmp.ne.s32.totalorder %s605, %s606
      %p617 = scmp.eq.s32.totalorder %s61, 0
      %p618 = por %p616, %p617
      %p619 = scmp.ne.s32.totalorder %s605, %s606
      %p620 = scmp.eq.s32.totalorder %s62, 1
      %p621 = por %p619, %p620
      %p623 = scmp.ne.s32.totalorder %s606, %s622
      %p624 = scmp.eq.s32.totalorder %s62, 0
      %p625 = por %p623, %p624
      %s626 = ssub.s32 %s56, %s63
      %p627 = scmp.eq.s32.totalorder %s626, 0
      %s629 = sadd.s32 %s628, 1
      %s630 = scalar_select %p627, %s628, %s629
      %p633 = pneg %p627
      %p634 = scmp.eq.s32.totalorder %s56, 1
      %p635 = por %p633, %p634
      %p636 = scmp.ne.s32.totalorder %s628, %s631
      %p637 = scmp.eq.s32.totalorder %s56, 0
      %p638 = por %p636, %p637
      %p639 = scmp.ne.s32.totalorder %s628, %s631
      %p640 = scmp.eq.s32.totalorder %s61, 1
      %p641 = por %p639, %p640
      %p642 = scmp.ne.s32.totalorder %s631, %s632
      %p643 = scmp.eq.s32.totalorder %s61, 0
      %p644 = por %p642, %p643
      %p645 = scmp.ne.s32.totalorder %s631, %s632
      %p646 = scmp.eq.s32.totalorder %s62, 1
      %p647 = por %p645, %p646
      %p649 = scmp.ne.s32.totalorder %s632, %s648
      %p650 = scmp.eq.s32.totalorder %s62, 0
      %p651 = por %p649, %p650
      %s652 = ssub.s32 %s56, %s63
      %p653 = scmp.eq.s32.totalorder %s652, 0
      %s655 = sadd.s32 %s654, 1
      %s656 = scalar_select %p653, %s654, %s655
      %p659 = pneg %p653
      %p660 = scmp.eq.s32.totalorder %s56, 1
      %p661 = por %p659, %p660
      %p662 = scmp.ne.s32.totalorder %s654, %s657
      %p663 = scmp.eq.s32.totalorder %s56, 0
      %p664 = por %p662, %p663
      %p665 = scmp.ne.s32.totalorder %s654, %s657
      %p666 = scmp.eq.s32.totalorder %s61, 1
      %p667 = por %p665, %p666
      %p668 = scmp.ne.s32.totalorder %s657, %s658
      %p669 = scmp.eq.s32.totalorder %s61, 0
      %p670 = por %p668, %p669
      %p671 = scmp.ne.s32.totalorder %s657, %s658
      %p672 = scmp.eq.s32.totalorder %s62, 1
      %p673 = por %p671, %p672
      %p675 = scmp.ne.s32.totalorder %s658, %s674
      %p676 = scmp.eq.s32.totalorder %s62, 0
      %p677 = por %p675, %p676
      %s678 = ssub.s32 %s56, %s63
      %p679 = scmp.eq.s32.totalorder %s678, 0
      %s681 = sadd.s32 %s680, 1
      %s682 = scalar_select %p679, %s680, %s681
      %p685 = pneg %p679
      %p686 = scmp.eq.s32.totalorder %s56, 1
      %p687 = por %p685, %p686
      %p688 = scmp.ne.s32.totalorder %s680, %s683
      %p689 = scmp.eq.s32.totalorder %s56, 0
      %p690 = por %p688, %p689
      %p691 = scmp.ne.s32.totalorder %s680, %s683
      %p692 = scmp.eq.s32.totalorder %s61, 1
      %p693 = por %p691, %p692
      %p694 = scmp.ne.s32.totalorder %s683, %s684
      %p695 = scmp.eq.s32.totalorder %s61, 0
      %p696 = por %p694, %p695
      %p697 = scmp.ne.s32.totalorder %s683, %s684
      %p698 = scmp.eq.s32.totalorder %s62, 1
      %p699 = por %p697, %p698
      %p701 = scmp.ne.s32.totalorder %s684, %s700
      %p702 = scmp.eq.s32.totalorder %s62, 0
      %p703 = por %p701, %p702
      %s705 = sadd.s32 %s704, 1
      %p708 = scmp.eq.s32.totalorder %s56, 1
      %p709 = scmp.ne.s32.totalorder %s704, %s706
      %p710 = scmp.eq.s32.totalorder %s56, 0
      %p711 = por %p709, %p710
      %p712 = scmp.ne.s32.totalorder %s704, %s706
      %p713 = scmp.eq.s32.totalorder %s61, 1
      %p714 = por %p712, %p713
      %p715 = scmp.ne.s32.totalorder %s706, %s707
      %p716 = scmp.eq.s32.totalorder %s61, 0
      %p717 = por %p715, %p716
      %p718 = scmp.ne.s32.totalorder %s706, %s707
      %p719 = scmp.eq.s32.totalorder %s62, 1
      %p720 = por %p718, %p719
      %p722 = scmp.ne.s32.totalorder %s707, %s721
      %p723 = scmp.eq.s32.totalorder %s62, 0
      %p724 = por %p722, %p723
      %s726 = sadd.s32 %s725, 1
      %p729 = scmp.eq.s32.totalorder %s56, 1
      %p730 = scmp.ne.s32.totalorder %s725, %s727
      %p731 = scmp.eq.s32.totalorder %s56, 0
      %p732 = por %p730, %p731
      %p733 = scmp.ne.s32.totalorder %s725, %s727
      %p734 = scmp.eq.s32.totalorder %s61, 1
      %p735 = por %p733, %p734
      %p736 = scmp.ne.s32.totalorder %s727, %s728
      %p737 = scmp.eq.s32.totalorder %s61, 0
      %p738 = por %p736, %p737
      %p739 = scmp.ne.s32.totalorder %s727, %s728
      %p740 = scmp.eq.s32.totalorder %s62, 1
      %p741 = por %p739, %p740
      %p743 = scmp.ne.s32.totalorder %s728, %s742
      %p744 = scmp.eq.s32.totalorder %s62, 0
      %p745 = por %p743, %p744
      %s747 = sadd.s32 %s746, 1
      %p750 = scmp.eq.s32.totalorder %s56, 1
      %p751 = scmp.ne.s32.totalorder %s746, %s748
      %p752 = scmp.eq.s32.totalorder %s56, 0
      %p753 = por %p751, %p752
      %p754 = scmp.ne.s32.totalorder %s746, %s748
      %p755 = scmp.eq.s32.totalorder %s61, 1
      %p756 = por %p754, %p755
      %p757 = scmp.ne.s32.totalorder %s748, %s749
      %p758 = scmp.eq.s32.totalorder %s61, 0
      %p759 = por %p757, %p758
      %p760 = scmp.ne.s32.totalorder %s748, %s749
      %p761 = scmp.eq.s32.totalorder %s62, 1
      %p762 = por %p760, %p761
      %p764 = scmp.ne.s32.totalorder %s749, %s763
      %p765 = scmp.eq.s32.totalorder %s62, 0
      %p766 = por %p764, %p765
      %p767 = scmp.le.s32.totalorder 1, %s56
      %p768 = scmp.lt.s32.totalorder %s56, 3
      %p769 = pnand %p767, %p768
      %p770 = pneg %p769
      // Predicated region
      $region9: #{transformer_forward.1} parent=5 // pred_check
        _
      $region10: #{transformer_forward.1} parent=5 // pred_check_branch
        %772 = sbr.rel (%p769) target = $region12
      $region11: #{transformer_forward.1} parent=5 // pred_region
        %s773 = ssub.s32 %s56, 1
        // Predicated region
        $region13: #{transformer_forward.1} parent=11 // pred_check
          %p774 = pneg %p77
        $region14: #{transformer_forward.1} parent=11 // pred_check_branch
          %776 = sbr.rel (%p774) target = $region16
        $region15: #{transformer_forward.1} parent=11 // pred_region
          _
        $region16: #{transformer_forward.1} parent=11 // pred_fallthru
          _
        // Predicated region
        $region17: #{transformer_forward.1} parent=11 // pred_check
          %p777 = pneg %p98
        $region18: #{transformer_forward.1} parent=11 // pred_check_branch
          %779 = sbr.rel (%p777) target = $region20
        $region19: #{transformer_forward.1} parent=11 // pred_region
          _
        $region20: #{transformer_forward.1} parent=11 // pred_fallthru
          _
        // Predicated region
        $region21: #{transformer_forward.1} parent=11 // pred_check
          %p780 = pneg %p717
        $region22: #{transformer_forward.1} parent=11 // pred_check_branch
          %782 = sbr.rel (%p780) target = $region24
        $region23: #{transformer_forward.1} parent=11 // pred_region
          %s784 = ssub.s32 1024, 1024
          %785 = vsyncadd [#allocation26], %s784
          %s786 = sshll.u32 [#allocation25], 4
          %s787 = int_to_ptr.vmem [resolvable:$true] %s786
          %792 = dma.hbm_to_vmem [thread:$0]  %s25, 1024, %s787, [#allocation26], 64, 64, 4
        $region24: #{transformer_forward.1} parent=11 // pred_fallthru
          _
        // Predicated region
        $region25: #{transformer_forward.1} parent=11 // pred_check
          %p793 = pneg %p738
        $region26: #{transformer_forward.1} parent=11 // pred_check_branch
          %795 = sbr.rel (%p793) target = $region28
        $region27: #{transformer_forward.1} parent=11 // pred_region
          _
        $region28: #{transformer_forward.1} parent=11 // pred_fallthru
          _
      $region12: #{transformer_forward.1} parent=5 // pred_fallthru
        _
      %p796 = scmp.lt.s32.totalorder %s56, 2
      // Predicated region
      $region29: #{transformer_forward.1} parent=5 // pred_check
        %p797 = pneg %p796
      $region30: #{transformer_forward.1} parent=5 // pred_check_branch
        %799 = sbr.rel (%p797) target = $region32
      $region31: #{transformer_forward.1} parent=5 // pred_region
        // Predicated region
        $region33: #{transformer_forward.1} parent=31 // pred_check
          %p800 = pneg %p118
        $region34: #{transformer_forward.1} parent=31 // pred_check_branch
          %802 = sbr.rel (%p800) target = $region36
        $region35: #{transformer_forward.1} parent=31 // pred_region
          %s803 = sand.u32 %s108, 1
          %s804 = scalar_lea.sflag [#allocation5], %s803
          %s805 = sand.u32 %s108, 1
          %s806 = smul.addr %s805, 192
          %s807 = scalar_lea.vmem [#allocation4], %s806
          %s809 = ssub.s32 3072, 3072
          %810 = vsyncadd %s804, %s809
          %s811 = smul.addr %s56, 48
          %s812 = smul.addr %s811, 64
          %s813 = scalar_lea.hbm %s2, %s812
          %s814 = sshll.u32 %s807, 4
          %s815 = int_to_ptr.vmem [resolvable:$true] %s814
          %820 = dma.hbm_to_vmem [thread:$0]  %s813, 3072, %s815, %s804, 192, 192, 12
        $region36: #{transformer_forward.1} parent=31 // pred_fallthru
          _
        // Predicated region
        $region37: #{transformer_forward.1} parent=31 // pred_check
          %p821 = pneg %p144
        $region38: #{transformer_forward.1} parent=31 // pred_check_branch
          %823 = sbr.rel (%p821) target = $region40
        $region39: #{transformer_forward.1} parent=31 // pred_region
          %s824 = sand.u32 %s56, 1
          %s825 = scalar_lea.sflag [#allocation8], %s824
          %s826 = sand.u32 %s134, 1
          %s827 = smul.addr %s826, 64
          %s828 = scalar_lea.vmem [#allocation7], %s827
          %s830 = ssub.s32 1024, 1024
          %831 = vsyncadd %s825, %s830
          %s832 = smul.addr %s56, 16
          %s833 = smul.addr %s832, 64
          %s834 = scalar_lea.hbm %s3, %s833
          %s835 = sshll.u32 %s828, 4
          %s836 = int_to_ptr.vmem [resolvable:$true] %s835
          %841 = dma.hbm_to_vmem [thread:$0]  %s834, 1024, %s836, %s825, 64, 64, 4
        $region40: #{transformer_forward.1} parent=31 // pred_fallthru
          _
        // Predicated region
        $region41: #{transformer_forward.1} parent=31 // pred_check
          %p842 = pneg %p170
        $region42: #{transformer_forward.1} parent=31 // pred_check_branch
          %844 = sbr.rel (%p842) target = $region44
        $region43: #{transformer_forward.1} parent=31 // pred_region
          %p845 = scmp.lt.s32.totalorder %s56, 1
          %s846 = scalar_select %p845, %s56, 1
          %s847 = scalar_lea.vmem %s4, %s846
        $region44: #{transformer_forward.1} parent=31 // pred_fallthru
          _
        // Predicated region
        $region45: #{transformer_forward.1} parent=31 // pred_check
          %p848 = pneg %p196
        $region46: #{transformer_forward.1} parent=31 // pred_check_branch
          %850 = sbr.rel (%p848) target = $region48
        $region47: #{transformer_forward.1} parent=31 // pred_region
          %p851 = scmp.lt.s32.totalorder %s56, 1
          %s852 = scalar_select %p851, %s56, 1
          %s853 = scalar_lea.vmem %s5, %s852
        $region48: #{transformer_forward.1} parent=31 // pred_fallthru
          _
        // Predicated region
        $region49: #{transformer_forward.1} parent=31 // pred_check
          %p854 = pneg %p222
        $region50: #{transformer_forward.1} parent=31 // pred_check_branch
          %856 = sbr.rel (%p854) target = $region52
        $region51: #{transformer_forward.1} parent=31 // pred_region
          %p857 = scmp.lt.s32.totalorder %s56, 1
          %s858 = scalar_select %p857, %s56, 1
          %s859 = smul.addr %s858, 32
          %s860 = smul.addr %s859, 4
          %s861 = scalar_lea.vmem %s6, %s860
        $region52: #{transformer_forward.1} parent=31 // pred_fallthru
          _
        // Predicated region
        $region53: #{transformer_forward.1} parent=31 // pred_check
          %p862 = pneg %p248
        $region54: #{transformer_forward.1} parent=31 // pred_check_branch
          %864 = sbr.rel (%p862) target = $region56
        $region55: #{transformer_forward.1} parent=31 // pred_region
          %p865 = scmp.lt.s32.totalorder %s56, 1
          %s866 = scalar_select %p865, %s56, 1
          %s867 = smul.addr %s866, 2
          %s868 = scalar_lea.vmem %s7, %s867
        $region56: #{transformer_forward.1} parent=31 // pred_fallthru
          _
        // Predicated region
        $region57: #{transformer_forward.1} parent=31 // pred_check
          %p869 = pneg %p274
        $region58: #{transformer_forward.1} parent=31 // pred_check_branch
          %871 = sbr.rel (%p869) target = $region60
        $region59: #{transformer_forward.1} parent=31 // pred_region
          %s872 = sand.u32 %s56, 1
          %s873 = scalar_lea.sflag [#allocation8], %s872
          %s874 = sand.u32 %s264, 1
          %s875 = smul.addr %s874, 128
          %s876 = scalar_lea.vmem [#allocation9], %s875
          %s878 = ssub.s32 2048, 2048
          %879 = vsyncadd %s873, %s878
          %s880 = smul.addr %s56, 32
          %s881 = smul.addr %s880, 64
          %s882 = scalar_lea.hbm %s8, %s881
          %s883 = sshll.u32 %s876, 4
          %s884 = int_to_ptr.vmem [resolvable:$true] %s883
          %889 = dma.hbm_to_vmem [thread:$0]  %s882, 2048, %s884, %s873, 64, 64, 4
        $region60: #{transformer_forward.1} parent=31 // pred_fallthru
          _
        // Predicated region
        $region61: #{transformer_forward.1} parent=31 // pred_check
          %p890 = pneg %p300
        $region62: #{transformer_forward.1} parent=31 // pred_check_branch
          %892 = sbr.rel (%p890) target = $region64
        $region63: #{transformer_forward.1} parent=31 // pred_region
          %p893 = scmp.lt.s32.totalorder %s56, 1
          %s894 = scalar_select %p893, %s56, 1
          %s895 = scalar_lea.vmem %s9, %s894
        $region64: #{transformer_forward.1} parent=31 // pred_fallthru
          _
        // Predicated region
        $region65: #{transformer_forward.1} parent=31 // pred_check
          %p896 = pneg %p326
        $region66: #{transformer_forward.1} parent=31 // pred_check_branch
          %898 = sbr.rel (%p896) target = $region68
        $region67: #{transformer_forward.1} parent=31 // pred_region
          %p899 = scmp.lt.s32.totalorder %s56, 1
          %s900 = scalar_select %p899, %s56, 1
          %s901 = scalar_lea.vmem %s10, %s900
        $region68: #{transformer_forward.1} parent=31 // pred_fallthru
          _
        // Predicated region
        $region69: #{transformer_forward.1} parent=31 // pred_check
          %p902 = pneg %p352
        $region70: #{transformer_forward.1} parent=31 // pred_check_branch
          %904 = sbr.rel (%p902) target = $region72
        $region71: #{transformer_forward.1} parent=31 // pred_region
          %p905 = scmp.lt.s32.totalorder %s56, 1
          %s906 = scalar_select %p905, %s56, 1
          %s907 = scalar_lea.vmem %s11, %s906
        $region72: #{transformer_forward.1} parent=31 // pred_fallthru
          _
        // Predicated region
        $region73: #{transformer_forward.1} parent=31 // pred_check
          %p908 = pneg %p378
        $region74: #{transformer_forward.1} parent=31 // pred_check_branch
          %910 = sbr.rel (%p908) target = $region76
        $region75: #{transformer_forward.1} parent=31 // pred_region
          %s911 = sand.u32 %s56, 1
          %s912 = scalar_lea.sflag [#allocation11], %s911
          %s913 = sand.u32 %s368, 1
          %s914 = smul.addr %s913, 192
          %s915 = scalar_lea.vmem [#allocation10], %s914
          %s917 = ssub.s32 3072, 3072
          %918 = vsyncadd %s912, %s917
          %s919 = smul.addr %s56, 48
          %s920 = smul.addr %s919, 64
          %s921 = scalar_lea.hbm %s12, %s920
          %s922 = sshll.u32 %s915, 4
          %s923 = int_to_ptr.vmem [resolvable:$true] %s922
          %928 = dma.hbm_to_vmem [thread:$0]  %s921, 3072, %s923, %s912, 192, 192, 12
        $region76: #{transformer_forward.1} parent=31 // pred_fallthru
          _
        // Predicated region
        $region77: #{transformer_forward.1} parent=31 // pred_check
          %p929 = pneg %p404
        $region78: #{transformer_forward.1} parent=31 // pred_check_branch
          %931 = sbr.rel (%p929) target = $region80
        $region79: #{transformer_forward.1} parent=31 // pred_region
          %s932 = sand.u32 %s56, 1
          %s933 = scalar_lea.sflag [#allocation11], %s932
          %s934 = sand.u32 %s394, 1
          %s935 = smul.addr %s934, 64
          %s936 = scalar_lea.vmem [#allocation12], %s935
          %s938 = ssub.s32 1024, 1024
          %939 = vsyncadd %s933, %s938
          %s940 = smul.addr %s56, 16
          %s941 = smul.addr %s940, 64
          %s942 = scalar_lea.hbm %s13, %s941
          %s943 = sshll.u32 %s936, 4
          %s944 = int_to_ptr.vmem [resolvable:$true] %s943
          %949 = dma.hbm_to_vmem [thread:$0]  %s942, 1024, %s944, %s933, 64, 64, 4
        $region80: #{transformer_forward.1} parent=31 // pred_fallthru
          _
        // Predicated region
        $region81: #{transformer_forward.1} parent=31 // pred_check
          %p950 = pneg %p430
        $region82: #{transformer_forward.1} parent=31 // pred_check_branch
          %952 = sbr.rel (%p950) target = $region84
        $region83: #{transformer_forward.1} parent=31 // pred_region
          %p953 = scmp.lt.s32.totalorder %s56, 1
          %s954 = scalar_select %p953, %s56, 1
          %s955 = scalar_lea.vmem %s14, %s954
        $region84: #{transformer_forward.1} parent=31 // pred_fallthru
          _
        // Predicated region
        $region85: #{transformer_forward.1} parent=31 // pred_check
          %p956 = pneg %p456
        $region86: #{transformer_forward.1} parent=31 // pred_check_branch
          %958 = sbr.rel (%p956) target = $region88
        $region87: #{transformer_forward.1} parent=31 // pred_region
          %p959 = scmp.lt.s32.totalorder %s56, 1
          %s960 = scalar_select %p959, %s56, 1
          %s961 = scalar_lea.vmem %s15, %s960
        $region88: #{transformer_forward.1} parent=31 // pred_fallthru
          _
        // Predicated region
        $region89: #{transformer_forward.1} parent=31 // pred_check
          %p962 = pneg %p482
        $region90: #{transformer_forward.1} parent=31 // pred_check_branch
          %964 = sbr.rel (%p962) target = $region92
        $region91: #{transformer_forward.1} parent=31 // pred_region
          %s965 = sand.u32 %s56, 1
          %s966 = scalar_lea.sflag [#allocation14], %s965
          %s967 = sand.u32 %s472, 1
          %s968 = smul.addr %s967, 64
          %s969 = scalar_lea.vmem [#allocation13], %s968
          %s971 = ssub.s32 1024, 1024
          %972 = vsyncadd %s966, %s971
          %s973 = smul.addr %s56, 16
          %s974 = smul.addr %s973, 64
          %s975 = scalar_lea.hbm %s16, %s974
          %s976 = sshll.u32 %s969, 4
          %s977 = int_to_ptr.vmem [resolvable:$true] %s976
          %982 = dma.hbm_to_vmem [thread:$0]  %s975, 1024, %s977, %s966, 64, 64, 4
        $region92: #{transformer_forward.1} parent=31 // pred_fallthru
          _
        // Predicated region
        $region93: #{transformer_forward.1} parent=31 // pred_check
          %p983 = pneg %p508
        $region94: #{transformer_forward.1} parent=31 // pred_check_branch
          %985 = sbr.rel (%p983) target = $region96
        $region95: #{transformer_forward.1} parent=31 // pred_region
          %s986 = sand.u32 %s56, 1
          %s987 = scalar_lea.sflag [#allocation14], %s986
          %s988 = sand.u32 %s498, 1
          %s989 = smul.addr %s988, 128
          %s990 = scalar_lea.vmem [#allocation15], %s989
          %s992 = ssub.s32 2048, 2048
          %993 = vsyncadd %s987, %s992
          %s994 = smul.addr %s56, 32
          %s995 = smul.addr %s994, 64
          %s996 = scalar_lea.hbm %s17, %s995
          %s997 = sshll.u32 %s990, 4
          %s998 = int_to_ptr.vmem [resolvable:$true] %s997
          %1003 = dma.hbm_to_vmem [thread:$0]  %s996, 2048, %s998, %s987, 128, 128, 8
        $region96: #{transformer_forward.1} parent=31 // pred_fallthru
          _
        // Predicated region
        $region97: #{transformer_forward.1} parent=31 // pred_check
          %p1004 = pneg %p534
        $region98: #{transformer_forward.1} parent=31 // pred_check_branch
          %1006 = sbr.rel (%p1004) target = $region100
        $region99: #{transformer_forward.1} parent=31 // pred_region
          %s1007 = sand.u32 %s56, 1
          %s1008 = scalar_lea.sflag [#allocation17], %s1007
          %s1009 = sand.u32 %s524, 1
          %s1010 = smul.addr %s1009, 64
          %s1011 = scalar_lea.vmem [#allocation16], %s1010
          %s1013 = ssub.s32 1024, 1024
          %1014 = vsyncadd %s1008, %s1013
          %s1015 = smul.addr %s56, 16
          %s1016 = smul.addr %s1015, 64
          %s1017 = scalar_lea.hbm %s18, %s1016
          %s1018 = sshll.u32 %s1011, 4
          %s1019 = int_to_ptr.vmem [resolvable:$true] %s1018
          %1024 = dma.hbm_to_vmem [thread:$0]  %s1017, 1024, %s1019, %s1008, 64, 64, 4
        $region100: #{transformer_forward.1} parent=31 // pred_fallthru
          _
        // Predicated region
        $region101: #{transformer_forward.1} parent=31 // pred_check
          %p1025 = pneg %p560
        $region102: #{transformer_forward.1} parent=31 // pred_check_branch
          %1027 = sbr.rel (%p1025) target = $region104
        $region103: #{transformer_forward.1} parent=31 // pred_region
          %s1028 = sand.u32 %s56, 1
          %s1029 = scalar_lea.sflag [#allocation17], %s1028
          %s1030 = sand.u32 %s550, 1
          %s1031 = smul.addr %s1030, 128
          %s1032 = scalar_lea.vmem [#allocation18], %s1031
          %s1034 = ssub.s32 2048, 2048
          %1035 = vsyncadd %s1029, %s1034
          %s1036 = smul.addr %s56, 32
          %s1037 = smul.addr %s1036, 64
          %s1038 = scalar_lea.hbm %s19, %s1037
          %s1039 = sshll.u32 %s1032, 4
          %s1040 = int_to_ptr.vmem [resolvable:$true] %s1039
          %1045 = dma.hbm_to_vmem [thread:$0]  %s1038, 2048, %s1040, %s1029, 128, 128, 8
        $region104: #{transformer_forward.1} parent=31 // pred_fallthru
          _
        // Predicated region
        $region105: #{transformer_forward.1} parent=31 // pred_check
          %p1046 = pneg %p586
        $region106: #{transformer_forward.1} parent=31 // pred_check_branch
          %1048 = sbr.rel (%p1046) target = $region108
        $region107: #{transformer_forward.1} parent=31 // pred_region
          %p1049 = scmp.lt.s32.totalorder %s56, 1
          %s1050 = scalar_select %p1049, %s56, 1
          %s1051 = smul.addr %s1050, 2
          %s1052 = scalar_lea.vmem %s20, %s1051
        $region108: #{transformer_forward.1} parent=31 // pred_fallthru
          _
        // Predicated region
        $region109: #{transformer_forward.1} parent=31 // pred_check
          %p1053 = pneg %p612
        $region110: #{transformer_forward.1} parent=31 // pred_check_branch
          %1055 = sbr.rel (%p1053) target = $region112
        $region111: #{transformer_forward.1} parent=31 // pred_region
          %s1056 = sand.u32 %s56, 1
          %s1057 = scalar_lea.sflag [#allocation20], %s1056
          %s1058 = sand.u32 %s602, 1
          %s1059 = smul.addr %s1058, 128
          %s1060 = scalar_lea.vmem [#allocation19], %s1059
          %s1062 = ssub.s32 2048, 2048
          %1063 = vsyncadd %s1057, %s1062
          %s1064 = smul.addr %s56, 32
          %s1065 = smul.addr %s1064, 64
          %s1066 = scalar_lea.hbm %s21, %s1065
          %s1067 = sshll.u32 %s1060, 4
          %s1068 = int_to_ptr.vmem [resolvable:$true] %s1067
          %1073 = dma.hbm_to_vmem [thread:$0]  %s1066, 2048, %s1068, %s1057, 64, 64, 4
        $region112: #{transformer_forward.1} parent=31 // pred_fallthru
          _
        // Predicated region
        $region113: #{transformer_forward.1} parent=31 // pred_check
          %p1074 = pneg %p638
        $region114: #{transformer_forward.1} parent=31 // pred_check_branch
          %1076 = sbr.rel (%p1074) target = $region116
        $region115: #{transformer_forward.1} parent=31 // pred_region
          %s1077 = sand.u32 %s56, 1
          %s1078 = scalar_lea.sflag [#allocation20], %s1077
          %s1079 = sand.u32 %s628, 1
          %s1080 = scalar_lea.vmem [#allocation21], %s1079
          %s1082 = ssub.s32 16, 16
          %1083 = vsyncadd %s1078, %s1082
          %s1084 = smul.addr %s56, 16
          %s1085 = scalar_lea.hbm %s22, %s1084
          %s1087 = sshll.u32 %s1080, 4
          %s1088 = int_to_ptr.vmem [resolvable:$true] %s1087
          %1090 = dma.hbm_to_vmem [thread:$0]  %s1085, 16, %s1088, %s1078
        $region116: #{transformer_forward.1} parent=31 // pred_fallthru
          _
        // Predicated region
        $region117: #{transformer_forward.1} parent=31 // pred_check
          %p1091 = pneg %p664
        $region118: #{transformer_forward.1} parent=31 // pred_check_branch
          %1093 = sbr.rel (%p1091) target = $region120
        $region119: #{transformer_forward.1} parent=31 // pred_region
          %s1094 = sand.u32 %s56, 1
          %s1095 = scalar_lea.sflag [#allocation23], %s1094
          %s1096 = sand.u32 %s654, 1
          %s1097 = scalar_lea.vmem [#allocation22], %s1096
          %s1099 = ssub.s32 16, 16
          %1100 = vsyncadd %s1095, %s1099
          %s1101 = smul.addr %s56, 16
          %s1102 = scalar_lea.hbm %s23, %s1101
          %s1104 = sshll.u32 %s1097, 4
          %s1105 = int_to_ptr.vmem [resolvable:$true] %s1104
          %1107 = dma.hbm_to_vmem [thread:$0]  %s1102, 16, %s1105, %s1095
        $region120: #{transformer_forward.1} parent=31 // pred_fallthru
          _
        // Predicated region
        $region121: #{transformer_forward.1} parent=31 // pred_check
          %p1108 = pneg %p690
        $region122: #{transformer_forward.1} parent=31 // pred_check_branch
          %1110 = sbr.rel (%p1108) target = $region124
        $region123: #{transformer_forward.1} parent=31 // pred_region
          %s1111 = sand.u32 %s56, 1
          %s1112 = scalar_lea.sflag [#allocation23], %s1111
          %s1113 = sand.u32 %s680, 1
          %s1114 = scalar_lea.vmem [#allocation24], %s1113
          %s1116 = ssub.s32 16, 16
          %1117 = vsyncadd %s1112, %s1116
          %s1118 = smul.addr %s56, 16
          %s1119 = scalar_lea.hbm %s24, %s1118
          %s1121 = sshll.u32 %s1114, 4
          %s1122 = int_to_ptr.vmem [resolvable:$true] %s1121
          %1124 = dma.hbm_to_vmem [thread:$0]  %s1119, 16, %s1122, %s1112
        $region124: #{transformer_forward.1} parent=31 // pred_fallthru
          _
      $region32: #{transformer_forward.1} parent=5 // pred_fallthru
        _
      %p1125 = scmp.le.s32.totalorder 1, %s56
      %p1126 = scmp.lt.s32.totalorder %s56, 3
      %p1127 = pnand %p1125, %p1126
      %p1128 = pneg %p1127
      // Predicated region
      $region125: #{transformer_forward.1} parent=5 // pred_check
        _
      $region126: #{transformer_forward.1} parent=5 // pred_check_branch
        %1130 = sbr.rel (%p1127) target = $region128
      $region127: #{transformer_forward.1} parent=5 // pred_region
        %s1131 = ssub.s32 %s56, 1
        %s1132 = sand.u32 %s111, 1
        %s1133 = scalar_lea.sflag [#allocation5], %s1132
        %s1134 = sand.u32 %s111, 1
        %s1135 = smul.addr %s1134, 192
        %s1136 = scalar_lea.vmem [#allocation4], %s1135
        // Predicated region
        $region129: #{transformer_forward.1} parent=127 // pred_check
          %p1137 = pneg %p124
        $region130: #{transformer_forward.1} parent=127 // pred_check_branch
          %1139 = sbr.rel (%p1137) target = $region132
        $region131: #{transformer_forward.1} parent=127 // pred_region
          %1140 = dma.done %s1133, 3072
        $region132: #{transformer_forward.1} parent=127 // pred_fallthru
          _
        %s1141 = sand.u32 %s61, 1
        %s1142 = scalar_lea.sflag [#allocation8], %s1141
        %s1143 = sand.u32 %s137, 1
        %s1144 = smul.addr %s1143, 64
        %s1145 = scalar_lea.vmem [#allocation7], %s1144
        // Predicated region
        $region133: #{transformer_forward.1} parent=127 // pred_check
          %p1146 = pneg %p150
        $region134: #{transformer_forward.1} parent=127 // pred_check_branch
          %1148 = sbr.rel (%p1146) target = $region136
        $region135: #{transformer_forward.1} parent=127 // pred_region
          %1149 = dma.done %s1142, 1024
        $region136: #{transformer_forward.1} parent=127 // pred_fallthru
          _
        %s1150 = sand.u32 %s61, 1
        %s1151 = scalar_lea.sflag [#allocation8], %s1150
        %s1152 = sand.u32 %s267, 1
        %s1153 = smul.addr %s1152, 128
        %s1154 = scalar_lea.vmem [#allocation9], %s1153
        // Predicated region
        $region137: #{transformer_forward.1} parent=127 // pred_check
          %p1155 = pneg %p280
        $region138: #{transformer_forward.1} parent=127 // pred_check_branch
          %1157 = sbr.rel (%p1155) target = $region140
        $region139: #{transformer_forward.1} parent=127 // pred_region
          %1158 = dma.done %s1151, 2048
        $region140: #{transformer_forward.1} parent=127 // pred_fallthru
          _
        %s1159 = sand.u32 %s61, 1
        %s1160 = scalar_lea.sflag [#allocation11], %s1159
        %s1161 = sand.u32 %s371, 1
        %s1162 = smul.addr %s1161, 192
        %s1163 = scalar_lea.vmem [#allocation10], %s1162
        // Predicated region
        $region141: #{transformer_forward.1} parent=127 // pred_check
          %p1164 = pneg %p384
        $region142: #{transformer_forward.1} parent=127 // pred_check_branch
          %1166 = sbr.rel (%p1164) target = $region144
        $region143: #{transformer_forward.1} parent=127 // pred_region
          %1167 = dma.done %s1160, 3072
        $region144: #{transformer_forward.1} parent=127 // pred_fallthru
          _
        %s1168 = sand.u32 %s61, 1
        %s1169 = scalar_lea.sflag [#allocation11], %s1168
        %s1170 = sand.u32 %s397, 1
        %s1171 = smul.addr %s1170, 64
        %s1172 = scalar_lea.vmem [#allocation12], %s1171
        // Predicated region
        $region145: #{transformer_forward.1} parent=127 // pred_check
          %p1173 = pneg %p410
        $region146: #{transformer_forward.1} parent=127 // pred_check_branch
          %1175 = sbr.rel (%p1173) target = $region148
        $region147: #{transformer_forward.1} parent=127 // pred_region
          %1176 = dma.done %s1169, 1024
        $region148: #{transformer_forward.1} parent=127 // pred_fallthru
          _
        %s1177 = sand.u32 %s61, 1
        %s1178 = scalar_lea.sflag [#allocation14], %s1177
        %s1179 = sand.u32 %s475, 1
        %s1180 = smul.addr %s1179, 64
        %s1181 = scalar_lea.vmem [#allocation13], %s1180
        // Predicated region
        $region149: #{transformer_forward.1} parent=127 // pred_check
          %p1182 = pneg %p488
        $region150: #{transformer_forward.1} parent=127 // pred_check_branch
          %1184 = sbr.rel (%p1182) target = $region152
        $region151: #{transformer_forward.1} parent=127 // pred_region
          %1185 = dma.done %s1178, 1024
        $region152: #{transformer_forward.1} parent=127 // pred_fallthru
          _
        %s1186 = sand.u32 %s61, 1
        %s1187 = scalar_lea.sflag [#allocation14], %s1186
        %s1188 = sand.u32 %s501, 1
        %s1189 = smul.addr %s1188, 128
        %s1190 = scalar_lea.vmem [#allocation15], %s1189
        // Predicated region
        $region153: #{transformer_forward.1} parent=127 // pred_check
          %p1191 = pneg %p514
        $region154: #{transformer_forward.1} parent=127 // pred_check_branch
          %1193 = sbr.rel (%p1191) target = $region156
        $region155: #{transformer_forward.1} parent=127 // pred_region
          %1194 = dma.done %s1187, 2048
        $region156: #{transformer_forward.1} parent=127 // pred_fallthru
          _
        %s1195 = sand.u32 %s61, 1
        %s1196 = scalar_lea.sflag [#allocation17], %s1195
        %s1197 = sand.u32 %s527, 1
        %s1198 = smul.addr %s1197, 64
        %s1199 = scalar_lea.vmem [#allocation16], %s1198
        // Predicated region
        $region157: #{transformer_forward.1} parent=127 // pred_check
          %p1200 = pneg %p540
        $region158: #{transformer_forward.1} parent=127 // pred_check_branch
          %1202 = sbr.rel (%p1200) target = $region160
        $region159: #{transformer_forward.1} parent=127 // pred_region
          %1203 = dma.done %s1196, 1024
        $region160: #{transformer_forward.1} parent=127 // pred_fallthru
          _
        %s1204 = sand.u32 %s61, 1
        %s1205 = scalar_lea.sflag [#allocation17], %s1204
        %s1206 = sand.u32 %s553, 1
        %s1207 = smul.addr %s1206, 128
        %s1208 = scalar_lea.vmem [#allocation18], %s1207
        // Predicated region
        $region161: #{transformer_forward.1} parent=127 // pred_check
          %p1209 = pneg %p566
        $region162: #{transformer_forward.1} parent=127 // pred_check_branch
          %1211 = sbr.rel (%p1209) target = $region164
        $region163: #{transformer_forward.1} parent=127 // pred_region
          %1212 = dma.done %s1205, 2048
        $region164: #{transformer_forward.1} parent=127 // pred_fallthru
          _
        %s1213 = sand.u32 %s61, 1
        %s1214 = scalar_lea.sflag [#allocation20], %s1213
        %s1215 = sand.u32 %s605, 1
        %s1216 = smul.addr %s1215, 128
        %s1217 = scalar_lea.vmem [#allocation19], %s1216
        // Predicated region
        $region165: #{transformer_forward.1} parent=127 // pred_check
          %p1218 = pneg %p618
        $region166: #{transformer_forward.1} parent=127 // pred_check_branch
          %1220 = sbr.rel (%p1218) target = $region168
        $region167: #{transformer_forward.1} parent=127 // pred_region
          %1221 = dma.done %s1214, 2048
        $region168: #{transformer_forward.1} parent=127 // pred_fallthru
          _
        %s1222 = sand.u32 %s61, 1
        %s1223 = scalar_lea.sflag [#allocation20], %s1222
        %s1224 = sand.u32 %s631, 1
        %s1225 = scalar_lea.vmem [#allocation21], %s1224
        // Predicated region
        $region169: #{transformer_forward.1} parent=127 // pred_check
          %p1226 = pneg %p644
        $region170: #{transformer_forward.1} parent=127 // pred_check_branch
          %1228 = sbr.rel (%p1226) target = $region172
        $region171: #{transformer_forward.1} parent=127 // pred_region
          %1229 = dma.done %s1223, 16
        $region172: #{transformer_forward.1} parent=127 // pred_fallthru
          _
        %s1230 = sand.u32 %s61, 1
        %s1231 = scalar_lea.sflag [#allocation23], %s1230
        %s1232 = sand.u32 %s657, 1
        %s1233 = scalar_lea.vmem [#allocation22], %s1232
        // Predicated region
        $region173: #{transformer_forward.1} parent=127 // pred_check
          %p1234 = pneg %p670
        $region174: #{transformer_forward.1} parent=127 // pred_check_branch
          %1236 = sbr.rel (%p1234) target = $region176
        $region175: #{transformer_forward.1} parent=127 // pred_region
          %1237 = dma.done %s1231, 16
        $region176: #{transformer_forward.1} parent=127 // pred_fallthru
          _
        %s1238 = sand.u32 %s61, 1
        %s1239 = scalar_lea.sflag [#allocation23], %s1238
        %s1240 = sand.u32 %s683, 1
        %s1241 = scalar_lea.vmem [#allocation24], %s1240
        // Predicated region
        $region177: #{transformer_forward.1} parent=127 // pred_check
          %p1242 = pneg %p696
        $region178: #{transformer_forward.1} parent=127 // pred_check_branch
          %1244 = sbr.rel (%p1242) target = $region180
        $region179: #{transformer_forward.1} parent=127 // pred_region
          %1245 = dma.done %s1239, 16
        $region180: #{transformer_forward.1} parent=127 // pred_fallthru
          _
        // Predicated region
        $region181: #{transformer_forward.1} parent=127 // pred_check
          %p1246 = pneg %p717
        $region182: #{transformer_forward.1} parent=127 // pred_check_branch
          %1248 = sbr.rel (%p1246) target = $region184
        $region183: #{transformer_forward.1} parent=127 // pred_region
          %1249 = dma.done [#allocation26], 1024
        $region184: #{transformer_forward.1} parent=127 // pred_fallthru
          _
        %p1250 = pneg %p77
        %p1251 = pneg %p74
        %p1252 = pneg %p98
        %p1253 = pneg %p95
        %s1254 = sand.u32 %s111, 1
        %s1255 = scalar_lea.sflag [#allocation5], %s1254
        %s1256 = sand.u32 %s111, 1
        %s1257 = smul.addr %s1256, 192
        %s1258 = scalar_lea.vmem [#allocation4], %s1257
        %p1259 = pneg %p124
        %p1260 = pneg %p121
        %s1261 = sand.u32 %s61, 1
        %s1262 = scalar_lea.sflag [#allocation8], %s1261
        %s1263 = sand.u32 %s137, 1
        %s1264 = smul.addr %s1263, 64
        %s1265 = scalar_lea.vmem [#allocation7], %s1264
        %p1266 = pneg %p150
        %p1267 = pneg %p147
        %p1268 = scmp.lt.s32.totalorder %s61, 1
        %s1269 = scalar_select %p1268, %s61, 1
        %s1270 = scalar_lea.vmem %s4, %s1269
        %p1271 = pneg %p176
        %p1272 = pneg %p173
        %p1273 = scmp.lt.s32.totalorder %s61, 1
        %s1274 = scalar_select %p1273, %s61, 1
        %s1275 = scalar_lea.vmem %s5, %s1274
        %p1276 = pneg %p202
        %p1277 = pneg %p199
        %p1278 = scmp.lt.s32.totalorder %s61, 1
        %s1279 = scalar_select %p1278, %s61, 1
        %s1280 = smul.addr %s1279, 32
        %s1281 = smul.addr %s1280, 4
        %s1282 = scalar_lea.vmem %s6, %s1281
        %p1283 = pneg %p228
        %p1284 = pneg %p225
        %p1285 = scmp.lt.s32.totalorder %s61, 1
        %s1286 = scalar_select %p1285, %s61, 1
        %s1287 = smul.addr %s1286, 2
        %s1288 = scalar_lea.vmem %s7, %s1287
        %p1289 = pneg %p254
        %p1290 = pneg %p251
        %s1291 = sand.u32 %s61, 1
        %s1292 = scalar_lea.sflag [#allocation8], %s1291
        %s1293 = sand.u32 %s267, 1
        %s1294 = smul.addr %s1293, 128
        %s1295 = scalar_lea.vmem [#allocation9], %s1294
        %p1296 = pneg %p280
        %p1297 = pneg %p277
        %p1298 = scmp.lt.s32.totalorder %s61, 1
        %s1299 = scalar_select %p1298, %s61, 1
        %s1300 = scalar_lea.vmem %s9, %s1299
        %p1301 = pneg %p306
        %p1302 = pneg %p303
        %p1303 = scmp.lt.s32.totalorder %s61, 1
        %s1304 = scalar_select %p1303, %s61, 1
        %s1305 = scalar_lea.vmem %s10, %s1304
        %p1306 = pneg %p332
        %p1307 = pneg %p329
        %p1308 = scmp.lt.s32.totalorder %s61, 1
        %s1309 = scalar_select %p1308, %s61, 1
        %s1310 = scalar_lea.vmem %s11, %s1309
        %p1311 = pneg %p358
        %p1312 = pneg %p355
        %s1313 = sand.u32 %s61, 1
        %s1314 = scalar_lea.sflag [#allocation11], %s1313
        %s1315 = sand.u32 %s371, 1
        %s1316 = smul.addr %s1315, 192
        %s1317 = scalar_lea.vmem [#allocation10], %s1316
        %p1318 = pneg %p384
        %p1319 = pneg %p381
        %s1320 = sand.u32 %s61, 1
        %s1321 = scalar_lea.sflag [#allocation11], %s1320
        %s1322 = sand.u32 %s397, 1
        %s1323 = smul.addr %s1322, 64
        %s1324 = scalar_lea.vmem [#allocation12], %s1323
        %p1325 = pneg %p410
        %p1326 = pneg %p407
        %p1327 = scmp.lt.s32.totalorder %s61, 1
        %s1328 = scalar_select %p1327, %s61, 1
        %s1329 = scalar_lea.vmem %s14, %s1328
        %p1330 = pneg %p436
        %p1331 = pneg %p433
        %p1332 = scmp.lt.s32.totalorder %s61, 1
        %s1333 = scalar_select %p1332, %s61, 1
        %s1334 = scalar_lea.vmem %s15, %s1333
        %p1335 = pneg %p462
        %p1336 = pneg %p459
        %s1337 = sand.u32 %s61, 1
        %s1338 = scalar_lea.sflag [#allocation14], %s1337
        %s1339 = sand.u32 %s475, 1
        %s1340 = smul.addr %s1339, 64
        %s1341 = scalar_lea.vmem [#allocation13], %s1340
        %p1342 = pneg %p488
        %p1343 = pneg %p485
        %s1344 = sand.u32 %s61, 1
        %s1345 = scalar_lea.sflag [#allocation14], %s1344
        %s1346 = sand.u32 %s501, 1
        %s1347 = smul.addr %s1346, 128
        %s1348 = scalar_lea.vmem [#allocation15], %s1347
        %p1349 = pneg %p514
        %p1350 = pneg %p511
        %s1351 = sand.u32 %s61, 1
        %s1352 = scalar_lea.sflag [#allocation17], %s1351
        %s1353 = sand.u32 %s527, 1
        %s1354 = smul.addr %s1353, 64
        %s1355 = scalar_lea.vmem [#allocation16], %s1354
        %p1356 = pneg %p540
        %p1357 = pneg %p537
        %s1358 = sand.u32 %s61, 1
        %s1359 = scalar_lea.sflag [#allocation17], %s1358
        %s1360 = sand.u32 %s553, 1
        %s1361 = smul.addr %s1360, 128
        %s1362 = scalar_lea.vmem [#allocation18], %s1361
        %p1363 = pneg %p566
        %p1364 = pneg %p563
        %p1365 = scmp.lt.s32.totalorder %s61, 1
        %s1366 = scalar_select %p1365, %s61, 1
        %s1367 = smul.addr %s1366, 2
        %s1368 = scalar_lea.vmem %s20, %s1367
        %p1369 = pneg %p592
        %p1370 = pneg %p589
        %s1371 = sand.u32 %s61, 1
        %s1372 = scalar_lea.sflag [#allocation20], %s1371
        %s1373 = sand.u32 %s605, 1
        %s1374 = smul.addr %s1373, 128
        %s1375 = scalar_lea.vmem [#allocation19], %s1374
        %p1376 = pneg %p618
        %p1377 = pneg %p615
        %s1378 = sand.u32 %s61, 1
        %s1379 = scalar_lea.sflag [#allocation20], %s1378
        %s1380 = sand.u32 %s631, 1
        %s1381 = scalar_lea.vmem [#allocation21], %s1380
        %p1382 = pneg %p644
        %p1383 = pneg %p641
        %s1384 = sand.u32 %s61, 1
        %s1385 = scalar_lea.sflag [#allocation23], %s1384
        %s1386 = sand.u32 %s657, 1
        %s1387 = scalar_lea.vmem [#allocation22], %s1386
        %p1388 = pneg %p670
        %p1389 = pneg %p667
        %s1390 = sand.u32 %s61, 1
        %s1391 = scalar_lea.sflag [#allocation23], %s1390
        %s1392 = sand.u32 %s683, 1
        %s1393 = scalar_lea.vmem [#allocation24], %s1392
        %p1394 = pneg %p696
        %p1395 = pneg %p693
        %p1396 = pneg %p717
        %p1397 = pneg %p714
        %p1398 = pneg %p738
        %p1399 = pneg %p735
        %p1400 = pneg %p759
        %p1401 = pneg %p756
        %p1402 = scmp.lt.s32.totalorder %s61, 1
        %s1403 = scalar_select %p1402, %s61, 1
        %s1404 = scalar_lea.vmem %s4, %s1403
        %p1405 = scmp.lt.s32.totalorder %s61, 1
        %s1406 = scalar_select %p1405, %s61, 1
        %s1407 = scalar_lea.vmem %s5, %s1406
        %p1408 = scmp.lt.s32.totalorder %s61, 1
        %s1409 = scalar_select %p1408, %s61, 1
        %s1410 = smul.addr %s1409, 32
        %s1411 = smul.addr %s1410, 4
        %s1412 = scalar_lea.vmem %s6, %s1411
        %p1413 = scmp.lt.s32.totalorder %s61, 1
        %s1414 = scalar_select %p1413, %s61, 1
        %s1415 = smul.addr %s1414, 2
        %s1416 = scalar_lea.vmem %s7, %s1415
        %p1417 = scmp.lt.s32.totalorder %s61, 1
        %s1418 = scalar_select %p1417, %s61, 1
        %s1419 = scalar_lea.vmem %s9, %s1418
        %p1420 = scmp.lt.s32.totalorder %s61, 1
        %s1421 = scalar_select %p1420, %s61, 1
        %s1422 = scalar_lea.vmem %s10, %s1421
        %p1423 = scmp.lt.s32.totalorder %s61, 1
        %s1424 = scalar_select %p1423, %s61, 1
        %s1425 = scalar_lea.vmem %s11, %s1424
        %p1426 = scmp.lt.s32.totalorder %s61, 1
        %s1427 = scalar_select %p1426, %s61, 1
        %s1428 = scalar_lea.vmem %s14, %s1427
        %p1429 = scmp.lt.s32.totalorder %s61, 1
        %s1430 = scalar_select %p1429, %s61, 1
        %s1431 = scalar_lea.vmem %s15, %s1430
        %p1432 = scmp.lt.s32.totalorder %s61, 1
        %s1433 = scalar_select %p1432, %s61, 1
        %s1434 = smul.addr %s1433, 2
        %s1435 = scalar_lea.vmem %s20, %s1434
        %p1437 = scmp.eq.s32.totalorder %s61, 0
        // Predicated region
        $region185: #{transformer_forward.1} parent=127 // pred_check
          %p1438 = pneg %p1437
        $region186: #{transformer_forward.1} parent=127 // pred_check_branch
          %1440 = sbr.rel (%p1438) target = $region188
        $region187: #{transformer_forward.1} parent=127 // pred_region
          %v1441 = vld [vmem:[%s0] sm:$0xff]
          %1442 = vst [vmem:[#allocation2] sm:$0xff] %v1441
          %v1443 = vld [vmem:[%s1] sm:$0xff]
          %1444 = vst [vmem:[#allocation3] sm:$0xff] %v1443
        $region188: #{transformer_forward.1} parent=127 // pred_fallthru
          _
        %v1445 = vld [vmem:[#allocation2] sm:$0xff]
        %v1446 = vld [vmem:[%s1136] sm:$0xff]
        %v1447 = vld [vmem:[%s1136 + $0x8] sm:$0xf]
        %v1448 = vld [vmem:[%s1136 + $0xc] sm:$0xff]
        %v1449 = vld [vmem:[%s1136 + $0x14] sm:$0xf]
        %v1450 = vld [vmem:[%s1136 + $0x18] sm:$0xff]
        %v1451 = vld [vmem:[%s1136 + $0x20] sm:$0xf]
        %v1452 = vld [vmem:[%s1136 + $0x24] sm:$0xff]
        %v1453 = vld [vmem:[%s1136 + $0x2c] sm:$0xf]
        %v1454 = vld [vmem:[%s1136 + $0x30] sm:$0xff]
        %v1455 = vld [vmem:[%s1136 + $0x38] sm:$0xf]
        %v1456 = vld [vmem:[%s1136 + $0x3c] sm:$0xff]
        %v1457 = vld [vmem:[%s1136 + $0x44] sm:$0xf]
        %v1458 = vld [vmem:[%s1136 + $0x48] sm:$0xff]
        %v1459 = vld [vmem:[%s1136 + $0x50] sm:$0xf]
        %v1460 = vld [vmem:[%s1136 + $0x54] sm:$0xff]
        %v1461 = vld [vmem:[%s1136 + $0x5c] sm:$0xf]
        %v1462 = vld [vmem:[%s1136 + $0x60] sm:$0xff]
        %v1463 = vld [vmem:[%s1136 + $0x68] sm:$0xf]
        %v1464 = vld [vmem:[%s1136 + $0x6c] sm:$0xff]
        %v1465 = vld [vmem:[%s1136 + $0x74] sm:$0xf]
        %v1466 = vld [vmem:[%s1136 + $0x78] sm:$0xff]
        %v1467 = vld [vmem:[%s1136 + $0x80] sm:$0xf]
        %v1468 = vld [vmem:[%s1136 + $0x84] sm:$0xff]
        %v1469 = vld [vmem:[%s1136 + $0x8c] sm:$0xf]
        %v1470 = vld [vmem:[%s1136 + $0x90] sm:$0xff]
        %v1471 = vld [vmem:[%s1136 + $0x98] sm:$0xf]
        %v1472 = vld [vmem:[%s1136 + $0x9c] sm:$0xff]
        %v1473 = vld [vmem:[%s1136 + $0xa4] sm:$0xf]
        %v1474 = vld [vmem:[%s1136 + $0xa8] sm:$0xff]
        %v1475 = vld [vmem:[%s1136 + $0xb0] sm:$0xf]
        %v1476 = vld [vmem:[%s1136 + $0xb4] sm:$0xff]
        %v1477 = vld [vmem:[%s1136 + $0xbc] sm:$0xf]
        %v1478 = vld [vmem:[%s1145] sm:$0xf]
        %v1479 = vld [vmem:[%s1145 + $0x4] sm:$0xf]
        %v1480 = vld [vmem:[%s1145 + $0x8] sm:$0xf]
        %v1481 = vld [vmem:[%s1145 + $0xc] sm:$0xf]
        %v1482 = vld [vmem:[%s1145 + $0x10] sm:$0xf]
        %v1483 = vld [vmem:[%s1145 + $0x14] sm:$0xf]
        %v1484 = vld [vmem:[%s1145 + $0x18] sm:$0xf]
        %v1485 = vld [vmem:[%s1145 + $0x1c] sm:$0xf]
        %v1486 = vld [vmem:[%s1145 + $0x20] sm:$0xf]
        %v1487 = vld [vmem:[%s1145 + $0x24] sm:$0xf]
        %v1488 = vld [vmem:[%s1145 + $0x28] sm:$0xf]
        %v1489 = vld [vmem:[%s1145 + $0x2c] sm:$0xf]
        %v1490 = vld [vmem:[%s1145 + $0x30] sm:$0xf]
        %v1491 = vld [vmem:[%s1145 + $0x34] sm:$0xf]
        %v1492 = vld [vmem:[%s1145 + $0x38] sm:$0xf]
        %v1493 = vld [vmem:[%s1145 + $0x3c] sm:$0xf]
        %v1494 = vpack.c.bf16 %v1445, %v1445
        %v1527 = vunpack.c.l.b16 %v1446
        %v1528 = vunpack.c.h.b16 %v1446
        %v1529 = vunpack.c.l.b16 %v1447
        %v1530 = vunpack.c.l.b16 %v1448
        %v1531 = vunpack.c.h.b16 %v1448
        %v1532 = vunpack.c.l.b16 %v1449
        %v1533 = vunpack.c.l.b16 %v1450
        %v1534 = vunpack.c.h.b16 %v1450
        %v1535 = vunpack.c.l.b16 %v1451
        %v1536 = vunpack.c.l.b16 %v1452
        %v1537 = vunpack.c.h.b16 %v1452
        %v1538 = vunpack.c.l.b16 %v1453
        %v1539 = vunpack.c.l.b16 %v1454
        %v1540 = vunpack.c.h.b16 %v1454
        %v1541 = vunpack.c.l.b16 %v1455
        %v1542 = vunpack.c.l.b16 %v1456
        %v1543 = vunpack.c.h.b16 %v1456
        %v1544 = vunpack.c.l.b16 %v1457
        %v1545 = vunpack.c.l.b16 %v1458
        %v1546 = vunpack.c.h.b16 %v1458
        %v1547 = vunpack.c.l.b16 %v1459
        %v1548 = vunpack.c.l.b16 %v1460
        %v1549 = vunpack.c.h.b16 %v1460
        %v1550 = vunpack.c.l.b16 %v1461
        %v1551 = vunpack.c.l.b16 %v1462
        %v1552 = vunpack.c.h.b16 %v1462
        %v1553 = vunpack.c.l.b16 %v1463
        %v1554 = vunpack.c.l.b16 %v1464
        %v1555 = vunpack.c.h.b16 %v1464
        %v1556 = vunpack.c.l.b16 %v1465
        %v1557 = vunpack.c.l.b16 %v1466
        %v1558 = vunpack.c.h.b16 %v1466
        %v1559 = vunpack.c.l.b16 %v1467
        %v1560 = vunpack.c.l.b16 %v1468
        %v1561 = vunpack.c.h.b16 %v1468
        %v1562 = vunpack.c.l.b16 %v1469
        %v1563 = vunpack.c.l.b16 %v1470
        %v1564 = vunpack.c.h.b16 %v1470
        %v1565 = vunpack.c.l.b16 %v1471
        %v1566 = vunpack.c.l.b16 %v1472
        %v1567 = vunpack.c.h.b16 %v1472
        %v1568 = vunpack.c.l.b16 %v1473
        %v1569 = vunpack.c.l.b16 %v1474
        %v1570 = vunpack.c.h.b16 %v1474
        %v1571 = vunpack.c.l.b16 %v1475
        %v1572 = vunpack.c.l.b16 %v1476
        %v1573 = vunpack.c.h.b16 %v1476
        %v1574 = vunpack.c.l.b16 %v1477
        %v1575 = vpack.c.b16 %v1530, %v1527
        %v1576 = vpack.c.b16 %v1531, %v1528
        %v1577 = vpack.c.b16 %v1532, %v1529
        %v1578 = vpack.c.b16 %v1536, %v1533
        %v1579 = vpack.c.b16 %v1537, %v1534
        %v1580 = vpack.c.b16 %v1538, %v1535
        %v1581 = vpack.c.b16 %v1542, %v1539
        %v1582 = vpack.c.b16 %v1543, %v1540
        %v1583 = vpack.c.b16 %v1544, %v1541
        %v1584 = vpack.c.b16 %v1548, %v1545
        %v1585 = vpack.c.b16 %v1549, %v1546
        %v1586 = vpack.c.b16 %v1550, %v1547
        %v1587 = vpack.c.b16 %v1554, %v1551
        %v1588 = vpack.c.b16 %v1555, %v1552
        %v1589 = vpack.c.b16 %v1556, %v1553
        %v1590 = vpack.c.b16 %v1560, %v1557
        %v1591 = vpack.c.b16 %v1561, %v1558
        %v1592 = vpack.c.b16 %v1562, %v1559
        %v1593 = vpack.c.b16 %v1566, %v1563
        %v1594 = vpack.c.b16 %v1567, %v1564
        %v1595 = vpack.c.b16 %v1568, %v1565
        %v1596 = vpack.c.b16 %v1572, %v1569
        %v1597 = vpack.c.b16 %v1573, %v1570
        %v1598 = vpack.c.b16 %v1574, %v1571
        %1623 = vmatprep.subr.bf16.mxu0 %v1576
        %1624 = vmatpush1.bf16.msra.mxu0 %v1575
        %1625 = vmatprep.subr.bf16.mxu0 %v1579
        %1626 = vmatpush1.bf16.msra.mxu0 %v1578
        %1627 = vmatprep.subr.bf16.mxu0 %v1582
        %1628 = vmatpush1.bf16.msra.mxu0 %v1581
        %1629 = vmatprep.subr.bf16.mxu0 %v1585
        %1630 = vmatpush1.bf16.msra.mxu0 %v1584
        %1631 = vmatprep.subr.bf16.mxu0 %v1588
        %1632 = vmatpush1.bf16.msra.mxu0 %v1587
        %1633 = vmatprep.subr.bf16.mxu0 %v1591
        %1634 = vmatpush1.bf16.msra.mxu0 %v1590
        %1635 = vmatprep.subr.bf16.mxu0 %v1594
        %1636 = vmatpush1.bf16.msra.mxu0 %v1593
        %1637 = vmatprep.subr.bf16.mxu0 %v1597
        %1638 = vmatpush1.bf16.msra.mxu0 %v1596
        %1639 = vmatprep.subr.bf16.mxu0 0
        %1640 = vmatpush1.bf16.msra.mxu0 0
        %1641 = vmatprep.subr.bf16.mxu0 0
        %1642 = vmatpush1.bf16.msra.mxu0 0
        %1643 = vmatprep.subr.bf16.mxu0 0
        %1644 = vmatpush1.bf16.msra.mxu0 0
        %1645 = vmatprep.subr.bf16.mxu0 0
        %1646 = vmatpush1.bf16.msra.mxu0 0
        %1647 = vmatprep.subr.bf16.mxu0 0
        %1648 = vmatpush1.bf16.msra.mxu0 0
        %1649 = vmatprep.subr.bf16.mxu0 0
        %1650 = vmatpush1.bf16.msra.mxu0 0
        %1651 = vmatprep.subr.bf16.mxu0 0
        %1652 = vmatpush1.bf16.msra.mxu0 0
        %1653 = vmatprep.subr.bf16.mxu0 0
        %1654 = vmatpush1.bf16.msra.mxu0 0
        %1655 = vmatprep.mubr.bf16.mxu0 0
        %1656 = vmatmul.mubr.bf16.gmra.mrb[0].mxu0 %v1494
        %v1657 = vpop.f32.mrb[0].mxu0
        %v1658 = vadd.f32 0.0, %v1657
        %v1659 = vpop.f32.mrb[0].mxu0
        %v1660 = vadd.f32 0.0, %v1659
        %v1661 = vpop.f32.mrb[0].mxu0
        %v1662 = vpop.f32.mrb[0].mxu0
        %1663 = vdwg.mxu0
        %1664 = vmatprep.subr.bf16.mxu0 0
        %1665 = vmatpush1.bf16.msra.mxu0 %v1577
        %1666 = vmatprep.subr.bf16.mxu0 0
        %1667 = vmatpush1.bf16.msra.mxu0 %v1580
        %1668 = vmatprep.subr.bf16.mxu0 0
        %1669 = vmatpush1.bf16.msra.mxu0 %v1583
        %1670 = vmatprep.subr.bf16.mxu0 0
        %1671 = vmatpush1.bf16.msra.mxu0 %v1586
        %1672 = vmatprep.subr.bf16.mxu0 0
        %1673 = vmatpush1.bf16.msra.mxu0 %v1589
        %1674 = vmatprep.subr.bf16.mxu0 0
        %1675 = vmatpush1.bf16.msra.mxu0 %v1592
        %1676 = vmatprep.subr.bf16.mxu0 0
        %1677 = vmatpush1.bf16.msra.mxu0 %v1595
        %1678 = vmatprep.subr.bf16.mxu0 0
        %1679 = vmatpush1.bf16.msra.mxu0 %v1598
        %1680 = vmatprep.subr.bf16.mxu0 0
        %1681 = vmatpush1.bf16.msra.mxu0 0
        %1682 = vmatprep.subr.bf16.mxu0 0
        %1683 = vmatpush1.bf16.msra.mxu0 0
        %1684 = vmatprep.subr.bf16.mxu0 0
        %1685 = vmatpush1.bf16.msra.mxu0 0
        %1686 = vmatprep.subr.bf16.mxu0 0
        %1687 = vmatpush1.bf16.msra.mxu0 0
        %1688 = vmatprep.subr.bf16.mxu0 0
        %1689 = vmatpush1.bf16.msra.mxu0 0
        %1690 = vmatprep.subr.bf16.mxu0 0
        %1691 = vmatpush1.bf16.msra.mxu0 0
        %1692 = vmatprep.subr.bf16.mxu0 0
        %1693 = vmatpush1.bf16.msra.mxu0 0
        %1694 = vmatprep.subr.bf16.mxu0 0
        %1695 = vmatpush1.bf16.msra.mxu0 0
        %1696 = vmatprep.mubr.bf16.mxu0 0
        %1697 = vmatmul.mubr.bf16.gmra.mrb[0].mxu0 %v1494
        %v1698 = vpop.f32.mrb[0].mxu0
        %v1699 = vadd.f32 0.0, %v1698
        %v1700 = vpop.f32.mrb[0].mxu0
        %v1701 = vpop.f32.mrb[0].mxu0
        %v1702 = vpop.f32.mrb[0].mxu0
        %1703 = vdwg.mxu0
        %v1704 = vmul.f32 %v1658, 0.25
        %vm1705 = vcmask 130048
        %v1707 = vsel %vm1705, %v1704, 0
        %v1710 = vsel %vm1705, %v1660, 0
        %1712 = vmatprep.subr.mxu0 0.0
        %1713 = vmatpush1.xpose.msra.mxu0 %v1710
        %1714 = vmatprep.subr.mxu0 0.0
        %1715 = vmatpush1.xpose.msra.mxu0 0.0
        %1716 = vmatprep.subr.mxu0 0.0
        %1717 = vmatpush1.xpose.msra.mxu0 0.0
        %1718 = vmatprep.subr.mxu0 0.0
        %1719 = vmatpush1.xpose.msra.mxu0 0.0
        %1720 = vmatprep.subr.mxu0 0.0
        %1721 = vmatpush1.xpose.msra.mxu0 0.0
        %1722 = vmatprep.subr.mxu0 0.0
        %1723 = vmatpush1.xpose.msra.mxu0 0.0
        %1724 = vmatprep.subr.mxu0 0.0
        %1725 = vmatpush1.xpose.msra.mxu0 0.0
        %1726 = vmatprep.subr.mxu0 0.0
        %1727 = vmatpush1.xpose.msra.mxu0 0.0
        %1728 = vmatprep.subr.mxu0 0.0
        %1729 = vmatpush1.xpose.msra.mxu0 0.0
        %1730 = vmatprep.subr.mxu0 0.0
        %1731 = vmatpush1.xpose.msra.mxu0 0.0
        %1732 = vmatprep.subr.mxu0 0.0
        %1733 = vmatpush1.xpose.msra.mxu0 0.0
        %1734 = vmatprep.subr.mxu0 0.0
        %1735 = vmatpush1.xpose.msra.mxu0 0.0
        %1736 = vmatprep.subr.mxu0 0.0
        %1737 = vmatpush1.xpose.msra.mxu0 0.0
        %1738 = vmatprep.subr.mxu0 0.0
        %1739 = vmatpush1.xpose.msra.mxu0 0.0
        %1740 = vmatprep.subr.mxu0 0.0
        %1741 = vmatpush1.xpose.msra.mxu0 0.0
        %1742 = vmatprep.subr.mxu0 0.0
        %1743 = vmatpush1.xpose.msra.mxu0 0.0
        %1744 = vmatprep.subr.mxu0 0.0
        %1745 = vmatpush1.xpose.msra.mxu0 0.0
        %1746 = vmatprep.subr.mxu0 0.0
        %1747 = vmatpush1.xpose.msra.mxu0 0.0
        %1748 = vmatprep.subr.mxu0 0.0
        %1749 = vmatpush1.xpose.msra.mxu0 0.0
        %1750 = vmatprep.subr.mxu0 0.0
        %1751 = vmatpush1.xpose.msra.mxu0 0.0
        %1752 = vmatprep.subr.mxu0 0.0
        %1753 = vmatpush1.xpose.msra.mxu0 0.0
        %1754 = vmatprep.subr.mxu0 0.0
        %1755 = vmatpush1.xpose.msra.mxu0 0.0
        %1756 = vmatprep.subr.mxu0 0.0
        %1757 = vmatpush1.xpose.msra.mxu0 0.0
        %1758 = vmatprep.subr.mxu0 0.0
        %1759 = vmatpush1.xpose.msra.mxu0 0.0
        %1760 = vmatprep.subr.mxu0 0.0
        %1761 = vmatpush1.xpose.msra.mxu0 0.0
        %1762 = vmatprep.subr.mxu0 0.0
        %1763 = vmatpush1.xpose.msra.mxu0 0.0
        %1764 = vmatprep.subr.mxu0 0.0
        %1765 = vmatpush1.xpose.msra.mxu0 0.0
        %1766 = vmatprep.subr.mxu0 0.0
        %1767 = vmatpush1.xpose.msra.mxu0 0.0
        %1768 = vmatprep.subr.mxu0 0.0
        %1769 = vmatpush1.xpose.msra.mxu0 0.0
        %1770 = vmatprep.subr.mxu0 0.0
        %1771 = vmatpush1.xpose.msra.mxu0 0.0
        %1772 = vmatprep.subr.mxu0 0.0
        %1773 = vmatpush1.xpose.msra.mxu0 0.0
        %1774 = vmatprep.subr.mxu0 0.0
        %1775 = vmatpush1.xpose.msra.mxu0 0.0
        %1776 = vmatprep.mubr.f32.mxu0 0.0
        %1777 = vmatmul.mubr.f32.gmra.mrb[0].mxu0 %v1707
        %v1778 = vpop.f32.mrb[0].mxu0
        %v1779 = vadd.f32 0.0, %v1778
        %v1780 = vpop.f32.mrb[0].mxu0
        %1781 = vdwg.mxu0
        %vm1782 = vcmask 64512
        %v1783 = vsel %vm1782, %v1779, -inf
        %1784 = vmax.xlane.f32.xlu0 %v1783
        %v1785 = vpop.xlane.xlu0 %1784
        %v1786 = vsub.f32 %v1779, %v1785
        %v1787 = vmul.f32 %v1786, 1.442695
        %v1788 = vpow.pop %v1787
        %v1789 = vsel %vm1782, %v1788, 0.0
        %1790 = vadd.xlane.f32.xlu0 %v1789
        %v1791 = vpop.xlane.xlu0 %1790
        %v1792 = vrcp.pop %v1791
        %v1793 = vmul.f32 %v1788, %v1792
        %v1795 = vsel %vm1782, %v1793, 0
        %1797 = vmatprep.subr.mxu0 0.0
        %1798 = vmatpush1.msra.mxu0 %v1699
        %1799 = vmatprep.subr.mxu0 0.0
        %1800 = vmatpush1.msra.mxu0 0.0
        %1801 = vmatprep.subr.mxu0 0.0
        %1802 = vmatpush1.msra.mxu0 0.0
        %1803 = vmatprep.subr.mxu0 0.0
        %1804 = vmatpush1.msra.mxu0 0.0
        %1805 = vmatprep.subr.mxu0 0.0
        %1806 = vmatpush1.msra.mxu0 0.0
        %1807 = vmatprep.subr.mxu0 0.0
        %1808 = vmatpush1.msra.mxu0 0.0
        %1809 = vmatprep.subr.mxu0 0.0
        %1810 = vmatpush1.msra.mxu0 0.0
        %1811 = vmatprep.subr.mxu0 0.0
        %1812 = vmatpush1.msra.mxu0 0.0
        %1813 = vmatprep.subr.mxu0 0.0
        %1814 = vmatpush1.msra.mxu0 0.0
        %1815 = vmatprep.subr.mxu0 0.0
        %1816 = vmatpush1.msra.mxu0 0.0
        %1817 = vmatprep.subr.mxu0 0.0
        %1818 = vmatpush1.msra.mxu0 0.0
        %1819 = vmatprep.subr.mxu0 0.0
        %1820 = vmatpush1.msra.mxu0 0.0
        %1821 = vmatprep.subr.mxu0 0.0
        %1822 = vmatpush1.msra.mxu0 0.0
        %1823 = vmatprep.subr.mxu0 0.0
        %1824 = vmatpush1.msra.mxu0 0.0
        %1825 = vmatprep.subr.mxu0 0.0
        %1826 = vmatpush1.msra.mxu0 0.0
        %1827 = vmatprep.subr.mxu0 0.0
        %1828 = vmatpush1.msra.mxu0 0.0
        %1829 = vmatprep.subr.mxu0 0.0
        %1830 = vmatpush1.msra.mxu0 0.0
        %1831 = vmatprep.subr.mxu0 0.0
        %1832 = vmatpush1.msra.mxu0 0.0
        %1833 = vmatprep.subr.mxu0 0.0
        %1834 = vmatpush1.msra.mxu0 0.0
        %1835 = vmatprep.subr.mxu0 0.0
        %1836 = vmatpush1.msra.mxu0 0.0
        %1837 = vmatprep.subr.mxu0 0.0
        %1838 = vmatpush1.msra.mxu0 0.0
        %1839 = vmatprep.subr.mxu0 0.0
        %1840 = vmatpush1.msra.mxu0 0.0
        %1841 = vmatprep.subr.mxu0 0.0
        %1842 = vmatpush1.msra.mxu0 0.0
        %1843 = vmatprep.subr.mxu0 0.0
        %1844 = vmatpush1.msra.mxu0 0.0
        %1845 = vmatprep.subr.mxu0 0.0
        %1846 = vmatpush1.msra.mxu0 0.0
        %1847 = vmatprep.subr.mxu0 0.0
        %1848 = vmatpush1.msra.mxu0 0.0
        %1849 = vmatprep.subr.mxu0 0.0
        %1850 = vmatpush1.msra.mxu0 0.0
        %1851 = vmatprep.subr.mxu0 0.0
        %1852 = vmatpush1.msra.mxu0 0.0
        %1853 = vmatprep.subr.mxu0 0.0
        %1854 = vmatpush1.msra.mxu0 0.0
        %1855 = vmatprep.subr.mxu0 0.0
        %1856 = vmatpush1.msra.mxu0 0.0
        %1857 = vmatprep.subr.mxu0 0.0
        %1858 = vmatpush1.msra.mxu0 0.0
        %1859 = vmatprep.subr.mxu0 0.0
        %1860 = vmatpush1.msra.mxu0 0.0
        %1861 = vmatprep.mubr.f32.mxu0 0.0
        %1862 = vmatmul.mubr.f32.gmra.mrb[0].mxu0 %v1795
        %v1863 = vpop.f32.mrb[0].mxu0
        %v1864 = vadd.f32 0.0, %v1863
        %v1865 = vpop.f32.mrb[0].mxu0
        %1866 = vdwg.mxu0
        %1867 = vrot.lane.b32.xlu0 %v1704, 112
        %v1868 = vpop.permute.xlu0 %1867
        %1869 = vrot.lane.b32.xlu0 %v1660, 112
        %v1870 = vpop.permute.xlu0 %1869
        %v1871 = vsel %vm1705, %v1868, 0
        %v1873 = vsel %vm1705, %v1870, 0
        %1875 = vmatprep.subr.mxu0 0.0
        %1876 = vmatpush1.xpose.msra.mxu0 %v1873
        %1877 = vmatprep.subr.mxu0 0.0
        %1878 = vmatpush1.xpose.msra.mxu0 0.0
        %1879 = vmatprep.subr.mxu0 0.0
        %1880 = vmatpush1.xpose.msra.mxu0 0.0
        %1881 = vmatprep.subr.mxu0 0.0
        %1882 = vmatpush1.xpose.msra.mxu0 0.0
        %1883 = vmatprep.subr.mxu0 0.0
        %1884 = vmatpush1.xpose.msra.mxu0 0.0
        %1885 = vmatprep.subr.mxu0 0.0
        %1886 = vmatpush1.xpose.msra.mxu0 0.0
        %1887 = vmatprep.subr.mxu0 0.0
        %1888 = vmatpush1.xpose.msra.mxu0 0.0
        %1889 = vmatprep.subr.mxu0 0.0
        %1890 = vmatpush1.xpose.msra.mxu0 0.0
        %1891 = vmatprep.subr.mxu0 0.0
        %1892 = vmatpush1.xpose.msra.mxu0 0.0
        %1893 = vmatprep.subr.mxu0 0.0
        %1894 = vmatpush1.xpose.msra.mxu0 0.0
        %1895 = vmatprep.subr.mxu0 0.0
        %1896 = vmatpush1.xpose.msra.mxu0 0.0
        %1897 = vmatprep.subr.mxu0 0.0
        %1898 = vmatpush1.xpose.msra.mxu0 0.0
        %1899 = vmatprep.subr.mxu0 0.0
        %1900 = vmatpush1.xpose.msra.mxu0 0.0
        %1901 = vmatprep.subr.mxu0 0.0
        %1902 = vmatpush1.xpose.msra.mxu0 0.0
        %1903 = vmatprep.subr.mxu0 0.0
        %1904 = vmatpush1.xpose.msra.mxu0 0.0
        %1905 = vmatprep.subr.mxu0 0.0
        %1906 = vmatpush1.xpose.msra.mxu0 0.0
        %1907 = vmatprep.subr.mxu0 0.0
        %1908 = vmatpush1.xpose.msra.mxu0 0.0
        %1909 = vmatprep.subr.mxu0 0.0
        %1910 = vmatpush1.xpose.msra.mxu0 0.0
        %1911 = vmatprep.subr.mxu0 0.0
        %1912 = vmatpush1.xpose.msra.mxu0 0.0
        %1913 = vmatprep.subr.mxu0 0.0
        %1914 = vmatpush1.xpose.msra.mxu0 0.0
        %1915 = vmatprep.subr.mxu0 0.0
        %1916 = vmatpush1.xpose.msra.mxu0 0.0
        %1917 = vmatprep.subr.mxu0 0.0
        %1918 = vmatpush1.xpose.msra.mxu0 0.0
        %1919 = vmatprep.subr.mxu0 0.0
        %1920 = vmatpush1.xpose.msra.mxu0 0.0
        %1921 = vmatprep.subr.mxu0 0.0
        %1922 = vmatpush1.xpose.msra.mxu0 0.0
        %1923 = vmatprep.subr.mxu0 0.0
        %1924 = vmatpush1.xpose.msra.mxu0 0.0
        %1925 = vmatprep.subr.mxu0 0.0
        %1926 = vmatpush1.xpose.msra.mxu0 0.0
        %1927 = vmatprep.subr.mxu0 0.0
        %1928 = vmatpush1.xpose.msra.mxu0 0.0
        %1929 = vmatprep.subr.mxu0 0.0
        %1930 = vmatpush1.xpose.msra.mxu0 0.0
        %1931 = vmatprep.subr.mxu0 0.0
        %1932 = vmatpush1.xpose.msra.mxu0 0.0
        %1933 = vmatprep.subr.mxu0 0.0
        %1934 = vmatpush1.xpose.msra.mxu0 0.0
        %1935 = vmatprep.subr.mxu0 0.0
        %1936 = vmatpush1.xpose.msra.mxu0 0.0
        %1937 = vmatprep.subr.mxu0 0.0
        %1938 = vmatpush1.xpose.msra.mxu0 0.0
        %1939 = vmatprep.mubr.f32.mxu0 0.0
        %1940 = vmatmul.mubr.f32.gmra.mrb[0].mxu0 %v1871
        %v1941 = vpop.f32.mrb[0].mxu0
        %v1942 = vadd.f32 0.0, %v1941
        %v1943 = vpop.f32.mrb[0].mxu0
        %1944 = vdwg.mxu0
        %v1945 = vsel %vm1782, %v1942, -inf
        %1946 = vmax.xlane.f32.xlu0 %v1945
        %v1947 = vpop.xlane.xlu0 %1946
        %v1948 = vsub.f32 %v1942, %v1947
        %v1949 = vmul.f32 %v1948, 1.442695
        %v1950 = vpow.pop %v1949
        %v1951 = vsel %vm1782, %v1950, 0.0
        %1952 = vadd.xlane.f32.xlu0 %v1951
        %v1953 = vpop.xlane.xlu0 %1952
        %v1954 = vrcp.pop %v1953
        %v1955 = vmul.f32 %v1950, %v1954
        %1957 = vrot.lane.b32.xlu0 %v1699, 112
        %v1958 = vpop.permute.xlu0 %1957
        %v1961 = vsel %vm1782, %v1955, 0
        %1963 = vmatprep.subr.mxu0 0.0
        %1964 = vmatpush1.msra.mxu0 %v1958
        %1965 = vmatprep.subr.mxu0 0.0
        %1966 = vmatpush1.msra.mxu0 0.0
        %1967 = vmatprep.subr.mxu0 0.0
        %1968 = vmatpush1.msra.mxu0 0.0
        %1969 = vmatprep.subr.mxu0 0.0
        %1970 = vmatpush1.msra.mxu0 0.0
        %1971 = vmatprep.subr.mxu0 0.0
        %1972 = vmatpush1.msra.mxu0 0.0
        %1973 = vmatprep.subr.mxu0 0.0
        %1974 = vmatpush1.msra.mxu0 0.0
        %1975 = vmatprep.subr.mxu0 0.0
        %1976 = vmatpush1.msra.mxu0 0.0
        %1977 = vmatprep.subr.mxu0 0.0
        %1978 = vmatpush1.msra.mxu0 0.0
        %1979 = vmatprep.subr.mxu0 0.0
        %1980 = vmatpush1.msra.mxu0 0.0
        %1981 = vmatprep.subr.mxu0 0.0
        %1982 = vmatpush1.msra.mxu0 0.0
        %1983 = vmatprep.subr.mxu0 0.0
        %1984 = vmatpush1.msra.mxu0 0.0
        %1985 = vmatprep.subr.mxu0 0.0
        %1986 = vmatpush1.msra.mxu0 0.0
        %1987 = vmatprep.subr.mxu0 0.0
        %1988 = vmatpush1.msra.mxu0 0.0
        %1989 = vmatprep.subr.mxu0 0.0
        %1990 = vmatpush1.msra.mxu0 0.0
        %1991 = vmatprep.subr.mxu0 0.0
        %1992 = vmatpush1.msra.mxu0 0.0
        %1993 = vmatprep.subr.mxu0 0.0
        %1994 = vmatpush1.msra.mxu0 0.0
        %1995 = vmatprep.subr.mxu0 0.0
        %1996 = vmatpush1.msra.mxu0 0.0
        %1997 = vmatprep.subr.mxu0 0.0
        %1998 = vmatpush1.msra.mxu0 0.0
        %1999 = vmatprep.subr.mxu0 0.0
        %2000 = vmatpush1.msra.mxu0 0.0
        %2001 = vmatprep.subr.mxu0 0.0
        %2002 = vmatpush1.msra.mxu0 0.0
        %2003 = vmatprep.subr.mxu0 0.0
        %2004 = vmatpush1.msra.mxu0 0.0
        %2005 = vmatprep.subr.mxu0 0.0
        %2006 = vmatpush1.msra.mxu0 0.0
        %2007 = vmatprep.subr.mxu0 0.0
        %2008 = vmatpush1.msra.mxu0 0.0
        %2009 = vmatprep.subr.mxu0 0.0
        %2010 = vmatpush1.msra.mxu0 0.0
        %2011 = vmatprep.subr.mxu0 0.0
        %2012 = vmatpush1.msra.mxu0 0.0
        %2013 = vmatprep.subr.mxu0 0.0
        %2014 = vmatpush1.msra.mxu0 0.0
        %2015 = vmatprep.subr.mxu0 0.0
        %2016 = vmatpush1.msra.mxu0 0.0
        %2017 = vmatprep.subr.mxu0 0.0
        %2018 = vmatpush1.msra.mxu0 0.0
        %2019 = vmatprep.subr.mxu0 0.0
        %2020 = vmatpush1.msra.mxu0 0.0
        %2021 = vmatprep.subr.mxu0 0.0
        %2022 = vmatpush1.msra.mxu0 0.0
        %2023 = vmatprep.subr.mxu0 0.0
        %2024 = vmatpush1.msra.mxu0 0.0
        %2025 = vmatprep.subr.mxu0 0.0
        %2026 = vmatpush1.msra.mxu0 0.0
        %2027 = vmatprep.mubr.f32.mxu0 0.0
        %2028 = vmatmul.mubr.f32.gmra.mrb[0].mxu0 %v1961
        %v2029 = vpop.f32.mrb[0].mxu0
        %v2030 = vadd.f32 0.0, %v2029
        %v2031 = vpop.f32.mrb[0].mxu0
        %2032 = vdwg.mxu0
        %2033 = vrot.lane.b32.xlu0 %v1704, 96
        %v2034 = vpop.permute.xlu0 %2033
        %2035 = vrot.lane.b32.xlu0 %v1660, 96
        %v2036 = vpop.permute.xlu0 %2035
        %v2037 = vsel %vm1705, %v2034, 0
        %v2039 = vsel %vm1705, %v2036, 0
        %2041 = vmatprep.subr.mxu0 0.0
        %2042 = vmatpush1.xpose.msra.mxu0 %v2039
        %2043 = vmatprep.subr.mxu0 0.0
        %2044 = vmatpush1.xpose.msra.mxu0 0.0
        %2045 = vmatprep.subr.mxu0 0.0
        %2046 = vmatpush1.xpose.msra.mxu0 0.0
        %2047 = vmatprep.subr.mxu0 0.0
        %2048 = vmatpush1.xpose.msra.mxu0 0.0
        %2049 = vmatprep.subr.mxu0 0.0
        %2050 = vmatpush1.xpose.msra.mxu0 0.0
        %2051 = vmatprep.subr.mxu0 0.0
        %2052 = vmatpush1.xpose.msra.mxu0 0.0
        %2053 = vmatprep.subr.mxu0 0.0
        %2054 = vmatpush1.xpose.msra.mxu0 0.0
        %2055 = vmatprep.subr.mxu0 0.0
        %2056 = vmatpush1.xpose.msra.mxu0 0.0
        %2057 = vmatprep.subr.mxu0 0.0
        %2058 = vmatpush1.xpose.msra.mxu0 0.0
        %2059 = vmatprep.subr.mxu0 0.0
        %2060 = vmatpush1.xpose.msra.mxu0 0.0
        %2061 = vmatprep.subr.mxu0 0.0
        %2062 = vmatpush1.xpose.msra.mxu0 0.0
        %2063 = vmatprep.subr.mxu0 0.0
        %2064 = vmatpush1.xpose.msra.mxu0 0.0
        %2065 = vmatprep.subr.mxu0 0.0
        %2066 = vmatpush1.xpose.msra.mxu0 0.0
        %2067 = vmatprep.subr.mxu0 0.0
        %2068 = vmatpush1.xpose.msra.mxu0 0.0
        %2069 = vmatprep.subr.mxu0 0.0
        %2070 = vmatpush1.xpose.msra.mxu0 0.0
        %2071 = vmatprep.subr.mxu0 0.0
        %2072 = vmatpush1.xpose.msra.mxu0 0.0
        %2073 = vmatprep.subr.mxu0 0.0
        %2074 = vmatpush1.xpose.msra.mxu0 0.0
        %2075 = vmatprep.subr.mxu0 0.0
        %2076 = vmatpush1.xpose.msra.mxu0 0.0
        %2077 = vmatprep.subr.mxu0 0.0
        %2078 = vmatpush1.xpose.msra.mxu0 0.0
        %2079 = vmatprep.subr.mxu0 0.0
        %2080 = vmatpush1.xpose.msra.mxu0 0.0
        %2081 = vmatprep.subr.mxu0 0.0
        %2082 = vmatpush1.xpose.msra.mxu0 0.0
        %2083 = vmatprep.subr.mxu0 0.0
        %2084 = vmatpush1.xpose.msra.mxu0 0.0
        %2085 = vmatprep.subr.mxu0 0.0
        %2086 = vmatpush1.xpose.msra.mxu0 0.0
        %2087 = vmatprep.subr.mxu0 0.0
        %2088 = vmatpush1.xpose.msra.mxu0 0.0
        %2089 = vmatprep.subr.mxu0 0.0
        %2090 = vmatpush1.xpose.msra.mxu0 0.0
        %2091 = vmatprep.subr.mxu0 0.0
        %2092 = vmatpush1.xpose.msra.mxu0 0.0
        %2093 = vmatprep.subr.mxu0 0.0
        %2094 = vmatpush1.xpose.msra.mxu0 0.0
        %2095 = vmatprep.subr.mxu0 0.0
        %2096 = vmatpush1.xpose.msra.mxu0 0.0
        %2097 = vmatprep.subr.mxu0 0.0
        %2098 = vmatpush1.xpose.msra.mxu0 0.0
        %2099 = vmatprep.subr.mxu0 0.0
        %2100 = vmatpush1.xpose.msra.mxu0 0.0
        %2101 = vmatprep.subr.mxu0 0.0
        %2102 = vmatpush1.xpose.msra.mxu0 0.0
        %2103 = vmatprep.subr.mxu0 0.0
        %2104 = vmatpush1.xpose.msra.mxu0 0.0
        %2105 = vmatprep.mubr.f32.mxu0 0.0
        %2106 = vmatmul.mubr.f32.gmra.mrb[0].mxu0 %v2037
        %v2107 = vpop.f32.mrb[0].mxu0
        %v2108 = vadd.f32 0.0, %v2107
        %v2109 = vpop.f32.mrb[0].mxu0
        %2110 = vdwg.mxu0
        %v2111 = vsel %vm1782, %v2108, -inf
        %2112 = vmax.xlane.f32.xlu0 %v2111
        %v2113 = vpop.xlane.xlu0 %2112
        %v2114 = vsub.f32 %v2108, %v2113
        %v2115 = vmul.f32 %v2114, 1.442695
        %v2116 = vpow.pop %v2115
        %v2117 = vsel %vm1782, %v2116, 0.0
        %2118 = vadd.xlane.f32.xlu0 %v2117
        %v2119 = vpop.xlane.xlu0 %2118
        %v2120 = vrcp.pop %v2119
        %v2121 = vmul.f32 %v2116, %v2120
        %2122 = vrot.lane.b32.xlu0 %v1699, 96
        %v2123 = vpop.permute.xlu0 %2122
        %v2126 = vsel %vm1782, %v2121, 0
        %2128 = vmatprep.subr.mxu0 0.0
        %2129 = vmatpush1.msra.mxu0 %v2123
        %2130 = vmatprep.subr.mxu0 0.0
        %2131 = vmatpush1.msra.mxu0 0.0
        %2132 = vmatprep.subr.mxu0 0.0
        %2133 = vmatpush1.msra.mxu0 0.0
        %2134 = vmatprep.subr.mxu0 0.0
        %2135 = vmatpush1.msra.mxu0 0.0
        %2136 = vmatprep.subr.mxu0 0.0
        %2137 = vmatpush1.msra.mxu0 0.0
        %2138 = vmatprep.subr.mxu0 0.0
        %2139 = vmatpush1.msra.mxu0 0.0
        %2140 = vmatprep.subr.mxu0 0.0
        %2141 = vmatpush1.msra.mxu0 0.0
        %2142 = vmatprep.subr.mxu0 0.0
        %2143 = vmatpush1.msra.mxu0 0.0
        %2144 = vmatprep.subr.mxu0 0.0
        %2145 = vmatpush1.msra.mxu0 0.0
        %2146 = vmatprep.subr.mxu0 0.0
        %2147 = vmatpush1.msra.mxu0 0.0
        %2148 = vmatprep.subr.mxu0 0.0
        %2149 = vmatpush1.msra.mxu0 0.0
        %2150 = vmatprep.subr.mxu0 0.0
        %2151 = vmatpush1.msra.mxu0 0.0
        %2152 = vmatprep.subr.mxu0 0.0
        %2153 = vmatpush1.msra.mxu0 0.0
        %2154 = vmatprep.subr.mxu0 0.0
        %2155 = vmatpush1.msra.mxu0 0.0
        %2156 = vmatprep.subr.mxu0 0.0
        %2157 = vmatpush1.msra.mxu0 0.0
        %2158 = vmatprep.subr.mxu0 0.0
        %2159 = vmatpush1.msra.mxu0 0.0
        %2160 = vmatprep.subr.mxu0 0.0
        %2161 = vmatpush1.msra.mxu0 0.0
        %2162 = vmatprep.subr.mxu0 0.0
        %2163 = vmatpush1.msra.mxu0 0.0
        %2164 = vmatprep.subr.mxu0 0.0
        %2165 = vmatpush1.msra.mxu0 0.0
        %2166 = vmatprep.subr.mxu0 0.0
        %2167 = vmatpush1.msra.mxu0 0.0
        %2168 = vmatprep.subr.mxu0 0.0
        %2169 = vmatpush1.msra.mxu0 0.0
        %2170 = vmatprep.subr.mxu0 0.0
        %2171 = vmatpush1.msra.mxu0 0.0
        %2172 = vmatprep.subr.mxu0 0.0
        %2173 = vmatpush1.msra.mxu0 0.0
        %2174 = vmatprep.subr.mxu0 0.0
        %2175 = vmatpush1.msra.mxu0 0.0
        %2176 = vmatprep.subr.mxu0 0.0
        %2177 = vmatpush1.msra.mxu0 0.0
        %2178 = vmatprep.subr.mxu0 0.0
        %2179 = vmatpush1.msra.mxu0 0.0
        %2180 = vmatprep.subr.mxu0 0.0
        %2181 = vmatpush1.msra.mxu0 0.0
        %2182 = vmatprep.subr.mxu0 0.0
        %2183 = vmatpush1.msra.mxu0 0.0
        %2184 = vmatprep.subr.mxu0 0.0
        %2185 = vmatpush1.msra.mxu0 0.0
        %2186 = vmatprep.subr.mxu0 0.0
        %2187 = vmatpush1.msra.mxu0 0.0
        %2188 = vmatprep.subr.mxu0 0.0
        %2189 = vmatpush1.msra.mxu0 0.0
        %2190 = vmatprep.subr.mxu0 0.0
        %2191 = vmatpush1.msra.mxu0 0.0
        %2192 = vmatprep.mubr.f32.mxu0 0.0
        %2193 = vmatmul.mubr.f32.gmra.mrb[0].mxu0 %v2126
        %v2194 = vpop.f32.mrb[0].mxu0
        %v2195 = vadd.f32 0.0, %v2194
        %v2196 = vpop.f32.mrb[0].mxu0
        %2197 = vdwg.mxu0
        %2198 = vrot.lane.b32.xlu0 %v1704, 80
        %v2199 = vpop.permute.xlu0 %2198
        %2200 = vrot.lane.b32.xlu0 %v1660, 80
        %v2201 = vpop.permute.xlu0 %2200
        %v2202 = vsel %vm1705, %v2199, 0
        %v2204 = vsel %vm1705, %v2201, 0
        %2206 = vmatprep.subr.mxu0 0.0
        %2207 = vmatpush1.xpose.msra.mxu0 %v2204
        %2208 = vmatprep.subr.mxu0 0.0
        %2209 = vmatpush1.xpose.msra.mxu0 0.0
        %2210 = vmatprep.subr.mxu0 0.0
        %2211 = vmatpush1.xpose.msra.mxu0 0.0
        %2212 = vmatprep.subr.mxu0 0.0
        %2213 = vmatpush1.xpose.msra.mxu0 0.0
        %2214 = vmatprep.subr.mxu0 0.0
        %2215 = vmatpush1.xpose.msra.mxu0 0.0
        %2216 = vmatprep.subr.mxu0 0.0
        %2217 = vmatpush1.xpose.msra.mxu0 0.0
        %2218 = vmatprep.subr.mxu0 0.0
        %2219 = vmatpush1.xpose.msra.mxu0 0.0
        %2220 = vmatprep.subr.mxu0 0.0
        %2221 = vmatpush1.xpose.msra.mxu0 0.0
        %2222 = vmatprep.subr.mxu0 0.0
        %2223 = vmatpush1.xpose.msra.mxu0 0.0
        %2224 = vmatprep.subr.mxu0 0.0
        %2225 = vmatpush1.xpose.msra.mxu0 0.0
        %2226 = vmatprep.subr.mxu0 0.0
        %2227 = vmatpush1.xpose.msra.mxu0 0.0
        %2228 = vmatprep.subr.mxu0 0.0
        %2229 = vmatpush1.xpose.msra.mxu0 0.0
        %2230 = vmatprep.subr.mxu0 0.0
        %2231 = vmatpush1.xpose.msra.mxu0 0.0
        %2232 = vmatprep.subr.mxu0 0.0
        %2233 = vmatpush1.xpose.msra.mxu0 0.0
        %2234 = vmatprep.subr.mxu0 0.0
        %2235 = vmatpush1.xpose.msra.mxu0 0.0
        %2236 = vmatprep.subr.mxu0 0.0
        %2237 = vmatpush1.xpose.msra.mxu0 0.0
        %2238 = vmatprep.subr.mxu0 0.0
        %2239 = vmatpush1.xpose.msra.mxu0 0.0
        %2240 = vmatprep.subr.mxu0 0.0
        %2241 = vmatpush1.xpose.msra.mxu0 0.0
        %2242 = vmatprep.subr.mxu0 0.0
        %2243 = vmatpush1.xpose.msra.mxu0 0.0
        %2244 = vmatprep.subr.mxu0 0.0
        %2245 = vmatpush1.xpose.msra.mxu0 0.0
        %2246 = vmatprep.subr.mxu0 0.0
        %2247 = vmatpush1.xpose.msra.mxu0 0.0
        %2248 = vmatprep.subr.mxu0 0.0
        %2249 = vmatpush1.xpose.msra.mxu0 0.0
        %2250 = vmatprep.subr.mxu0 0.0
        %2251 = vmatpush1.xpose.msra.mxu0 0.0
        %2252 = vmatprep.subr.mxu0 0.0
        %2253 = vmatpush1.xpose.msra.mxu0 0.0
        %2254 = vmatprep.subr.mxu0 0.0
        %2255 = vmatpush1.xpose.msra.mxu0 0.0
        %2256 = vmatprep.subr.mxu0 0.0
        %2257 = vmatpush1.xpose.msra.mxu0 0.0
        %2258 = vmatprep.subr.mxu0 0.0
        %2259 = vmatpush1.xpose.msra.mxu0 0.0
        %2260 = vmatprep.subr.mxu0 0.0
        %2261 = vmatpush1.xpose.msra.mxu0 0.0
        %2262 = vmatprep.subr.mxu0 0.0
        %2263 = vmatpush1.xpose.msra.mxu0 0.0
        %2264 = vmatprep.subr.mxu0 0.0
        %2265 = vmatpush1.xpose.msra.mxu0 0.0
        %2266 = vmatprep.subr.mxu0 0.0
        %2267 = vmatpush1.xpose.msra.mxu0 0.0
        %2268 = vmatprep.subr.mxu0 0.0
        %2269 = vmatpush1.xpose.msra.mxu0 0.0
        %2270 = vmatprep.mubr.f32.mxu0 0.0
        %2271 = vmatmul.mubr.f32.gmra.mrb[0].mxu0 %v2202
        %v2272 = vpop.f32.mrb[0].mxu0
        %v2273 = vadd.f32 0.0, %v2272
        %v2274 = vpop.f32.mrb[0].mxu0
        %2275 = vdwg.mxu0
        %v2276 = vsel %vm1782, %v2273, -inf
        %2277 = vmax.xlane.f32.xlu0 %v2276
        %v2278 = vpop.xlane.xlu0 %2277
        %v2279 = vsub.f32 %v2273, %v2278
        %v2280 = vmul.f32 %v2279, 1.442695
        %v2281 = vpow.pop %v2280
        %v2282 = vsel %vm1782, %v2281, 0.0
        %2283 = vadd.xlane.f32.xlu0 %v2282
        %v2284 = vpop.xlane.xlu0 %2283
        %v2285 = vrcp.pop %v2284
        %v2286 = vmul.f32 %v2281, %v2285
        %2287 = vrot.lane.b32.xlu0 %v1699, 80
        %v2288 = vpop.permute.xlu0 %2287
        %v2291 = vsel %vm1782, %v2286, 0
        %2293 = vmatprep.subr.mxu0 0.0
        %2294 = vmatpush1.msra.mxu0 %v2288
        %2295 = vmatprep.subr.mxu0 0.0
        %2296 = vmatpush1.msra.mxu0 0.0
        %2297 = vmatprep.subr.mxu0 0.0
        %2298 = vmatpush1.msra.mxu0 0.0
        %2299 = vmatprep.subr.mxu0 0.0
        %2300 = vmatpush1.msra.mxu0 0.0
        %2301 = vmatprep.subr.mxu0 0.0
        %2302 = vmatpush1.msra.mxu0 0.0
        %2303 = vmatprep.subr.mxu0 0.0
        %2304 = vmatpush1.msra.mxu0 0.0
        %2305 = vmatprep.subr.mxu0 0.0
        %2306 = vmatpush1.msra.mxu0 0.0
        %2307 = vmatprep.subr.mxu0 0.0
        %2308 = vmatpush1.msra.mxu0 0.0
        %2309 = vmatprep.subr.mxu0 0.0
        %2310 = vmatpush1.msra.mxu0 0.0
        %2311 = vmatprep.subr.mxu0 0.0
        %2312 = vmatpush1.msra.mxu0 0.0
        %2313 = vmatprep.subr.mxu0 0.0
        %2314 = vmatpush1.msra.mxu0 0.0
        %2315 = vmatprep.subr.mxu0 0.0
        %2316 = vmatpush1.msra.mxu0 0.0
        %2317 = vmatprep.subr.mxu0 0.0
        %2318 = vmatpush1.msra.mxu0 0.0
        %2319 = vmatprep.subr.mxu0 0.0
        %2320 = vmatpush1.msra.mxu0 0.0
        %2321 = vmatprep.subr.mxu0 0.0
        %2322 = vmatpush1.msra.mxu0 0.0
        %2323 = vmatprep.subr.mxu0 0.0
        %2324 = vmatpush1.msra.mxu0 0.0
        %2325 = vmatprep.subr.mxu0 0.0
        %2326 = vmatpush1.msra.mxu0 0.0
        %2327 = vmatprep.subr.mxu0 0.0
        %2328 = vmatpush1.msra.mxu0 0.0
        %2329 = vmatprep.subr.mxu0 0.0
        %2330 = vmatpush1.msra.mxu0 0.0
        %2331 = vmatprep.subr.mxu0 0.0
        %2332 = vmatpush1.msra.mxu0 0.0
        %2333 = vmatprep.subr.mxu0 0.0
        %2334 = vmatpush1.msra.mxu0 0.0
        %2335 = vmatprep.subr.mxu0 0.0
        %2336 = vmatpush1.msra.mxu0 0.0
        %2337 = vmatprep.subr.mxu0 0.0
        %2338 = vmatpush1.msra.mxu0 0.0
        %2339 = vmatprep.subr.mxu0 0.0
        %2340 = vmatpush1.msra.mxu0 0.0
        %2341 = vmatprep.subr.mxu0 0.0
        %2342 = vmatpush1.msra.mxu0 0.0
        %2343 = vmatprep.subr.mxu0 0.0
        %2344 = vmatpush1.msra.mxu0 0.0
        %2345 = vmatprep.subr.mxu0 0.0
        %2346 = vmatpush1.msra.mxu0 0.0
        %2347 = vmatprep.subr.mxu0 0.0
        %2348 = vmatpush1.msra.mxu0 0.0
        %2349 = vmatprep.subr.mxu0 0.0
        %2350 = vmatpush1.msra.mxu0 0.0
        %2351 = vmatprep.subr.mxu0 0.0
        %2352 = vmatpush1.msra.mxu0 0.0
        %2353 = vmatprep.subr.mxu0 0.0
        %2354 = vmatpush1.msra.mxu0 0.0
        %2355 = vmatprep.subr.mxu0 0.0
        %2356 = vmatpush1.msra.mxu0 0.0
        %2357 = vmatprep.mubr.f32.mxu0 0.0
        %2358 = vmatmul.mubr.f32.gmra.mrb[0].mxu0 %v2291
        %v2359 = vpop.f32.mrb[0].mxu0
        %v2360 = vadd.f32 0.0, %v2359
        %v2361 = vpop.f32.mrb[0].mxu0
        %2362 = vdwg.mxu0
        %2363 = vrot.lane.b32.xlu0 %v1704, 64
        %v2364 = vpop.permute.xlu0 %2363
        %2365 = vrot.lane.b32.xlu0 %v1660, 64
        %v2366 = vpop.permute.xlu0 %2365
        %v2367 = vsel %vm1705, %v2364, 0
        %v2369 = vsel %vm1705, %v2366, 0
        %2371 = vmatprep.subr.mxu0 0.0
        %2372 = vmatpush1.xpose.msra.mxu0 %v2369
        %2373 = vmatprep.subr.mxu0 0.0
        %2374 = vmatpush1.xpose.msra.mxu0 0.0
        %2375 = vmatprep.subr.mxu0 0.0
        %2376 = vmatpush1.xpose.msra.mxu0 0.0
        %2377 = vmatprep.subr.mxu0 0.0
        %2378 = vmatpush1.xpose.msra.mxu0 0.0
        %2379 = vmatprep.subr.mxu0 0.0
        %2380 = vmatpush1.xpose.msra.mxu0 0.0
        %2381 = vmatprep.subr.mxu0 0.0
        %2382 = vmatpush1.xpose.msra.mxu0 0.0
        %2383 = vmatprep.subr.mxu0 0.0
        %2384 = vmatpush1.xpose.msra.mxu0 0.0
        %2385 = vmatprep.subr.mxu0 0.0
        %2386 = vmatpush1.xpose.msra.mxu0 0.0
        %2387 = vmatprep.subr.mxu0 0.0
        %2388 = vmatpush1.xpose.msra.mxu0 0.0
        %2389 = vmatprep.subr.mxu0 0.0
        %2390 = vmatpush1.xpose.msra.mxu0 0.0
        %2391 = vmatprep.subr.mxu0 0.0
        %2392 = vmatpush1.xpose.msra.mxu0 0.0
        %2393 = vmatprep.subr.mxu0 0.0
        %2394 = vmatpush1.xpose.msra.mxu0 0.0
        %2395 = vmatprep.subr.mxu0 0.0
        %2396 = vmatpush1.xpose.msra.mxu0 0.0
        %2397 = vmatprep.subr.mxu0 0.0
        %2398 = vmatpush1.xpose.msra.mxu0 0.0
        %2399 = vmatprep.subr.mxu0 0.0
        %2400 = vmatpush1.xpose.msra.mxu0 0.0
        %2401 = vmatprep.subr.mxu0 0.0
        %2402 = vmatpush1.xpose.msra.mxu0 0.0
        %2403 = vmatprep.subr.mxu0 0.0
        %2404 = vmatpush1.xpose.msra.mxu0 0.0
        %2405 = vmatprep.subr.mxu0 0.0
        %2406 = vmatpush1.xpose.msra.mxu0 0.0
        %2407 = vmatprep.subr.mxu0 0.0
        %2408 = vmatpush1.xpose.msra.mxu0 0.0
        %2409 = vmatprep.subr.mxu0 0.0
        %2410 = vmatpush1.xpose.msra.mxu0 0.0
        %2411 = vmatprep.subr.mxu0 0.0
        %2412 = vmatpush1.xpose.msra.mxu0 0.0
        %2413 = vmatprep.subr.mxu0 0.0
        %2414 = vmatpush1.xpose.msra.mxu0 0.0
        %2415 = vmatprep.subr.mxu0 0.0
        %2416 = vmatpush1.xpose.msra.mxu0 0.0
        %2417 = vmatprep.subr.mxu0 0.0
        %2418 = vmatpush1.xpose.msra.mxu0 0.0
        %2419 = vmatprep.subr.mxu0 0.0
        %2420 = vmatpush1.xpose.msra.mxu0 0.0
        %2421 = vmatprep.subr.mxu0 0.0
        %2422 = vmatpush1.xpose.msra.mxu0 0.0
        %2423 = vmatprep.subr.mxu0 0.0
        %2424 = vmatpush1.xpose.msra.mxu0 0.0
        %2425 = vmatprep.subr.mxu0 0.0
        %2426 = vmatpush1.xpose.msra.mxu0 0.0
        %2427 = vmatprep.subr.mxu0 0.0
        %2428 = vmatpush1.xpose.msra.mxu0 0.0
        %2429 = vmatprep.subr.mxu0 0.0
        %2430 = vmatpush1.xpose.msra.mxu0 0.0
        %2431 = vmatprep.subr.mxu0 0.0
        %2432 = vmatpush1.xpose.msra.mxu0 0.0
        %2433 = vmatprep.subr.mxu0 0.0
        %2434 = vmatpush1.xpose.msra.mxu0 0.0
        %2435 = vmatprep.mubr.f32.mxu0 0.0
        %2436 = vmatmul.mubr.f32.gmra.mrb[0].mxu0 %v2367
        %v2437 = vpop.f32.mrb[0].mxu0
        %v2438 = vadd.f32 0.0, %v2437
        %v2439 = vpop.f32.mrb[0].mxu0
        %2440 = vdwg.mxu0
        %v2441 = vsel %vm1782, %v2438, -inf
        %2442 = vmax.xlane.f32.xlu0 %v2441
        %v2443 = vpop.xlane.xlu0 %2442
        %v2444 = vsub.f32 %v2438, %v2443
        %v2445 = vmul.f32 %v2444, 1.442695
        %v2446 = vpow.pop %v2445
        %v2447 = vsel %vm1782, %v2446, 0.0
        %2448 = vadd.xlane.f32.xlu0 %v2447
        %v2449 = vpop.xlane.xlu0 %2448
        %v2450 = vrcp.pop %v2449
        %v2451 = vmul.f32 %v2446, %v2450
        %2452 = vrot.lane.b32.xlu0 %v1699, 64
        %v2453 = vpop.permute.xlu0 %2452
        %v2456 = vsel %vm1782, %v2451, 0
        %2458 = vmatprep.subr.mxu0 0.0
        %2459 = vmatpush1.msra.mxu0 %v2453
        %2460 = vmatprep.subr.mxu0 0.0
        %2461 = vmatpush1.msra.mxu0 0.0
        %2462 = vmatprep.subr.mxu0 0.0
        %2463 = vmatpush1.msra.mxu0 0.0
        %2464 = vmatprep.subr.mxu0 0.0
        %2465 = vmatpush1.msra.mxu0 0.0
        %2466 = vmatprep.subr.mxu0 0.0
        %2467 = vmatpush1.msra.mxu0 0.0
        %2468 = vmatprep.subr.mxu0 0.0
        %2469 = vmatpush1.msra.mxu0 0.0
        %2470 = vmatprep.subr.mxu0 0.0
        %2471 = vmatpush1.msra.mxu0 0.0
        %2472 = vmatprep.subr.mxu0 0.0
        %2473 = vmatpush1.msra.mxu0 0.0
        %2474 = vmatprep.subr.mxu0 0.0
        %2475 = vmatpush1.msra.mxu0 0.0
        %2476 = vmatprep.subr.mxu0 0.0
        %2477 = vmatpush1.msra.mxu0 0.0
        %2478 = vmatprep.subr.mxu0 0.0
        %2479 = vmatpush1.msra.mxu0 0.0
        %2480 = vmatprep.subr.mxu0 0.0
        %2481 = vmatpush1.msra.mxu0 0.0
        %2482 = vmatprep.subr.mxu0 0.0
        %2483 = vmatpush1.msra.mxu0 0.0
        %2484 = vmatprep.subr.mxu0 0.0
        %2485 = vmatpush1.msra.mxu0 0.0
        %2486 = vmatprep.subr.mxu0 0.0
        %2487 = vmatpush1.msra.mxu0 0.0
        %2488 = vmatprep.subr.mxu0 0.0
        %2489 = vmatpush1.msra.mxu0 0.0
        %2490 = vmatprep.subr.mxu0 0.0
        %2491 = vmatpush1.msra.mxu0 0.0
        %2492 = vmatprep.subr.mxu0 0.0
        %2493 = vmatpush1.msra.mxu0 0.0
        %2494 = vmatprep.subr.mxu0 0.0
        %2495 = vmatpush1.msra.mxu0 0.0
        %2496 = vmatprep.subr.mxu0 0.0
        %2497 = vmatpush1.msra.mxu0 0.0
        %2498 = vmatprep.subr.mxu0 0.0
        %2499 = vmatpush1.msra.mxu0 0.0
        %2500 = vmatprep.subr.mxu0 0.0
        %2501 = vmatpush1.msra.mxu0 0.0
        %2502 = vmatprep.subr.mxu0 0.0
        %2503 = vmatpush1.msra.mxu0 0.0
        %2504 = vmatprep.subr.mxu0 0.0
        %2505 = vmatpush1.msra.mxu0 0.0
        %2506 = vmatprep.subr.mxu0 0.0
        %2507 = vmatpush1.msra.mxu0 0.0
        %2508 = vmatprep.subr.mxu0 0.0
        %2509 = vmatpush1.msra.mxu0 0.0
        %2510 = vmatprep.subr.mxu0 0.0
        %2511 = vmatpush1.msra.mxu0 0.0
        %2512 = vmatprep.subr.mxu0 0.0
        %2513 = vmatpush1.msra.mxu0 0.0
        %2514 = vmatprep.subr.mxu0 0.0
        %2515 = vmatpush1.msra.mxu0 0.0
        %2516 = vmatprep.subr.mxu0 0.0
        %2517 = vmatpush1.msra.mxu0 0.0
        %2518 = vmatprep.subr.mxu0 0.0
        %2519 = vmatpush1.msra.mxu0 0.0
        %2520 = vmatprep.subr.mxu0 0.0
        %2521 = vmatpush1.msra.mxu0 0.0
        %2522 = vmatprep.mubr.f32.mxu0 0.0
        %2523 = vmatmul.mubr.f32.gmra.mrb[0].mxu0 %v2456
        %v2524 = vpop.f32.mrb[0].mxu0
        %v2525 = vadd.f32 0.0, %v2524
        %v2526 = vpop.f32.mrb[0].mxu0
        %2527 = vdwg.mxu0
        %2528 = vrot.lane.b32.xlu0 %v1704, 48
        %v2529 = vpop.permute.xlu0 %2528
        %2530 = vrot.lane.b32.xlu0 %v1660, 48
        %v2531 = vpop.permute.xlu0 %2530
        %v2532 = vsel %vm1705, %v2529, 0
        %v2534 = vsel %vm1705, %v2531, 0
        %2536 = vmatprep.subr.mxu0 0.0
        %2537 = vmatpush1.xpose.msra.mxu0 %v2534
        %2538 = vmatprep.subr.mxu0 0.0
        %2539 = vmatpush1.xpose.msra.mxu0 0.0
        %2540 = vmatprep.subr.mxu0 0.0
        %2541 = vmatpush1.xpose.msra.mxu0 0.0
        %2542 = vmatprep.subr.mxu0 0.0
        %2543 = vmatpush1.xpose.msra.mxu0 0.0
        %2544 = vmatprep.subr.mxu0 0.0
        %2545 = vmatpush1.xpose.msra.mxu0 0.0
        %2546 = vmatprep.subr.mxu0 0.0
        %2547 = vmatpush1.xpose.msra.mxu0 0.0
        %2548 = vmatprep.subr.mxu0 0.0
        %2549 = vmatpush1.xpose.msra.mxu0 0.0
        %2550 = vmatprep.subr.mxu0 0.0
        %2551 = vmatpush1.xpose.msra.mxu0 0.0
        %2552 = vmatprep.subr.mxu0 0.0
        %2553 = vmatpush1.xpose.msra.mxu0 0.0
        %2554 = vmatprep.subr.mxu0 0.0
        %2555 = vmatpush1.xpose.msra.mxu0 0.0
        %2556 = vmatprep.subr.mxu0 0.0
        %2557 = vmatpush1.xpose.msra.mxu0 0.0
        %2558 = vmatprep.subr.mxu0 0.0
        %2559 = vmatpush1.xpose.msra.mxu0 0.0
        %2560 = vmatprep.subr.mxu0 0.0
        %2561 = vmatpush1.xpose.msra.mxu0 0.0
        %2562 = vmatprep.subr.mxu0 0.0
        %2563 = vmatpush1.xpose.msra.mxu0 0.0
        %2564 = vmatprep.subr.mxu0 0.0
        %2565 = vmatpush1.xpose.msra.mxu0 0.0
        %2566 = vmatprep.subr.mxu0 0.0
        %2567 = vmatpush1.xpose.msra.mxu0 0.0
        %2568 = vmatprep.subr.mxu0 0.0
        %2569 = vmatpush1.xpose.msra.mxu0 0.0
        %2570 = vmatprep.subr.mxu0 0.0
        %2571 = vmatpush1.xpose.msra.mxu0 0.0
        %2572 = vmatprep.subr.mxu0 0.0
        %2573 = vmatpush1.xpose.msra.mxu0 0.0
        %2574 = vmatprep.subr.mxu0 0.0
        %2575 = vmatpush1.xpose.msra.mxu0 0.0
        %2576 = vmatprep.subr.mxu0 0.0
        %2577 = vmatpush1.xpose.msra.mxu0 0.0
        %2578 = vmatprep.subr.mxu0 0.0
        %2579 = vmatpush1.xpose.msra.mxu0 0.0
        %2580 = vmatprep.subr.mxu0 0.0
        %2581 = vmatpush1.xpose.msra.mxu0 0.0
        %2582 = vmatprep.subr.mxu0 0.0
        %2583 = vmatpush1.xpose.msra.mxu0 0.0
        %2584 = vmatprep.subr.mxu0 0.0
        %2585 = vmatpush1.xpose.msra.mxu0 0.0
        %2586 = vmatprep.subr.mxu0 0.0
        %2587 = vmatpush1.xpose.msra.mxu0 0.0
        %2588 = vmatprep.subr.mxu0 0.0
        %2589 = vmatpush1.xpose.msra.mxu0 0.0
        %2590 = vmatprep.subr.mxu0 0.0
        %2591 = vmatpush1.xpose.msra.mxu0 0.0
        %2592 = vmatprep.subr.mxu0 0.0
        %2593 = vmatpush1.xpose.msra.mxu0 0.0
        %2594 = vmatprep.subr.mxu0 0.0
        %2595 = vmatpush1.xpose.msra.mxu0 0.0
        %2596 = vmatprep.subr.mxu0 0.0
        %2597 = vmatpush1.xpose.msra.mxu0 0.0
        %2598 = vmatprep.subr.mxu0 0.0
        %2599 = vmatpush1.xpose.msra.mxu0 0.0
        %2600 = vmatprep.mubr.f32.mxu0 0.0
        %2601 = vmatmul.mubr.f32.gmra.mrb[0].mxu0 %v2532
        %v2602 = vpop.f32.mrb[0].mxu0
        %v2603 = vadd.f32 0.0, %v2602
        %v2604 = vpop.f32.mrb[0].mxu0
        %2605 = vdwg.mxu0
        %v2606 = vsel %vm1782, %v2603, -inf
        %2607 = vmax.xlane.f32.xlu0 %v2606
        %v2608 = vpop.xlane.xlu0 %2607
        %v2609 = vsub.f32 %v2603, %v2608
        %v2610 = vmul.f32 %v2609, 1.442695
        %v2611 = vpow.pop %v2610
        %v2612 = vsel %vm1782, %v2611, 0.0
        %2613 = vadd.xlane.f32.xlu0 %v2612
        %v2614 = vpop.xlane.xlu0 %2613
        %v2615 = vrcp.pop %v2614
        %v2616 = vmul.f32 %v2611, %v2615
        %2617 = vrot.lane.b32.xlu0 %v1699, 48
        %v2618 = vpop.permute.xlu0 %2617
        %v2621 = vsel %vm1782, %v2616, 0
        %2623 = vmatprep.subr.mxu0 0.0
        %2624 = vmatpush1.msra.mxu0 %v2618
        %2625 = vmatprep.subr.mxu0 0.0
        %2626 = vmatpush1.msra.mxu0 0.0
        %2627 = vmatprep.subr.mxu0 0.0
        %2628 = vmatpush1.msra.mxu0 0.0
        %2629 = vmatprep.subr.mxu0 0.0
        %2630 = vmatpush1.msra.mxu0 0.0
        %2631 = vmatprep.subr.mxu0 0.0
        %2632 = vmatpush1.msra.mxu0 0.0
        %2633 = vmatprep.subr.mxu0 0.0
        %2634 = vmatpush1.msra.mxu0 0.0
        %2635 = vmatprep.subr.mxu0 0.0
        %2636 = vmatpush1.msra.mxu0 0.0
        %2637 = vmatprep.subr.mxu0 0.0
        %2638 = vmatpush1.msra.mxu0 0.0
        %2639 = vmatprep.subr.mxu0 0.0
        %2640 = vmatpush1.msra.mxu0 0.0
        %2641 = vmatprep.subr.mxu0 0.0
        %2642 = vmatpush1.msra.mxu0 0.0
        %2643 = vmatprep.subr.mxu0 0.0
        %2644 = vmatpush1.msra.mxu0 0.0
        %2645 = vmatprep.subr.mxu0 0.0
        %2646 = vmatpush1.msra.mxu0 0.0
        %2647 = vmatprep.subr.mxu0 0.0
        %2648 = vmatpush1.msra.mxu0 0.0
        %2649 = vmatprep.subr.mxu0 0.0
        %2650 = vmatpush1.msra.mxu0 0.0
        %2651 = vmatprep.subr.mxu0 0.0
        %2652 = vmatpush1.msra.mxu0 0.0
        %2653 = vmatprep.subr.mxu0 0.0
        %2654 = vmatpush1.msra.mxu0 0.0
        %2655 = vmatprep.subr.mxu0 0.0
        %2656 = vmatpush1.msra.mxu0 0.0
        %2657 = vmatprep.subr.mxu0 0.0
        %2658 = vmatpush1.msra.mxu0 0.0
        %2659 = vmatprep.subr.mxu0 0.0
        %2660 = vmatpush1.msra.mxu0 0.0
        %2661 = vmatprep.subr.mxu0 0.0
        %2662 = vmatpush1.msra.mxu0 0.0
        %2663 = vmatprep.subr.mxu0 0.0
        %2664 = vmatpush1.msra.mxu0 0.0
        %2665 = vmatprep.subr.mxu0 0.0
        %2666 = vmatpush1.msra.mxu0 0.0
        %2667 = vmatprep.subr.mxu0 0.0
        %2668 = vmatpush1.msra.mxu0 0.0
        %2669 = vmatprep.subr.mxu0 0.0
        %2670 = vmatpush1.msra.mxu0 0.0
        %2671 = vmatprep.subr.mxu0 0.0
        %2672 = vmatpush1.msra.mxu0 0.0
        %2673 = vmatprep.subr.mxu0 0.0
        %2674 = vmatpush1.msra.mxu0 0.0
        %2675 = vmatprep.subr.mxu0 0.0
        %2676 = vmatpush1.msra.mxu0 0.0
        %2677 = vmatprep.subr.mxu0 0.0
        %2678 = vmatpush1.msra.mxu0 0.0
        %2679 = vmatprep.subr.mxu0 0.0
        %2680 = vmatpush1.msra.mxu0 0.0
        %2681 = vmatprep.subr.mxu0 0.0
        %2682 = vmatpush1.msra.mxu0 0.0
        %2683 = vmatprep.subr.mxu0 0.0
        %2684 = vmatpush1.msra.mxu0 0.0
        %2685 = vmatprep.subr.mxu0 0.0
        %2686 = vmatpush1.msra.mxu0 0.0
        %2687 = vmatprep.mubr.f32.mxu0 0.0
        %2688 = vmatmul.mubr.f32.gmra.mrb[0].mxu0 %v2621
        %v2689 = vpop.f32.mrb[0].mxu0
        %v2690 = vadd.f32 0.0, %v2689
        %v2691 = vpop.f32.mrb[0].mxu0
        %2692 = vdwg.mxu0
        %2693 = vrot.lane.b32.xlu0 %v1704, 32
        %v2694 = vpop.permute.xlu0 %2693
        %2695 = vrot.lane.b32.xlu0 %v1660, 32
        %v2696 = vpop.permute.xlu0 %2695
        %v2697 = vsel %vm1705, %v2694, 0
        %v2699 = vsel %vm1705, %v2696, 0
        %2701 = vmatprep.subr.mxu0 0.0
        %2702 = vmatpush1.xpose.msra.mxu0 %v2699
        %2703 = vmatprep.subr.mxu0 0.0
        %2704 = vmatpush1.xpose.msra.mxu0 0.0
        %2705 = vmatprep.subr.mxu0 0.0
        %2706 = vmatpush1.xpose.msra.mxu0 0.0
        %2707 = vmatprep.subr.mxu0 0.0
        %2708 = vmatpush1.xpose.msra.mxu0 0.0
        %2709 = vmatprep.subr.mxu0 0.0
        %2710 = vmatpush1.xpose.msra.mxu0 0.0
        %2711 = vmatprep.subr.mxu0 0.0
        %2712 = vmatpush1.xpose.msra.mxu0 0.0
        %2713 = vmatprep.subr.mxu0 0.0
        %2714 = vmatpush1.xpose.msra.mxu0 0.0
        %2715 = vmatprep.subr.mxu0 0.0
        %2716 = vmatpush1.xpose.msra.mxu0 0.0
        %2717 = vmatprep.subr.mxu0 0.0
        %2718 = vmatpush1.xpose.msra.mxu0 0.0
        %2719 = vmatprep.subr.mxu0 0.0
        %2720 = vmatpush1.xpose.msra.mxu0 0.0
        %2721 = vmatprep.subr.mxu0 0.0
        %2722 = vmatpush1.xpose.msra.mxu0 0.0
        %2723 = vmatprep.subr.mxu0 0.0
        %2724 = vmatpush1.xpose.msra.mxu0 0.0
        %2725 = vmatprep.subr.mxu0 0.0
        %2726 = vmatpush1.xpose.msra.mxu0 0.0
        %2727 = vmatprep.subr.mxu0 0.0
        %2728 = vmatpush1.xpose.msra.mxu0 0.0
        %2729 = vmatprep.subr.mxu0 0.0
        %2730 = vmatpush1.xpose.msra.mxu0 0.0
        %2731 = vmatprep.subr.mxu0 0.0
        %2732 = vmatpush1.xpose.msra.mxu0 0.0
        %2733 = vmatprep.subr.mxu0 0.0
        %2734 = vmatpush1.xpose.msra.mxu0 0.0
        %2735 = vmatprep.subr.mxu0 0.0
        %2736 = vmatpush1.xpose.msra.mxu0 0.0
        %2737 = vmatprep.subr.mxu0 0.0
        %2738 = vmatpush1.xpose.msra.mxu0 0.0
        %2739 = vmatprep.subr.mxu0 0.0
        %2740 = vmatpush1.xpose.msra.mxu0 0.0
        %2741 = vmatprep.subr.mxu0 0.0
        %2742 = vmatpush1.xpose.msra.mxu0 0.0
        %2743 = vmatprep.subr.mxu0 0.0
        %2744 = vmatpush1.xpose.msra.mxu0 0.0
        %2745 = vmatprep.subr.mxu0 0.0
        %2746 = vmatpush1.xpose.msra.mxu0 0.0
        %2747 = vmatprep.subr.mxu0 0.0
        %2748 = vmatpush1.xpose.msra.mxu0 0.0
        %2749 = vmatprep.subr.mxu0 0.0
        %2750 = vmatpush1.xpose.msra.mxu0 0.0
        %2751 = vmatprep.subr.mxu0 0.0
        %2752 = vmatpush1.xpose.msra.mxu0 0.0
        %2753 = vmatprep.subr.mxu0 0.0
        %2754 = vmatpush1.xpose.msra.mxu0 0.0
        %2755 = vmatprep.subr.mxu0 0.0
        %2756 = vmatpush1.xpose.msra.mxu0 0.0
        %2757 = vmatprep.subr.mxu0 0.0
        %2758 = vmatpush1.xpose.msra.mxu0 0.0
        %2759 = vmatprep.subr.mxu0 0.0
        %2760 = vmatpush1.xpose.msra.mxu0 0.0
        %2761 = vmatprep.subr.mxu0 0.0
        %2762 = vmatpush1.xpose.msra.mxu0 0.0
        %2763 = vmatprep.subr.mxu0 0.0
        %2764 = vmatpush1.xpose.msra.mxu0 0.0
        %2765 = vmatprep.mubr.f32.mxu0 0.0
        %2766 = vmatmul.mubr.f32.gmra.mrb[0].mxu0 %v2697
        %v2767 = vpop.f32.mrb[0].mxu0
        %v2768 = vadd.f32 0.0, %v2767
        %v2769 = vpop.f32.mrb[0].mxu0
        %2770 = vdwg.mxu0
        %v2771 = vsel %vm1782, %v2768, -inf
        %2772 = vmax.xlane.f32.xlu0 %v2771
        %v2773 = vpop.xlane.xlu0 %2772
        %v2774 = vsub.f32 %v2768, %v2773
        %v2775 = vmul.f32 %v2774, 1.442695
        %v2776 = vpow.pop %v2775
        %v2777 = vsel %vm1782, %v2776, 0.0
        %2778 = vadd.xlane.f32.xlu0 %v2777
        %v2779 = vpop.xlane.xlu0 %2778
        %v2780 = vrcp.pop %v2779
        %v2781 = vmul.f32 %v2776, %v2780
        %2782 = vrot.lane.b32.xlu0 %v1699, 32
        %v2783 = vpop.permute.xlu0 %2782
        %v2786 = vsel %vm1782, %v2781, 0
        %2788 = vmatprep.subr.mxu0 0.0
        %2789 = vmatpush1.msra.mxu0 %v2783
        %2790 = vmatprep.subr.mxu0 0.0
        %2791 = vmatpush1.msra.mxu0 0.0
        %2792 = vmatprep.subr.mxu0 0.0
        %2793 = vmatpush1.msra.mxu0 0.0
        %2794 = vmatprep.subr.mxu0 0.0
        %2795 = vmatpush1.msra.mxu0 0.0
        %2796 = vmatprep.subr.mxu0 0.0
        %2797 = vmatpush1.msra.mxu0 0.0
        %2798 = vmatprep.subr.mxu0 0.0
        %2799 = vmatpush1.msra.mxu0 0.0
        %2800 = vmatprep.subr.mxu0 0.0
        %2801 = vmatpush1.msra.mxu0 0.0
        %2802 = vmatprep.subr.mxu0 0.0
        %2803 = vmatpush1.msra.mxu0 0.0
        %2804 = vmatprep.subr.mxu0 0.0
        %2805 = vmatpush1.msra.mxu0 0.0
        %2806 = vmatprep.subr.mxu0 0.0
        %2807 = vmatpush1.msra.mxu0 0.0
        %2808 = vmatprep.subr.mxu0 0.0
        %2809 = vmatpush1.msra.mxu0 0.0
        %2810 = vmatprep.subr.mxu0 0.0
        %2811 = vmatpush1.msra.mxu0 0.0
        %2812 = vmatprep.subr.mxu0 0.0
        %2813 = vmatpush1.msra.mxu0 0.0
        %2814 = vmatprep.subr.mxu0 0.0
        %2815 = vmatpush1.msra.mxu0 0.0
        %2816 = vmatprep.subr.mxu0 0.0
        %2817 = vmatpush1.msra.mxu0 0.0
        %2818 = vmatprep.subr.mxu0 0.0
        %2819 = vmatpush1.msra.mxu0 0.0
        %2820 = vmatprep.subr.mxu0 0.0
        %2821 = vmatpush1.msra.mxu0 0.0
        %2822 = vmatprep.subr.mxu0 0.0
        %2823 = vmatpush1.msra.mxu0 0.0
        %2824 = vmatprep.subr.mxu0 0.0
        %2825 = vmatpush1.msra.mxu0 0.0
        %2826 = vmatprep.subr.mxu0 0.0
        %2827 = vmatpush1.msra.mxu0 0.0
        %2828 = vmatprep.subr.mxu0 0.0
        %2829 = vmatpush1.msra.mxu0 0.0
        %2830 = vmatprep.subr.mxu0 0.0
        %2831 = vmatpush1.msra.mxu0 0.0
        %2832 = vmatprep.subr.mxu0 0.0
        %2833 = vmatpush1.msra.mxu0 0.0
        %2834 = vmatprep.subr.mxu0 0.0
        %2835 = vmatpush1.msra.mxu0 0.0
        %2836 = vmatprep.subr.mxu0 0.0
        %2837 = vmatpush1.msra.mxu0 0.0
        %2838 = vmatprep.subr.mxu0 0.0
        %2839 = vmatpush1.msra.mxu0 0.0
        %2840 = vmatprep.subr.mxu0 0.0
        %2841 = vmatpush1.msra.mxu0 0.0
        %2842 = vmatprep.subr.mxu0 0.0
        %2843 = vmatpush1.msra.mxu0 0.0
        %2844 = vmatprep.subr.mxu0 0.0
        %2845 = vmatpush1.msra.mxu0 0.0
        %2846 = vmatprep.subr.mxu0 0.0
        %2847 = vmatpush1.msra.mxu0 0.0
        %2848 = vmatprep.subr.mxu0 0.0
        %2849 = vmatpush1.msra.mxu0 0.0
        %2850 = vmatprep.subr.mxu0 0.0
        %2851 = vmatpush1.msra.mxu0 0.0
        %2852 = vmatprep.mubr.f32.mxu0 0.0
        %2853 = vmatmul.mubr.f32.gmra.mrb[0].mxu0 %v2786
        %v2854 = vpop.f32.mrb[0].mxu0
        %v2855 = vadd.f32 0.0, %v2854
        %v2856 = vpop.f32.mrb[0].mxu0
        %2857 = vdwg.mxu0
        %2858 = vrot.lane.b32.xlu0 %v1704, 16
        %v2859 = vpop.permute.xlu0 %2858
        %2860 = vrot.lane.b32.xlu0 %v1660, 16
        %v2861 = vpop.permute.xlu0 %2860
        %v2862 = vsel %vm1705, %v2859, 0
        %v2864 = vsel %vm1705, %v2861, 0
        %2866 = vmatprep.subr.mxu0 0.0
        %2867 = vmatpush1.xpose.msra.mxu0 %v2864
        %2868 = vmatprep.subr.mxu0 0.0
        %2869 = vmatpush1.xpose.msra.mxu0 0.0
        %2870 = vmatprep.subr.mxu0 0.0
        %2871 = vmatpush1.xpose.msra.mxu0 0.0
        %2872 = vmatprep.subr.mxu0 0.0
        %2873 = vmatpush1.xpose.msra.mxu0 0.0
        %2874 = vmatprep.subr.mxu0 0.0
        %2875 = vmatpush1.xpose.msra.mxu0 0.0
        %2876 = vmatprep.subr.mxu0 0.0
        %2877 = vmatpush1.xpose.msra.mxu0 0.0
        %2878 = vmatprep.subr.mxu0 0.0
        %2879 = vmatpush1.xpose.msra.mxu0 0.0
        %2880 = vmatprep.subr.mxu0 0.0
        %2881 = vmatpush1.xpose.msra.mxu0 0.0
        %2882 = vmatprep.subr.mxu0 0.0
        %2883 = vmatpush1.xpose.msra.mxu0 0.0
        %2884 = vmatprep.subr.mxu0 0.0
        %2885 = vmatpush1.xpose.msra.mxu0 0.0
        %2886 = vmatprep.subr.mxu0 0.0
        %2887 = vmatpush1.xpose.msra.mxu0 0.0
        %2888 = vmatprep.subr.mxu0 0.0
        %2889 = vmatpush1.xpose.msra.mxu0 0.0
        %2890 = vmatprep.subr.mxu0 0.0
        %2891 = vmatpush1.xpose.msra.mxu0 0.0
        %2892 = vmatprep.subr.mxu0 0.0
        %2893 = vmatpush1.xpose.msra.mxu0 0.0
        %2894 = vmatprep.subr.mxu0 0.0
        %2895 = vmatpush1.xpose.msra.mxu0 0.0
        %2896 = vmatprep.subr.mxu0 0.0
        %2897 = vmatpush1.xpose.msra.mxu0 0.0
        %2898 = vmatprep.subr.mxu0 0.0
        %2899 = vmatpush1.xpose.msra.mxu0 0.0
        %2900 = vmatprep.subr.mxu0 0.0
        %2901 = vmatpush1.xpose.msra.mxu0 0.0
        %2902 = vmatprep.subr.mxu0 0.0
        %2903 = vmatpush1.xpose.msra.mxu0 0.0
        %2904 = vmatprep.subr.mxu0 0.0
        %2905 = vmatpush1.xpose.msra.mxu0 0.0
        %2906 = vmatprep.subr.mxu0 0.0
        %2907 = vmatpush1.xpose.msra.mxu0 0.0
        %2908 = vmatprep.subr.mxu0 0.0
        %2909 = vmatpush1.xpose.msra.mxu0 0.0
        %2910 = vmatprep.subr.mxu0 0.0
        %2911 = vmatpush1.xpose.msra.mxu0 0.0
        %2912 = vmatprep.subr.mxu0 0.0
        %2913 = vmatpush1.xpose.msra.mxu0 0.0
        %2914 = vmatprep.subr.mxu0 0.0
        %2915 = vmatpush1.xpose.msra.mxu0 0.0
        %2916 = vmatprep.subr.mxu0 0.0
        %2917 = vmatpush1.xpose.msra.mxu0 0.0
        %2918 = vmatprep.subr.mxu0 0.0
        %2919 = vmatpush1.xpose.msra.mxu0 0.0
        %2920 = vmatprep.subr.mxu0 0.0
        %2921 = vmatpush1.xpose.msra.mxu0 0.0
        %2922 = vmatprep.subr.mxu0 0.0
        %2923 = vmatpush1.xpose.msra.mxu0 0.0
        %2924 = vmatprep.subr.mxu0 0.0
        %2925 = vmatpush1.xpose.msra.mxu0 0.0
        %2926 = vmatprep.subr.mxu0 0.0
        %2927 = vmatpush1.xpose.msra.mxu0 0.0
        %2928 = vmatprep.subr.mxu0 0.0
        %2929 = vmatpush1.xpose.msra.mxu0 0.0
        %2930 = vmatprep.mubr.f32.mxu0 0.0
        %2931 = vmatmul.mubr.f32.gmra.mrb[0].mxu0 %v2862
        %v2932 = vpop.f32.mrb[0].mxu0
        %v2933 = vadd.f32 0.0, %v2932
        %v2934 = vpop.f32.mrb[0].mxu0
        %2935 = vdwg.mxu0
        %v2936 = vsel %vm1782, %v2933, -inf
        %2937 = vmax.xlane.f32.xlu0 %v2936
        %v2938 = vpop.xlane.xlu0 %2937
        %v2939 = vsub.f32 %v2933, %v2938
        %v2940 = vmul.f32 %v2939, 1.442695
        %v2941 = vpow.pop %v2940
        %v2942 = vsel %vm1782, %v2941, 0.0
        %2943 = vadd.xlane.f32.xlu0 %v2942
        %v2944 = vpop.xlane.xlu0 %2943
        %v2945 = vrcp.pop %v2944
        %v2946 = vmul.f32 %v2941, %v2945
        %2947 = vrot.lane.b32.xlu0 %v1699, 16
        %v2948 = vpop.permute.xlu0 %2947
        %v2951 = vsel %vm1782, %v2946, 0
        %2953 = vmatprep.subr.mxu0 0.0
        %2954 = vmatpush1.msra.mxu0 %v2948
        %2955 = vmatprep.subr.mxu0 0.0
        %2956 = vmatpush1.msra.mxu0 0.0
        %2957 = vmatprep.subr.mxu0 0.0
        %2958 = vmatpush1.msra.mxu0 0.0
        %2959 = vmatprep.subr.mxu0 0.0
        %2960 = vmatpush1.msra.mxu0 0.0
        %2961 = vmatprep.subr.mxu0 0.0
        %2962 = vmatpush1.msra.mxu0 0.0
        %2963 = vmatprep.subr.mxu0 0.0
        %2964 = vmatpush1.msra.mxu0 0.0
        %2965 = vmatprep.subr.mxu0 0.0
        %2966 = vmatpush1.msra.mxu0 0.0
        %2967 = vmatprep.subr.mxu0 0.0
        %2968 = vmatpush1.msra.mxu0 0.0
        %2969 = vmatprep.subr.mxu0 0.0
        %2970 = vmatpush1.msra.mxu0 0.0
        %2971 = vmatprep.subr.mxu0 0.0
        %2972 = vmatpush1.msra.mxu0 0.0
        %2973 = vmatprep.subr.mxu0 0.0
        %2974 = vmatpush1.msra.mxu0 0.0
        %2975 = vmatprep.subr.mxu0 0.0
        %2976 = vmatpush1.msra.mxu0 0.0
        %2977 = vmatprep.subr.mxu0 0.0
        %2978 = vmatpush1.msra.mxu0 0.0
        %2979 = vmatprep.subr.mxu0 0.0
        %2980 = vmatpush1.msra.mxu0 0.0
        %2981 = vmatprep.subr.mxu0 0.0
        %2982 = vmatpush1.msra.mxu0 0.0
        %2983 = vmatprep.subr.mxu0 0.0
        %2984 = vmatpush1.msra.mxu0 0.0
        %2985 = vmatprep.subr.mxu0 0.0
        %2986 = vmatpush1.msra.mxu0 0.0
        %2987 = vmatprep.subr.mxu0 0.0
        %2988 = vmatpush1.msra.mxu0 0.0
        %2989 = vmatprep.subr.mxu0 0.0
        %2990 = vmatpush1.msra.mxu0 0.0
        %2991 = vmatprep.subr.mxu0 0.0
        %2992 = vmatpush1.msra.mxu0 0.0
        %2993 = vmatprep.subr.mxu0 0.0
        %2994 = vmatpush1.msra.mxu0 0.0
        %2995 = vmatprep.subr.mxu0 0.0
        %2996 = vmatpush1.msra.mxu0 0.0
        %2997 = vmatprep.subr.mxu0 0.0
        %2998 = vmatpush1.msra.mxu0 0.0
        %2999 = vmatprep.subr.mxu0 0.0
        %3000 = vmatpush1.msra.mxu0 0.0
        %3001 = vmatprep.subr.mxu0 0.0
        %3002 = vmatpush1.msra.mxu0 0.0
        %3003 = vmatprep.subr.mxu0 0.0
        %3004 = vmatpush1.msra.mxu0 0.0
        %3005 = vmatprep.subr.mxu0 0.0
        %3006 = vmatpush1.msra.mxu0 0.0
        %3007 = vmatprep.subr.mxu0 0.0
        %3008 = vmatpush1.msra.mxu0 0.0
        %3009 = vmatprep.subr.mxu0 0.0
        %3010 = vmatpush1.msra.mxu0 0.0
        %3011 = vmatprep.subr.mxu0 0.0
        %3012 = vmatpush1.msra.mxu0 0.0
        %3013 = vmatprep.subr.mxu0 0.0
        %3014 = vmatpush1.msra.mxu0 0.0
        %3015 = vmatprep.subr.mxu0 0.0
        %3016 = vmatpush1.msra.mxu0 0.0
        %3017 = vmatprep.mubr.f32.mxu0 0.0
        %3018 = vmatmul.mubr.f32.gmra.mrb[0].mxu0 %v2951
        %v3019 = vpop.f32.mrb[0].mxu0
        %v3020 = vadd.f32 0.0, %v3019
        %v3021 = vpop.f32.mrb[0].mxu0
        %3022 = vdwg.mxu0
        %3024 = vrot.lane.b32.xlu0 %v2030, 16
        %v3025 = vpop.permute.xlu0 %3024
        %3028 = vrot.lane.b32.xlu0 %v2195, 32
        %v3029 = vpop.permute.xlu0 %3028
        %3032 = vrot.lane.b32.xlu0 %v2360, 48
        %v3033 = vpop.permute.xlu0 %3032
        %3036 = vrot.lane.b32.xlu0 %v2525, 64
        %v3037 = vpop.permute.xlu0 %3036
        %3040 = vrot.lane.b32.xlu0 %v2690, 80
        %v3041 = vpop.permute.xlu0 %3040
        %3044 = vrot.lane.b32.xlu0 %v2855, 96
        %v3045 = vpop.permute.xlu0 %3044
        %3048 = vrot.lane.b32.xlu0 %v3020, 112
        %v3049 = vpop.permute.xlu0 %3048
        %v3051 = vsel %vm1705, %v1864, %v3025
        %vm3052 = vcmask 261120
        %v3053 = vsel %vm3052, %v3051, %v3029
        %vm3054 = vcmask 392192
        %v3055 = vsel %vm3054, %v3053, %v3033
        %vm3056 = vcmask 523264
        %v3057 = vsel %vm3056, %v3055, %v3037
        %vm3058 = vcmask 654336
        %v3059 = vsel %vm3058, %v3057, %v3041
        %vm3060 = vcmask 785408
        %v3061 = vsel %vm3060, %v3059, %v3045
        %vm3062 = vcmask 916480
        %v3063 = vsel %vm3062, %v3061, %v3049
        %v3064 = vpack.c.bf16 %v3063, %v3063
        %v3081 = vunpack.c.l.b16 %v1478
        %v3082 = vunpack.c.l.b16 %v1479
        %v3083 = vunpack.c.l.b16 %v1480
        %v3084 = vunpack.c.l.b16 %v1481
        %v3085 = vunpack.c.l.b16 %v1482
        %v3086 = vunpack.c.l.b16 %v1483
        %v3087 = vunpack.c.l.b16 %v1484
        %v3088 = vunpack.c.l.b16 %v1485
        %v3089 = vunpack.c.l.b16 %v1486
        %v3090 = vunpack.c.l.b16 %v1487
        %v3091 = vunpack.c.l.b16 %v1488
        %v3092 = vunpack.c.l.b16 %v1489
        %v3093 = vunpack.c.l.b16 %v1490
        %v3094 = vunpack.c.l.b16 %v1491
        %v3095 = vunpack.c.l.b16 %v1492
        %v3096 = vunpack.c.l.b16 %v1493
        %v3097 = vpack.c.b16 %v3082, %v3081
        %v3098 = vpack.c.b16 %v3084, %v3083
        %v3099 = vpack.c.b16 %v3086, %v3085
        %v3100 = vpack.c.b16 %v3088, %v3087
        %v3101 = vpack.c.b16 %v3090, %v3089
        %v3102 = vpack.c.b16 %v3092, %v3091
        %v3103 = vpack.c.b16 %v3094, %v3093
        %v3104 = vpack.c.b16 %v3096, %v3095
        %3113 = vmatprep.subr.bf16.mxu0 0
        %3114 = vmatpush1.bf16.msra.mxu0 %v3097
        %3115 = vmatprep.subr.bf16.mxu0 0
        %3116 = vmatpush1.bf16.msra.mxu0 %v3098
        %3117 = vmatprep.subr.bf16.mxu0 0
        %3118 = vmatpush1.bf16.msra.mxu0 %v3099
        %3119 = vmatprep.subr.bf16.mxu0 0
        %3120 = vmatpush1.bf16.msra.mxu0 %v3100
        %3121 = vmatprep.subr.bf16.mxu0 0
        %3122 = vmatpush1.bf16.msra.mxu0 %v3101
        %3123 = vmatprep.subr.bf16.mxu0 0
        %3124 = vmatpush1.bf16.msra.mxu0 %v3102
        %3125 = vmatprep.subr.bf16.mxu0 0
        %3126 = vmatpush1.bf16.msra.mxu0 %v3103
        %3127 = vmatprep.subr.bf16.mxu0 0
        %3128 = vmatpush1.bf16.msra.mxu0 %v3104
        %3129 = vmatprep.subr.bf16.mxu0 0
        %3130 = vmatpush1.bf16.msra.mxu0 0
        %3131 = vmatprep.subr.bf16.mxu0 0
        %3132 = vmatpush1.bf16.msra.mxu0 0
        %3133 = vmatprep.subr.bf16.mxu0 0
        %3134 = vmatpush1.bf16.msra.mxu0 0
        %3135 = vmatprep.subr.bf16.mxu0 0
        %3136 = vmatpush1.bf16.msra.mxu0 0
        %3137 = vmatprep.subr.bf16.mxu0 0
        %3138 = vmatpush1.bf16.msra.mxu0 0
        %3139 = vmatprep.subr.bf16.mxu0 0
        %3140 = vmatpush1.bf16.msra.mxu0 0
        %3141 = vmatprep.subr.bf16.mxu0 0
        %3142 = vmatpush1.bf16.msra.mxu0 0
        %3143 = vmatprep.subr.bf16.mxu0 0
        %3144 = vmatpush1.bf16.msra.mxu0 0
        %3145 = vmatprep.mubr.bf16.mxu0 0
        %3146 = vmatmul.mubr.bf16.gmra.mrb[0].mxu0 %v3064
        %v3147 = vpop.f32.mrb[0].mxu0
        %v3148 = vadd.f32 %v1445, %v3147
        %v3149 = vpop.f32.mrb[0].mxu0
        %v3150 = vpop.f32.mrb[0].mxu0
        %v3151 = vpop.f32.mrb[0].mxu0
        %3152 = vdwg.mxu0
        %v3153 = vld [vmem:[%s1404] sm:$0x1]
        %v3154 = vld [vmem:[%s1407] sm:$0x1]
        %3155 = vadd.xlane.f32.xlu0 %v3148
        %v3156 = vpop.xlane.xlu0 %3155
        %v3157 = vrcp.pop 128.0
        %v3158 = vmul.f32 %v3156, %v3157
        %v3159 = vsub.f32 %v3148, %v3158
        %v3160 = vmul.f32 %v3159, %v3159
        %3161 = vadd.xlane.f32.xlu0 %v3160
        %v3162 = vpop.xlane.xlu0 %3161
        %v3163 = vmul.f32 %v3162, %v3157
        %v3164 = vadd.f32 %v3163, 1e-05
        %v3165 = vrsqrt.pop %v3164
        %v3166 = vmul.f32 %v3159, %v3165
        %v3168 = vlaneseq
        %v3169 = vshrl.u32 %v3168, 7
        %v3170 = vsub.s32 0, %v3169
        %v3171 = vrot.slane %v3153, %v3170
        %v3173 = vmul.f32 %v3166, %v3171
        %v3175 = vlaneseq
        %v3176 = vshrl.u32 %v3175, 7
        %v3177 = vsub.s32 0, %v3176
        %v3178 = vrot.slane %v3154, %v3177
        %v3180 = vadd.f32 %v3173, %v3178
        %v3181 = vld [vmem:[%s1412] sm:$0xff]
        %v3182 = vld [vmem:[%s1412 + $0x8] sm:$0xff]
        %v3183 = vld [vmem:[%s1412 + $0x10] sm:$0xff]
        %v3184 = vld [vmem:[%s1412 + $0x18] sm:$0xff]
        %v3185 = vld [vmem:[%s1412 + $0x20] sm:$0xff]
        %v3186 = vld [vmem:[%s1412 + $0x28] sm:$0xff]
        %v3187 = vld [vmem:[%s1412 + $0x30] sm:$0xff]
        %v3188 = vld [vmem:[%s1412 + $0x38] sm:$0xff]
        %v3189 = vld [vmem:[%s1412 + $0x40] sm:$0xff]
        %v3190 = vld [vmem:[%s1412 + $0x48] sm:$0xff]
        %v3191 = vld [vmem:[%s1412 + $0x50] sm:$0xff]
        %v3192 = vld [vmem:[%s1412 + $0x58] sm:$0xff]
        %v3193 = vld [vmem:[%s1412 + $0x60] sm:$0xff]
        %v3194 = vld [vmem:[%s1412 + $0x68] sm:$0xff]
        %v3195 = vld [vmem:[%s1412 + $0x70] sm:$0xff]
        %v3196 = vld [vmem:[%s1412 + $0x78] sm:$0xff]
        %v3197 = vld [vmem:[%s1416] sm:$0x3]
        %v3198 = vld [vmem:[%s1154] sm:$0xf]
        %v3199 = vld [vmem:[%s1154 + $0x4] sm:$0xf]
        %v3200 = vld [vmem:[%s1154 + $0x8] sm:$0xf]
        %v3201 = vld [vmem:[%s1154 + $0xc] sm:$0xf]
        %v3202 = vld [vmem:[%s1154 + $0x10] sm:$0xf]
        %v3203 = vld [vmem:[%s1154 + $0x14] sm:$0xf]
        %v3204 = vld [vmem:[%s1154 + $0x18] sm:$0xf]
        %v3205 = vld [vmem:[%s1154 + $0x1c] sm:$0xf]
        %v3206 = vld [vmem:[%s1154 + $0x20] sm:$0xf]
        %v3207 = vld [vmem:[%s1154 + $0x24] sm:$0xf]
        %v3208 = vld [vmem:[%s1154 + $0x28] sm:$0xf]
        %v3209 = vld [vmem:[%s1154 + $0x2c] sm:$0xf]
        %v3210 = vld [vmem:[%s1154 + $0x30] sm:$0xf]
        %v3211 = vld [vmem:[%s1154 + $0x34] sm:$0xf]
        %v3212 = vld [vmem:[%s1154 + $0x38] sm:$0xf]
        %v3213 = vld [vmem:[%s1154 + $0x3c] sm:$0xf]
        %v3214 = vld [vmem:[%s1154 + $0x40] sm:$0xf]
        %v3215 = vld [vmem:[%s1154 + $0x44] sm:$0xf]
        %v3216 = vld [vmem:[%s1154 + $0x48] sm:$0xf]
        %v3217 = vld [vmem:[%s1154 + $0x4c] sm:$0xf]
        %v3218 = vld [vmem:[%s1154 + $0x50] sm:$0xf]
        %v3219 = vld [vmem:[%s1154 + $0x54] sm:$0xf]
        %v3220 = vld [vmem:[%s1154 + $0x58] sm:$0xf]
        %v3221 = vld [vmem:[%s1154 + $0x5c] sm:$0xf]
        %v3222 = vld [vmem:[%s1154 + $0x60] sm:$0xf]
        %v3223 = vld [vmem:[%s1154 + $0x64] sm:$0xf]
        %v3224 = vld [vmem:[%s1154 + $0x68] sm:$0xf]
        %v3225 = vld [vmem:[%s1154 + $0x6c] sm:$0xf]
        %v3226 = vld [vmem:[%s1154 + $0x70] sm:$0xf]
        %v3227 = vld [vmem:[%s1154 + $0x74] sm:$0xf]
        %v3228 = vld [vmem:[%s1154 + $0x78] sm:$0xf]
        %v3229 = vld [vmem:[%s1154 + $0x7c] sm:$0xf]
        %v3230 = vld [vmem:[%s1419] sm:$0x1]
        %v3231 = vpack.c.bf16 %v3180, %v3180
        %v3233 = vlaneseq
        %v3234 = vshrl.u32 %v3233, 7
        %v3235 = vsub.s32 0, %v3234
        %v3236 = vrot.slane %v3197, %v3235
        %v3237 = vlaneseq
        %v3238 = vshrl.u32 %v3237, 7
        %v3239 = vsub.s32 1, %v3238
        %v3240 = vrot.slane %v3197, %v3239
        %v3259 = vunpack.c.l.b16 %v3181
        %v3260 = vunpack.c.h.b16 %v3181
        %v3261 = vunpack.c.l.b16 %v3182
        %v3262 = vunpack.c.h.b16 %v3182
        %v3263 = vunpack.c.l.b16 %v3183
        %v3264 = vunpack.c.h.b16 %v3183
        %v3265 = vunpack.c.l.b16 %v3184
        %v3266 = vunpack.c.h.b16 %v3184
        %v3267 = vunpack.c.l.b16 %v3185
        %v3268 = vunpack.c.h.b16 %v3185
        %v3269 = vunpack.c.l.b16 %v3186
        %v3270 = vunpack.c.h.b16 %v3186
        %v3271 = vunpack.c.l.b16 %v3187
        %v3272 = vunpack.c.h.b16 %v3187
        %v3273 = vunpack.c.l.b16 %v3188
        %v3274 = vunpack.c.h.b16 %v3188
        %v3275 = vunpack.c.l.b16 %v3189
        %v3276 = vunpack.c.h.b16 %v3189
        %v3277 = vunpack.c.l.b16 %v3190
        %v3278 = vunpack.c.h.b16 %v3190
        %v3279 = vunpack.c.l.b16 %v3191
        %v3280 = vunpack.c.h.b16 %v3191
        %v3281 = vunpack.c.l.b16 %v3192
        %v3282 = vunpack.c.h.b16 %v3192
        %v3283 = vunpack.c.l.b16 %v3193
        %v3284 = vunpack.c.h.b16 %v3193
        %v3285 = vunpack.c.l.b16 %v3194
        %v3286 = vunpack.c.h.b16 %v3194
        %v3287 = vunpack.c.l.b16 %v3195
        %v3288 = vunpack.c.h.b16 %v3195
        %v3289 = vunpack.c.l.b16 %v3196
        %v3290 = vunpack.c.h.b16 %v3196
        %v3291 = vpack.c.b16 %v3261, %v3259
        %v3292 = vpack.c.b16 %v3262, %v3260
        %v3293 = vpack.c.b16 %v3265, %v3263
        %v3294 = vpack.c.b16 %v3266, %v3264
        %v3295 = vpack.c.b16 %v3269, %v3267
        %v3296 = vpack.c.b16 %v3270, %v3268
        %v3297 = vpack.c.b16 %v3273, %v3271
        %v3298 = vpack.c.b16 %v3274, %v3272
        %v3299 = vpack.c.b16 %v3277, %v3275
        %v3300 = vpack.c.b16 %v3278, %v3276
        %v3301 = vpack.c.b16 %v3281, %v3279
        %v3302 = vpack.c.b16 %v3282, %v3280
        %v3303 = vpack.c.b16 %v3285, %v3283
        %v3304 = vpack.c.b16 %v3286, %v3284
        %v3305 = vpack.c.b16 %v3289, %v3287
        %v3306 = vpack.c.b16 %v3290, %v3288
        %3323 = vmatprep.subr.bf16.mxu0 %v3292
        %3324 = vmatpush1.bf16.msra.mxu0 %v3291
        %3325 = vmatprep.subr.bf16.mxu0 %v3294
        %3326 = vmatpush1.bf16.msra.mxu0 %v3293
        %3327 = vmatprep.subr.bf16.mxu0 %v3296
        %3328 = vmatpush1.bf16.msra.mxu0 %v3295
        %3329 = vmatprep.subr.bf16.mxu0 %v3298
        %3330 = vmatpush1.bf16.msra.mxu0 %v3297
        %3331 = vmatprep.subr.bf16.mxu0 %v3300
        %3332 = vmatpush1.bf16.msra.mxu0 %v3299
        %3333 = vmatprep.subr.bf16.mxu0 %v3302
        %3334 = vmatpush1.bf16.msra.mxu0 %v3301
        %3335 = vmatprep.subr.bf16.mxu0 %v3304
        %3336 = vmatpush1.bf16.msra.mxu0 %v3303
        %3337 = vmatprep.subr.bf16.mxu0 %v3306
        %3338 = vmatpush1.bf16.msra.mxu0 %v3305
        %3339 = vmatprep.subr.bf16.mxu0 0
        %3340 = vmatpush1.bf16.msra.mxu0 0
        %3341 = vmatprep.subr.bf16.mxu0 0
        %3342 = vmatpush1.bf16.msra.mxu0 0
        %3343 = vmatprep.subr.bf16.mxu0 0
        %3344 = vmatpush1.bf16.msra.mxu0 0
        %3345 = vmatprep.subr.bf16.mxu0 0
        %3346 = vmatpush1.bf16.msra.mxu0 0
        %3347 = vmatprep.subr.bf16.mxu0 0
        %3348 = vmatpush1.bf16.msra.mxu0 0
        %3349 = vmatprep.subr.bf16.mxu0 0
        %3350 = vmatpush1.bf16.msra.mxu0 0
        %3351 = vmatprep.subr.bf16.mxu0 0
        %3352 = vmatpush1.bf16.msra.mxu0 0
        %3353 = vmatprep.subr.bf16.mxu0 0
        %3354 = vmatpush1.bf16.msra.mxu0 0
        %3355 = vmatprep.mubr.bf16.mxu0 0
        %3356 = vmatmul.mubr.bf16.gmra.mrb[0].mxu0 %v3231
        %v3357 = vpop.f32.mrb[0].mxu0
        %v3358 = vadd.f32 %v3236, %v3357
        %v3359 = vpop.f32.mrb[0].mxu0
        %v3360 = vadd.f32 %v3240, %v3359
        %v3361 = vpop.f32.mrb[0].mxu0
        %v3362 = vpop.f32.mrb[0].mxu0
        %3363 = vdwg.mxu0
        %v3364 = vmax.f32 %v3358, 0.0
        %v3365 = vmax.f32 %v3360, 0.0
        %v3366 = vpack.c.bf16 %v3364, %v3364
        %v3367 = vpack.c.bf16 %v3365, %v3365
        %v3369 = vlaneseq
        %v3370 = vshrl.u32 %v3369, 7
        %v3371 = vsub.s32 0, %v3370
        %v3372 = vrot.slane %v3230, %v3371
        %v3406 = vunpack.c.l.b16 %v3198
        %v3407 = vunpack.c.l.b16 %v3199
        %v3408 = vunpack.c.l.b16 %v3200
        %v3409 = vunpack.c.l.b16 %v3201
        %v3410 = vunpack.c.l.b16 %v3202
        %v3411 = vunpack.c.l.b16 %v3203
        %v3412 = vunpack.c.l.b16 %v3204
        %v3413 = vunpack.c.l.b16 %v3205
        %v3414 = vunpack.c.l.b16 %v3206
        %v3415 = vunpack.c.l.b16 %v3207
        %v3416 = vunpack.c.l.b16 %v3208
        %v3417 = vunpack.c.l.b16 %v3209
        %v3418 = vunpack.c.l.b16 %v3210
        %v3419 = vunpack.c.l.b16 %v3211
        %v3420 = vunpack.c.l.b16 %v3212
        %v3421 = vunpack.c.l.b16 %v3213
        %v3422 = vunpack.c.l.b16 %v3214
        %v3423 = vunpack.c.l.b16 %v3215
        %v3424 = vunpack.c.l.b16 %v3216
        %v3425 = vunpack.c.l.b16 %v3217
        %v3426 = vunpack.c.l.b16 %v3218
        %v3427 = vunpack.c.l.b16 %v3219
        %v3428 = vunpack.c.l.b16 %v3220
        %v3429 = vunpack.c.l.b16 %v3221
        %v3430 = vunpack.c.l.b16 %v3222
        %v3431 = vunpack.c.l.b16 %v3223
        %v3432 = vunpack.c.l.b16 %v3224
        %v3433 = vunpack.c.l.b16 %v3225
        %v3434 = vunpack.c.l.b16 %v3226
        %v3435 = vunpack.c.l.b16 %v3227
        %v3436 = vunpack.c.l.b16 %v3228
        %v3437 = vunpack.c.l.b16 %v3229
        %v3438 = vpack.c.b16 %v3407, %v3406
        %v3439 = vpack.c.b16 %v3409, %v3408
        %v3440 = vpack.c.b16 %v3411, %v3410
        %v3441 = vpack.c.b16 %v3413, %v3412
        %v3442 = vpack.c.b16 %v3415, %v3414
        %v3443 = vpack.c.b16 %v3417, %v3416
        %v3444 = vpack.c.b16 %v3419, %v3418
        %v3445 = vpack.c.b16 %v3421, %v3420
        %v3446 = vpack.c.b16 %v3423, %v3422
        %v3447 = vpack.c.b16 %v3425, %v3424
        %v3448 = vpack.c.b16 %v3427, %v3426
        %v3449 = vpack.c.b16 %v3429, %v3428
        %v3450 = vpack.c.b16 %v3431, %v3430
        %v3451 = vpack.c.b16 %v3433, %v3432
        %v3452 = vpack.c.b16 %v3435, %v3434
        %v3453 = vpack.c.b16 %v3437, %v3436
        %3470 = vmatprep.subr.bf16.mxu0 0
        %3471 = vmatpush1.bf16.msra.mxu0 %v3438
        %3472 = vmatprep.subr.bf16.mxu0 0
        %3473 = vmatpush1.bf16.msra.mxu0 %v3439
        %3474 = vmatprep.subr.bf16.mxu0 0
        %3475 = vmatpush1.bf16.msra.mxu0 %v3440
        %3476 = vmatprep.subr.bf16.mxu0 0
        %3477 = vmatpush1.bf16.msra.mxu0 %v3441
        %3478 = vmatprep.subr.bf16.mxu0 0
        %3479 = vmatpush1.bf16.msra.mxu0 %v3442
        %3480 = vmatprep.subr.bf16.mxu0 0
        %3481 = vmatpush1.bf16.msra.mxu0 %v3443
        %3482 = vmatprep.subr.bf16.mxu0 0
        %3483 = vmatpush1.bf16.msra.mxu0 %v3444
        %3484 = vmatprep.subr.bf16.mxu0 0
        %3485 = vmatpush1.bf16.msra.mxu0 %v3445
        %3486 = vmatprep.subr.bf16.mxu0 0
        %3487 = vmatpush1.bf16.msra.mxu0 %v3446
        %3488 = vmatprep.subr.bf16.mxu0 0
        %3489 = vmatpush1.bf16.msra.mxu0 %v3447
        %3490 = vmatprep.subr.bf16.mxu0 0
        %3491 = vmatpush1.bf16.msra.mxu0 %v3448
        %3492 = vmatprep.subr.bf16.mxu0 0
        %3493 = vmatpush1.bf16.msra.mxu0 %v3449
        %3494 = vmatprep.subr.bf16.mxu0 0
        %3495 = vmatpush1.bf16.msra.mxu0 %v3450
        %3496 = vmatprep.subr.bf16.mxu0 0
        %3497 = vmatpush1.bf16.msra.mxu0 %v3451
        %3498 = vmatprep.subr.bf16.mxu0 0
        %3499 = vmatpush1.bf16.msra.mxu0 %v3452
        %3500 = vmatprep.subr.bf16.mxu0 0
        %3501 = vmatpush1.bf16.msra.mxu0 %v3453
        %3502 = vmatprep.mubr.bf16.mxu0 %v3367
        %3503 = vmatmul.mubr.bf16.gmra.mrb[0].mxu0 %v3366
        %v3504 = vpop.f32.mrb[0].mxu0
        %v3505 = vadd.f32 %v3372, %v3504
        %v3506 = vpop.f32.mrb[0].mxu0
        %v3507 = vpop.f32.mrb[0].mxu0
        %v3508 = vpop.f32.mrb[0].mxu0
        %3509 = vdwg.mxu0
        %v3510 = vadd.f32 %v3505, %v3148
        %v3511 = vld [vmem:[%s1422] sm:$0x1]
        %v3512 = vld [vmem:[%s1425] sm:$0x1]
        %3513 = vadd.xlane.f32.xlu0 %v3510
        %v3514 = vpop.xlane.xlu0 %3513
        %v3515 = vmul.f32 %v3514, %v3157
        %v3516 = vsub.f32 %v3510, %v3515
        %v3517 = vmul.f32 %v3516, %v3516
        %3518 = vadd.xlane.f32.xlu0 %v3517
        %v3519 = vpop.xlane.xlu0 %3518
        %v3520 = vmul.f32 %v3519, %v3157
        %v3521 = vadd.f32 %v3520, 1e-05
        %v3522 = vrsqrt.pop %v3521
        %v3523 = vmul.f32 %v3516, %v3522
        %v3525 = vlaneseq
        %v3526 = vshrl.u32 %v3525, 7
        %v3527 = vsub.s32 0, %v3526
        %v3528 = vrot.slane %v3511, %v3527
        %v3530 = vmul.f32 %v3523, %v3528
        %v3532 = vlaneseq
        %v3533 = vshrl.u32 %v3532, 7
        %v3534 = vsub.s32 0, %v3533
        %v3535 = vrot.slane %v3512, %v3534
        %v3537 = vadd.f32 %v3530, %v3535
        %3538 = vst [vmem:[#allocation2] sm:$0xff] %v3537
        %v3539 = vld [vmem:[#allocation3] sm:$0xff]
        %v3540 = vld [vmem:[%s1163] sm:$0xff]
        %v3541 = vld [vmem:[%s1163 + $0x8] sm:$0xf]
        %v3542 = vld [vmem:[%s1163 + $0xc] sm:$0xff]
        %v3543 = vld [vmem:[%s1163 + $0x14] sm:$0xf]
        %v3544 = vld [vmem:[%s1163 + $0x18] sm:$0xff]
        %v3545 = vld [vmem:[%s1163 + $0x20] sm:$0xf]
        %v3546 = vld [vmem:[%s1163 + $0x24] sm:$0xff]
        %v3547 = vld [vmem:[%s1163 + $0x2c] sm:$0xf]
        %v3548 = vld [vmem:[%s1163 + $0x30] sm:$0xff]
        %v3549 = vld [vmem:[%s1163 + $0x38] sm:$0xf]
        %v3550 = vld [vmem:[%s1163 + $0x3c] sm:$0xff]
        %v3551 = vld [vmem:[%s1163 + $0x44] sm:$0xf]
        %v3552 = vld [vmem:[%s1163 + $0x48] sm:$0xff]
        %v3553 = vld [vmem:[%s1163 + $0x50] sm:$0xf]
        %v3554 = vld [vmem:[%s1163 + $0x54] sm:$0xff]
        %v3555 = vld [vmem:[%s1163 + $0x5c] sm:$0xf]
        %v3556 = vld [vmem:[%s1163 + $0x60] sm:$0xff]
        %v3557 = vld [vmem:[%s1163 + $0x68] sm:$0xf]
        %v3558 = vld [vmem:[%s1163 + $0x6c] sm:$0xff]
        %v3559 = vld [vmem:[%s1163 + $0x74] sm:$0xf]
        %v3560 = vld [vmem:[%s1163 + $0x78] sm:$0xff]
        %v3561 = vld [vmem:[%s1163 + $0x80] sm:$0xf]
        %v3562 = vld [vmem:[%s1163 + $0x84] sm:$0xff]
        %v3563 = vld [vmem:[%s1163 + $0x8c] sm:$0xf]
        %v3564 = vld [vmem:[%s1163 + $0x90] sm:$0xff]
        %v3565 = vld [vmem:[%s1163 + $0x98] sm:$0xf]
        %v3566 = vld [vmem:[%s1163 + $0x9c] sm:$0xff]
        %v3567 = vld [vmem:[%s1163 + $0xa4] sm:$0xf]
        %v3568 = vld [vmem:[%s1163 + $0xa8] sm:$0xff]
        %v3569 = vld [vmem:[%s1163 + $0xb0] sm:$0xf]
        %v3570 = vld [vmem:[%s1163 + $0xb4] sm:$0xff]
        %v3571 = vld [vmem:[%s1163 + $0xbc] sm:$0xf]
        %v3572 = vld [vmem:[%s1172] sm:$0xf]
        %v3573 = vld [vmem:[%s1172 + $0x4] sm:$0xf]
        %v3574 = vld [vmem:[%s1172 + $0x8] sm:$0xf]
        %v3575 = vld [vmem:[%s1172 + $0xc] sm:$0xf]
        %v3576 = vld [vmem:[%s1172 + $0x10] sm:$0xf]
        %v3577 = vld [vmem:[%s1172 + $0x14] sm:$0xf]
        %v3578 = vld [vmem:[%s1172 + $0x18] sm:$0xf]
        %v3579 = vld [vmem:[%s1172 + $0x1c] sm:$0xf]
        %v3580 = vld [vmem:[%s1172 + $0x20] sm:$0xf]
        %v3581 = vld [vmem:[%s1172 + $0x24] sm:$0xf]
        %v3582 = vld [vmem:[%s1172 + $0x28] sm:$0xf]
        %v3583 = vld [vmem:[%s1172 + $0x2c] sm:$0xf]
        %v3584 = vld [vmem:[%s1172 + $0x30] sm:$0xf]
        %v3585 = vld [vmem:[%s1172 + $0x34] sm:$0xf]
        %v3586 = vld [vmem:[%s1172 + $0x38] sm:$0xf]
        %v3587 = vld [vmem:[%s1172 + $0x3c] sm:$0xf]
        %v3588 = vpack.c.bf16 %v3539, %v3539
        %v3621 = vunpack.c.l.b16 %v3540
        %v3622 = vunpack.c.h.b16 %v3540
        %v3623 = vunpack.c.l.b16 %v3541
        %v3624 = vunpack.c.l.b16 %v3542
        %v3625 = vunpack.c.h.b16 %v3542
        %v3626 = vunpack.c.l.b16 %v3543
        %v3627 = vunpack.c.l.b16 %v3544
        %v3628 = vunpack.c.h.b16 %v3544
        %v3629 = vunpack.c.l.b16 %v3545
        %v3630 = vunpack.c.l.b16 %v3546
        %v3631 = vunpack.c.h.b16 %v3546
        %v3632 = vunpack.c.l.b16 %v3547
        %v3633 = vunpack.c.l.b16 %v3548
        %v3634 = vunpack.c.h.b16 %v3548
        %v3635 = vunpack.c.l.b16 %v3549
        %v3636 = vunpack.c.l.b16 %v3550
        %v3637 = vunpack.c.h.b16 %v3550
        %v3638 = vunpack.c.l.b16 %v3551
        %v3639 = vunpack.c.l.b16 %v3552
        %v3640 = vunpack.c.h.b16 %v3552
        %v3641 = vunpack.c.l.b16 %v3553
        %v3642 = vunpack.c.l.b16 %v3554
        %v3643 = vunpack.c.h.b16 %v3554
        %v3644 = vunpack.c.l.b16 %v3555
        %v3645 = vunpack.c.l.b16 %v3556
        %v3646 = vunpack.c.h.b16 %v3556
        %v3647 = vunpack.c.l.b16 %v3557
        %v3648 = vunpack.c.l.b16 %v3558
        %v3649 = vunpack.c.h.b16 %v3558
        %v3650 = vunpack.c.l.b16 %v3559
        %v3651 = vunpack.c.l.b16 %v3560
        %v3652 = vunpack.c.h.b16 %v3560
        %v3653 = vunpack.c.l.b16 %v3561
        %v3654 = vunpack.c.l.b16 %v3562
        %v3655 = vunpack.c.h.b16 %v3562
        %v3656 = vunpack.c.l.b16 %v3563
        %v3657 = vunpack.c.l.b16 %v3564
        %v3658 = vunpack.c.h.b16 %v3564
        %v3659 = vunpack.c.l.b16 %v3565
        %v3660 = vunpack.c.l.b16 %v3566
        %v3661 = vunpack.c.h.b16 %v3566
        %v3662 = vunpack.c.l.b16 %v3567
        %v3663 = vunpack.c.l.b16 %v3568
        %v3664 = vunpack.c.h.b16 %v3568
        %v3665 = vunpack.c.l.b16 %v3569
        %v3666 = vunpack.c.l.b16 %v3570
        %v3667 = vunpack.c.h.b16 %v3570
        %v3668 = vunpack.c.l.b16 %v3571
        %v3669 = vpack.c.b16 %v3624, %v3621
        %v3670 = vpack.c.b16 %v3625, %v3622
        %v3671 = vpack.c.b16 %v3626, %v3623
        %v3672 = vpack.c.b16 %v3630, %v3627
        %v3673 = vpack.c.b16 %v3631, %v3628
        %v3674 = vpack.c.b16 %v3632, %v3629
        %v3675 = vpack.c.b16 %v3636, %v3633
        %v3676 = vpack.c.b16 %v3637, %v3634
        %v3677 = vpack.c.b16 %v3638, %v3635
        %v3678 = vpack.c.b16 %v3642, %v3639
        %v3679 = vpack.c.b16 %v3643, %v3640
        %v3680 = vpack.c.b16 %v3644, %v3641
        %v3681 = vpack.c.b16 %v3648, %v3645
        %v3682 = vpack.c.b16 %v3649, %v3646
        %v3683 = vpack.c.b16 %v3650, %v3647
        %v3684 = vpack.c.b16 %v3654, %v3651
        %v3685 = vpack.c.b16 %v3655, %v3652
        %v3686 = vpack.c.b16 %v3656, %v3653
        %v3687 = vpack.c.b16 %v3660, %v3657
        %v3688 = vpack.c.b16 %v3661, %v3658
        %v3689 = vpack.c.b16 %v3662, %v3659
        %v3690 = vpack.c.b16 %v3666, %v3663
        %v3691 = vpack.c.b16 %v3667, %v3664
        %v3692 = vpack.c.b16 %v3668, %v3665
        %3717 = vmatprep.subr.bf16.mxu0 %v3670
        %3718 = vmatpush1.bf16.msra.mxu0 %v3669
        %3719 = vmatprep.subr.bf16.mxu0 %v3673
        %3720 = vmatpush1.bf16.msra.mxu0 %v3672
        %3721 = vmatprep.subr.bf16.mxu0 %v3676
        %3722 = vmatpush1.bf16.msra.mxu0 %v3675
        %3723 = vmatprep.subr.bf16.mxu0 %v3679
        %3724 = vmatpush1.bf16.msra.mxu0 %v3678
        %3725 = vmatprep.subr.bf16.mxu0 %v3682
        %3726 = vmatpush1.bf16.msra.mxu0 %v3681
        %3727 = vmatprep.subr.bf16.mxu0 %v3685
        %3728 = vmatpush1.bf16.msra.mxu0 %v3684
        %3729 = vmatprep.subr.bf16.mxu0 %v3688
        %3730 = vmatpush1.bf16.msra.mxu0 %v3687
        %3731 = vmatprep.subr.bf16.mxu0 %v3691
        %3732 = vmatpush1.bf16.msra.mxu0 %v3690
        %3733 = vmatprep.subr.bf16.mxu0 0
        %3734 = vmatpush1.bf16.msra.mxu0 0
        %3735 = vmatprep.subr.bf16.mxu0 0
        %3736 = vmatpush1.bf16.msra.mxu0 0
        %3737 = vmatprep.subr.bf16.mxu0 0
        %3738 = vmatpush1.bf16.msra.mxu0 0
        %3739 = vmatprep.subr.bf16.mxu0 0
        %3740 = vmatpush1.bf16.msra.mxu0 0
        %3741 = vmatprep.subr.bf16.mxu0 0
        %3742 = vmatpush1.bf16.msra.mxu0 0
        %3743 = vmatprep.subr.bf16.mxu0 0
        %3744 = vmatpush1.bf16.msra.mxu0 0
        %3745 = vmatprep.subr.bf16.mxu0 0
        %3746 = vmatpush1.bf16.msra.mxu0 0
        %3747 = vmatprep.subr.bf16.mxu0 0
        %3748 = vmatpush1.bf16.msra.mxu0 0
        %3749 = vmatprep.mubr.bf16.mxu0 0
        %3750 = vmatmul.mubr.bf16.gmra.mrb[0].mxu0 %v3588
        %v3751 = vpop.f32.mrb[0].mxu0
        %v3752 = vadd.f32 0.0, %v3751
        %v3753 = vpop.f32.mrb[0].mxu0
        %v3754 = vadd.f32 0.0, %v3753
        %v3755 = vpop.f32.mrb[0].mxu0
        %v3756 = vpop.f32.mrb[0].mxu0
        %3757 = vdwg.mxu0
        %3758 = vmatprep.subr.bf16.mxu0 0
        %3759 = vmatpush1.bf16.msra.mxu0 %v3671
        %3760 = vmatprep.subr.bf16.mxu0 0
        %3761 = vmatpush1.bf16.msra.mxu0 %v3674
        %3762 = vmatprep.subr.bf16.mxu0 0
        %3763 = vmatpush1.bf16.msra.mxu0 %v3677
        %3764 = vmatprep.subr.bf16.mxu0 0
        %3765 = vmatpush1.bf16.msra.mxu0 %v3680
        %3766 = vmatprep.subr.bf16.mxu0 0
        %3767 = vmatpush1.bf16.msra.mxu0 %v3683
        %3768 = vmatprep.subr.bf16.mxu0 0
        %3769 = vmatpush1.bf16.msra.mxu0 %v3686
        %3770 = vmatprep.subr.bf16.mxu0 0
        %3771 = vmatpush1.bf16.msra.mxu0 %v3689
        %3772 = vmatprep.subr.bf16.mxu0 0
        %3773 = vmatpush1.bf16.msra.mxu0 %v3692
        %3774 = vmatprep.subr.bf16.mxu0 0
        %3775 = vmatpush1.bf16.msra.mxu0 0
        %3776 = vmatprep.subr.bf16.mxu0 0
        %3777 = vmatpush1.bf16.msra.mxu0 0
        %3778 = vmatprep.subr.bf16.mxu0 0
        %3779 = vmatpush1.bf16.msra.mxu0 0
        %3780 = vmatprep.subr.bf16.mxu0 0
        %3781 = vmatpush1.bf16.msra.mxu0 0
        %3782 = vmatprep.subr.bf16.mxu0 0
        %3783 = vmatpush1.bf16.msra.mxu0 0
        %3784 = vmatprep.subr.bf16.mxu0 0
        %3785 = vmatpush1.bf16.msra.mxu0 0
        %3786 = vmatprep.subr.bf16.mxu0 0
        %3787 = vmatpush1.bf16.msra.mxu0 0
        %3788 = vmatprep.subr.bf16.mxu0 0
        %3789 = vmatpush1.bf16.msra.mxu0 0
        %3790 = vmatprep.mubr.bf16.mxu0 0
        %3791 = vmatmul.mubr.bf16.gmra.mrb[0].mxu0 %v3588
        %v3792 = vpop.f32.mrb[0].mxu0
        %v3793 = vadd.f32 0.0, %v3792
        %v3794 = vpop.f32.mrb[0].mxu0
        %v3795 = vpop.f32.mrb[0].mxu0
        %v3796 = vpop.f32.mrb[0].mxu0
        %3797 = vdwg.mxu0
        %v3798 = vmul.f32 %v3752, 0.25
        %v3799 = vlaneseq
        %v3800 = vshrl.u32 %v3799, 7
        %v3801 = vlaneseq
        %v3802 = vand.u32 %v3801, 127
        %vm3803 = vcmp.gt.s32.totalorder %v3802, %v3800
        %v3805 = vsel %vm1705, %v3798, 0
        %v3808 = vsel %vm1705, %v3754, 0
        %3810 = vmatprep.subr.mxu0 0.0
        %3811 = vmatpush1.xpose.msra.mxu0 %v3808
        %3812 = vmatprep.subr.mxu0 0.0
        %3813 = vmatpush1.xpose.msra.mxu0 0.0
        %3814 = vmatprep.subr.mxu0 0.0
        %3815 = vmatpush1.xpose.msra.mxu0 0.0
        %3816 = vmatprep.subr.mxu0 0.0
        %3817 = vmatpush1.xpose.msra.mxu0 0.0
        %3818 = vmatprep.subr.mxu0 0.0
        %3819 = vmatpush1.xpose.msra.mxu0 0.0
        %3820 = vmatprep.subr.mxu0 0.0
        %3821 = vmatpush1.xpose.msra.mxu0 0.0
        %3822 = vmatprep.subr.mxu0 0.0
        %3823 = vmatpush1.xpose.msra.mxu0 0.0
        %3824 = vmatprep.subr.mxu0 0.0
        %3825 = vmatpush1.xpose.msra.mxu0 0.0
        %3826 = vmatprep.subr.mxu0 0.0
        %3827 = vmatpush1.xpose.msra.mxu0 0.0
        %3828 = vmatprep.subr.mxu0 0.0
        %3829 = vmatpush1.xpose.msra.mxu0 0.0
        %3830 = vmatprep.subr.mxu0 0.0
        %3831 = vmatpush1.xpose.msra.mxu0 0.0
        %3832 = vmatprep.subr.mxu0 0.0
        %3833 = vmatpush1.xpose.msra.mxu0 0.0
        %3834 = vmatprep.subr.mxu0 0.0
        %3835 = vmatpush1.xpose.msra.mxu0 0.0
        %3836 = vmatprep.subr.mxu0 0.0
        %3837 = vmatpush1.xpose.msra.mxu0 0.0
        %3838 = vmatprep.subr.mxu0 0.0
        %3839 = vmatpush1.xpose.msra.mxu0 0.0
        %3840 = vmatprep.subr.mxu0 0.0
        %3841 = vmatpush1.xpose.msra.mxu0 0.0
        %3842 = vmatprep.subr.mxu0 0.0
        %3843 = vmatpush1.xpose.msra.mxu0 0.0
        %3844 = vmatprep.subr.mxu0 0.0
        %3845 = vmatpush1.xpose.msra.mxu0 0.0
        %3846 = vmatprep.subr.mxu0 0.0
        %3847 = vmatpush1.xpose.msra.mxu0 0.0
        %3848 = vmatprep.subr.mxu0 0.0
        %3849 = vmatpush1.xpose.msra.mxu0 0.0
        %3850 = vmatprep.subr.mxu0 0.0
        %3851 = vmatpush1.xpose.msra.mxu0 0.0
        %3852 = vmatprep.subr.mxu0 0.0
        %3853 = vmatpush1.xpose.msra.mxu0 0.0
        %3854 = vmatprep.subr.mxu0 0.0
        %3855 = vmatpush1.xpose.msra.mxu0 0.0
        %3856 = vmatprep.subr.mxu0 0.0
        %3857 = vmatpush1.xpose.msra.mxu0 0.0
        %3858 = vmatprep.subr.mxu0 0.0
        %3859 = vmatpush1.xpose.msra.mxu0 0.0
        %3860 = vmatprep.subr.mxu0 0.0
        %3861 = vmatpush1.xpose.msra.mxu0 0.0
        %3862 = vmatprep.subr.mxu0 0.0
        %3863 = vmatpush1.xpose.msra.mxu0 0.0
        %3864 = vmatprep.subr.mxu0 0.0
        %3865 = vmatpush1.xpose.msra.mxu0 0.0
        %3866 = vmatprep.subr.mxu0 0.0
        %3867 = vmatpush1.xpose.msra.mxu0 0.0
        %3868 = vmatprep.subr.mxu0 0.0
        %3869 = vmatpush1.xpose.msra.mxu0 0.0
        %3870 = vmatprep.subr.mxu0 0.0
        %3871 = vmatpush1.xpose.msra.mxu0 0.0
        %3872 = vmatprep.subr.mxu0 0.0
        %3873 = vmatpush1.xpose.msra.mxu0 0.0
        %3874 = vmatprep.mubr.f32.mxu0 0.0
        %3875 = vmatmul.mubr.f32.gmra.mrb[0].mxu0 %v3805
        %v3876 = vpop.f32.mrb[0].mxu0
        %v3877 = vadd.f32 0.0, %v3876
        %v3878 = vpop.f32.mrb[0].mxu0
        %3879 = vdwg.mxu0
        %v3880 = vsel %vm3803, -1e+30, %v3877
        %v3881 = vsel %vm1782, %v3880, -inf
        %3882 = vmax.xlane.f32.xlu0 %v3881
        %v3883 = vpop.xlane.xlu0 %3882
        %v3884 = vsub.f32 %v3880, %v3883
        %v3885 = vmul.f32 %v3884, 1.442695
        %v3886 = vpow.pop %v3885
        %v3887 = vsel %vm1782, %v3886, 0.0
        %3888 = vadd.xlane.f32.xlu0 %v3887
        %v3889 = vpop.xlane.xlu0 %3888
        %v3890 = vrcp.pop %v3889
        %v3891 = vmul.f32 %v3886, %v3890
        %v3893 = vsel %vm1782, %v3891, 0
        %3895 = vmatprep.subr.mxu0 0.0
        %3896 = vmatpush1.msra.mxu0 %v3793
        %3897 = vmatprep.subr.mxu0 0.0
        %3898 = vmatpush1.msra.mxu0 0.0
        %3899 = vmatprep.subr.mxu0 0.0
        %3900 = vmatpush1.msra.mxu0 0.0
        %3901 = vmatprep.subr.mxu0 0.0
        %3902 = vmatpush1.msra.mxu0 0.0
        %3903 = vmatprep.subr.mxu0 0.0
        %3904 = vmatpush1.msra.mxu0 0.0
        %3905 = vmatprep.subr.mxu0 0.0
        %3906 = vmatpush1.msra.mxu0 0.0
        %3907 = vmatprep.subr.mxu0 0.0
        %3908 = vmatpush1.msra.mxu0 0.0
        %3909 = vmatprep.subr.mxu0 0.0
        %3910 = vmatpush1.msra.mxu0 0.0
        %3911 = vmatprep.subr.mxu0 0.0
        %3912 = vmatpush1.msra.mxu0 0.0
        %3913 = vmatprep.subr.mxu0 0.0
        %3914 = vmatpush1.msra.mxu0 0.0
        %3915 = vmatprep.subr.mxu0 0.0
        %3916 = vmatpush1.msra.mxu0 0.0
        %3917 = vmatprep.subr.mxu0 0.0
        %3918 = vmatpush1.msra.mxu0 0.0
        %3919 = vmatprep.subr.mxu0 0.0
        %3920 = vmatpush1.msra.mxu0 0.0
        %3921 = vmatprep.subr.mxu0 0.0
        %3922 = vmatpush1.msra.mxu0 0.0
        %3923 = vmatprep.subr.mxu0 0.0
        %3924 = vmatpush1.msra.mxu0 0.0
        %3925 = vmatprep.subr.mxu0 0.0
        %3926 = vmatpush1.msra.mxu0 0.0
        %3927 = vmatprep.subr.mxu0 0.0
        %3928 = vmatpush1.msra.mxu0 0.0
        %3929 = vmatprep.subr.mxu0 0.0
        %3930 = vmatpush1.msra.mxu0 0.0
        %3931 = vmatprep.subr.mxu0 0.0
        %3932 = vmatpush1.msra.mxu0 0.0
        %3933 = vmatprep.subr.mxu0 0.0
        %3934 = vmatpush1.msra.mxu0 0.0
        %3935 = vmatprep.subr.mxu0 0.0
        %3936 = vmatpush1.msra.mxu0 0.0
        %3937 = vmatprep.subr.mxu0 0.0
        %3938 = vmatpush1.msra.mxu0 0.0
        %3939 = vmatprep.subr.mxu0 0.0
        %3940 = vmatpush1.msra.mxu0 0.0
        %3941 = vmatprep.subr.mxu0 0.0
        %3942 = vmatpush1.msra.mxu0 0.0
        %3943 = vmatprep.subr.mxu0 0.0
        %3944 = vmatpush1.msra.mxu0 0.0
        %3945 = vmatprep.subr.mxu0 0.0
        %3946 = vmatpush1.msra.mxu0 0.0
        %3947 = vmatprep.subr.mxu0 0.0
        %3948 = vmatpush1.msra.mxu0 0.0
        %3949 = vmatprep.subr.mxu0 0.0
        %3950 = vmatpush1.msra.mxu0 0.0
        %3951 = vmatprep.subr.mxu0 0.0
        %3952 = vmatpush1.msra.mxu0 0.0
        %3953 = vmatprep.subr.mxu0 0.0
        %3954 = vmatpush1.msra.mxu0 0.0
        %3955 = vmatprep.subr.mxu0 0.0
        %3956 = vmatpush1.msra.mxu0 0.0
        %3957 = vmatprep.subr.mxu0 0.0
        %3958 = vmatpush1.msra.mxu0 0.0
        %3959 = vmatprep.mubr.f32.mxu0 0.0
        %3960 = vmatmul.mubr.f32.gmra.mrb[0].mxu0 %v3893
        %v3961 = vpop.f32.mrb[0].mxu0
        %v3962 = vadd.f32 0.0, %v3961
        %v3963 = vpop.f32.mrb[0].mxu0
        %3964 = vdwg.mxu0
        %3965 = vrot.lane.b32.xlu0 %v3798, 112
        %v3966 = vpop.permute.xlu0 %3965
        %3967 = vrot.lane.b32.xlu0 %v3754, 112
        %v3968 = vpop.permute.xlu0 %3967
        %v3969 = vsel %vm1705, %v3966, 0
        %v3971 = vsel %vm1705, %v3968, 0
        %3973 = vmatprep.subr.mxu0 0.0
        %3974 = vmatpush1.xpose.msra.mxu0 %v3971
        %3975 = vmatprep.subr.mxu0 0.0
        %3976 = vmatpush1.xpose.msra.mxu0 0.0
        %3977 = vmatprep.subr.mxu0 0.0
        %3978 = vmatpush1.xpose.msra.mxu0 0.0
        %3979 = vmatprep.subr.mxu0 0.0
        %3980 = vmatpush1.xpose.msra.mxu0 0.0
        %3981 = vmatprep.subr.mxu0 0.0
        %3982 = vmatpush1.xpose.msra.mxu0 0.0
        %3983 = vmatprep.subr.mxu0 0.0
        %3984 = vmatpush1.xpose.msra.mxu0 0.0
        %3985 = vmatprep.subr.mxu0 0.0
        %3986 = vmatpush1.xpose.msra.mxu0 0.0
        %3987 = vmatprep.subr.mxu0 0.0
        %3988 = vmatpush1.xpose.msra.mxu0 0.0
        %3989 = vmatprep.subr.mxu0 0.0
        %3990 = vmatpush1.xpose.msra.mxu0 0.0
        %3991 = vmatprep.subr.mxu0 0.0
        %3992 = vmatpush1.xpose.msra.mxu0 0.0
        %3993 = vmatprep.subr.mxu0 0.0
        %3994 = vmatpush1.xpose.msra.mxu0 0.0
        %3995 = vmatprep.subr.mxu0 0.0
        %3996 = vmatpush1.xpose.msra.mxu0 0.0
        %3997 = vmatprep.subr.mxu0 0.0
        %3998 = vmatpush1.xpose.msra.mxu0 0.0
        %3999 = vmatprep.subr.mxu0 0.0
        %4000 = vmatpush1.xpose.msra.mxu0 0.0
        %4001 = vmatprep.subr.mxu0 0.0
        %4002 = vmatpush1.xpose.msra.mxu0 0.0
        %4003 = vmatprep.subr.mxu0 0.0
        %4004 = vmatpush1.xpose.msra.mxu0 0.0
        %4005 = vmatprep.subr.mxu0 0.0
        %4006 = vmatpush1.xpose.msra.mxu0 0.0
        %4007 = vmatprep.subr.mxu0 0.0
        %4008 = vmatpush1.xpose.msra.mxu0 0.0
        %4009 = vmatprep.subr.mxu0 0.0
        %4010 = vmatpush1.xpose.msra.mxu0 0.0
        %4011 = vmatprep.subr.mxu0 0.0
        %4012 = vmatpush1.xpose.msra.mxu0 0.0
        %4013 = vmatprep.subr.mxu0 0.0
        %4014 = vmatpush1.xpose.msra.mxu0 0.0
        %4015 = vmatprep.subr.mxu0 0.0
        %4016 = vmatpush1.xpose.msra.mxu0 0.0
        %4017 = vmatprep.subr.mxu0 0.0
        %4018 = vmatpush1.xpose.msra.mxu0 0.0
        %4019 = vmatprep.subr.mxu0 0.0
        %4020 = vmatpush1.xpose.msra.mxu0 0.0
        %4021 = vmatprep.subr.mxu0 0.0
        %4022 = vmatpush1.xpose.msra.mxu0 0.0
        %4023 = vmatprep.subr.mxu0 0.0
        %4024 = vmatpush1.xpose.msra.mxu0 0.0
        %4025 = vmatprep.subr.mxu0 0.0
        %4026 = vmatpush1.xpose.msra.mxu0 0.0
        %4027 = vmatprep.subr.mxu0 0.0
        %4028 = vmatpush1.xpose.msra.mxu0 0.0
        %4029 = vmatprep.subr.mxu0 0.0
        %4030 = vmatpush1.xpose.msra.mxu0 0.0
        %4031 = vmatprep.subr.mxu0 0.0
        %4032 = vmatpush1.xpose.msra.mxu0 0.0
        %4033 = vmatprep.subr.mxu0 0.0
        %4034 = vmatpush1.xpose.msra.mxu0 0.0
        %4035 = vmatprep.subr.mxu0 0.0
        %4036 = vmatpush1.xpose.msra.mxu0 0.0
        %4037 = vmatprep.mubr.f32.mxu0 0.0
        %4038 = vmatmul.mubr.f32.gmra.mrb[0].mxu0 %v3969
        %v4039 = vpop.f32.mrb[0].mxu0
        %v4040 = vadd.f32 0.0, %v4039
        %v4041 = vpop.f32.mrb[0].mxu0
        %4042 = vdwg.mxu0
        %v4043 = vsel %vm3803, -1e+30, %v4040
        %v4044 = vsel %vm1782, %v4043, -inf
        %4045 = vmax.xlane.f32.xlu0 %v4044
        %v4046 = vpop.xlane.xlu0 %4045
        %v4047 = vsub.f32 %v4043, %v4046
        %v4048 = vmul.f32 %v4047, 1.442695
        %v4049 = vpow.pop %v4048
        %v4050 = vsel %vm1782, %v4049, 0.0
        %4051 = vadd.xlane.f32.xlu0 %v4050
        %v4052 = vpop.xlane.xlu0 %4051
        %v4053 = vrcp.pop %v4052
        %v4054 = vmul.f32 %v4049, %v4053
        %4056 = vrot.lane.b32.xlu0 %v3793, 112
        %v4057 = vpop.permute.xlu0 %4056
        %v4060 = vsel %vm1782, %v4054, 0
        %4062 = vmatprep.subr.mxu0 0.0
        %4063 = vmatpush1.msra.mxu0 %v4057
        %4064 = vmatprep.subr.mxu0 0.0
        %4065 = vmatpush1.msra.mxu0 0.0
        %4066 = vmatprep.subr.mxu0 0.0
        %4067 = vmatpush1.msra.mxu0 0.0
        %4068 = vmatprep.subr.mxu0 0.0
        %4069 = vmatpush1.msra.mxu0 0.0
        %4070 = vmatprep.subr.mxu0 0.0
        %4071 = vmatpush1.msra.mxu0 0.0
        %4072 = vmatprep.subr.mxu0 0.0
        %4073 = vmatpush1.msra.mxu0 0.0
        %4074 = vmatprep.subr.mxu0 0.0
        %4075 = vmatpush1.msra.mxu0 0.0
        %4076 = vmatprep.subr.mxu0 0.0
        %4077 = vmatpush1.msra.mxu0 0.0
        %4078 = vmatprep.subr.mxu0 0.0
        %4079 = vmatpush1.msra.mxu0 0.0
        %4080 = vmatprep.subr.mxu0 0.0
        %4081 = vmatpush1.msra.mxu0 0.0
        %4082 = vmatprep.subr.mxu0 0.0
        %4083 = vmatpush1.msra.mxu0 0.0
        %4084 = vmatprep.subr.mxu0 0.0
        %4085 = vmatpush1.msra.mxu0 0.0
        %4086 = vmatprep.subr.mxu0 0.0
        %4087 = vmatpush1.msra.mxu0 0.0
        %4088 = vmatprep.subr.mxu0 0.0
        %4089 = vmatpush1.msra.mxu0 0.0
        %4090 = vmatprep.subr.mxu0 0.0
        %4091 = vmatpush1.msra.mxu0 0.0
        %4092 = vmatprep.subr.mxu0 0.0
        %4093 = vmatpush1.msra.mxu0 0.0
        %4094 = vmatprep.subr.mxu0 0.0
        %4095 = vmatpush1.msra.mxu0 0.0
        %4096 = vmatprep.subr.mxu0 0.0
        %4097 = vmatpush1.msra.mxu0 0.0
        %4098 = vmatprep.subr.mxu0 0.0
        %4099 = vmatpush1.msra.mxu0 0.0
        %4100 = vmatprep.subr.mxu0 0.0
        %4101 = vmatpush1.msra.mxu0 0.0
        %4102 = vmatprep.subr.mxu0 0.0
        %4103 = vmatpush1.msra.mxu0 0.0
        %4104 = vmatprep.subr.mxu0 0.0
        %4105 = vmatpush1.msra.mxu0 0.0
        %4106 = vmatprep.subr.mxu0 0.0
        %4107 = vmatpush1.msra.mxu0 0.0
        %4108 = vmatprep.subr.mxu0 0.0
        %4109 = vmatpush1.msra.mxu0 0.0
        %4110 = vmatprep.subr.mxu0 0.0
        %4111 = vmatpush1.msra.mxu0 0.0
        %4112 = vmatprep.subr.mxu0 0.0
        %4113 = vmatpush1.msra.mxu0 0.0
        %4114 = vmatprep.subr.mxu0 0.0
        %4115 = vmatpush1.msra.mxu0 0.0
        %4116 = vmatprep.subr.mxu0 0.0
        %4117 = vmatpush1.msra.mxu0 0.0
        %4118 = vmatprep.subr.mxu0 0.0
        %4119 = vmatpush1.msra.mxu0 0.0
        %4120 = vmatprep.subr.mxu0 0.0
        %4121 = vmatpush1.msra.mxu0 0.0
        %4122 = vmatprep.subr.mxu0 0.0
        %4123 = vmatpush1.msra.mxu0 0.0
        %4124 = vmatprep.subr.mxu0 0.0
        %4125 = vmatpush1.msra.mxu0 0.0
        %4126 = vmatprep.mubr.f32.mxu0 0.0
        %4127 = vmatmul.mubr.f32.gmra.mrb[0].mxu0 %v4060
        %v4128 = vpop.f32.mrb[0].mxu0
        %v4129 = vadd.f32 0.0, %v4128
        %v4130 = vpop.f32.mrb[0].mxu0
        %4131 = vdwg.mxu0
        %4132 = vrot.lane.b32.xlu0 %v3798, 96
        %v4133 = vpop.permute.xlu0 %4132
        %4134 = vrot.lane.b32.xlu0 %v3754, 96
        %v4135 = vpop.permute.xlu0 %4134
        %v4136 = vsel %vm1705, %v4133, 0
        %v4138 = vsel %vm1705, %v4135, 0
        %4140 = vmatprep.subr.mxu0 0.0
        %4141 = vmatpush1.xpose.msra.mxu0 %v4138
        %4142 = vmatprep.subr.mxu0 0.0
        %4143 = vmatpush1.xpose.msra.mxu0 0.0
        %4144 = vmatprep.subr.mxu0 0.0
        %4145 = vmatpush1.xpose.msra.mxu0 0.0
        %4146 = vmatprep.subr.mxu0 0.0
        %4147 = vmatpush1.xpose.msra.mxu0 0.0
        %4148 = vmatprep.subr.mxu0 0.0
        %4149 = vmatpush1.xpose.msra.mxu0 0.0
        %4150 = vmatprep.subr.mxu0 0.0
        %4151 = vmatpush1.xpose.msra.mxu0 0.0
        %4152 = vmatprep.subr.mxu0 0.0
        %4153 = vmatpush1.xpose.msra.mxu0 0.0
        %4154 = vmatprep.subr.mxu0 0.0
        %4155 = vmatpush1.xpose.msra.mxu0 0.0
        %4156 = vmatprep.subr.mxu0 0.0
        %4157 = vmatpush1.xpose.msra.mxu0 0.0
        %4158 = vmatprep.subr.mxu0 0.0
        %4159 = vmatpush1.xpose.msra.mxu0 0.0
        %4160 = vmatprep.subr.mxu0 0.0
        %4161 = vmatpush1.xpose.msra.mxu0 0.0
        %4162 = vmatprep.subr.mxu0 0.0
        %4163 = vmatpush1.xpose.msra.mxu0 0.0
        %4164 = vmatprep.subr.mxu0 0.0
        %4165 = vmatpush1.xpose.msra.mxu0 0.0
        %4166 = vmatprep.subr.mxu0 0.0
        %4167 = vmatpush1.xpose.msra.mxu0 0.0
        %4168 = vmatprep.subr.mxu0 0.0
        %4169 = vmatpush1.xpose.msra.mxu0 0.0
        %4170 = vmatprep.subr.mxu0 0.0
        %4171 = vmatpush1.xpose.msra.mxu0 0.0
        %4172 = vmatprep.subr.mxu0 0.0
        %4173 = vmatpush1.xpose.msra.mxu0 0.0
        %4174 = vmatprep.subr.mxu0 0.0
        %4175 = vmatpush1.xpose.msra.mxu0 0.0
        %4176 = vmatprep.subr.mxu0 0.0
        %4177 = vmatpush1.xpose.msra.mxu0 0.0
        %4178 = vmatprep.subr.mxu0 0.0
        %4179 = vmatpush1.xpose.msra.mxu0 0.0
        %4180 = vmatprep.subr.mxu0 0.0
        %4181 = vmatpush1.xpose.msra.mxu0 0.0
        %4182 = vmatprep.subr.mxu0 0.0
        %4183 = vmatpush1.xpose.msra.mxu0 0.0
        %4184 = vmatprep.subr.mxu0 0.0
        %4185 = vmatpush1.xpose.msra.mxu0 0.0
        %4186 = vmatprep.subr.mxu0 0.0
        %4187 = vmatpush1.xpose.msra.mxu0 0.0
        %4188 = vmatprep.subr.mxu0 0.0
        %4189 = vmatpush1.xpose.msra.mxu0 0.0
        %4190 = vmatprep.subr.mxu0 0.0
        %4191 = vmatpush1.xpose.msra.mxu0 0.0
        %4192 = vmatprep.subr.mxu0 0.0
        %4193 = vmatpush1.xpose.msra.mxu0 0.0
        %4194 = vmatprep.subr.mxu0 0.0
        %4195 = vmatpush1.xpose.msra.mxu0 0.0
        %4196 = vmatprep.subr.mxu0 0.0
        %4197 = vmatpush1.xpose.msra.mxu0 0.0
        %4198 = vmatprep.subr.mxu0 0.0
        %4199 = vmatpush1.xpose.msra.mxu0 0.0
        %4200 = vmatprep.subr.mxu0 0.0
        %4201 = vmatpush1.xpose.msra.mxu0 0.0
        %4202 = vmatprep.subr.mxu0 0.0
        %4203 = vmatpush1.xpose.msra.mxu0 0.0
        %4204 = vmatprep.mubr.f32.mxu0 0.0
        %4205 = vmatmul.mubr.f32.gmra.mrb[0].mxu0 %v4136
        %v4206 = vpop.f32.mrb[0].mxu0
        %v4207 = vadd.f32 0.0, %v4206
        %v4208 = vpop.f32.mrb[0].mxu0
        %4209 = vdwg.mxu0
        %v4210 = vsel %vm3803, -1e+30, %v4207
        %v4211 = vsel %vm1782, %v4210, -inf
        %4212 = vmax.xlane.f32.xlu0 %v4211
        %v4213 = vpop.xlane.xlu0 %4212
        %v4214 = vsub.f32 %v4210, %v4213
        %v4215 = vmul.f32 %v4214, 1.442695
        %v4216 = vpow.pop %v4215
        %v4217 = vsel %vm1782, %v4216, 0.0
        %4218 = vadd.xlane.f32.xlu0 %v4217
        %v4219 = vpop.xlane.xlu0 %4218
        %v4220 = vrcp.pop %v4219
        %v4221 = vmul.f32 %v4216, %v4220
        %4222 = vrot.lane.b32.xlu0 %v3793, 96
        %v4223 = vpop.permute.xlu0 %4222
        %v4226 = vsel %vm1782, %v4221, 0
        %4228 = vmatprep.subr.mxu0 0.0
        %4229 = vmatpush1.msra.mxu0 %v4223
        %4230 = vmatprep.subr.mxu0 0.0
        %4231 = vmatpush1.msra.mxu0 0.0
        %4232 = vmatprep.subr.mxu0 0.0
        %4233 = vmatpush1.msra.mxu0 0.0
        %4234 = vmatprep.subr.mxu0 0.0
        %4235 = vmatpush1.msra.mxu0 0.0
        %4236 = vmatprep.subr.mxu0 0.0
        %4237 = vmatpush1.msra.mxu0 0.0
        %4238 = vmatprep.subr.mxu0 0.0
        %4239 = vmatpush1.msra.mxu0 0.0
        %4240 = vmatprep.subr.mxu0 0.0
        %4241 = vmatpush1.msra.mxu0 0.0
        %4242 = vmatprep.subr.mxu0 0.0
        %4243 = vmatpush1.msra.mxu0 0.0
        %4244 = vmatprep.subr.mxu0 0.0
        %4245 = vmatpush1.msra.mxu0 0.0
        %4246 = vmatprep.subr.mxu0 0.0
        %4247 = vmatpush1.msra.mxu0 0.0
        %4248 = vmatprep.subr.mxu0 0.0
        %4249 = vmatpush1.msra.mxu0 0.0
        %4250 = vmatprep.subr.mxu0 0.0
        %4251 = vmatpush1.msra.mxu0 0.0
        %4252 = vmatprep.subr.mxu0 0.0
        %4253 = vmatpush1.msra.mxu0 0.0
        %4254 = vmatprep.subr.mxu0 0.0
        %4255 = vmatpush1.msra.mxu0 0.0
        %4256 = vmatprep.subr.mxu0 0.0
        %4257 = vmatpush1.msra.mxu0 0.0
        %4258 = vmatprep.subr.mxu0 0.0
        %4259 = vmatpush1.msra.mxu0 0.0
        %4260 = vmatprep.subr.mxu0 0.0
        %4261 = vmatpush1.msra.mxu0 0.0
        %4262 = vmatprep.subr.mxu0 0.0
        %4263 = vmatpush1.msra.mxu0 0.0
        %4264 = vmatprep.subr.mxu0 0.0
        %4265 = vmatpush1.msra.mxu0 0.0
        %4266 = vmatprep.subr.mxu0 0.0
        %4267 = vmatpush1.msra.mxu0 0.0
        %4268 = vmatprep.subr.mxu0 0.0
        %4269 = vmatpush1.msra.mxu0 0.0
        %4270 = vmatprep.subr.mxu0 0.0
        %4271 = vmatpush1.msra.mxu0 0.0
        %4272 = vmatprep.subr.mxu0 0.0
        %4273 = vmatpush1.msra.mxu0 0.0
        %4274 = vmatprep.subr.mxu0 0.0
        %4275 = vmatpush1.msra.mxu0 0.0
        %4276 = vmatprep.subr.mxu0 0.0
        %4277 = vmatpush1.msra.mxu0 0.0
        %4278 = vmatprep.subr.mxu0 0.0
        %4279 = vmatpush1.msra.mxu0 0.0
        %4280 = vmatprep.subr.mxu0 0.0
        %4281 = vmatpush1.msra.mxu0 0.0
        %4282 = vmatprep.subr.mxu0 0.0
        %4283 = vmatpush1.msra.mxu0 0.0
        %4284 = vmatprep.subr.mxu0 0.0
        %4285 = vmatpush1.msra.mxu0 0.0
        %4286 = vmatprep.subr.mxu0 0.0
        %4287 = vmatpush1.msra.mxu0 0.0
        %4288 = vmatprep.subr.mxu0 0.0
        %4289 = vmatpush1.msra.mxu0 0.0
        %4290 = vmatprep.subr.mxu0 0.0
        %4291 = vmatpush1.msra.mxu0 0.0
        %4292 = vmatprep.mubr.f32.mxu0 0.0
        %4293 = vmatmul.mubr.f32.gmra.mrb[0].mxu0 %v4226
        %v4294 = vpop.f32.mrb[0].mxu0
        %v4295 = vadd.f32 0.0, %v4294
        %v4296 = vpop.f32.mrb[0].mxu0
        %4297 = vdwg.mxu0
        %4298 = vrot.lane.b32.xlu0 %v3798, 80
        %v4299 = vpop.permute.xlu0 %4298
        %4300 = vrot.lane.b32.xlu0 %v3754, 80
        %v4301 = vpop.permute.xlu0 %4300
        %v4302 = vsel %vm1705, %v4299, 0
        %v4304 = vsel %vm1705, %v4301, 0
        %4306 = vmatprep.subr.mxu0 0.0
        %4307 = vmatpush1.xpose.msra.mxu0 %v4304
        %4308 = vmatprep.subr.mxu0 0.0
        %4309 = vmatpush1.xpose.msra.mxu0 0.0
        %4310 = vmatprep.subr.mxu0 0.0
        %4311 = vmatpush1.xpose.msra.mxu0 0.0
        %4312 = vmatprep.subr.mxu0 0.0
        %4313 = vmatpush1.xpose.msra.mxu0 0.0
        %4314 = vmatprep.subr.mxu0 0.0
        %4315 = vmatpush1.xpose.msra.mxu0 0.0
        %4316 = vmatprep.subr.mxu0 0.0
        %4317 = vmatpush1.xpose.msra.mxu0 0.0
        %4318 = vmatprep.subr.mxu0 0.0
        %4319 = vmatpush1.xpose.msra.mxu0 0.0
        %4320 = vmatprep.subr.mxu0 0.0
        %4321 = vmatpush1.xpose.msra.mxu0 0.0
        %4322 = vmatprep.subr.mxu0 0.0
        %4323 = vmatpush1.xpose.msra.mxu0 0.0
        %4324 = vmatprep.subr.mxu0 0.0
        %4325 = vmatpush1.xpose.msra.mxu0 0.0
        %4326 = vmatprep.subr.mxu0 0.0
        %4327 = vmatpush1.xpose.msra.mxu0 0.0
        %4328 = vmatprep.subr.mxu0 0.0
        %4329 = vmatpush1.xpose.msra.mxu0 0.0
        %4330 = vmatprep.subr.mxu0 0.0
        %4331 = vmatpush1.xpose.msra.mxu0 0.0
        %4332 = vmatprep.subr.mxu0 0.0
        %4333 = vmatpush1.xpose.msra.mxu0 0.0
        %4334 = vmatprep.subr.mxu0 0.0
        %4335 = vmatpush1.xpose.msra.mxu0 0.0
        %4336 = vmatprep.subr.mxu0 0.0
        %4337 = vmatpush1.xpose.msra.mxu0 0.0
        %4338 = vmatprep.subr.mxu0 0.0
        %4339 = vmatpush1.xpose.msra.mxu0 0.0
        %4340 = vmatprep.subr.mxu0 0.0
        %4341 = vmatpush1.xpose.msra.mxu0 0.0
        %4342 = vmatprep.subr.mxu0 0.0
        %4343 = vmatpush1.xpose.msra.mxu0 0.0
        %4344 = vmatprep.subr.mxu0 0.0
        %4345 = vmatpush1.xpose.msra.mxu0 0.0
        %4346 = vmatprep.subr.mxu0 0.0
        %4347 = vmatpush1.xpose.msra.mxu0 0.0
        %4348 = vmatprep.subr.mxu0 0.0
        %4349 = vmatpush1.xpose.msra.mxu0 0.0
        %4350 = vmatprep.subr.mxu0 0.0
        %4351 = vmatpush1.xpose.msra.mxu0 0.0
        %4352 = vmatprep.subr.mxu0 0.0
        %4353 = vmatpush1.xpose.msra.mxu0 0.0
        %4354 = vmatprep.subr.mxu0 0.0
        %4355 = vmatpush1.xpose.msra.mxu0 0.0
        %4356 = vmatprep.subr.mxu0 0.0
        %4357 = vmatpush1.xpose.msra.mxu0 0.0
        %4358 = vmatprep.subr.mxu0 0.0
        %4359 = vmatpush1.xpose.msra.mxu0 0.0
        %4360 = vmatprep.subr.mxu0 0.0
        %4361 = vmatpush1.xpose.msra.mxu0 0.0
        %4362 = vmatprep.subr.mxu0 0.0
        %4363 = vmatpush1.xpose.msra.mxu0 0.0
        %4364 = vmatprep.subr.mxu0 0.0
        %4365 = vmatpush1.xpose.msra.mxu0 0.0
        %4366 = vmatprep.subr.mxu0 0.0
        %4367 = vmatpush1.xpose.msra.mxu0 0.0
        %4368 = vmatprep.subr.mxu0 0.0
        %4369 = vmatpush1.xpose.msra.mxu0 0.0
        %4370 = vmatprep.mubr.f32.mxu0 0.0
        %4371 = vmatmul.mubr.f32.gmra.mrb[0].mxu0 %v4302
        %v4372 = vpop.f32.mrb[0].mxu0
        %v4373 = vadd.f32 0.0, %v4372
        %v4374 = vpop.f32.mrb[0].mxu0
        %4375 = vdwg.mxu0
        %v4376 = vsel %vm3803, -1e+30, %v4373
        %v4377 = vsel %vm1782, %v4376, -inf
        %4378 = vmax.xlane.f32.xlu0 %v4377
        %v4379 = vpop.xlane.xlu0 %4378
        %v4380 = vsub.f32 %v4376, %v4379
        %v4381 = vmul.f32 %v4380, 1.442695
        %v4382 = vpow.pop %v4381
        %v4383 = vsel %vm1782, %v4382, 0.0
        %4384 = vadd.xlane.f32.xlu0 %v4383
        %v4385 = vpop.xlane.xlu0 %4384
        %v4386 = vrcp.pop %v4385
        %v4387 = vmul.f32 %v4382, %v4386
        %4388 = vrot.lane.b32.xlu0 %v3793, 80
        %v4389 = vpop.permute.xlu0 %4388
        %v4392 = vsel %vm1782, %v4387, 0
        %4394 = vmatprep.subr.mxu0 0.0
        %4395 = vmatpush1.msra.mxu0 %v4389
        %4396 = vmatprep.subr.mxu0 0.0
        %4397 = vmatpush1.msra.mxu0 0.0
        %4398 = vmatprep.subr.mxu0 0.0
        %4399 = vmatpush1.msra.mxu0 0.0
        %4400 = vmatprep.subr.mxu0 0.0
        %4401 = vmatpush1.msra.mxu0 0.0
        %4402 = vmatprep.subr.mxu0 0.0
        %4403 = vmatpush1.msra.mxu0 0.0
        %4404 = vmatprep.subr.mxu0 0.0
        %4405 = vmatpush1.msra.mxu0 0.0
        %4406 = vmatprep.subr.mxu0 0.0
        %4407 = vmatpush1.msra.mxu0 0.0
        %4408 = vmatprep.subr.mxu0 0.0
        %4409 = vmatpush1.msra.mxu0 0.0
        %4410 = vmatprep.subr.mxu0 0.0
        %4411 = vmatpush1.msra.mxu0 0.0
        %4412 = vmatprep.subr.mxu0 0.0
        %4413 = vmatpush1.msra.mxu0 0.0
        %4414 = vmatprep.subr.mxu0 0.0
        %4415 = vmatpush1.msra.mxu0 0.0
        %4416 = vmatprep.subr.mxu0 0.0
        %4417 = vmatpush1.msra.mxu0 0.0
        %4418 = vmatprep.subr.mxu0 0.0
        %4419 = vmatpush1.msra.mxu0 0.0
        %4420 = vmatprep.subr.mxu0 0.0
        %4421 = vmatpush1.msra.mxu0 0.0
        %4422 = vmatprep.subr.mxu0 0.0
        %4423 = vmatpush1.msra.mxu0 0.0
        %4424 = vmatprep.subr.mxu0 0.0
        %4425 = vmatpush1.msra.mxu0 0.0
        %4426 = vmatprep.subr.mxu0 0.0
        %4427 = vmatpush1.msra.mxu0 0.0
        %4428 = vmatprep.subr.mxu0 0.0
        %4429 = vmatpush1.msra.mxu0 0.0
        %4430 = vmatprep.subr.mxu0 0.0
        %4431 = vmatpush1.msra.mxu0 0.0
        %4432 = vmatprep.subr.mxu0 0.0
        %4433 = vmatpush1.msra.mxu0 0.0
        %4434 = vmatprep.subr.mxu0 0.0
        %4435 = vmatpush1.msra.mxu0 0.0
        %4436 = vmatprep.subr.mxu0 0.0
        %4437 = vmatpush1.msra.mxu0 0.0
        %4438 = vmatprep.subr.mxu0 0.0
        %4439 = vmatpush1.msra.mxu0 0.0
        %4440 = vmatprep.subr.mxu0 0.0
        %4441 = vmatpush1.msra.mxu0 0.0
        %4442 = vmatprep.subr.mxu0 0.0
        %4443 = vmatpush1.msra.mxu0 0.0
        %4444 = vmatprep.subr.mxu0 0.0
        %4445 = vmatpush1.msra.mxu0 0.0
        %4446 = vmatprep.subr.mxu0 0.0
        %4447 = vmatpush1.msra.mxu0 0.0
        %4448 = vmatprep.subr.mxu0 0.0
        %4449 = vmatpush1.msra.mxu0 0.0
        %4450 = vmatprep.subr.mxu0 0.0
        %4451 = vmatpush1.msra.mxu0 0.0
        %4452 = vmatprep.subr.mxu0 0.0
        %4453 = vmatpush1.msra.mxu0 0.0
        %4454 = vmatprep.subr.mxu0 0.0
        %4455 = vmatpush1.msra.mxu0 0.0
        %4456 = vmatprep.subr.mxu0 0.0
        %4457 = vmatpush1.msra.mxu0 0.0
        %4458 = vmatprep.mubr.f32.mxu0 0.0
        %4459 = vmatmul.mubr.f32.gmra.mrb[0].mxu0 %v4392
        %v4460 = vpop.f32.mrb[0].mxu0
        %v4461 = vadd.f32 0.0, %v4460
        %v4462 = vpop.f32.mrb[0].mxu0
        %4463 = vdwg.mxu0
        %4464 = vrot.lane.b32.xlu0 %v3798, 64
        %v4465 = vpop.permute.xlu0 %4464
        %4466 = vrot.lane.b32.xlu0 %v3754, 64
        %v4467 = vpop.permute.xlu0 %4466
        %v4468 = vsel %vm1705, %v4465, 0
        %v4470 = vsel %vm1705, %v4467, 0
        %4472 = vmatprep.subr.mxu0 0.0
        %4473 = vmatpush1.xpose.msra.mxu0 %v4470
        %4474 = vmatprep.subr.mxu0 0.0
        %4475 = vmatpush1.xpose.msra.mxu0 0.0
        %4476 = vmatprep.subr.mxu0 0.0
        %4477 = vmatpush1.xpose.msra.mxu0 0.0
        %4478 = vmatprep.subr.mxu0 0.0
        %4479 = vmatpush1.xpose.msra.mxu0 0.0
        %4480 = vmatprep.subr.mxu0 0.0
        %4481 = vmatpush1.xpose.msra.mxu0 0.0
        %4482 = vmatprep.subr.mxu0 0.0
        %4483 = vmatpush1.xpose.msra.mxu0 0.0
        %4484 = vmatprep.subr.mxu0 0.0
        %4485 = vmatpush1.xpose.msra.mxu0 0.0
        %4486 = vmatprep.subr.mxu0 0.0
        %4487 = vmatpush1.xpose.msra.mxu0 0.0
        %4488 = vmatprep.subr.mxu0 0.0
        %4489 = vmatpush1.xpose.msra.mxu0 0.0
        %4490 = vmatprep.subr.mxu0 0.0
        %4491 = vmatpush1.xpose.msra.mxu0 0.0
        %4492 = vmatprep.subr.mxu0 0.0
        %4493 = vmatpush1.xpose.msra.mxu0 0.0
        %4494 = vmatprep.subr.mxu0 0.0
        %4495 = vmatpush1.xpose.msra.mxu0 0.0
        %4496 = vmatprep.subr.mxu0 0.0
        %4497 = vmatpush1.xpose.msra.mxu0 0.0
        %4498 = vmatprep.subr.mxu0 0.0
        %4499 = vmatpush1.xpose.msra.mxu0 0.0
        %4500 = vmatprep.subr.mxu0 0.0
        %4501 = vmatpush1.xpose.msra.mxu0 0.0
        %4502 = vmatprep.subr.mxu0 0.0
        %4503 = vmatpush1.xpose.msra.mxu0 0.0
        %4504 = vmatprep.subr.mxu0 0.0
        %4505 = vmatpush1.xpose.msra.mxu0 0.0
        %4506 = vmatprep.subr.mxu0 0.0
        %4507 = vmatpush1.xpose.msra.mxu0 0.0
        %4508 = vmatprep.subr.mxu0 0.0
        %4509 = vmatpush1.xpose.msra.mxu0 0.0
        %4510 = vmatprep.subr.mxu0 0.0
        %4511 = vmatpush1.xpose.msra.mxu0 0.0
        %4512 = vmatprep.subr.mxu0 0.0
        %4513 = vmatpush1.xpose.msra.mxu0 0.0
        %4514 = vmatprep.subr.mxu0 0.0
        %4515 = vmatpush1.xpose.msra.mxu0 0.0
        %4516 = vmatprep.subr.mxu0 0.0
        %4517 = vmatpush1.xpose.msra.mxu0 0.0
        %4518 = vmatprep.subr.mxu0 0.0
        %4519 = vmatpush1.xpose.msra.mxu0 0.0
        %4520 = vmatprep.subr.mxu0 0.0
        %4521 = vmatpush1.xpose.msra.mxu0 0.0
        %4522 = vmatprep.subr.mxu0 0.0
        %4523 = vmatpush1.xpose.msra.mxu0 0.0
        %4524 = vmatprep.subr.mxu0 0.0
        %4525 = vmatpush1.xpose.msra.mxu0 0.0
        %4526 = vmatprep.subr.mxu0 0.0
        %4527 = vmatpush1.xpose.msra.mxu0 0.0
        %4528 = vmatprep.subr.mxu0 0.0
        %4529 = vmatpush1.xpose.msra.mxu0 0.0
        %4530 = vmatprep.subr.mxu0 0.0
        %4531 = vmatpush1.xpose.msra.mxu0 0.0
        %4532 = vmatprep.subr.mxu0 0.0
        %4533 = vmatpush1.xpose.msra.mxu0 0.0
        %4534 = vmatprep.subr.mxu0 0.0
        %4535 = vmatpush1.xpose.msra.mxu0 0.0
        %4536 = vmatprep.mubr.f32.mxu0 0.0
        %4537 = vmatmul.mubr.f32.gmra.mrb[0].mxu0 %v4468
        %v4538 = vpop.f32.mrb[0].mxu0
        %v4539 = vadd.f32 0.0, %v4538
        %v4540 = vpop.f32.mrb[0].mxu0
        %4541 = vdwg.mxu0
        %v4542 = vsel %vm3803, -1e+30, %v4539
        %v4543 = vsel %vm1782, %v4542, -inf
        %4544 = vmax.xlane.f32.xlu0 %v4543
        %v4545 = vpop.xlane.xlu0 %4544
        %v4546 = vsub.f32 %v4542, %v4545
        %v4547 = vmul.f32 %v4546, 1.442695
        %v4548 = vpow.pop %v4547
        %v4549 = vsel %vm1782, %v4548, 0.0
        %4550 = vadd.xlane.f32.xlu0 %v4549
        %v4551 = vpop.xlane.xlu0 %4550
        %v4552 = vrcp.pop %v4551
        %v4553 = vmul.f32 %v4548, %v4552
        %4554 = vrot.lane.b32.xlu0 %v3793, 64
        %v4555 = vpop.permute.xlu0 %4554
        %v4558 = vsel %vm1782, %v4553, 0
        %4560 = vmatprep.subr.mxu0 0.0
        %4561 = vmatpush1.msra.mxu0 %v4555
        %4562 = vmatprep.subr.mxu0 0.0
        %4563 = vmatpush1.msra.mxu0 0.0
        %4564 = vmatprep.subr.mxu0 0.0
        %4565 = vmatpush1.msra.mxu0 0.0
        %4566 = vmatprep.subr.mxu0 0.0
        %4567 = vmatpush1.msra.mxu0 0.0
        %4568 = vmatprep.subr.mxu0 0.0
        %4569 = vmatpush1.msra.mxu0 0.0
        %4570 = vmatprep.subr.mxu0 0.0
        %4571 = vmatpush1.msra.mxu0 0.0
        %4572 = vmatprep.subr.mxu0 0.0
        %4573 = vmatpush1.msra.mxu0 0.0
        %4574 = vmatprep.subr.mxu0 0.0
        %4575 = vmatpush1.msra.mxu0 0.0
        %4576 = vmatprep.subr.mxu0 0.0
        %4577 = vmatpush1.msra.mxu0 0.0
        %4578 = vmatprep.subr.mxu0 0.0
        %4579 = vmatpush1.msra.mxu0 0.0
        %4580 = vmatprep.subr.mxu0 0.0
        %4581 = vmatpush1.msra.mxu0 0.0
        %4582 = vmatprep.subr.mxu0 0.0
        %4583 = vmatpush1.msra.mxu0 0.0
        %4584 = vmatprep.subr.mxu0 0.0
        %4585 = vmatpush1.msra.mxu0 0.0
        %4586 = vmatprep.subr.mxu0 0.0
        %4587 = vmatpush1.msra.mxu0 0.0
        %4588 = vmatprep.subr.mxu0 0.0
        %4589 = vmatpush1.msra.mxu0 0.0
        %4590 = vmatprep.subr.mxu0 0.0
        %4591 = vmatpush1.msra.mxu0 0.0
        %4592 = vmatprep.subr.mxu0 0.0
        %4593 = vmatpush1.msra.mxu0 0.0
        %4594 = vmatprep.subr.mxu0 0.0
        %4595 = vmatpush1.msra.mxu0 0.0
        %4596 = vmatprep.subr.mxu0 0.0
        %4597 = vmatpush1.msra.mxu0 0.0
        %4598 = vmatprep.subr.mxu0 0.0
        %4599 = vmatpush1.msra.mxu0 0.0
        %4600 = vmatprep.subr.mxu0 0.0
        %4601 = vmatpush1.msra.mxu0 0.0
        %4602 = vmatprep.subr.mxu0 0.0
        %4603 = vmatpush1.msra.mxu0 0.0
        %4604 = vmatprep.subr.mxu0 0.0
        %4605 = vmatpush1.msra.mxu0 0.0
        %4606 = vmatprep.subr.mxu0 0.0
        %4607 = vmatpush1.msra.mxu0 0.0
        %4608 = vmatprep.subr.mxu0 0.0
        %4609 = vmatpush1.msra.mxu0 0.0
        %4610 = vmatprep.subr.mxu0 0.0
        %4611 = vmatpush1.msra.mxu0 0.0
        %4612 = vmatprep.subr.mxu0 0.0
        %4613 = vmatpush1.msra.mxu0 0.0
        %4614 = vmatprep.subr.mxu0 0.0
        %4615 = vmatpush1.msra.mxu0 0.0
        %4616 = vmatprep.subr.mxu0 0.0
        %4617 = vmatpush1.msra.mxu0 0.0
        %4618 = vmatprep.subr.mxu0 0.0
        %4619 = vmatpush1.msra.mxu0 0.0
        %4620 = vmatprep.subr.mxu0 0.0
        %4621 = vmatpush1.msra.mxu0 0.0
        %4622 = vmatprep.subr.mxu0 0.0
        %4623 = vmatpush1.msra.mxu0 0.0
        %4624 = vmatprep.mubr.f32.mxu0 0.0
        %4625 = vmatmul.mubr.f32.gmra.mrb[0].mxu0 %v4558
        %v4626 = vpop.f32.mrb[0].mxu0
        %v4627 = vadd.f32 0.0, %v4626
        %v4628 = vpop.f32.mrb[0].mxu0
        %4629 = vdwg.mxu0
        %4630 = vrot.lane.b32.xlu0 %v3798, 48
        %v4631 = vpop.permute.xlu0 %4630
        %4632 = vrot.lane.b32.xlu0 %v3754, 48
        %v4633 = vpop.permute.xlu0 %4632
        %v4634 = vsel %vm1705, %v4631, 0
        %v4636 = vsel %vm1705, %v4633, 0
        %4638 = vmatprep.subr.mxu0 0.0
        %4639 = vmatpush1.xpose.msra.mxu0 %v4636
        %4640 = vmatprep.subr.mxu0 0.0
        %4641 = vmatpush1.xpose.msra.mxu0 0.0
        %4642 = vmatprep.subr.mxu0 0.0
        %4643 = vmatpush1.xpose.msra.mxu0 0.0
        %4644 = vmatprep.subr.mxu0 0.0
        %4645 = vmatpush1.xpose.msra.mxu0 0.0
        %4646 = vmatprep.subr.mxu0 0.0
        %4647 = vmatpush1.xpose.msra.mxu0 0.0
        %4648 = vmatprep.subr.mxu0 0.0
        %4649 = vmatpush1.xpose.msra.mxu0 0.0
        %4650 = vmatprep.subr.mxu0 0.0
        %4651 = vmatpush1.xpose.msra.mxu0 0.0
        %4652 = vmatprep.subr.mxu0 0.0
        %4653 = vmatpush1.xpose.msra.mxu0 0.0
        %4654 = vmatprep.subr.mxu0 0.0
        %4655 = vmatpush1.xpose.msra.mxu0 0.0
        %4656 = vmatprep.subr.mxu0 0.0
        %4657 = vmatpush1.xpose.msra.mxu0 0.0
        %4658 = vmatprep.subr.mxu0 0.0
        %4659 = vmatpush1.xpose.msra.mxu0 0.0
        %4660 = vmatprep.subr.mxu0 0.0
        %4661 = vmatpush1.xpose.msra.mxu0 0.0
        %4662 = vmatprep.subr.mxu0 0.0
        %4663 = vmatpush1.xpose.msra.mxu0 0.0
        %4664 = vmatprep.subr.mxu0 0.0
        %4665 = vmatpush1.xpose.msra.mxu0 0.0
        %4666 = vmatprep.subr.mxu0 0.0
        %4667 = vmatpush1.xpose.msra.mxu0 0.0
        %4668 = vmatprep.subr.mxu0 0.0
        %4669 = vmatpush1.xpose.msra.mxu0 0.0
        %4670 = vmatprep.subr.mxu0 0.0
        %4671 = vmatpush1.xpose.msra.mxu0 0.0
        %4672 = vmatprep.subr.mxu0 0.0
        %4673 = vmatpush1.xpose.msra.mxu0 0.0
        %4674 = vmatprep.subr.mxu0 0.0
        %4675 = vmatpush1.xpose.msra.mxu0 0.0
        %4676 = vmatprep.subr.mxu0 0.0
        %4677 = vmatpush1.xpose.msra.mxu0 0.0
        %4678 = vmatprep.subr.mxu0 0.0
        %4679 = vmatpush1.xpose.msra.mxu0 0.0
        %4680 = vmatprep.subr.mxu0 0.0
        %4681 = vmatpush1.xpose.msra.mxu0 0.0
        %4682 = vmatprep.subr.mxu0 0.0
        %4683 = vmatpush1.xpose.msra.mxu0 0.0
        %4684 = vmatprep.subr.mxu0 0.0
        %4685 = vmatpush1.xpose.msra.mxu0 0.0
        %4686 = vmatprep.subr.mxu0 0.0
        %4687 = vmatpush1.xpose.msra.mxu0 0.0
        %4688 = vmatprep.subr.mxu0 0.0
        %4689 = vmatpush1.xpose.msra.mxu0 0.0
        %4690 = vmatprep.subr.mxu0 0.0
        %4691 = vmatpush1.xpose.msra.mxu0 0.0
        %4692 = vmatprep.subr.mxu0 0.0
        %4693 = vmatpush1.xpose.msra.mxu0 0.0
        %4694 = vmatprep.subr.mxu0 0.0
        %4695 = vmatpush1.xpose.msra.mxu0 0.0
        %4696 = vmatprep.subr.mxu0 0.0
        %4697 = vmatpush1.xpose.msra.mxu0 0.0
        %4698 = vmatprep.subr.mxu0 0.0
        %4699 = vmatpush1.xpose.msra.mxu0 0.0
        %4700 = vmatprep.subr.mxu0 0.0
        %4701 = vmatpush1.xpose.msra.mxu0 0.0
        %4702 = vmatprep.mubr.f32.mxu0 0.0
        %4703 = vmatmul.mubr.f32.gmra.mrb[0].mxu0 %v4634
        %v4704 = vpop.f32.mrb[0].mxu0
        %v4705 = vadd.f32 0.0, %v4704
        %v4706 = vpop.f32.mrb[0].mxu0
        %4707 = vdwg.mxu0
        %v4708 = vsel %vm3803, -1e+30, %v4705
        %v4709 = vsel %vm1782, %v4708, -inf
        %4710 = vmax.xlane.f32.xlu0 %v4709
        %v4711 = vpop.xlane.xlu0 %4710
        %v4712 = vsub.f32 %v4708, %v4711
        %v4713 = vmul.f32 %v4712, 1.442695
        %v4714 = vpow.pop %v4713
        %v4715 = vsel %vm1782, %v4714, 0.0
        %4716 = vadd.xlane.f32.xlu0 %v4715
        %v4717 = vpop.xlane.xlu0 %4716
        %v4718 = vrcp.pop %v4717
        %v4719 = vmul.f32 %v4714, %v4718
        %4720 = vrot.lane.b32.xlu0 %v3793, 48
        %v4721 = vpop.permute.xlu0 %4720
        %v4724 = vsel %vm1782, %v4719, 0
        %4726 = vmatprep.subr.mxu0 0.0
        %4727 = vmatpush1.msra.mxu0 %v4721
        %4728 = vmatprep.subr.mxu0 0.0
        %4729 = vmatpush1.msra.mxu0 0.0
        %4730 = vmatprep.subr.mxu0 0.0
        %4731 = vmatpush1.msra.mxu0 0.0
        %4732 = vmatprep.subr.mxu0 0.0
        %4733 = vmatpush1.msra.mxu0 0.0
        %4734 = vmatprep.subr.mxu0 0.0
        %4735 = vmatpush1.msra.mxu0 0.0
        %4736 = vmatprep.subr.mxu0 0.0
        %4737 = vmatpush1.msra.mxu0 0.0
        %4738 = vmatprep.subr.mxu0 0.0
        %4739 = vmatpush1.msra.mxu0 0.0
        %4740 = vmatprep.subr.mxu0 0.0
        %4741 = vmatpush1.msra.mxu0 0.0
        %4742 = vmatprep.subr.mxu0 0.0
        %4743 = vmatpush1.msra.mxu0 0.0
        %4744 = vmatprep.subr.mxu0 0.0
        %4745 = vmatpush1.msra.mxu0 0.0
        %4746 = vmatprep.subr.mxu0 0.0
        %4747 = vmatpush1.msra.mxu0 0.0
        %4748 = vmatprep.subr.mxu0 0.0
        %4749 = vmatpush1.msra.mxu0 0.0
        %4750 = vmatprep.subr.mxu0 0.0
        %4751 = vmatpush1.msra.mxu0 0.0
        %4752 = vmatprep.subr.mxu0 0.0
        %4753 = vmatpush1.msra.mxu0 0.0
        %4754 = vmatprep.subr.mxu0 0.0
        %4755 = vmatpush1.msra.mxu0 0.0
        %4756 = vmatprep.subr.mxu0 0.0
        %4757 = vmatpush1.msra.mxu0 0.0
        %4758 = vmatprep.subr.mxu0 0.0
        %4759 = vmatpush1.msra.mxu0 0.0
        %4760 = vmatprep.subr.mxu0 0.0
        %4761 = vmatpush1.msra.mxu0 0.0
        %4762 = vmatprep.subr.mxu0 0.0
        %4763 = vmatpush1.msra.mxu0 0.0
        %4764 = vmatprep.subr.mxu0 0.0
        %4765 = vmatpush1.msra.mxu0 0.0
        %4766 = vmatprep.subr.mxu0 0.0
        %4767 = vmatpush1.msra.mxu0 0.0
        %4768 = vmatprep.subr.mxu0 0.0
        %4769 = vmatpush1.msra.mxu0 0.0
        %4770 = vmatprep.subr.mxu0 0.0
        %4771 = vmatpush1.msra.mxu0 0.0
        %4772 = vmatprep.subr.mxu0 0.0
        %4773 = vmatpush1.msra.mxu0 0.0
        %4774 = vmatprep.subr.mxu0 0.0
        %4775 = vmatpush1.msra.mxu0 0.0
        %4776 = vmatprep.subr.mxu0 0.0
        %4777 = vmatpush1.msra.mxu0 0.0
        %4778 = vmatprep.subr.mxu0 0.0
        %4779 = vmatpush1.msra.mxu0 0.0
        %4780 = vmatprep.subr.mxu0 0.0
        %4781 = vmatpush1.msra.mxu0 0.0
        %4782 = vmatprep.subr.mxu0 0.0
        %4783 = vmatpush1.msra.mxu0 0.0
        %4784 = vmatprep.subr.mxu0 0.0
        %4785 = vmatpush1.msra.mxu0 0.0
        %4786 = vmatprep.subr.mxu0 0.0
        %4787 = vmatpush1.msra.mxu0 0.0
        %4788 = vmatprep.subr.mxu0 0.0
        %4789 = vmatpush1.msra.mxu0 0.0
        %4790 = vmatprep.mubr.f32.mxu0 0.0
        %4791 = vmatmul.mubr.f32.gmra.mrb[0].mxu0 %v4724
        %v4792 = vpop.f32.mrb[0].mxu0
        %v4793 = vadd.f32 0.0, %v4792
        %v4794 = vpop.f32.mrb[0].mxu0
        %4795 = vdwg.mxu0
        %4796 = vrot.lane.b32.xlu0 %v3798, 32
        %v4797 = vpop.permute.xlu0 %4796
        %4798 = vrot.lane.b32.xlu0 %v3754, 32
        %v4799 = vpop.permute.xlu0 %4798
        %v4800 = vsel %vm1705, %v4797, 0
        %v4802 = vsel %vm1705, %v4799, 0
        %4804 = vmatprep.subr.mxu0 0.0
        %4805 = vmatpush1.xpose.msra.mxu0 %v4802
        %4806 = vmatprep.subr.mxu0 0.0
        %4807 = vmatpush1.xpose.msra.mxu0 0.0
        %4808 = vmatprep.subr.mxu0 0.0
        %4809 = vmatpush1.xpose.msra.mxu0 0.0
        %4810 = vmatprep.subr.mxu0 0.0
        %4811 = vmatpush1.xpose.msra.mxu0 0.0
        %4812 = vmatprep.subr.mxu0 0.0
        %4813 = vmatpush1.xpose.msra.mxu0 0.0
        %4814 = vmatprep.subr.mxu0 0.0
        %4815 = vmatpush1.xpose.msra.mxu0 0.0
        %4816 = vmatprep.subr.mxu0 0.0
        %4817 = vmatpush1.xpose.msra.mxu0 0.0
        %4818 = vmatprep.subr.mxu0 0.0
        %4819 = vmatpush1.xpose.msra.mxu0 0.0
        %4820 = vmatprep.subr.mxu0 0.0
        %4821 = vmatpush1.xpose.msra.mxu0 0.0
        %4822 = vmatprep.subr.mxu0 0.0
        %4823 = vmatpush1.xpose.msra.mxu0 0.0
        %4824 = vmatprep.subr.mxu0 0.0
        %4825 = vmatpush1.xpose.msra.mxu0 0.0
        %4826 = vmatprep.subr.mxu0 0.0
        %4827 = vmatpush1.xpose.msra.mxu0 0.0
        %4828 = vmatprep.subr.mxu0 0.0
        %4829 = vmatpush1.xpose.msra.mxu0 0.0
        %4830 = vmatprep.subr.mxu0 0.0
        %4831 = vmatpush1.xpose.msra.mxu0 0.0
        %4832 = vmatprep.subr.mxu0 0.0
        %4833 = vmatpush1.xpose.msra.mxu0 0.0
        %4834 = vmatprep.subr.mxu0 0.0
        %4835 = vmatpush1.xpose.msra.mxu0 0.0
        %4836 = vmatprep.subr.mxu0 0.0
        %4837 = vmatpush1.xpose.msra.mxu0 0.0
        %4838 = vmatprep.subr.mxu0 0.0
        %4839 = vmatpush1.xpose.msra.mxu0 0.0
        %4840 = vmatprep.subr.mxu0 0.0
        %4841 = vmatpush1.xpose.msra.mxu0 0.0
        %4842 = vmatprep.subr.mxu0 0.0
        %4843 = vmatpush1.xpose.msra.mxu0 0.0
        %4844 = vmatprep.subr.mxu0 0.0
        %4845 = vmatpush1.xpose.msra.mxu0 0.0
        %4846 = vmatprep.subr.mxu0 0.0
        %4847 = vmatpush1.xpose.msra.mxu0 0.0
        %4848 = vmatprep.subr.mxu0 0.0
        %4849 = vmatpush1.xpose.msra.mxu0 0.0
        %4850 = vmatprep.subr.mxu0 0.0
        %4851 = vmatpush1.xpose.msra.mxu0 0.0
        %4852 = vmatprep.subr.mxu0 0.0
        %4853 = vmatpush1.xpose.msra.mxu0 0.0
        %4854 = vmatprep.subr.mxu0 0.0
        %4855 = vmatpush1.xpose.msra.mxu0 0.0
        %4856 = vmatprep.subr.mxu0 0.0
        %4857 = vmatpush1.xpose.msra.mxu0 0.0
        %4858 = vmatprep.subr.mxu0 0.0
        %4859 = vmatpush1.xpose.msra.mxu0 0.0
        %4860 = vmatprep.subr.mxu0 0.0
        %4861 = vmatpush1.xpose.msra.mxu0 0.0
        %4862 = vmatprep.subr.mxu0 0.0
        %4863 = vmatpush1.xpose.msra.mxu0 0.0
        %4864 = vmatprep.subr.mxu0 0.0
        %4865 = vmatpush1.xpose.msra.mxu0 0.0
        %4866 = vmatprep.subr.mxu0 0.0
        %4867 = vmatpush1.xpose.msra.mxu0 0.0
        %4868 = vmatprep.mubr.f32.mxu0 0.0
        %4869 = vmatmul.mubr.f32.gmra.mrb[0].mxu0 %v4800
        %v4870 = vpop.f32.mrb[0].mxu0
        %v4871 = vadd.f32 0.0, %v4870
        %v4872 = vpop.f32.mrb[0].mxu0
        %4873 = vdwg.mxu0
        %v4874 = vsel %vm3803, -1e+30, %v4871
        %v4875 = vsel %vm1782, %v4874, -inf
        %4876 = vmax.xlane.f32.xlu0 %v4875
        %v4877 = vpop.xlane.xlu0 %4876
        %v4878 = vsub.f32 %v4874, %v4877
        %v4879 = vmul.f32 %v4878, 1.442695
        %v4880 = vpow.pop %v4879
        %v4881 = vsel %vm1782, %v4880, 0.0
        %4882 = vadd.xlane.f32.xlu0 %v4881
        %v4883 = vpop.xlane.xlu0 %4882
        %v4884 = vrcp.pop %v4883
        %v4885 = vmul.f32 %v4880, %v4884
        %4886 = vrot.lane.b32.xlu0 %v3793, 32
        %v4887 = vpop.permute.xlu0 %4886
        %v4890 = vsel %vm1782, %v4885, 0
        %4892 = vmatprep.subr.mxu0 0.0
        %4893 = vmatpush1.msra.mxu0 %v4887
        %4894 = vmatprep.subr.mxu0 0.0
        %4895 = vmatpush1.msra.mxu0 0.0
        %4896 = vmatprep.subr.mxu0 0.0
        %4897 = vmatpush1.msra.mxu0 0.0
        %4898 = vmatprep.subr.mxu0 0.0
        %4899 = vmatpush1.msra.mxu0 0.0
        %4900 = vmatprep.subr.mxu0 0.0
        %4901 = vmatpush1.msra.mxu0 0.0
        %4902 = vmatprep.subr.mxu0 0.0
        %4903 = vmatpush1.msra.mxu0 0.0
        %4904 = vmatprep.subr.mxu0 0.0
        %4905 = vmatpush1.msra.mxu0 0.0
        %4906 = vmatprep.subr.mxu0 0.0
        %4907 = vmatpush1.msra.mxu0 0.0
        %4908 = vmatprep.subr.mxu0 0.0
        %4909 = vmatpush1.msra.mxu0 0.0
        %4910 = vmatprep.subr.mxu0 0.0
        %4911 = vmatpush1.msra.mxu0 0.0
        %4912 = vmatprep.subr.mxu0 0.0
        %4913 = vmatpush1.msra.mxu0 0.0
        %4914 = vmatprep.subr.mxu0 0.0
        %4915 = vmatpush1.msra.mxu0 0.0
        %4916 = vmatprep.subr.mxu0 0.0
        %4917 = vmatpush1.msra.mxu0 0.0
        %4918 = vmatprep.subr.mxu0 0.0
        %4919 = vmatpush1.msra.mxu0 0.0
        %4920 = vmatprep.subr.mxu0 0.0
        %4921 = vmatpush1.msra.mxu0 0.0
        %4922 = vmatprep.subr.mxu0 0.0
        %4923 = vmatpush1.msra.mxu0 0.0
        %4924 = vmatprep.subr.mxu0 0.0
        %4925 = vmatpush1.msra.mxu0 0.0
        %4926 = vmatprep.subr.mxu0 0.0
        %4927 = vmatpush1.msra.mxu0 0.0
        %4928 = vmatprep.subr.mxu0 0.0
        %4929 = vmatpush1.msra.mxu0 0.0
        %4930 = vmatprep.subr.mxu0 0.0
        %4931 = vmatpush1.msra.mxu0 0.0
        %4932 = vmatprep.subr.mxu0 0.0
        %4933 = vmatpush1.msra.mxu0 0.0
        %4934 = vmatprep.subr.mxu0 0.0
        %4935 = vmatpush1.msra.mxu0 0.0
        %4936 = vmatprep.subr.mxu0 0.0
        %4937 = vmatpush1.msra.mxu0 0.0
        %4938 = vmatprep.subr.mxu0 0.0
        %4939 = vmatpush1.msra.mxu0 0.0
        %4940 = vmatprep.subr.mxu0 0.0
        %4941 = vmatpush1.msra.mxu0 0.0
        %4942 = vmatprep.subr.mxu0 0.0
        %4943 = vmatpush1.msra.mxu0 0.0
        %4944 = vmatprep.subr.mxu0 0.0
        %4945 = vmatpush1.msra.mxu0 0.0
        %4946 = vmatprep.subr.mxu0 0.0
        %4947 = vmatpush1.msra.mxu0 0.0
        %4948 = vmatprep.subr.mxu0 0.0
        %4949 = vmatpush1.msra.mxu0 0.0
        %4950 = vmatprep.subr.mxu0 0.0
        %4951 = vmatpush1.msra.mxu0 0.0
        %4952 = vmatprep.subr.mxu0 0.0
        %4953 = vmatpush1.msra.mxu0 0.0
        %4954 = vmatprep.subr.mxu0 0.0
        %4955 = vmatpush1.msra.mxu0 0.0
        %4956 = vmatprep.mubr.f32.mxu0 0.0
        %4957 = vmatmul.mubr.f32.gmra.mrb[0].mxu0 %v4890
        %v4958 = vpop.f32.mrb[0].mxu0
        %v4959 = vadd.f32 0.0, %v4958
        %v4960 = vpop.f32.mrb[0].mxu0
        %4961 = vdwg.mxu0
        %4962 = vrot.lane.b32.xlu0 %v3798, 16
        %v4963 = vpop.permute.xlu0 %4962
        %4964 = vrot.lane.b32.xlu0 %v3754, 16
        %v4965 = vpop.permute.xlu0 %4964
        %v4966 = vsel %vm1705, %v4963, 0
        %v4968 = vsel %vm1705, %v4965, 0
        %4970 = vmatprep.subr.mxu0 0.0
        %4971 = vmatpush1.xpose.msra.mxu0 %v4968
        %4972 = vmatprep.subr.mxu0 0.0
        %4973 = vmatpush1.xpose.msra.mxu0 0.0
        %4974 = vmatprep.subr.mxu0 0.0
        %4975 = vmatpush1.xpose.msra.mxu0 0.0
        %4976 = vmatprep.subr.mxu0 0.0
        %4977 = vmatpush1.xpose.msra.mxu0 0.0
        %4978 = vmatprep.subr.mxu0 0.0
        %4979 = vmatpush1.xpose.msra.mxu0 0.0
        %4980 = vmatprep.subr.mxu0 0.0
        %4981 = vmatpush1.xpose.msra.mxu0 0.0
        %4982 = vmatprep.subr.mxu0 0.0
        %4983 = vmatpush1.xpose.msra.mxu0 0.0
        %4984 = vmatprep.subr.mxu0 0.0
        %4985 = vmatpush1.xpose.msra.mxu0 0.0
        %4986 = vmatprep.subr.mxu0 0.0
        %4987 = vmatpush1.xpose.msra.mxu0 0.0
        %4988 = vmatprep.subr.mxu0 0.0
        %4989 = vmatpush1.xpose.msra.mxu0 0.0
        %4990 = vmatprep.subr.mxu0 0.0
        %4991 = vmatpush1.xpose.msra.mxu0 0.0
        %4992 = vmatprep.subr.mxu0 0.0
        %4993 = vmatpush1.xpose.msra.mxu0 0.0
        %4994 = vmatprep.subr.mxu0 0.0
        %4995 = vmatpush1.xpose.msra.mxu0 0.0
        %4996 = vmatprep.subr.mxu0 0.0
        %4997 = vmatpush1.xpose.msra.mxu0 0.0
        %4998 = vmatprep.subr.mxu0 0.0
        %4999 = vmatpush1.xpose.msra.mxu0 0.0
        %5000 = vmatprep.subr.mxu0 0.0
        %5001 = vmatpush1.xpose.msra.mxu0 0.0
        %5002 = vmatprep.subr.mxu0 0.0
        %5003 = vmatpush1.xpose.msra.mxu0 0.0
        %5004 = vmatprep.subr.mxu0 0.0
        %5005 = vmatpush1.xpose.msra.mxu0 0.0
        %5006 = vmatprep.subr.mxu0 0.0
        %5007 = vmatpush1.xpose.msra.mxu0 0.0
        %5008 = vmatprep.subr.mxu0 0.0
        %5009 = vmatpush1.xpose.msra.mxu0 0.0
        %5010 = vmatprep.subr.mxu0 0.0
        %5011 = vmatpush1.xpose.msra.mxu0 0.0
        %5012 = vmatprep.subr.mxu0 0.0
        %5013 = vmatpush1.xpose.msra.mxu0 0.0
        %5014 = vmatprep.subr.mxu0 0.0
        %5015 = vmatpush1.xpose.msra.mxu0 0.0
        %5016 = vmatprep.subr.mxu0 0.0
        %5017 = vmatpush1.xpose.msra.mxu0 0.0
        %5018 = vmatprep.subr.mxu0 0.0
        %5019 = vmatpush1.xpose.msra.mxu0 0.0
        %5020 = vmatprep.subr.mxu0 0.0
        %5021 = vmatpush1.xpose.msra.mxu0 0.0
        %5022 = vmatprep.subr.mxu0 0.0
        %5023 = vmatpush1.xpose.msra.mxu0 0.0
        %5024 = vmatprep.subr.mxu0 0.0
        %5025 = vmatpush1.xpose.msra.mxu0 0.0
        %5026 = vmatprep.subr.mxu0 0.0
        %5027 = vmatpush1.xpose.msra.mxu0 0.0
        %5028 = vmatprep.subr.mxu0 0.0
        %5029 = vmatpush1.xpose.msra.mxu0 0.0
        %5030 = vmatprep.subr.mxu0 0.0
        %5031 = vmatpush1.xpose.msra.mxu0 0.0
        %5032 = vmatprep.subr.mxu0 0.0
        %5033 = vmatpush1.xpose.msra.mxu0 0.0
        %5034 = vmatprep.mubr.f32.mxu0 0.0
        %5035 = vmatmul.mubr.f32.gmra.mrb[0].mxu0 %v4966
        %v5036 = vpop.f32.mrb[0].mxu0
        %v5037 = vadd.f32 0.0, %v5036
        %v5038 = vpop.f32.mrb[0].mxu0
        %5039 = vdwg.mxu0
        %v5040 = vsel %vm3803, -1e+30, %v5037
        %v5041 = vsel %vm1782, %v5040, -inf
        %5042 = vmax.xlane.f32.xlu0 %v5041
        %v5043 = vpop.xlane.xlu0 %5042
        %v5044 = vsub.f32 %v5040, %v5043
        %v5045 = vmul.f32 %v5044, 1.442695
        %v5046 = vpow.pop %v5045
        %v5047 = vsel %vm1782, %v5046, 0.0
        %5048 = vadd.xlane.f32.xlu0 %v5047
        %v5049 = vpop.xlane.xlu0 %5048
        %v5050 = vrcp.pop %v5049
        %v5051 = vmul.f32 %v5046, %v5050
        %5052 = vrot.lane.b32.xlu0 %v3793, 16
        %v5053 = vpop.permute.xlu0 %5052
        %v5056 = vsel %vm1782, %v5051, 0
        %5058 = vmatprep.subr.mxu0 0.0
        %5059 = vmatpush1.msra.mxu0 %v5053
        %5060 = vmatprep.subr.mxu0 0.0
        %5061 = vmatpush1.msra.mxu0 0.0
        %5062 = vmatprep.subr.mxu0 0.0
        %5063 = vmatpush1.msra.mxu0 0.0
        %5064 = vmatprep.subr.mxu0 0.0
        %5065 = vmatpush1.msra.mxu0 0.0
        %5066 = vmatprep.subr.mxu0 0.0
        %5067 = vmatpush1.msra.mxu0 0.0
        %5068 = vmatprep.subr.mxu0 0.0
        %5069 = vmatpush1.msra.mxu0 0.0
        %5070 = vmatprep.subr.mxu0 0.0
        %5071 = vmatpush1.msra.mxu0 0.0
        %5072 = vmatprep.subr.mxu0 0.0
        %5073 = vmatpush1.msra.mxu0 0.0
        %5074 = vmatprep.subr.mxu0 0.0
        %5075 = vmatpush1.msra.mxu0 0.0
        %5076 = vmatprep.subr.mxu0 0.0
        %5077 = vmatpush1.msra.mxu0 0.0
        %5078 = vmatprep.subr.mxu0 0.0
        %5079 = vmatpush1.msra.mxu0 0.0
        %5080 = vmatprep.subr.mxu0 0.0
        %5081 = vmatpush1.msra.mxu0 0.0
        %5082 = vmatprep.subr.mxu0 0.0
        %5083 = vmatpush1.msra.mxu0 0.0
        %5084 = vmatprep.subr.mxu0 0.0
        %5085 = vmatpush1.msra.mxu0 0.0
        %5086 = vmatprep.subr.mxu0 0.0
        %5087 = vmatpush1.msra.mxu0 0.0
        %5088 = vmatprep.subr.mxu0 0.0
        %5089 = vmatpush1.msra.mxu0 0.0
        %5090 = vmatprep.subr.mxu0 0.0
        %5091 = vmatpush1.msra.mxu0 0.0
        %5092 = vmatprep.subr.mxu0 0.0
        %5093 = vmatpush1.msra.mxu0 0.0
        %5094 = vmatprep.subr.mxu0 0.0
        %5095 = vmatpush1.msra.mxu0 0.0
        %5096 = vmatprep.subr.mxu0 0.0
        %5097 = vmatpush1.msra.mxu0 0.0
        %5098 = vmatprep.subr.mxu0 0.0
        %5099 = vmatpush1.msra.mxu0 0.0
        %5100 = vmatprep.subr.mxu0 0.0
        %5101 = vmatpush1.msra.mxu0 0.0
        %5102 = vmatprep.subr.mxu0 0.0
        %5103 = vmatpush1.msra.mxu0 0.0
        %5104 = vmatprep.subr.mxu0 0.0
        %5105 = vmatpush1.msra.mxu0 0.0
        %5106 = vmatprep.subr.mxu0 0.0
        %5107 = vmatpush1.msra.mxu0 0.0
        %5108 = vmatprep.subr.mxu0 0.0
        %5109 = vmatpush1.msra.mxu0 0.0
        %5110 = vmatprep.subr.mxu0 0.0
        %5111 = vmatpush1.msra.mxu0 0.0
        %5112 = vmatprep.subr.mxu0 0.0
        %5113 = vmatpush1.msra.mxu0 0.0
        %5114 = vmatprep.subr.mxu0 0.0
        %5115 = vmatpush1.msra.mxu0 0.0
        %5116 = vmatprep.subr.mxu0 0.0
        %5117 = vmatpush1.msra.mxu0 0.0
        %5118 = vmatprep.subr.mxu0 0.0
        %5119 = vmatpush1.msra.mxu0 0.0
        %5120 = vmatprep.subr.mxu0 0.0
        %5121 = vmatpush1.msra.mxu0 0.0
        %5122 = vmatprep.mubr.f32.mxu0 0.0
        %5123 = vmatmul.mubr.f32.gmra.mrb[0].mxu0 %v5056
        %v5124 = vpop.f32.mrb[0].mxu0
        %v5125 = vadd.f32 0.0, %v5124
        %v5126 = vpop.f32.mrb[0].mxu0
        %5127 = vdwg.mxu0
        %5129 = vrot.lane.b32.xlu0 %v4129, 16
        %v5130 = vpop.permute.xlu0 %5129
        %5133 = vrot.lane.b32.xlu0 %v4295, 32
        %v5134 = vpop.permute.xlu0 %5133
        %5137 = vrot.lane.b32.xlu0 %v4461, 48
        %v5138 = vpop.permute.xlu0 %5137
        %5141 = vrot.lane.b32.xlu0 %v4627, 64
        %v5142 = vpop.permute.xlu0 %5141
        %5145 = vrot.lane.b32.xlu0 %v4793, 80
        %v5146 = vpop.permute.xlu0 %5145
        %5149 = vrot.lane.b32.xlu0 %v4959, 96
        %v5150 = vpop.permute.xlu0 %5149
        %5153 = vrot.lane.b32.xlu0 %v5125, 112
        %v5154 = vpop.permute.xlu0 %5153
        %v5156 = vsel %vm1705, %v3962, %v5130
        %v5157 = vsel %vm3052, %v5156, %v5134
        %v5158 = vsel %vm3054, %v5157, %v5138
        %v5159 = vsel %vm3056, %v5158, %v5142
        %v5160 = vsel %vm3058, %v5159, %v5146
        %v5161 = vsel %vm3060, %v5160, %v5150
        %v5162 = vsel %vm3062, %v5161, %v5154
        %v5163 = vpack.c.bf16 %v5162, %v5162
        %v5180 = vunpack.c.l.b16 %v3572
        %v5181 = vunpack.c.l.b16 %v3573
        %v5182 = vunpack.c.l.b16 %v3574
        %v5183 = vunpack.c.l.b16 %v3575
        %v5184 = vunpack.c.l.b16 %v3576
        %v5185 = vunpack.c.l.b16 %v3577
        %v5186 = vunpack.c.l.b16 %v3578
        %v5187 = vunpack.c.l.b16 %v3579
        %v5188 = vunpack.c.l.b16 %v3580
        %v5189 = vunpack.c.l.b16 %v3581
        %v5190 = vunpack.c.l.b16 %v3582
        %v5191 = vunpack.c.l.b16 %v3583
        %v5192 = vunpack.c.l.b16 %v3584
        %v5193 = vunpack.c.l.b16 %v3585
        %v5194 = vunpack.c.l.b16 %v3586
        %v5195 = vunpack.c.l.b16 %v3587
        %v5196 = vpack.c.b16 %v5181, %v5180
        %v5197 = vpack.c.b16 %v5183, %v5182
        %v5198 = vpack.c.b16 %v5185, %v5184
        %v5199 = vpack.c.b16 %v5187, %v5186
        %v5200 = vpack.c.b16 %v5189, %v5188
        %v5201 = vpack.c.b16 %v5191, %v5190
        %v5202 = vpack.c.b16 %v5193, %v5192
        %v5203 = vpack.c.b16 %v5195, %v5194
        %5212 = vmatprep.subr.bf16.mxu0 0
        %5213 = vmatpush1.bf16.msra.mxu0 %v5196
        %5214 = vmatprep.subr.bf16.mxu0 0
        %5215 = vmatpush1.bf16.msra.mxu0 %v5197
        %5216 = vmatprep.subr.bf16.mxu0 0
        %5217 = vmatpush1.bf16.msra.mxu0 %v5198
        %5218 = vmatprep.subr.bf16.mxu0 0
        %5219 = vmatpush1.bf16.msra.mxu0 %v5199
        %5220 = vmatprep.subr.bf16.mxu0 0
        %5221 = vmatpush1.bf16.msra.mxu0 %v5200
        %5222 = vmatprep.subr.bf16.mxu0 0
        %5223 = vmatpush1.bf16.msra.mxu0 %v5201
        %5224 = vmatprep.subr.bf16.mxu0 0
        %5225 = vmatpush1.bf16.msra.mxu0 %v5202
        %5226 = vmatprep.subr.bf16.mxu0 0
        %5227 = vmatpush1.bf16.msra.mxu0 %v5203
        %5228 = vmatprep.subr.bf16.mxu0 0
        %5229 = vmatpush1.bf16.msra.mxu0 0
        %5230 = vmatprep.subr.bf16.mxu0 0
        %5231 = vmatpush1.bf16.msra.mxu0 0
        %5232 = vmatprep.subr.bf16.mxu0 0
        %5233 = vmatpush1.bf16.msra.mxu0 0
        %5234 = vmatprep.subr.bf16.mxu0 0
        %5235 = vmatpush1.bf16.msra.mxu0 0
        %5236 = vmatprep.subr.bf16.mxu0 0
        %5237 = vmatpush1.bf16.msra.mxu0 0
        %5238 = vmatprep.subr.bf16.mxu0 0
        %5239 = vmatpush1.bf16.msra.mxu0 0
        %5240 = vmatprep.subr.bf16.mxu0 0
        %5241 = vmatpush1.bf16.msra.mxu0 0
        %5242 = vmatprep.subr.bf16.mxu0 0
        %5243 = vmatpush1.bf16.msra.mxu0 0
        %5244 = vmatprep.mubr.bf16.mxu0 0
        %5245 = vmatmul.mubr.bf16.gmra.mrb[0].mxu0 %v5163
        %v5246 = vpop.f32.mrb[0].mxu0
        %v5247 = vadd.f32 %v3539, %v5246
        %v5248 = vpop.f32.mrb[0].mxu0
        %v5249 = vpop.f32.mrb[0].mxu0
        %v5250 = vpop.f32.mrb[0].mxu0
        %5251 = vdwg.mxu0
        %v5252 = vld [vmem:[%s1428] sm:$0x1]
        %v5253 = vld [vmem:[%s1431] sm:$0x1]
        %5254 = vadd.xlane.f32.xlu0 %v5247
        %v5255 = vpop.xlane.xlu0 %5254
        %v5256 = vmul.f32 %v5255, %v3157
        %v5257 = vsub.f32 %v5247, %v5256
        %v5258 = vmul.f32 %v5257, %v5257
        %5259 = vadd.xlane.f32.xlu0 %v5258
        %v5260 = vpop.xlane.xlu0 %5259
        %v5261 = vmul.f32 %v5260, %v3157
        %v5262 = vadd.f32 %v5261, 1e-05
        %v5263 = vrsqrt.pop %v5262
        %v5264 = vmul.f32 %v5257, %v5263
        %v5266 = vlaneseq
        %v5267 = vshrl.u32 %v5266, 7
        %v5268 = vsub.s32 0, %v5267
        %v5269 = vrot.slane %v5252, %v5268
        %v5271 = vmul.f32 %v5264, %v5269
        %v5273 = vlaneseq
        %v5274 = vshrl.u32 %v5273, 7
        %v5275 = vsub.s32 0, %v5274
        %v5276 = vrot.slane %v5253, %v5275
        %v5278 = vadd.f32 %v5271, %v5276
        %v5279 = vld [vmem:[%s1181] sm:$0xf]
        %v5280 = vld [vmem:[%s1181 + $0x4] sm:$0xf]
        %v5281 = vld [vmem:[%s1181 + $0x8] sm:$0xf]
        %v5282 = vld [vmem:[%s1181 + $0xc] sm:$0xf]
        %v5283 = vld [vmem:[%s1181 + $0x10] sm:$0xf]
        %v5284 = vld [vmem:[%s1181 + $0x14] sm:$0xf]
        %v5285 = vld [vmem:[%s1181 + $0x18] sm:$0xf]
        %v5286 = vld [vmem:[%s1181 + $0x1c] sm:$0xf]
        %v5287 = vld [vmem:[%s1181 + $0x20] sm:$0xf]
        %v5288 = vld [vmem:[%s1181 + $0x24] sm:$0xf]
        %v5289 = vld [vmem:[%s1181 + $0x28] sm:$0xf]
        %v5290 = vld [vmem:[%s1181 + $0x2c] sm:$0xf]
        %v5291 = vld [vmem:[%s1181 + $0x30] sm:$0xf]
        %v5292 = vld [vmem:[%s1181 + $0x34] sm:$0xf]
        %v5293 = vld [vmem:[%s1181 + $0x38] sm:$0xf]
        %v5294 = vld [vmem:[%s1181 + $0x3c] sm:$0xf]
        %v5295 = vld [vmem:[%s1190] sm:$0xff]
        %v5296 = vld [vmem:[%s1190 + $0x8] sm:$0xff]
        %v5297 = vld [vmem:[%s1190 + $0x10] sm:$0xff]
        %v5298 = vld [vmem:[%s1190 + $0x18] sm:$0xff]
        %v5299 = vld [vmem:[%s1190 + $0x20] sm:$0xff]
        %v5300 = vld [vmem:[%s1190 + $0x28] sm:$0xff]
        %v5301 = vld [vmem:[%s1190 + $0x30] sm:$0xff]
        %v5302 = vld [vmem:[%s1190 + $0x38] sm:$0xff]
        %v5303 = vld [vmem:[%s1190 + $0x40] sm:$0xff]
        %v5304 = vld [vmem:[%s1190 + $0x48] sm:$0xff]
        %v5305 = vld [vmem:[%s1190 + $0x50] sm:$0xff]
        %v5306 = vld [vmem:[%s1190 + $0x58] sm:$0xff]
        %v5307 = vld [vmem:[%s1190 + $0x60] sm:$0xff]
        %v5308 = vld [vmem:[%s1190 + $0x68] sm:$0xff]
        %v5309 = vld [vmem:[%s1190 + $0x70] sm:$0xff]
        %v5310 = vld [vmem:[%s1190 + $0x78] sm:$0xff]
        %v5311 = vld [vmem:[%s1199] sm:$0xf]
        %v5312 = vld [vmem:[%s1199 + $0x4] sm:$0xf]
        %v5313 = vld [vmem:[%s1199 + $0x8] sm:$0xf]
        %v5314 = vld [vmem:[%s1199 + $0xc] sm:$0xf]
        %v5315 = vld [vmem:[%s1199 + $0x10] sm:$0xf]
        %v5316 = vld [vmem:[%s1199 + $0x14] sm:$0xf]
        %v5317 = vld [vmem:[%s1199 + $0x18] sm:$0xf]
        %v5318 = vld [vmem:[%s1199 + $0x1c] sm:$0xf]
        %v5319 = vld [vmem:[%s1199 + $0x20] sm:$0xf]
        %v5320 = vld [vmem:[%s1199 + $0x24] sm:$0xf]
        %v5321 = vld [vmem:[%s1199 + $0x28] sm:$0xf]
        %v5322 = vld [vmem:[%s1199 + $0x2c] sm:$0xf]
        %v5323 = vld [vmem:[%s1199 + $0x30] sm:$0xf]
        %v5324 = vld [vmem:[%s1199 + $0x34] sm:$0xf]
        %v5325 = vld [vmem:[%s1199 + $0x38] sm:$0xf]
        %v5326 = vld [vmem:[%s1199 + $0x3c] sm:$0xf]
        %v5327 = vpack.c.bf16 %v5278, %v5278
        %v5344 = vunpack.c.l.b16 %v5279
        %v5345 = vunpack.c.l.b16 %v5280
        %v5346 = vunpack.c.l.b16 %v5281
        %v5347 = vunpack.c.l.b16 %v5282
        %v5348 = vunpack.c.l.b16 %v5283
        %v5349 = vunpack.c.l.b16 %v5284
        %v5350 = vunpack.c.l.b16 %v5285
        %v5351 = vunpack.c.l.b16 %v5286
        %v5352 = vunpack.c.l.b16 %v5287
        %v5353 = vunpack.c.l.b16 %v5288
        %v5354 = vunpack.c.l.b16 %v5289
        %v5355 = vunpack.c.l.b16 %v5290
        %v5356 = vunpack.c.l.b16 %v5291
        %v5357 = vunpack.c.l.b16 %v5292
        %v5358 = vunpack.c.l.b16 %v5293
        %v5359 = vunpack.c.l.b16 %v5294
        %v5360 = vpack.c.b16 %v5345, %v5344
        %v5361 = vpack.c.b16 %v5347, %v5346
        %v5362 = vpack.c.b16 %v5349, %v5348
        %v5363 = vpack.c.b16 %v5351, %v5350
        %v5364 = vpack.c.b16 %v5353, %v5352
        %v5365 = vpack.c.b16 %v5355, %v5354
        %v5366 = vpack.c.b16 %v5357, %v5356
        %v5367 = vpack.c.b16 %v5359, %v5358
        %5376 = vmatprep.subr.bf16.mxu0 0
        %5377 = vmatpush1.bf16.msra.mxu0 %v5360
        %5378 = vmatprep.subr.bf16.mxu0 0
        %5379 = vmatpush1.bf16.msra.mxu0 %v5361
        %5380 = vmatprep.subr.bf16.mxu0 0
        %5381 = vmatpush1.bf16.msra.mxu0 %v5362
        %5382 = vmatprep.subr.bf16.mxu0 0
        %5383 = vmatpush1.bf16.msra.mxu0 %v5363
        %5384 = vmatprep.subr.bf16.mxu0 0
        %5385 = vmatpush1.bf16.msra.mxu0 %v5364
        %5386 = vmatprep.subr.bf16.mxu0 0
        %5387 = vmatpush1.bf16.msra.mxu0 %v5365
        %5388 = vmatprep.subr.bf16.mxu0 0
        %5389 = vmatpush1.bf16.msra.mxu0 %v5366
        %5390 = vmatprep.subr.bf16.mxu0 0
        %5391 = vmatpush1.bf16.msra.mxu0 %v5367
        %5392 = vmatprep.subr.bf16.mxu0 0
        %5393 = vmatpush1.bf16.msra.mxu0 0
        %5394 = vmatprep.subr.bf16.mxu0 0
        %5395 = vmatpush1.bf16.msra.mxu0 0
        %5396 = vmatprep.subr.bf16.mxu0 0
        %5397 = vmatpush1.bf16.msra.mxu0 0
        %5398 = vmatprep.subr.bf16.mxu0 0
        %5399 = vmatpush1.bf16.msra.mxu0 0
        %5400 = vmatprep.subr.bf16.mxu0 0
        %5401 = vmatpush1.bf16.msra.mxu0 0
        %5402 = vmatprep.subr.bf16.mxu0 0
        %5403 = vmatpush1.bf16.msra.mxu0 0
        %5404 = vmatprep.subr.bf16.mxu0 0
        %5405 = vmatpush1.bf16.msra.mxu0 0
        %5406 = vmatprep.subr.bf16.mxu0 0
        %5407 = vmatpush1.bf16.msra.mxu0 0
        %5408 = vmatprep.mubr.bf16.mxu0 0
        %5409 = vmatmul.mubr.bf16.gmra.mrb[0].mxu0 %v5327
        %v5410 = vpop.f32.mrb[0].mxu0
        %v5411 = vadd.f32 0.0, %v5410
        %v5412 = vpop.f32.mrb[0].mxu0
        %v5413 = vpop.f32.mrb[0].mxu0
        %v5414 = vpop.f32.mrb[0].mxu0
        %5415 = vdwg.mxu0
        %v5416 = vmul.f32 %v5411, 0.25
        %v5417 = vpack.c.bf16 %v3537, %v3537
        %v5434 = vunpack.c.l.b16 %v5295
        %v5435 = vunpack.c.h.b16 %v5295
        %v5436 = vunpack.c.l.b16 %v5296
        %v5437 = vunpack.c.h.b16 %v5296
        %v5438 = vunpack.c.l.b16 %v5297
        %v5439 = vunpack.c.h.b16 %v5297
        %v5440 = vunpack.c.l.b16 %v5298
        %v5441 = vunpack.c.h.b16 %v5298
        %v5442 = vunpack.c.l.b16 %v5299
        %v5443 = vunpack.c.h.b16 %v5299
        %v5444 = vunpack.c.l.b16 %v5300
        %v5445 = vunpack.c.h.b16 %v5300
        %v5446 = vunpack.c.l.b16 %v5301
        %v5447 = vunpack.c.h.b16 %v5301
        %v5448 = vunpack.c.l.b16 %v5302
        %v5449 = vunpack.c.h.b16 %v5302
        %v5450 = vunpack.c.l.b16 %v5303
        %v5451 = vunpack.c.h.b16 %v5303
        %v5452 = vunpack.c.l.b16 %v5304
        %v5453 = vunpack.c.h.b16 %v5304
        %v5454 = vunpack.c.l.b16 %v5305
        %v5455 = vunpack.c.h.b16 %v5305
        %v5456 = vunpack.c.l.b16 %v5306
        %v5457 = vunpack.c.h.b16 %v5306
        %v5458 = vunpack.c.l.b16 %v5307
        %v5459 = vunpack.c.h.b16 %v5307
        %v5460 = vunpack.c.l.b16 %v5308
        %v5461 = vunpack.c.h.b16 %v5308
        %v5462 = vunpack.c.l.b16 %v5309
        %v5463 = vunpack.c.h.b16 %v5309
        %v5464 = vunpack.c.l.b16 %v5310
        %v5465 = vunpack.c.h.b16 %v5310
        %v5466 = vpack.c.b16 %v5436, %v5434
        %v5467 = vpack.c.b16 %v5437, %v5435
        %v5468 = vpack.c.b16 %v5440, %v5438
        %v5469 = vpack.c.b16 %v5441, %v5439
        %v5470 = vpack.c.b16 %v5444, %v5442
        %v5471 = vpack.c.b16 %v5445, %v5443
        %v5472 = vpack.c.b16 %v5448, %v5446
        %v5473 = vpack.c.b16 %v5449, %v5447
        %v5474 = vpack.c.b16 %v5452, %v5450
        %v5475 = vpack.c.b16 %v5453, %v5451
        %v5476 = vpack.c.b16 %v5456, %v5454
        %v5477 = vpack.c.b16 %v5457, %v5455
        %v5478 = vpack.c.b16 %v5460, %v5458
        %v5479 = vpack.c.b16 %v5461, %v5459
        %v5480 = vpack.c.b16 %v5464, %v5462
        %v5481 = vpack.c.b16 %v5465, %v5463
        %5498 = vmatprep.subr.bf16.mxu0 %v5467
        %5499 = vmatpush1.bf16.msra.mxu0 %v5466
        %5500 = vmatprep.subr.bf16.mxu0 %v5469
        %5501 = vmatpush1.bf16.msra.mxu0 %v5468
        %5502 = vmatprep.subr.bf16.mxu0 %v5471
        %5503 = vmatpush1.bf16.msra.mxu0 %v5470
        %5504 = vmatprep.subr.bf16.mxu0 %v5473
        %5505 = vmatpush1.bf16.msra.mxu0 %v5472
        %5506 = vmatprep.subr.bf16.mxu0 %v5475
        %5507 = vmatpush1.bf16.msra.mxu0 %v5474
        %5508 = vmatprep.subr.bf16.mxu0 %v5477
        %5509 = vmatpush1.bf16.msra.mxu0 %v5476
        %5510 = vmatprep.subr.bf16.mxu0 %v5479
        %5511 = vmatpush1.bf16.msra.mxu0 %v5478
        %5512 = vmatprep.subr.bf16.mxu0 %v5481
        %5513 = vmatpush1.bf16.msra.mxu0 %v5480
        %5514 = vmatprep.subr.bf16.mxu0 0
        %5515 = vmatpush1.bf16.msra.mxu0 0
        %5516 = vmatprep.subr.bf16.mxu0 0
        %5517 = vmatpush1.bf16.msra.mxu0 0
        %5518 = vmatprep.subr.bf16.mxu0 0
        %5519 = vmatpush1.bf16.msra.mxu0 0
        %5520 = vmatprep.subr.bf16.mxu0 0
        %5521 = vmatpush1.bf16.msra.mxu0 0
        %5522 = vmatprep.subr.bf16.mxu0 0
        %5523 = vmatpush1.bf16.msra.mxu0 0
        %5524 = vmatprep.subr.bf16.mxu0 0
        %5525 = vmatpush1.bf16.msra.mxu0 0
        %5526 = vmatprep.subr.bf16.mxu0 0
        %5527 = vmatpush1.bf16.msra.mxu0 0
        %5528 = vmatprep.subr.bf16.mxu0 0
        %5529 = vmatpush1.bf16.msra.mxu0 0
        %5530 = vmatprep.mubr.bf16.mxu0 0
        %5531 = vmatmul.mubr.bf16.gmra.mrb[0].mxu0 %v5417
        %v5532 = vpop.f32.mrb[0].mxu0
        %v5533 = vadd.f32 0.0, %v5532
        %v5534 = vpop.f32.mrb[0].mxu0
        %v5535 = vadd.f32 0.0, %v5534
        %v5536 = vpop.f32.mrb[0].mxu0
        %v5537 = vpop.f32.mrb[0].mxu0
        %5538 = vdwg.mxu0
        %v5540 = vsel %vm1705, %v5416, 0
        %v5543 = vsel %vm1705, %v5533, 0
        %5545 = vmatprep.subr.mxu0 0.0
        %5546 = vmatpush1.xpose.msra.mxu0 %v5543
        %5547 = vmatprep.subr.mxu0 0.0
        %5548 = vmatpush1.xpose.msra.mxu0 0.0
        %5549 = vmatprep.subr.mxu0 0.0
        %5550 = vmatpush1.xpose.msra.mxu0 0.0
        %5551 = vmatprep.subr.mxu0 0.0
        %5552 = vmatpush1.xpose.msra.mxu0 0.0
        %5553 = vmatprep.subr.mxu0 0.0
        %5554 = vmatpush1.xpose.msra.mxu0 0.0
        %5555 = vmatprep.subr.mxu0 0.0
        %5556 = vmatpush1.xpose.msra.mxu0 0.0
        %5557 = vmatprep.subr.mxu0 0.0
        %5558 = vmatpush1.xpose.msra.mxu0 0.0
        %5559 = vmatprep.subr.mxu0 0.0
        %5560 = vmatpush1.xpose.msra.mxu0 0.0
        %5561 = vmatprep.subr.mxu0 0.0
        %5562 = vmatpush1.xpose.msra.mxu0 0.0
        %5563 = vmatprep.subr.mxu0 0.0
        %5564 = vmatpush1.xpose.msra.mxu0 0.0
        %5565 = vmatprep.subr.mxu0 0.0
        %5566 = vmatpush1.xpose.msra.mxu0 0.0
        %5567 = vmatprep.subr.mxu0 0.0
        %5568 = vmatpush1.xpose.msra.mxu0 0.0
        %5569 = vmatprep.subr.mxu0 0.0
        %5570 = vmatpush1.xpose.msra.mxu0 0.0
        %5571 = vmatprep.subr.mxu0 0.0
        %5572 = vmatpush1.xpose.msra.mxu0 0.0
        %5573 = vmatprep.subr.mxu0 0.0
        %5574 = vmatpush1.xpose.msra.mxu0 0.0
        %5575 = vmatprep.subr.mxu0 0.0
        %5576 = vmatpush1.xpose.msra.mxu0 0.0
        %5577 = vmatprep.subr.mxu0 0.0
        %5578 = vmatpush1.xpose.msra.mxu0 0.0
        %5579 = vmatprep.subr.mxu0 0.0
        %5580 = vmatpush1.xpose.msra.mxu0 0.0
        %5581 = vmatprep.subr.mxu0 0.0
        %5582 = vmatpush1.xpose.msra.mxu0 0.0
        %5583 = vmatprep.subr.mxu0 0.0
        %5584 = vmatpush1.xpose.msra.mxu0 0.0
        %5585 = vmatprep.subr.mxu0 0.0
        %5586 = vmatpush1.xpose.msra.mxu0 0.0
        %5587 = vmatprep.subr.mxu0 0.0
        %5588 = vmatpush1.xpose.msra.mxu0 0.0
        %5589 = vmatprep.subr.mxu0 0.0
        %5590 = vmatpush1.xpose.msra.mxu0 0.0
        %5591 = vmatprep.subr.mxu0 0.0
        %5592 = vmatpush1.xpose.msra.mxu0 0.0
        %5593 = vmatprep.subr.mxu0 0.0
        %5594 = vmatpush1.xpose.msra.mxu0 0.0
        %5595 = vmatprep.subr.mxu0 0.0
        %5596 = vmatpush1.xpose.msra.mxu0 0.0
        %5597 = vmatprep.subr.mxu0 0.0
        %5598 = vmatpush1.xpose.msra.mxu0 0.0
        %5599 = vmatprep.subr.mxu0 0.0
        %5600 = vmatpush1.xpose.msra.mxu0 0.0
        %5601 = vmatprep.subr.mxu0 0.0
        %5602 = vmatpush1.xpose.msra.mxu0 0.0
        %5603 = vmatprep.subr.mxu0 0.0
        %5604 = vmatpush1.xpose.msra.mxu0 0.0
        %5605 = vmatprep.subr.mxu0 0.0
        %5606 = vmatpush1.xpose.msra.mxu0 0.0
        %5607 = vmatprep.subr.mxu0 0.0
        %5608 = vmatpush1.xpose.msra.mxu0 0.0
        %5609 = vmatprep.mubr.f32.mxu0 0.0
        %5610 = vmatmul.mubr.f32.gmra.mrb[0].mxu0 %v5540
        %v5611 = vpop.f32.mrb[0].mxu0
        %v5612 = vadd.f32 0.0, %v5611
        %v5613 = vpop.f32.mrb[0].mxu0
        %5614 = vdwg.mxu0
        %v5615 = vsel %vm1782, %v5612, -inf
        %5616 = vmax.xlane.f32.xlu0 %v5615
        %v5617 = vpop.xlane.xlu0 %5616
        %v5618 = vsub.f32 %v5612, %v5617
        %v5619 = vmul.f32 %v5618, 1.442695
        %v5620 = vpow.pop %v5619
        %v5621 = vsel %vm1782, %v5620, 0.0
        %5622 = vadd.xlane.f32.xlu0 %v5621
        %v5623 = vpop.xlane.xlu0 %5622
        %v5624 = vrcp.pop %v5623
        %v5625 = vmul.f32 %v5620, %v5624
        %v5627 = vsel %vm1782, %v5625, 0
        %5629 = vmatprep.subr.mxu0 0.0
        %5630 = vmatpush1.msra.mxu0 %v5535
        %5631 = vmatprep.subr.mxu0 0.0
        %5632 = vmatpush1.msra.mxu0 0.0
        %5633 = vmatprep.subr.mxu0 0.0
        %5634 = vmatpush1.msra.mxu0 0.0
        %5635 = vmatprep.subr.mxu0 0.0
        %5636 = vmatpush1.msra.mxu0 0.0
        %5637 = vmatprep.subr.mxu0 0.0
        %5638 = vmatpush1.msra.mxu0 0.0
        %5639 = vmatprep.subr.mxu0 0.0
        %5640 = vmatpush1.msra.mxu0 0.0
        %5641 = vmatprep.subr.mxu0 0.0
        %5642 = vmatpush1.msra.mxu0 0.0
        %5643 = vmatprep.subr.mxu0 0.0
        %5644 = vmatpush1.msra.mxu0 0.0
        %5645 = vmatprep.subr.mxu0 0.0
        %5646 = vmatpush1.msra.mxu0 0.0
        %5647 = vmatprep.subr.mxu0 0.0
        %5648 = vmatpush1.msra.mxu0 0.0
        %5649 = vmatprep.subr.mxu0 0.0
        %5650 = vmatpush1.msra.mxu0 0.0
        %5651 = vmatprep.subr.mxu0 0.0
        %5652 = vmatpush1.msra.mxu0 0.0
        %5653 = vmatprep.subr.mxu0 0.0
        %5654 = vmatpush1.msra.mxu0 0.0
        %5655 = vmatprep.subr.mxu0 0.0
        %5656 = vmatpush1.msra.mxu0 0.0
        %5657 = vmatprep.subr.mxu0 0.0
        %5658 = vmatpush1.msra.mxu0 0.0
        %5659 = vmatprep.subr.mxu0 0.0
        %5660 = vmatpush1.msra.mxu0 0.0
        %5661 = vmatprep.subr.mxu0 0.0
        %5662 = vmatpush1.msra.mxu0 0.0
        %5663 = vmatprep.subr.mxu0 0.0
        %5664 = vmatpush1.msra.mxu0 0.0
        %5665 = vmatprep.subr.mxu0 0.0
        %5666 = vmatpush1.msra.mxu0 0.0
        %5667 = vmatprep.subr.mxu0 0.0
        %5668 = vmatpush1.msra.mxu0 0.0
        %5669 = vmatprep.subr.mxu0 0.0
        %5670 = vmatpush1.msra.mxu0 0.0
        %5671 = vmatprep.subr.mxu0 0.0
        %5672 = vmatpush1.msra.mxu0 0.0
        %5673 = vmatprep.subr.mxu0 0.0
        %5674 = vmatpush1.msra.mxu0 0.0
        %5675 = vmatprep.subr.mxu0 0.0
        %5676 = vmatpush1.msra.mxu0 0.0
        %5677 = vmatprep.subr.mxu0 0.0
        %5678 = vmatpush1.msra.mxu0 0.0
        %5679 = vmatprep.subr.mxu0 0.0
        %5680 = vmatpush1.msra.mxu0 0.0
        %5681 = vmatprep.subr.mxu0 0.0
        %5682 = vmatpush1.msra.mxu0 0.0
        %5683 = vmatprep.subr.mxu0 0.0
        %5684 = vmatpush1.msra.mxu0 0.0
        %5685 = vmatprep.subr.mxu0 0.0
        %5686 = vmatpush1.msra.mxu0 0.0
        %5687 = vmatprep.subr.mxu0 0.0
        %5688 = vmatpush1.msra.mxu0 0.0
        %5689 = vmatprep.subr.mxu0 0.0
        %5690 = vmatpush1.msra.mxu0 0.0
        %5691 = vmatprep.subr.mxu0 0.0
        %5692 = vmatpush1.msra.mxu0 0.0
        %5693 = vmatprep.mubr.f32.mxu0 0.0
        %5694 = vmatmul.mubr.f32.gmra.mrb[0].mxu0 %v5627
        %v5695 = vpop.f32.mrb[0].mxu0
        %v5696 = vadd.f32 0.0, %v5695
        %v5697 = vpop.f32.mrb[0].mxu0
        %5698 = vdwg.mxu0
        %5699 = vrot.lane.b32.xlu0 %v5416, 112
        %v5700 = vpop.permute.xlu0 %5699
        %5701 = vrot.lane.b32.xlu0 %v5533, 112
        %v5702 = vpop.permute.xlu0 %5701
        %v5703 = vsel %vm1705, %v5700, 0
        %v5705 = vsel %vm1705, %v5702, 0
        %5707 = vmatprep.subr.mxu0 0.0
        %5708 = vmatpush1.xpose.msra.mxu0 %v5705
        %5709 = vmatprep.subr.mxu0 0.0
        %5710 = vmatpush1.xpose.msra.mxu0 0.0
        %5711 = vmatprep.subr.mxu0 0.0
        %5712 = vmatpush1.xpose.msra.mxu0 0.0
        %5713 = vmatprep.subr.mxu0 0.0
        %5714 = vmatpush1.xpose.msra.mxu0 0.0
        %5715 = vmatprep.subr.mxu0 0.0
        %5716 = vmatpush1.xpose.msra.mxu0 0.0
        %5717 = vmatprep.subr.mxu0 0.0
        %5718 = vmatpush1.xpose.msra.mxu0 0.0
        %5719 = vmatprep.subr.mxu0 0.0
        %5720 = vmatpush1.xpose.msra.mxu0 0.0
        %5721 = vmatprep.subr.mxu0 0.0
        %5722 = vmatpush1.xpose.msra.mxu0 0.0
        %5723 = vmatprep.subr.mxu0 0.0
        %5724 = vmatpush1.xpose.msra.mxu0 0.0
        %5725 = vmatprep.subr.mxu0 0.0
        %5726 = vmatpush1.xpose.msra.mxu0 0.0
        %5727 = vmatprep.subr.mxu0 0.0
        %5728 = vmatpush1.xpose.msra.mxu0 0.0
        %5729 = vmatprep.subr.mxu0 0.0
        %5730 = vmatpush1.xpose.msra.mxu0 0.0
        %5731 = vmatprep.subr.mxu0 0.0
        %5732 = vmatpush1.xpose.msra.mxu0 0.0
        %5733 = vmatprep.subr.mxu0 0.0
        %5734 = vmatpush1.xpose.msra.mxu0 0.0
        %5735 = vmatprep.subr.mxu0 0.0
        %5736 = vmatpush1.xpose.msra.mxu0 0.0
        %5737 = vmatprep.subr.mxu0 0.0
        %5738 = vmatpush1.xpose.msra.mxu0 0.0
        %5739 = vmatprep.subr.mxu0 0.0
        %5740 = vmatpush1.xpose.msra.mxu0 0.0
        %5741 = vmatprep.subr.mxu0 0.0
        %5742 = vmatpush1.xpose.msra.mxu0 0.0
        %5743 = vmatprep.subr.mxu0 0.0
        %5744 = vmatpush1.xpose.msra.mxu0 0.0
        %5745 = vmatprep.subr.mxu0 0.0
        %5746 = vmatpush1.xpose.msra.mxu0 0.0
        %5747 = vmatprep.subr.mxu0 0.0
        %5748 = vmatpush1.xpose.msra.mxu0 0.0
        %5749 = vmatprep.subr.mxu0 0.0
        %5750 = vmatpush1.xpose.msra.mxu0 0.0
        %5751 = vmatprep.subr.mxu0 0.0
        %5752 = vmatpush1.xpose.msra.mxu0 0.0
        %5753 = vmatprep.subr.mxu0 0.0
        %5754 = vmatpush1.xpose.msra.mxu0 0.0
        %5755 = vmatprep.subr.mxu0 0.0
        %5756 = vmatpush1.xpose.msra.mxu0 0.0
        %5757 = vmatprep.subr.mxu0 0.0
        %5758 = vmatpush1.xpose.msra.mxu0 0.0
        %5759 = vmatprep.subr.mxu0 0.0
        %5760 = vmatpush1.xpose.msra.mxu0 0.0
        %5761 = vmatprep.subr.mxu0 0.0
        %5762 = vmatpush1.xpose.msra.mxu0 0.0
        %5763 = vmatprep.subr.mxu0 0.0
        %5764 = vmatpush1.xpose.msra.mxu0 0.0
        %5765 = vmatprep.subr.mxu0 0.0
        %5766 = vmatpush1.xpose.msra.mxu0 0.0
        %5767 = vmatprep.subr.mxu0 0.0
        %5768 = vmatpush1.xpose.msra.mxu0 0.0
        %5769 = vmatprep.subr.mxu0 0.0
        %5770 = vmatpush1.xpose.msra.mxu0 0.0
        %5771 = vmatprep.mubr.f32.mxu0 0.0
        %5772 = vmatmul.mubr.f32.gmra.mrb[0].mxu0 %v5703
        %v5773 = vpop.f32.mrb[0].mxu0
        %v5774 = vadd.f32 0.0, %v5773
        %v5775 = vpop.f32.mrb[0].mxu0
        %5776 = vdwg.mxu0
        %v5777 = vsel %vm1782, %v5774, -inf
        %5778 = vmax.xlane.f32.xlu0 %v5777
        %v5779 = vpop.xlane.xlu0 %5778
        %v5780 = vsub.f32 %v5774, %v5779
        %v5781 = vmul.f32 %v5780, 1.442695
        %v5782 = vpow.pop %v5781
        %v5783 = vsel %vm1782, %v5782, 0.0
        %5784 = vadd.xlane.f32.xlu0 %v5783
        %v5785 = vpop.xlane.xlu0 %5784
        %v5786 = vrcp.pop %v5785
        %v5787 = vmul.f32 %v5782, %v5786
        %5789 = vrot.lane.b32.xlu0 %v5535, 112
        %v5790 = vpop.permute.xlu0 %5789
        %v5793 = vsel %vm1782, %v5787, 0
        %5795 = vmatprep.subr.mxu0 0.0
        %5796 = vmatpush1.msra.mxu0 %v5790
        %5797 = vmatprep.subr.mxu0 0.0
        %5798 = vmatpush1.msra.mxu0 0.0
        %5799 = vmatprep.subr.mxu0 0.0
        %5800 = vmatpush1.msra.mxu0 0.0
        %5801 = vmatprep.subr.mxu0 0.0
        %5802 = vmatpush1.msra.mxu0 0.0
        %5803 = vmatprep.subr.mxu0 0.0
        %5804 = vmatpush1.msra.mxu0 0.0
        %5805 = vmatprep.subr.mxu0 0.0
        %5806 = vmatpush1.msra.mxu0 0.0
        %5807 = vmatprep.subr.mxu0 0.0
        %5808 = vmatpush1.msra.mxu0 0.0
        %5809 = vmatprep.subr.mxu0 0.0
        %5810 = vmatpush1.msra.mxu0 0.0
        %5811 = vmatprep.subr.mxu0 0.0
        %5812 = vmatpush1.msra.mxu0 0.0
        %5813 = vmatprep.subr.mxu0 0.0
        %5814 = vmatpush1.msra.mxu0 0.0
        %5815 = vmatprep.subr.mxu0 0.0
        %5816 = vmatpush1.msra.mxu0 0.0
        %5817 = vmatprep.subr.mxu0 0.0
        %5818 = vmatpush1.msra.mxu0 0.0
        %5819 = vmatprep.subr.mxu0 0.0
        %5820 = vmatpush1.msra.mxu0 0.0
        %5821 = vmatprep.subr.mxu0 0.0
        %5822 = vmatpush1.msra.mxu0 0.0
        %5823 = vmatprep.subr.mxu0 0.0
        %5824 = vmatpush1.msra.mxu0 0.0
        %5825 = vmatprep.subr.mxu0 0.0
        %5826 = vmatpush1.msra.mxu0 0.0
        %5827 = vmatprep.subr.mxu0 0.0
        %5828 = vmatpush1.msra.mxu0 0.0
        %5829 = vmatprep.subr.mxu0 0.0
        %5830 = vmatpush1.msra.mxu0 0.0
        %5831 = vmatprep.subr.mxu0 0.0
        %5832 = vmatpush1.msra.mxu0 0.0
        %5833 = vmatprep.subr.mxu0 0.0
        %5834 = vmatpush1.msra.mxu0 0.0
        %5835 = vmatprep.subr.mxu0 0.0
        %5836 = vmatpush1.msra.mxu0 0.0
        %5837 = vmatprep.subr.mxu0 0.0
        %5838 = vmatpush1.msra.mxu0 0.0
        %5839 = vmatprep.subr.mxu0 0.0
        %5840 = vmatpush1.msra.mxu0 0.0
        %5841 = vmatprep.subr.mxu0 0.0
        %5842 = vmatpush1.msra.mxu0 0.0
        %5843 = vmatprep.subr.mxu0 0.0
        %5844 = vmatpush1.msra.mxu0 0.0
        %5845 = vmatprep.subr.mxu0 0.0
        %5846 = vmatpush1.msra.mxu0 0.0
        %5847 = vmatprep.subr.mxu0 0.0
        %5848 = vmatpush1.msra.mxu0 0.0
        %5849 = vmatprep.subr.mxu0 0.0
        %5850 = vmatpush1.msra.mxu0 0.0
        %5851 = vmatprep.subr.mxu0 0.0
        %5852 = vmatpush1.msra.mxu0 0.0
        %5853 = vmatprep.subr.mxu0 0.0
        %5854 = vmatpush1.msra.mxu0 0.0
        %5855 = vmatprep.subr.mxu0 0.0
        %5856 = vmatpush1.msra.mxu0 0.0
        %5857 = vmatprep.subr.mxu0 0.0
        %5858 = vmatpush1.msra.mxu0 0.0
        %5859 = vmatprep.mubr.f32.mxu0 0.0
        %5860 = vmatmul.mubr.f32.gmra.mrb[0].mxu0 %v5793
        %v5861 = vpop.f32.mrb[0].mxu0
        %v5862 = vadd.f32 0.0, %v5861
        %v5863 = vpop.f32.mrb[0].mxu0
        %5864 = vdwg.mxu0
        %5865 = vrot.lane.b32.xlu0 %v5416, 96
        %v5866 = vpop.permute.xlu0 %5865
        %5867 = vrot.lane.b32.xlu0 %v5533, 96
        %v5868 = vpop.permute.xlu0 %5867
        %v5869 = vsel %vm1705, %v5866, 0
        %v5871 = vsel %vm1705, %v5868, 0
        %5873 = vmatprep.subr.mxu0 0.0
        %5874 = vmatpush1.xpose.msra.mxu0 %v5871
        %5875 = vmatprep.subr.mxu0 0.0
        %5876 = vmatpush1.xpose.msra.mxu0 0.0
        %5877 = vmatprep.subr.mxu0 0.0
        %5878 = vmatpush1.xpose.msra.mxu0 0.0
        %5879 = vmatprep.subr.mxu0 0.0
        %5880 = vmatpush1.xpose.msra.mxu0 0.0
        %5881 = vmatprep.subr.mxu0 0.0
        %5882 = vmatpush1.xpose.msra.mxu0 0.0
        %5883 = vmatprep.subr.mxu0 0.0
        %5884 = vmatpush1.xpose.msra.mxu0 0.0
        %5885 = vmatprep.subr.mxu0 0.0
        %5886 = vmatpush1.xpose.msra.mxu0 0.0
        %5887 = vmatprep.subr.mxu0 0.0
        %5888 = vmatpush1.xpose.msra.mxu0 0.0
        %5889 = vmatprep.subr.mxu0 0.0
        %5890 = vmatpush1.xpose.msra.mxu0 0.0
        %5891 = vmatprep.subr.mxu0 0.0
        %5892 = vmatpush1.xpose.msra.mxu0 0.0
        %5893 = vmatprep.subr.mxu0 0.0
        %5894 = vmatpush1.xpose.msra.mxu0 0.0
        %5895 = vmatprep.subr.mxu0 0.0
        %5896 = vmatpush1.xpose.msra.mxu0 0.0
        %5897 = vmatprep.subr.mxu0 0.0
        %5898 = vmatpush1.xpose.msra.mxu0 0.0
        %5899 = vmatprep.subr.mxu0 0.0
        %5900 = vmatpush1.xpose.msra.mxu0 0.0
        %5901 = vmatprep.subr.mxu0 0.0
        %5902 = vmatpush1.xpose.msra.mxu0 0.0
        %5903 = vmatprep.subr.mxu0 0.0
        %5904 = vmatpush1.xpose.msra.mxu0 0.0
        %5905 = vmatprep.subr.mxu0 0.0
        %5906 = vmatpush1.xpose.msra.mxu0 0.0
        %5907 = vmatprep.subr.mxu0 0.0
        %5908 = vmatpush1.xpose.msra.mxu0 0.0
        %5909 = vmatprep.subr.mxu0 0.0
        %5910 = vmatpush1.xpose.msra.mxu0 0.0
        %5911 = vmatprep.subr.mxu0 0.0
        %5912 = vmatpush1.xpose.msra.mxu0 0.0
        %5913 = vmatprep.subr.mxu0 0.0
        %5914 = vmatpush1.xpose.msra.mxu0 0.0
        %5915 = vmatprep.subr.mxu0 0.0
        %5916 = vmatpush1.xpose.msra.mxu0 0.0
        %5917 = vmatprep.subr.mxu0 0.0
        %5918 = vmatpush1.xpose.msra.mxu0 0.0
        %5919 = vmatprep.subr.mxu0 0.0
        %5920 = vmatpush1.xpose.msra.mxu0 0.0
        %5921 = vmatprep.subr.mxu0 0.0
        %5922 = vmatpush1.xpose.msra.mxu0 0.0
        %5923 = vmatprep.subr.mxu0 0.0
        %5924 = vmatpush1.xpose.msra.mxu0 0.0
        %5925 = vmatprep.subr.mxu0 0.0
        %5926 = vmatpush1.xpose.msra.mxu0 0.0
        %5927 = vmatprep.subr.mxu0 0.0
        %5928 = vmatpush1.xpose.msra.mxu0 0.0
        %5929 = vmatprep.subr.mxu0 0.0
        %5930 = vmatpush1.xpose.msra.mxu0 0.0
        %5931 = vmatprep.subr.mxu0 0.0
        %5932 = vmatpush1.xpose.msra.mxu0 0.0
        %5933 = vmatprep.subr.mxu0 0.0
        %5934 = vmatpush1.xpose.msra.mxu0 0.0
        %5935 = vmatprep.subr.mxu0 0.0
        %5936 = vmatpush1.xpose.msra.mxu0 0.0
        %5937 = vmatprep.mubr.f32.mxu0 0.0
        %5938 = vmatmul.mubr.f32.gmra.mrb[0].mxu0 %v5869
        %v5939 = vpop.f32.mrb[0].mxu0
        %v5940 = vadd.f32 0.0, %v5939
        %v5941 = vpop.f32.mrb[0].mxu0
        %5942 = vdwg.mxu0
        %v5943 = vsel %vm1782, %v5940, -inf
        %5944 = vmax.xlane.f32.xlu0 %v5943
        %v5945 = vpop.xlane.xlu0 %5944
        %v5946 = vsub.f32 %v5940, %v5945
        %v5947 = vmul.f32 %v5946, 1.442695
        %v5948 = vpow.pop %v5947
        %v5949 = vsel %vm1782, %v5948, 0.0
        %5950 = vadd.xlane.f32.xlu0 %v5949
        %v5951 = vpop.xlane.xlu0 %5950
        %v5952 = vrcp.pop %v5951
        %v5953 = vmul.f32 %v5948, %v5952
        %5954 = vrot.lane.b32.xlu0 %v5535, 96
        %v5955 = vpop.permute.xlu0 %5954
        %v5958 = vsel %vm1782, %v5953, 0
        %5960 = vmatprep.subr.mxu0 0.0
        %5961 = vmatpush1.msra.mxu0 %v5955
        %5962 = vmatprep.subr.mxu0 0.0
        %5963 = vmatpush1.msra.mxu0 0.0
        %5964 = vmatprep.subr.mxu0 0.0
        %5965 = vmatpush1.msra.mxu0 0.0
        %5966 = vmatprep.subr.mxu0 0.0
        %5967 = vmatpush1.msra.mxu0 0.0
        %5968 = vmatprep.subr.mxu0 0.0
        %5969 = vmatpush1.msra.mxu0 0.0
        %5970 = vmatprep.subr.mxu0 0.0
        %5971 = vmatpush1.msra.mxu0 0.0
        %5972 = vmatprep.subr.mxu0 0.0
        %5973 = vmatpush1.msra.mxu0 0.0
        %5974 = vmatprep.subr.mxu0 0.0
        %5975 = vmatpush1.msra.mxu0 0.0
        %5976 = vmatprep.subr.mxu0 0.0
        %5977 = vmatpush1.msra.mxu0 0.0
        %5978 = vmatprep.subr.mxu0 0.0
        %5979 = vmatpush1.msra.mxu0 0.0
        %5980 = vmatprep.subr.mxu0 0.0
        %5981 = vmatpush1.msra.mxu0 0.0
        %5982 = vmatprep.subr.mxu0 0.0
        %5983 = vmatpush1.msra.mxu0 0.0
        %5984 = vmatprep.subr.mxu0 0.0
        %5985 = vmatpush1.msra.mxu0 0.0
        %5986 = vmatprep.subr.mxu0 0.0
        %5987 = vmatpush1.msra.mxu0 0.0
        %5988 = vmatprep.subr.mxu0 0.0
        %5989 = vmatpush1.msra.mxu0 0.0
        %5990 = vmatprep.subr.mxu0 0.0
        %5991 = vmatpush1.msra.mxu0 0.0
        %5992 = vmatprep.subr.mxu0 0.0
        %5993 = vmatpush1.msra.mxu0 0.0
        %5994 = vmatprep.subr.mxu0 0.0
        %5995 = vmatpush1.msra.mxu0 0.0
        %5996 = vmatprep.subr.mxu0 0.0
        %5997 = vmatpush1.msra.mxu0 0.0
        %5998 = vmatprep.subr.mxu0 0.0
        %5999 = vmatpush1.msra.mxu0 0.0
        %6000 = vmatprep.subr.mxu0 0.0
        %6001 = vmatpush1.msra.mxu0 0.0
        %6002 = vmatprep.subr.mxu0 0.0
        %6003 = vmatpush1.msra.mxu0 0.0
        %6004 = vmatprep.subr.mxu0 0.0
        %6005 = vmatpush1.msra.mxu0 0.0
        %6006 = vmatprep.subr.mxu0 0.0
        %6007 = vmatpush1.msra.mxu0 0.0
        %6008 = vmatprep.subr.mxu0 0.0
        %6009 = vmatpush1.msra.mxu0 0.0
        %6010 = vmatprep.subr.mxu0 0.0
        %6011 = vmatpush1.msra.mxu0 0.0
        %6012 = vmatprep.subr.mxu0 0.0
        %6013 = vmatpush1.msra.mxu0 0.0
        %6014 = vmatprep.subr.mxu0 0.0
        %6015 = vmatpush1.msra.mxu0 0.0
        %6016 = vmatprep.subr.mxu0 0.0
        %6017 = vmatpush1.msra.mxu0 0.0
        %6018 = vmatprep.subr.mxu0 0.0
        %6019 = vmatpush1.msra.mxu0 0.0
        %6020 = vmatprep.subr.mxu0 0.0
        %6021 = vmatpush1.msra.mxu0 0.0
        %6022 = vmatprep.subr.mxu0 0.0
        %6023 = vmatpush1.msra.mxu0 0.0
        %6024 = vmatprep.mubr.f32.mxu0 0.0
        %6025 = vmatmul.mubr.f32.gmra.mrb[0].mxu0 %v5958
        %v6026 = vpop.f32.mrb[0].mxu0
        %v6027 = vadd.f32 0.0, %v6026
        %v6028 = vpop.f32.mrb[0].mxu0
        %6029 = vdwg.mxu0
        %6030 = vrot.lane.b32.xlu0 %v5416, 80
        %v6031 = vpop.permute.xlu0 %6030
        %6032 = vrot.lane.b32.xlu0 %v5533, 80
        %v6033 = vpop.permute.xlu0 %6032
        %v6034 = vsel %vm1705, %v6031, 0
        %v6036 = vsel %vm1705, %v6033, 0
        %6038 = vmatprep.subr.mxu0 0.0
        %6039 = vmatpush1.xpose.msra.mxu0 %v6036
        %6040 = vmatprep.subr.mxu0 0.0
        %6041 = vmatpush1.xpose.msra.mxu0 0.0
        %6042 = vmatprep.subr.mxu0 0.0
        %6043 = vmatpush1.xpose.msra.mxu0 0.0
        %6044 = vmatprep.subr.mxu0 0.0
        %6045 = vmatpush1.xpose.msra.mxu0 0.0
        %6046 = vmatprep.subr.mxu0 0.0
        %6047 = vmatpush1.xpose.msra.mxu0 0.0
        %6048 = vmatprep.subr.mxu0 0.0
        %6049 = vmatpush1.xpose.msra.mxu0 0.0
        %6050 = vmatprep.subr.mxu0 0.0
        %6051 = vmatpush1.xpose.msra.mxu0 0.0
        %6052 = vmatprep.subr.mxu0 0.0
        %6053 = vmatpush1.xpose.msra.mxu0 0.0
        %6054 = vmatprep.subr.mxu0 0.0
        %6055 = vmatpush1.xpose.msra.mxu0 0.0
        %6056 = vmatprep.subr.mxu0 0.0
        %6057 = vmatpush1.xpose.msra.mxu0 0.0
        %6058 = vmatprep.subr.mxu0 0.0
        %6059 = vmatpush1.xpose.msra.mxu0 0.0
        %6060 = vmatprep.subr.mxu0 0.0
        %6061 = vmatpush1.xpose.msra.mxu0 0.0
        %6062 = vmatprep.subr.mxu0 0.0
        %6063 = vmatpush1.xpose.msra.mxu0 0.0
        %6064 = vmatprep.subr.mxu0 0.0
        %6065 = vmatpush1.xpose.msra.mxu0 0.0
        %6066 = vmatprep.subr.mxu0 0.0
        %6067 = vmatpush1.xpose.msra.mxu0 0.0
        %6068 = vmatprep.subr.mxu0 0.0
        %6069 = vmatpush1.xpose.msra.mxu0 0.0
        %6070 = vmatprep.subr.mxu0 0.0
        %6071 = vmatpush1.xpose.msra.mxu0 0.0
        %6072 = vmatprep.subr.mxu0 0.0
        %6073 = vmatpush1.xpose.msra.mxu0 0.0
        %6074 = vmatprep.subr.mxu0 0.0
        %6075 = vmatpush1.xpose.msra.mxu0 0.0
        %6076 = vmatprep.subr.mxu0 0.0
        %6077 = vmatpush1.xpose.msra.mxu0 0.0
        %6078 = vmatprep.subr.mxu0 0.0
        %6079 = vmatpush1.xpose.msra.mxu0 0.0
        %6080 = vmatprep.subr.mxu0 0.0
        %6081 = vmatpush1.xpose.msra.mxu0 0.0
        %6082 = vmatprep.subr.mxu0 0.0
        %6083 = vmatpush1.xpose.msra.mxu0 0.0
        %6084 = vmatprep.subr.mxu0 0.0
        %6085 = vmatpush1.xpose.msra.mxu0 0.0
        %6086 = vmatprep.subr.mxu0 0.0
        %6087 = vmatpush1.xpose.msra.mxu0 0.0
        %6088 = vmatprep.subr.mxu0 0.0
        %6089 = vmatpush1.xpose.msra.mxu0 0.0
        %6090 = vmatprep.subr.mxu0 0.0
        %6091 = vmatpush1.xpose.msra.mxu0 0.0
        %6092 = vmatprep.subr.mxu0 0.0
        %6093 = vmatpush1.xpose.msra.mxu0 0.0
        %6094 = vmatprep.subr.mxu0 0.0
        %6095 = vmatpush1.xpose.msra.mxu0 0.0
        %6096 = vmatprep.subr.mxu0 0.0
        %6097 = vmatpush1.xpose.msra.mxu0 0.0
        %6098 = vmatprep.subr.mxu0 0.0
        %6099 = vmatpush1.xpose.msra.mxu0 0.0
        %6100 = vmatprep.subr.mxu0 0.0
        %6101 = vmatpush1.xpose.msra.mxu0 0.0
        %6102 = vmatprep.mubr.f32.mxu0 0.0
        %6103 = vmatmul.mubr.f32.gmra.mrb[0].mxu0 %v6034
        %v6104 = vpop.f32.mrb[0].mxu0
        %v6105 = vadd.f32 0.0, %v6104
        %v6106 = vpop.f32.mrb[0].mxu0
        %6107 = vdwg.mxu0
        %v6108 = vsel %vm1782, %v6105, -inf
        %6109 = vmax.xlane.f32.xlu0 %v6108
        %v6110 = vpop.xlane.xlu0 %6109
        %v6111 = vsub.f32 %v6105, %v6110
        %v6112 = vmul.f32 %v6111, 1.442695
        %v6113 = vpow.pop %v6112
        %v6114 = vsel %vm1782, %v6113, 0.0
        %6115 = vadd.xlane.f32.xlu0 %v6114
        %v6116 = vpop.xlane.xlu0 %6115
        %v6117 = vrcp.pop %v6116
        %v6118 = vmul.f32 %v6113, %v6117
        %6119 = vrot.lane.b32.xlu0 %v5535, 80
        %v6120 = vpop.permute.xlu0 %6119
        %v6123 = vsel %vm1782, %v6118, 0
        %6125 = vmatprep.subr.mxu0 0.0
        %6126 = vmatpush1.msra.mxu0 %v6120
        %6127 = vmatprep.subr.mxu0 0.0
        %6128 = vmatpush1.msra.mxu0 0.0
        %6129 = vmatprep.subr.mxu0 0.0
        %6130 = vmatpush1.msra.mxu0 0.0
        %6131 = vmatprep.subr.mxu0 0.0
        %6132 = vmatpush1.msra.mxu0 0.0
        %6133 = vmatprep.subr.mxu0 0.0
        %6134 = vmatpush1.msra.mxu0 0.0
        %6135 = vmatprep.subr.mxu0 0.0
        %6136 = vmatpush1.msra.mxu0 0.0
        %6137 = vmatprep.subr.mxu0 0.0
        %6138 = vmatpush1.msra.mxu0 0.0
        %6139 = vmatprep.subr.mxu0 0.0
        %6140 = vmatpush1.msra.mxu0 0.0
        %6141 = vmatprep.subr.mxu0 0.0
        %6142 = vmatpush1.msra.mxu0 0.0
        %6143 = vmatprep.subr.mxu0 0.0
        %6144 = vmatpush1.msra.mxu0 0.0
        %6145 = vmatprep.subr.mxu0 0.0
        %6146 = vmatpush1.msra.mxu0 0.0
        %6147 = vmatprep.subr.mxu0 0.0
        %6148 = vmatpush1.msra.mxu0 0.0
        %6149 = vmatprep.subr.mxu0 0.0
        %6150 = vmatpush1.msra.mxu0 0.0
        %6151 = vmatprep.subr.mxu0 0.0
        %6152 = vmatpush1.msra.mxu0 0.0
        %6153 = vmatprep.subr.mxu0 0.0
        %6154 = vmatpush1.msra.mxu0 0.0
        %6155 = vmatprep.subr.mxu0 0.0
        %6156 = vmatpush1.msra.mxu0 0.0
        %6157 = vmatprep.subr.mxu0 0.0
        %6158 = vmatpush1.msra.mxu0 0.0
        %6159 = vmatprep.subr.mxu0 0.0
        %6160 = vmatpush1.msra.mxu0 0.0
        %6161 = vmatprep.subr.mxu0 0.0
        %6162 = vmatpush1.msra.mxu0 0.0
        %6163 = vmatprep.subr.mxu0 0.0
        %6164 = vmatpush1.msra.mxu0 0.0
        %6165 = vmatprep.subr.mxu0 0.0
        %6166 = vmatpush1.msra.mxu0 0.0
        %6167 = vmatprep.subr.mxu0 0.0
        %6168 = vmatpush1.msra.mxu0 0.0
        %6169 = vmatprep.subr.mxu0 0.0
        %6170 = vmatpush1.msra.mxu0 0.0
        %6171 = vmatprep.subr.mxu0 0.0
        %6172 = vmatpush1.msra.mxu0 0.0
        %6173 = vmatprep.subr.mxu0 0.0
        %6174 = vmatpush1.msra.mxu0 0.0
        %6175 = vmatprep.subr.mxu0 0.0
        %6176 = vmatpush1.msra.mxu0 0.0
        %6177 = vmatprep.subr.mxu0 0.0
        %6178 = vmatpush1.msra.mxu0 0.0
        %6179 = vmatprep.subr.mxu0 0.0
        %6180 = vmatpush1.msra.mxu0 0.0
        %6181 = vmatprep.subr.mxu0 0.0
        %6182 = vmatpush1.msra.mxu0 0.0
        %6183 = vmatprep.subr.mxu0 0.0
        %6184 = vmatpush1.msra.mxu0 0.0
        %6185 = vmatprep.subr.mxu0 0.0
        %6186 = vmatpush1.msra.mxu0 0.0
        %6187 = vmatprep.subr.mxu0 0.0
        %6188 = vmatpush1.msra.mxu0 0.0
        %6189 = vmatprep.mubr.f32.mxu0 0.0
        %6190 = vmatmul.mubr.f32.gmra.mrb[0].mxu0 %v6123
        %v6191 = vpop.f32.mrb[0].mxu0
        %v6192 = vadd.f32 0.0, %v6191
        %v6193 = vpop.f32.mrb[0].mxu0
        %6194 = vdwg.mxu0
        %6195 = vrot.lane.b32.xlu0 %v5416, 64
        %v6196 = vpop.permute.xlu0 %6195
        %6197 = vrot.lane.b32.xlu0 %v5533, 64
        %v6198 = vpop.permute.xlu0 %6197
        %v6199 = vsel %vm1705, %v6196, 0
        %v6201 = vsel %vm1705, %v6198, 0
        %6203 = vmatprep.subr.mxu0 0.0
        %6204 = vmatpush1.xpose.msra.mxu0 %v6201
        %6205 = vmatprep.subr.mxu0 0.0
        %6206 = vmatpush1.xpose.msra.mxu0 0.0
        %6207 = vmatprep.subr.mxu0 0.0
        %6208 = vmatpush1.xpose.msra.mxu0 0.0
        %6209 = vmatprep.subr.mxu0 0.0
        %6210 = vmatpush1.xpose.msra.mxu0 0.0
        %6211 = vmatprep.subr.mxu0 0.0
        %6212 = vmatpush1.xpose.msra.mxu0 0.0
        %6213 = vmatprep.subr.mxu0 0.0
        %6214 = vmatpush1.xpose.msra.mxu0 0.0
        %6215 = vmatprep.subr.mxu0 0.0
        %6216 = vmatpush1.xpose.msra.mxu0 0.0
        %6217 = vmatprep.subr.mxu0 0.0
        %6218 = vmatpush1.xpose.msra.mxu0 0.0
        %6219 = vmatprep.subr.mxu0 0.0
        %6220 = vmatpush1.xpose.msra.mxu0 0.0
        %6221 = vmatprep.subr.mxu0 0.0
        %6222 = vmatpush1.xpose.msra.mxu0 0.0
        %6223 = vmatprep.subr.mxu0 0.0
        %6224 = vmatpush1.xpose.msra.mxu0 0.0
        %6225 = vmatprep.subr.mxu0 0.0
        %6226 = vmatpush1.xpose.msra.mxu0 0.0
        %6227 = vmatprep.subr.mxu0 0.0
        %6228 = vmatpush1.xpose.msra.mxu0 0.0
        %6229 = vmatprep.subr.mxu0 0.0
        %6230 = vmatpush1.xpose.msra.mxu0 0.0
        %6231 = vmatprep.subr.mxu0 0.0
        %6232 = vmatpush1.xpose.msra.mxu0 0.0
        %6233 = vmatprep.subr.mxu0 0.0
        %6234 = vmatpush1.xpose.msra.mxu0 0.0
        %6235 = vmatprep.subr.mxu0 0.0
        %6236 = vmatpush1.xpose.msra.mxu0 0.0
        %6237 = vmatprep.subr.mxu0 0.0
        %6238 = vmatpush1.xpose.msra.mxu0 0.0
        %6239 = vmatprep.subr.mxu0 0.0
        %6240 = vmatpush1.xpose.msra.mxu0 0.0
        %6241 = vmatprep.subr.mxu0 0.0
        %6242 = vmatpush1.xpose.msra.mxu0 0.0
        %6243 = vmatprep.subr.mxu0 0.0
        %6244 = vmatpush1.xpose.msra.mxu0 0.0
        %6245 = vmatprep.subr.mxu0 0.0
        %6246 = vmatpush1.xpose.msra.mxu0 0.0
        %6247 = vmatprep.subr.mxu0 0.0
        %6248 = vmatpush1.xpose.msra.mxu0 0.0
        %6249 = vmatprep.subr.mxu0 0.0
        %6250 = vmatpush1.xpose.msra.mxu0 0.0
        %6251 = vmatprep.subr.mxu0 0.0
        %6252 = vmatpush1.xpose.msra.mxu0 0.0
        %6253 = vmatprep.subr.mxu0 0.0
        %6254 = vmatpush1.xpose.msra.mxu0 0.0
        %6255 = vmatprep.subr.mxu0 0.0
        %6256 = vmatpush1.xpose.msra.mxu0 0.0
        %6257 = vmatprep.subr.mxu0 0.0
        %6258 = vmatpush1.xpose.msra.mxu0 0.0
        %6259 = vmatprep.subr.mxu0 0.0
        %6260 = vmatpush1.xpose.msra.mxu0 0.0
        %6261 = vmatprep.subr.mxu0 0.0
        %6262 = vmatpush1.xpose.msra.mxu0 0.0
        %6263 = vmatprep.subr.mxu0 0.0
        %6264 = vmatpush1.xpose.msra.mxu0 0.0
        %6265 = vmatprep.subr.mxu0 0.0
        %6266 = vmatpush1.xpose.msra.mxu0 0.0
        %6267 = vmatprep.mubr.f32.mxu0 0.0
        %6268 = vmatmul.mubr.f32.gmra.mrb[0].mxu0 %v6199
        %v6269 = vpop.f32.mrb[0].mxu0
        %v6270 = vadd.f32 0.0, %v6269
        %v6271 = vpop.f32.mrb[0].mxu0
        %6272 = vdwg.mxu0
        %v6273 = vsel %vm1782, %v6270, -inf
        %6274 = vmax.xlane.f32.xlu0 %v6273
        %v6275 = vpop.xlane.xlu0 %6274
        %v6276 = vsub.f32 %v6270, %v6275
        %v6277 = vmul.f32 %v6276, 1.442695
        %v6278 = vpow.pop %v6277
        %v6279 = vsel %vm1782, %v6278, 0.0
        %6280 = vadd.xlane.f32.xlu0 %v6279
        %v6281 = vpop.xlane.xlu0 %6280
        %v6282 = vrcp.pop %v6281
        %v6283 = vmul.f32 %v6278, %v6282
        %6284 = vrot.lane.b32.xlu0 %v5535, 64
        %v6285 = vpop.permute.xlu0 %6284
        %v6288 = vsel %vm1782, %v6283, 0
        %6290 = vmatprep.subr.mxu0 0.0
        %6291 = vmatpush1.msra.mxu0 %v6285
        %6292 = vmatprep.subr.mxu0 0.0
        %6293 = vmatpush1.msra.mxu0 0.0
        %6294 = vmatprep.subr.mxu0 0.0
        %6295 = vmatpush1.msra.mxu0 0.0
        %6296 = vmatprep.subr.mxu0 0.0
        %6297 = vmatpush1.msra.mxu0 0.0
        %6298 = vmatprep.subr.mxu0 0.0
        %6299 = vmatpush1.msra.mxu0 0.0
        %6300 = vmatprep.subr.mxu0 0.0
        %6301 = vmatpush1.msra.mxu0 0.0
        %6302 = vmatprep.subr.mxu0 0.0
        %6303 = vmatpush1.msra.mxu0 0.0
        %6304 = vmatprep.subr.mxu0 0.0
        %6305 = vmatpush1.msra.mxu0 0.0
        %6306 = vmatprep.subr.mxu0 0.0
        %6307 = vmatpush1.msra.mxu0 0.0
        %6308 = vmatprep.subr.mxu0 0.0
        %6309 = vmatpush1.msra.mxu0 0.0
        %6310 = vmatprep.subr.mxu0 0.0
        %6311 = vmatpush1.msra.mxu0 0.0
        %6312 = vmatprep.subr.mxu0 0.0
        %6313 = vmatpush1.msra.mxu0 0.0
        %6314 = vmatprep.subr.mxu0 0.0
        %6315 = vmatpush1.msra.mxu0 0.0
        %6316 = vmatprep.subr.mxu0 0.0
        %6317 = vmatpush1.msra.mxu0 0.0
        %6318 = vmatprep.subr.mxu0 0.0
        %6319 = vmatpush1.msra.mxu0 0.0
        %6320 = vmatprep.subr.mxu0 0.0
        %6321 = vmatpush1.msra.mxu0 0.0
        %6322 = vmatprep.subr.mxu0 0.0
        %6323 = vmatpush1.msra.mxu0 0.0
        %6324 = vmatprep.subr.mxu0 0.0
        %6325 = vmatpush1.msra.mxu0 0.0
        %6326 = vmatprep.subr.mxu0 0.0
        %6327 = vmatpush1.msra.mxu0 0.0
        %6328 = vmatprep.subr.mxu0 0.0
        %6329 = vmatpush1.msra.mxu0 0.0
        %6330 = vmatprep.subr.mxu0 0.0
        %6331 = vmatpush1.msra.mxu0 0.0
        %6332 = vmatprep.subr.mxu0 0.0
        %6333 = vmatpush1.msra.mxu0 0.0
        %6334 = vmatprep.subr.mxu0 0.0
        %6335 = vmatpush1.msra.mxu0 0.0
        %6336 = vmatprep.subr.mxu0 0.0
        %6337 = vmatpush1.msra.mxu0 0.0
        %6338 = vmatprep.subr.mxu0 0.0
        %6339 = vmatpush1.msra.mxu0 0.0
        %6340 = vmatprep.subr.mxu0 0.0
        %6341 = vmatpush1.msra.mxu0 0.0
        %6342 = vmatprep.subr.mxu0 0.0
        %6343 = vmatpush1.msra.mxu0 0.0
        %6344 = vmatprep.subr.mxu0 0.0
        %6345 = vmatpush1.msra.mxu0 0.0
        %6346 = vmatprep.subr.mxu0 0.0
        %6347 = vmatpush1.msra.mxu0 0.0
        %6348 = vmatprep.subr.mxu0 0.0
        %6349 = vmatpush1.msra.mxu0 0.0
        %6350 = vmatprep.subr.mxu0 0.0
        %6351 = vmatpush1.msra.mxu0 0.0
        %6352 = vmatprep.subr.mxu0 0.0
        %6353 = vmatpush1.msra.mxu0 0.0
        %6354 = vmatprep.mubr.f32.mxu0 0.0
        %6355 = vmatmul.mubr.f32.gmra.mrb[0].mxu0 %v6288
        %v6356 = vpop.f32.mrb[0].mxu0
        %v6357 = vadd.f32 0.0, %v6356
        %v6358 = vpop.f32.mrb[0].mxu0
        %6359 = vdwg.mxu0
        %6360 = vrot.lane.b32.xlu0 %v5416, 48
        %v6361 = vpop.permute.xlu0 %6360
        %6362 = vrot.lane.b32.xlu0 %v5533, 48
        %v6363 = vpop.permute.xlu0 %6362
        %v6364 = vsel %vm1705, %v6361, 0
        %v6366 = vsel %vm1705, %v6363, 0
        %6368 = vmatprep.subr.mxu0 0.0
        %6369 = vmatpush1.xpose.msra.mxu0 %v6366
        %6370 = vmatprep.subr.mxu0 0.0
        %6371 = vmatpush1.xpose.msra.mxu0 0.0
        %6372 = vmatprep.subr.mxu0 0.0
        %6373 = vmatpush1.xpose.msra.mxu0 0.0
        %6374 = vmatprep.subr.mxu0 0.0
        %6375 = vmatpush1.xpose.msra.mxu0 0.0
        %6376 = vmatprep.subr.mxu0 0.0
        %6377 = vmatpush1.xpose.msra.mxu0 0.0
        %6378 = vmatprep.subr.mxu0 0.0
        %6379 = vmatpush1.xpose.msra.mxu0 0.0
        %6380 = vmatprep.subr.mxu0 0.0
        %6381 = vmatpush1.xpose.msra.mxu0 0.0
        %6382 = vmatprep.subr.mxu0 0.0
        %6383 = vmatpush1.xpose.msra.mxu0 0.0
        %6384 = vmatprep.subr.mxu0 0.0
        %6385 = vmatpush1.xpose.msra.mxu0 0.0
        %6386 = vmatprep.subr.mxu0 0.0
        %6387 = vmatpush1.xpose.msra.mxu0 0.0
        %6388 = vmatprep.subr.mxu0 0.0
        %6389 = vmatpush1.xpose.msra.mxu0 0.0
        %6390 = vmatprep.subr.mxu0 0.0
        %6391 = vmatpush1.xpose.msra.mxu0 0.0
        %6392 = vmatprep.subr.mxu0 0.0
        %6393 = vmatpush1.xpose.msra.mxu0 0.0
        %6394 = vmatprep.subr.mxu0 0.0
        %6395 = vmatpush1.xpose.msra.mxu0 0.0
        %6396 = vmatprep.subr.mxu0 0.0
        %6397 = vmatpush1.xpose.msra.mxu0 0.0
        %6398 = vmatprep.subr.mxu0 0.0
        %6399 = vmatpush1.xpose.msra.mxu0 0.0
        %6400 = vmatprep.subr.mxu0 0.0
        %6401 = vmatpush1.xpose.msra.mxu0 0.0
        %6402 = vmatprep.subr.mxu0 0.0
        %6403 = vmatpush1.xpose.msra.mxu0 0.0
        %6404 = vmatprep.subr.mxu0 0.0
        %6405 = vmatpush1.xpose.msra.mxu0 0.0
        %6406 = vmatprep.subr.mxu0 0.0
        %6407 = vmatpush1.xpose.msra.mxu0 0.0
        %6408 = vmatprep.subr.mxu0 0.0
        %6409 = vmatpush1.xpose.msra.mxu0 0.0
        %6410 = vmatprep.subr.mxu0 0.0
        %6411 = vmatpush1.xpose.msra.mxu0 0.0
        %6412 = vmatprep.subr.mxu0 0.0
        %6413 = vmatpush1.xpose.msra.mxu0 0.0
        %6414 = vmatprep.subr.mxu0 0.0
        %6415 = vmatpush1.xpose.msra.mxu0 0.0
        %6416 = vmatprep.subr.mxu0 0.0
        %6417 = vmatpush1.xpose.msra.mxu0 0.0
        %6418 = vmatprep.subr.mxu0 0.0
        %6419 = vmatpush1.xpose.msra.mxu0 0.0
        %6420 = vmatprep.subr.mxu0 0.0
        %6421 = vmatpush1.xpose.msra.mxu0 0.0
        %6422 = vmatprep.subr.mxu0 0.0
        %6423 = vmatpush1.xpose.msra.mxu0 0.0
        %6424 = vmatprep.subr.mxu0 0.0
        %6425 = vmatpush1.xpose.msra.mxu0 0.0
        %6426 = vmatprep.subr.mxu0 0.0
        %6427 = vmatpush1.xpose.msra.mxu0 0.0
        %6428 = vmatprep.subr.mxu0 0.0
        %6429 = vmatpush1.xpose.msra.mxu0 0.0
        %6430 = vmatprep.subr.mxu0 0.0
        %6431 = vmatpush1.xpose.msra.mxu0 0.0
        %6432 = vmatprep.mubr.f32.mxu0 0.0
        %6433 = vmatmul.mubr.f32.gmra.mrb[0].mxu0 %v6364
        %v6434 = vpop.f32.mrb[0].mxu0
        %v6435 = vadd.f32 0.0, %v6434
        %v6436 = vpop.f32.mrb[0].mxu0
        %6437 = vdwg.mxu0
        %v6438 = vsel %vm1782, %v6435, -inf
        %6439 = vmax.xlane.f32.xlu0 %v6438
        %v6440 = vpop.xlane.xlu0 %6439
        %v6441 = vsub.f32 %v6435, %v6440
        %v6442 = vmul.f32 %v6441, 1.442695
        %v6443 = vpow.pop %v6442
        %v6444 = vsel %vm1782, %v6443, 0.0
        %6445 = vadd.xlane.f32.xlu0 %v6444
        %v6446 = vpop.xlane.xlu0 %6445
        %v6447 = vrcp.pop %v6446
        %v6448 = vmul.f32 %v6443, %v6447
        %6449 = vrot.lane.b32.xlu0 %v5535, 48
        %v6450 = vpop.permute.xlu0 %6449
        %v6453 = vsel %vm1782, %v6448, 0
        %6455 = vmatprep.subr.mxu0 0.0
        %6456 = vmatpush1.msra.mxu0 %v6450
        %6457 = vmatprep.subr.mxu0 0.0
        %6458 = vmatpush1.msra.mxu0 0.0
        %6459 = vmatprep.subr.mxu0 0.0
        %6460 = vmatpush1.msra.mxu0 0.0
        %6461 = vmatprep.subr.mxu0 0.0
        %6462 = vmatpush1.msra.mxu0 0.0
        %6463 = vmatprep.subr.mxu0 0.0
        %6464 = vmatpush1.msra.mxu0 0.0
        %6465 = vmatprep.subr.mxu0 0.0
        %6466 = vmatpush1.msra.mxu0 0.0
        %6467 = vmatprep.subr.mxu0 0.0
        %6468 = vmatpush1.msra.mxu0 0.0
        %6469 = vmatprep.subr.mxu0 0.0
        %6470 = vmatpush1.msra.mxu0 0.0
        %6471 = vmatprep.subr.mxu0 0.0
        %6472 = vmatpush1.msra.mxu0 0.0
        %6473 = vmatprep.subr.mxu0 0.0
        %6474 = vmatpush1.msra.mxu0 0.0
        %6475 = vmatprep.subr.mxu0 0.0
        %6476 = vmatpush1.msra.mxu0 0.0
        %6477 = vmatprep.subr.mxu0 0.0
        %6478 = vmatpush1.msra.mxu0 0.0
        %6479 = vmatprep.subr.mxu0 0.0
        %6480 = vmatpush1.msra.mxu0 0.0
        %6481 = vmatprep.subr.mxu0 0.0
        %6482 = vmatpush1.msra.mxu0 0.0
        %6483 = vmatprep.subr.mxu0 0.0
        %6484 = vmatpush1.msra.mxu0 0.0
        %6485 = vmatprep.subr.mxu0 0.0
        %6486 = vmatpush1.msra.mxu0 0.0
        %6487 = vmatprep.subr.mxu0 0.0
        %6488 = vmatpush1.msra.mxu0 0.0
        %6489 = vmatprep.subr.mxu0 0.0
        %6490 = vmatpush1.msra.mxu0 0.0
        %6491 = vmatprep.subr.mxu0 0.0
        %6492 = vmatpush1.msra.mxu0 0.0
        %6493 = vmatprep.subr.mxu0 0.0
        %6494 = vmatpush1.msra.mxu0 0.0
        %6495 = vmatprep.subr.mxu0 0.0
        %6496 = vmatpush1.msra.mxu0 0.0
        %6497 = vmatprep.subr.mxu0 0.0
        %6498 = vmatpush1.msra.mxu0 0.0
        %6499 = vmatprep.subr.mxu0 0.0
        %6500 = vmatpush1.msra.mxu0 0.0
        %6501 = vmatprep.subr.mxu0 0.0
        %6502 = vmatpush1.msra.mxu0 0.0
        %6503 = vmatprep.subr.mxu0 0.0
        %6504 = vmatpush1.msra.mxu0 0.0
        %6505 = vmatprep.subr.mxu0 0.0
        %6506 = vmatpush1.msra.mxu0 0.0
        %6507 = vmatprep.subr.mxu0 0.0
        %6508 = vmatpush1.msra.mxu0 0.0
        %6509 = vmatprep.subr.mxu0 0.0
        %6510 = vmatpush1.msra.mxu0 0.0
        %6511 = vmatprep.subr.mxu0 0.0
        %6512 = vmatpush1.msra.mxu0 0.0
        %6513 = vmatprep.subr.mxu0 0.0
        %6514 = vmatpush1.msra.mxu0 0.0
        %6515 = vmatprep.subr.mxu0 0.0
        %6516 = vmatpush1.msra.mxu0 0.0
        %6517 = vmatprep.subr.mxu0 0.0
        %6518 = vmatpush1.msra.mxu0 0.0
        %6519 = vmatprep.mubr.f32.mxu0 0.0
        %6520 = vmatmul.mubr.f32.gmra.mrb[0].mxu0 %v6453
        %v6521 = vpop.f32.mrb[0].mxu0
        %v6522 = vadd.f32 0.0, %v6521
        %v6523 = vpop.f32.mrb[0].mxu0
        %6524 = vdwg.mxu0
        %6525 = vrot.lane.b32.xlu0 %v5416, 32
        %v6526 = vpop.permute.xlu0 %6525
        %6527 = vrot.lane.b32.xlu0 %v5533, 32
        %v6528 = vpop.permute.xlu0 %6527
        %v6529 = vsel %vm1705, %v6526, 0
        %v6531 = vsel %vm1705, %v6528, 0
        %6533 = vmatprep.subr.mxu0 0.0
        %6534 = vmatpush1.xpose.msra.mxu0 %v6531
        %6535 = vmatprep.subr.mxu0 0.0
        %6536 = vmatpush1.xpose.msra.mxu0 0.0
        %6537 = vmatprep.subr.mxu0 0.0
        %6538 = vmatpush1.xpose.msra.mxu0 0.0
        %6539 = vmatprep.subr.mxu0 0.0
        %6540 = vmatpush1.xpose.msra.mxu0 0.0
        %6541 = vmatprep.subr.mxu0 0.0
        %6542 = vmatpush1.xpose.msra.mxu0 0.0
        %6543 = vmatprep.subr.mxu0 0.0
        %6544 = vmatpush1.xpose.msra.mxu0 0.0
        %6545 = vmatprep.subr.mxu0 0.0
        %6546 = vmatpush1.xpose.msra.mxu0 0.0
        %6547 = vmatprep.subr.mxu0 0.0
        %6548 = vmatpush1.xpose.msra.mxu0 0.0
        %6549 = vmatprep.subr.mxu0 0.0
        %6550 = vmatpush1.xpose.msra.mxu0 0.0
        %6551 = vmatprep.subr.mxu0 0.0
        %6552 = vmatpush1.xpose.msra.mxu0 0.0
        %6553 = vmatprep.subr.mxu0 0.0
        %6554 = vmatpush1.xpose.msra.mxu0 0.0
        %6555 = vmatprep.subr.mxu0 0.0
        %6556 = vmatpush1.xpose.msra.mxu0 0.0
        %6557 = vmatprep.subr.mxu0 0.0
        %6558 = vmatpush1.xpose.msra.mxu0 0.0
        %6559 = vmatprep.subr.mxu0 0.0
        %6560 = vmatpush1.xpose.msra.mxu0 0.0
        %6561 = vmatprep.subr.mxu0 0.0
        %6562 = vmatpush1.xpose.msra.mxu0 0.0
        %6563 = vmatprep.subr.mxu0 0.0
        %6564 = vmatpush1.xpose.msra.mxu0 0.0
        %6565 = vmatprep.subr.mxu0 0.0
        %6566 = vmatpush1.xpose.msra.mxu0 0.0
        %6567 = vmatprep.subr.mxu0 0.0
        %6568 = vmatpush1.xpose.msra.mxu0 0.0
        %6569 = vmatprep.subr.mxu0 0.0
        %6570 = vmatpush1.xpose.msra.mxu0 0.0
        %6571 = vmatprep.subr.mxu0 0.0
        %6572 = vmatpush1.xpose.msra.mxu0 0.0
        %6573 = vmatprep.subr.mxu0 0.0
        %6574 = vmatpush1.xpose.msra.mxu0 0.0
        %6575 = vmatprep.subr.mxu0 0.0
        %6576 = vmatpush1.xpose.msra.mxu0 0.0
        %6577 = vmatprep.subr.mxu0 0.0
        %6578 = vmatpush1.xpose.msra.mxu0 0.0
        %6579 = vmatprep.subr.mxu0 0.0
        %6580 = vmatpush1.xpose.msra.mxu0 0.0
        %6581 = vmatprep.subr.mxu0 0.0
        %6582 = vmatpush1.xpose.msra.mxu0 0.0
        %6583 = vmatprep.subr.mxu0 0.0
        %6584 = vmatpush1.xpose.msra.mxu0 0.0
        %6585 = vmatprep.subr.mxu0 0.0
        %6586 = vmatpush1.xpose.msra.mxu0 0.0
        %6587 = vmatprep.subr.mxu0 0.0
        %6588 = vmatpush1.xpose.msra.mxu0 0.0
        %6589 = vmatprep.subr.mxu0 0.0
        %6590 = vmatpush1.xpose.msra.mxu0 0.0
        %6591 = vmatprep.subr.mxu0 0.0
        %6592 = vmatpush1.xpose.msra.mxu0 0.0
        %6593 = vmatprep.subr.mxu0 0.0
        %6594 = vmatpush1.xpose.msra.mxu0 0.0
        %6595 = vmatprep.subr.mxu0 0.0
        %6596 = vmatpush1.xpose.msra.mxu0 0.0
        %6597 = vmatprep.mubr.f32.mxu0 0.0
        %6598 = vmatmul.mubr.f32.gmra.mrb[0].mxu0 %v6529
        %v6599 = vpop.f32.mrb[0].mxu0
        %v6600 = vadd.f32 0.0, %v6599
        %v6601 = vpop.f32.mrb[0].mxu0
        %6602 = vdwg.mxu0
        %v6603 = vsel %vm1782, %v6600, -inf
        %6604 = vmax.xlane.f32.xlu0 %v6603
        %v6605 = vpop.xlane.xlu0 %6604
        %v6606 = vsub.f32 %v6600, %v6605
        %v6607 = vmul.f32 %v6606, 1.442695
        %v6608 = vpow.pop %v6607
        %v6609 = vsel %vm1782, %v6608, 0.0
        %6610 = vadd.xlane.f32.xlu0 %v6609
        %v6611 = vpop.xlane.xlu0 %6610
        %v6612 = vrcp.pop %v6611
        %v6613 = vmul.f32 %v6608, %v6612
        %6614 = vrot.lane.b32.xlu0 %v5535, 32
        %v6615 = vpop.permute.xlu0 %6614
        %v6618 = vsel %vm1782, %v6613, 0
        %6620 = vmatprep.subr.mxu0 0.0
        %6621 = vmatpush1.msra.mxu0 %v6615
        %6622 = vmatprep.subr.mxu0 0.0
        %6623 = vmatpush1.msra.mxu0 0.0
        %6624 = vmatprep.subr.mxu0 0.0
        %6625 = vmatpush1.msra.mxu0 0.0
        %6626 = vmatprep.subr.mxu0 0.0
        %6627 = vmatpush1.msra.mxu0 0.0
        %6628 = vmatprep.subr.mxu0 0.0
        %6629 = vmatpush1.msra.mxu0 0.0
        %6630 = vmatprep.subr.mxu0 0.0
        %6631 = vmatpush1.msra.mxu0 0.0
        %6632 = vmatprep.subr.mxu0 0.0
        %6633 = vmatpush1.msra.mxu0 0.0
        %6634 = vmatprep.subr.mxu0 0.0
        %6635 = vmatpush1.msra.mxu0 0.0
        %6636 = vmatprep.subr.mxu0 0.0
        %6637 = vmatpush1.msra.mxu0 0.0
        %6638 = vmatprep.subr.mxu0 0.0
        %6639 = vmatpush1.msra.mxu0 0.0
        %6640 = vmatprep.subr.mxu0 0.0
        %6641 = vmatpush1.msra.mxu0 0.0
        %6642 = vmatprep.subr.mxu0 0.0
        %6643 = vmatpush1.msra.mxu0 0.0
        %6644 = vmatprep.subr.mxu0 0.0
        %6645 = vmatpush1.msra.mxu0 0.0
        %6646 = vmatprep.subr.mxu0 0.0
        %6647 = vmatpush1.msra.mxu0 0.0
        %6648 = vmatprep.subr.mxu0 0.0
        %6649 = vmatpush1.msra.mxu0 0.0
        %6650 = vmatprep.subr.mxu0 0.0
        %6651 = vmatpush1.msra.mxu0 0.0
        %6652 = vmatprep.subr.mxu0 0.0
        %6653 = vmatpush1.msra.mxu0 0.0
        %6654 = vmatprep.subr.mxu0 0.0
        %6655 = vmatpush1.msra.mxu0 0.0
        %6656 = vmatprep.subr.mxu0 0.0
        %6657 = vmatpush1.msra.mxu0 0.0
        %6658 = vmatprep.subr.mxu0 0.0
        %6659 = vmatpush1.msra.mxu0 0.0
        %6660 = vmatprep.subr.mxu0 0.0
        %6661 = vmatpush1.msra.mxu0 0.0
        %6662 = vmatprep.subr.mxu0 0.0
        %6663 = vmatpush1.msra.mxu0 0.0
        %6664 = vmatprep.subr.mxu0 0.0
        %6665 = vmatpush1.msra.mxu0 0.0
        %6666 = vmatprep.subr.mxu0 0.0
        %6667 = vmatpush1.msra.mxu0 0.0
        %6668 = vmatprep.subr.mxu0 0.0
        %6669 = vmatpush1.msra.mxu0 0.0
        %6670 = vmatprep.subr.mxu0 0.0
        %6671 = vmatpush1.msra.mxu0 0.0
        %6672 = vmatprep.subr.mxu0 0.0
        %6673 = vmatpush1.msra.mxu0 0.0
        %6674 = vmatprep.subr.mxu0 0.0
        %6675 = vmatpush1.msra.mxu0 0.0
        %6676 = vmatprep.subr.mxu0 0.0
        %6677 = vmatpush1.msra.mxu0 0.0
        %6678 = vmatprep.subr.mxu0 0.0
        %6679 = vmatpush1.msra.mxu0 0.0
        %6680 = vmatprep.subr.mxu0 0.0
        %6681 = vmatpush1.msra.mxu0 0.0
        %6682 = vmatprep.subr.mxu0 0.0
        %6683 = vmatpush1.msra.mxu0 0.0
        %6684 = vmatprep.mubr.f32.mxu0 0.0
        %6685 = vmatmul.mubr.f32.gmra.mrb[0].mxu0 %v6618
        %v6686 = vpop.f32.mrb[0].mxu0
        %v6687 = vadd.f32 0.0, %v6686
        %v6688 = vpop.f32.mrb[0].mxu0
        %6689 = vdwg.mxu0
        %6690 = vrot.lane.b32.xlu0 %v5416, 16
        %v6691 = vpop.permute.xlu0 %6690
        %6692 = vrot.lane.b32.xlu0 %v5533, 16
        %v6693 = vpop.permute.xlu0 %6692
        %v6694 = vsel %vm1705, %v6691, 0
        %v6696 = vsel %vm1705, %v6693, 0
        %6698 = vmatprep.subr.mxu0 0.0
        %6699 = vmatpush1.xpose.msra.mxu0 %v6696
        %6700 = vmatprep.subr.mxu0 0.0
        %6701 = vmatpush1.xpose.msra.mxu0 0.0
        %6702 = vmatprep.subr.mxu0 0.0
        %6703 = vmatpush1.xpose.msra.mxu0 0.0
        %6704 = vmatprep.subr.mxu0 0.0
        %6705 = vmatpush1.xpose.msra.mxu0 0.0
        %6706 = vmatprep.subr.mxu0 0.0
        %6707 = vmatpush1.xpose.msra.mxu0 0.0
        %6708 = vmatprep.subr.mxu0 0.0
        %6709 = vmatpush1.xpose.msra.mxu0 0.0
        %6710 = vmatprep.subr.mxu0 0.0
        %6711 = vmatpush1.xpose.msra.mxu0 0.0
        %6712 = vmatprep.subr.mxu0 0.0
        %6713 = vmatpush1.xpose.msra.mxu0 0.0
        %6714 = vmatprep.subr.mxu0 0.0
        %6715 = vmatpush1.xpose.msra.mxu0 0.0
        %6716 = vmatprep.subr.mxu0 0.0
        %6717 = vmatpush1.xpose.msra.mxu0 0.0
        %6718 = vmatprep.subr.mxu0 0.0
        %6719 = vmatpush1.xpose.msra.mxu0 0.0
        %6720 = vmatprep.subr.mxu0 0.0
        %6721 = vmatpush1.xpose.msra.mxu0 0.0
        %6722 = vmatprep.subr.mxu0 0.0
        %6723 = vmatpush1.xpose.msra.mxu0 0.0
        %6724 = vmatprep.subr.mxu0 0.0
        %6725 = vmatpush1.xpose.msra.mxu0 0.0
        %6726 = vmatprep.subr.mxu0 0.0
        %6727 = vmatpush1.xpose.msra.mxu0 0.0
        %6728 = vmatprep.subr.mxu0 0.0
        %6729 = vmatpush1.xpose.msra.mxu0 0.0
        %6730 = vmatprep.subr.mxu0 0.0
        %6731 = vmatpush1.xpose.msra.mxu0 0.0
        %6732 = vmatprep.subr.mxu0 0.0
        %6733 = vmatpush1.xpose.msra.mxu0 0.0
        %6734 = vmatprep.subr.mxu0 0.0
        %6735 = vmatpush1.xpose.msra.mxu0 0.0
        %6736 = vmatprep.subr.mxu0 0.0
        %6737 = vmatpush1.xpose.msra.mxu0 0.0
        %6738 = vmatprep.subr.mxu0 0.0
        %6739 = vmatpush1.xpose.msra.mxu0 0.0
        %6740 = vmatprep.subr.mxu0 0.0
        %6741 = vmatpush1.xpose.msra.mxu0 0.0
        %6742 = vmatprep.subr.mxu0 0.0
        %6743 = vmatpush1.xpose.msra.mxu0 0.0
        %6744 = vmatprep.subr.mxu0 0.0
        %6745 = vmatpush1.xpose.msra.mxu0 0.0
        %6746 = vmatprep.subr.mxu0 0.0
        %6747 = vmatpush1.xpose.msra.mxu0 0.0
        %6748 = vmatprep.subr.mxu0 0.0
        %6749 = vmatpush1.xpose.msra.mxu0 0.0
        %6750 = vmatprep.subr.mxu0 0.0
        %6751 = vmatpush1.xpose.msra.mxu0 0.0
        %6752 = vmatprep.subr.mxu0 0.0
        %6753 = vmatpush1.xpose.msra.mxu0 0.0
        %6754 = vmatprep.subr.mxu0 0.0
        %6755 = vmatpush1.xpose.msra.mxu0 0.0
        %6756 = vmatprep.subr.mxu0 0.0
        %6757 = vmatpush1.xpose.msra.mxu0 0.0
        %6758 = vmatprep.subr.mxu0 0.0
        %6759 = vmatpush1.xpose.msra.mxu0 0.0
        %6760 = vmatprep.subr.mxu0 0.0
        %6761 = vmatpush1.xpose.msra.mxu0 0.0
        %6762 = vmatprep.mubr.f32.mxu0 0.0
        %6763 = vmatmul.mubr.f32.gmra.mrb[0].mxu0 %v6694
        %v6764 = vpop.f32.mrb[0].mxu0
        %v6765 = vadd.f32 0.0, %v6764
        %v6766 = vpop.f32.mrb[0].mxu0
        %6767 = vdwg.mxu0
        %v6768 = vsel %vm1782, %v6765, -inf
        %6769 = vmax.xlane.f32.xlu0 %v6768
        %v6770 = vpop.xlane.xlu0 %6769
        %v6771 = vsub.f32 %v6765, %v6770
        %v6772 = vmul.f32 %v6771, 1.442695
        %v6773 = vpow.pop %v6772
        %v6774 = vsel %vm1782, %v6773, 0.0
        %6775 = vadd.xlane.f32.xlu0 %v6774
        %v6776 = vpop.xlane.xlu0 %6775
        %v6777 = vrcp.pop %v6776
        %v6778 = vmul.f32 %v6773, %v6777
        %6779 = vrot.lane.b32.xlu0 %v5535, 16
        %v6780 = vpop.permute.xlu0 %6779
        %v6783 = vsel %vm1782, %v6778, 0
        %6785 = vmatprep.subr.mxu0 0.0
        %6786 = vmatpush1.msra.mxu0 %v6780
        %6787 = vmatprep.subr.mxu0 0.0
        %6788 = vmatpush1.msra.mxu0 0.0
        %6789 = vmatprep.subr.mxu0 0.0
        %6790 = vmatpush1.msra.mxu0 0.0
        %6791 = vmatprep.subr.mxu0 0.0
        %6792 = vmatpush1.msra.mxu0 0.0
        %6793 = vmatprep.subr.mxu0 0.0
        %6794 = vmatpush1.msra.mxu0 0.0
        %6795 = vmatprep.subr.mxu0 0.0
        %6796 = vmatpush1.msra.mxu0 0.0
        %6797 = vmatprep.subr.mxu0 0.0
        %6798 = vmatpush1.msra.mxu0 0.0
        %6799 = vmatprep.subr.mxu0 0.0
        %6800 = vmatpush1.msra.mxu0 0.0
        %6801 = vmatprep.subr.mxu0 0.0
        %6802 = vmatpush1.msra.mxu0 0.0
        %6803 = vmatprep.subr.mxu0 0.0
        %6804 = vmatpush1.msra.mxu0 0.0
        %6805 = vmatprep.subr.mxu0 0.0
        %6806 = vmatpush1.msra.mxu0 0.0
        %6807 = vmatprep.subr.mxu0 0.0
        %6808 = vmatpush1.msra.mxu0 0.0
        %6809 = vmatprep.subr.mxu0 0.0
        %6810 = vmatpush1.msra.mxu0 0.0
        %6811 = vmatprep.subr.mxu0 0.0
        %6812 = vmatpush1.msra.mxu0 0.0
        %6813 = vmatprep.subr.mxu0 0.0
        %6814 = vmatpush1.msra.mxu0 0.0
        %6815 = vmatprep.subr.mxu0 0.0
        %6816 = vmatpush1.msra.mxu0 0.0
        %6817 = vmatprep.subr.mxu0 0.0
        %6818 = vmatpush1.msra.mxu0 0.0
        %6819 = vmatprep.subr.mxu0 0.0
        %6820 = vmatpush1.msra.mxu0 0.0
        %6821 = vmatprep.subr.mxu0 0.0
        %6822 = vmatpush1.msra.mxu0 0.0
        %6823 = vmatprep.subr.mxu0 0.0
        %6824 = vmatpush1.msra.mxu0 0.0
        %6825 = vmatprep.subr.mxu0 0.0
        %6826 = vmatpush1.msra.mxu0 0.0
        %6827 = vmatprep.subr.mxu0 0.0
        %6828 = vmatpush1.msra.mxu0 0.0
        %6829 = vmatprep.subr.mxu0 0.0
        %6830 = vmatpush1.msra.mxu0 0.0
        %6831 = vmatprep.subr.mxu0 0.0
        %6832 = vmatpush1.msra.mxu0 0.0
        %6833 = vmatprep.subr.mxu0 0.0
        %6834 = vmatpush1.msra.mxu0 0.0
        %6835 = vmatprep.subr.mxu0 0.0
        %6836 = vmatpush1.msra.mxu0 0.0
        %6837 = vmatprep.subr.mxu0 0.0
        %6838 = vmatpush1.msra.mxu0 0.0
        %6839 = vmatprep.subr.mxu0 0.0
        %6840 = vmatpush1.msra.mxu0 0.0
        %6841 = vmatprep.subr.mxu0 0.0
        %6842 = vmatpush1.msra.mxu0 0.0
        %6843 = vmatprep.subr.mxu0 0.0
        %6844 = vmatpush1.msra.mxu0 0.0
        %6845 = vmatprep.subr.mxu0 0.0
        %6846 = vmatpush1.msra.mxu0 0.0
        %6847 = vmatprep.subr.mxu0 0.0
        %6848 = vmatpush1.msra.mxu0 0.0
        %6849 = vmatprep.mubr.f32.mxu0 0.0
        %6850 = vmatmul.mubr.f32.gmra.mrb[0].mxu0 %v6783
        %v6851 = vpop.f32.mrb[0].mxu0
        %v6852 = vadd.f32 0.0, %v6851
        %v6853 = vpop.f32.mrb[0].mxu0
        %6854 = vdwg.mxu0
        %6856 = vrot.lane.b32.xlu0 %v5862, 16
        %v6857 = vpop.permute.xlu0 %6856
        %6860 = vrot.lane.b32.xlu0 %v6027, 32
        %v6861 = vpop.permute.xlu0 %6860
        %6864 = vrot.lane.b32.xlu0 %v6192, 48
        %v6865 = vpop.permute.xlu0 %6864
        %6868 = vrot.lane.b32.xlu0 %v6357, 64
        %v6869 = vpop.permute.xlu0 %6868
        %6872 = vrot.lane.b32.xlu0 %v6522, 80
        %v6873 = vpop.permute.xlu0 %6872
        %6876 = vrot.lane.b32.xlu0 %v6687, 96
        %v6877 = vpop.permute.xlu0 %6876
        %6880 = vrot.lane.b32.xlu0 %v6852, 112
        %v6881 = vpop.permute.xlu0 %6880
        %v6883 = vsel %vm1705, %v5696, %v6857
        %v6884 = vsel %vm3052, %v6883, %v6861
        %v6885 = vsel %vm3054, %v6884, %v6865
        %v6886 = vsel %vm3056, %v6885, %v6869
        %v6887 = vsel %vm3058, %v6886, %v6873
        %v6888 = vsel %vm3060, %v6887, %v6877
        %v6889 = vsel %vm3062, %v6888, %v6881
        %v6890 = vpack.c.bf16 %v6889, %v6889
        %v6907 = vunpack.c.l.b16 %v5311
        %v6908 = vunpack.c.l.b16 %v5312
        %v6909 = vunpack.c.l.b16 %v5313
        %v6910 = vunpack.c.l.b16 %v5314
        %v6911 = vunpack.c.l.b16 %v5315
        %v6912 = vunpack.c.l.b16 %v5316
        %v6913 = vunpack.c.l.b16 %v5317
        %v6914 = vunpack.c.l.b16 %v5318
        %v6915 = vunpack.c.l.b16 %v5319
        %v6916 = vunpack.c.l.b16 %v5320
        %v6917 = vunpack.c.l.b16 %v5321
        %v6918 = vunpack.c.l.b16 %v5322
        %v6919 = vunpack.c.l.b16 %v5323
        %v6920 = vunpack.c.l.b16 %v5324
        %v6921 = vunpack.c.l.b16 %v5325
        %v6922 = vunpack.c.l.b16 %v5326
        %v6923 = vpack.c.b16 %v6908, %v6907
        %v6924 = vpack.c.b16 %v6910, %v6909
        %v6925 = vpack.c.b16 %v6912, %v6911
        %v6926 = vpack.c.b16 %v6914, %v6913
        %v6927 = vpack.c.b16 %v6916, %v6915
        %v6928 = vpack.c.b16 %v6918, %v6917
        %v6929 = vpack.c.b16 %v6920, %v6919
        %v6930 = vpack.c.b16 %v6922, %v6921
        %6939 = vmatprep.subr.bf16.mxu0 0
        %6940 = vmatpush1.bf16.msra.mxu0 %v6923
        %6941 = vmatprep.subr.bf16.mxu0 0
        %6942 = vmatpush1.bf16.msra.mxu0 %v6924
        %6943 = vmatprep.subr.bf16.mxu0 0
        %6944 = vmatpush1.bf16.msra.mxu0 %v6925
        %6945 = vmatprep.subr.bf16.mxu0 0
        %6946 = vmatpush1.bf16.msra.mxu0 %v6926
        %6947 = vmatprep.subr.bf16.mxu0 0
        %6948 = vmatpush1.bf16.msra.mxu0 %v6927
        %6949 = vmatprep.subr.bf16.mxu0 0
        %6950 = vmatpush1.bf16.msra.mxu0 %v6928
        %6951 = vmatprep.subr.bf16.mxu0 0
        %6952 = vmatpush1.bf16.msra.mxu0 %v6929
        %6953 = vmatprep.subr.bf16.mxu0 0
        %6954 = vmatpush1.bf16.msra.mxu0 %v6930
        %6955 = vmatprep.subr.bf16.mxu0 0
        %6956 = vmatpush1.bf16.msra.mxu0 0
        %6957 = vmatprep.subr.bf16.mxu0 0
        %6958 = vmatpush1.bf16.msra.mxu0 0
        %6959 = vmatprep.subr.bf16.mxu0 0
        %6960 = vmatpush1.bf16.msra.mxu0 0
        %6961 = vmatprep.subr.bf16.mxu0 0
        %6962 = vmatpush1.bf16.msra.mxu0 0
        %6963 = vmatprep.subr.bf16.mxu0 0
        %6964 = vmatpush1.bf16.msra.mxu0 0
        %6965 = vmatprep.subr.bf16.mxu0 0
        %6966 = vmatpush1.bf16.msra.mxu0 0
        %6967 = vmatprep.subr.bf16.mxu0 0
        %6968 = vmatpush1.bf16.msra.mxu0 0
        %6969 = vmatprep.subr.bf16.mxu0 0
        %6970 = vmatpush1.bf16.msra.mxu0 0
        %6971 = vmatprep.mubr.bf16.mxu0 0
        %6972 = vmatmul.mubr.bf16.gmra.mrb[0].mxu0 %v6890
        %v6973 = vpop.f32.mrb[0].mxu0
        %v6974 = vadd.f32 %v5278, %v6973
        %v6975 = vpop.f32.mrb[0].mxu0
        %v6976 = vpop.f32.mrb[0].mxu0
        %v6977 = vpop.f32.mrb[0].mxu0
        %6978 = vdwg.mxu0
        %v6979 = vld [vmem:[%s1208] sm:$0xff]
        %v6980 = vld [vmem:[%s1208 + $0x8] sm:$0xff]
        %v6981 = vld [vmem:[%s1208 + $0x10] sm:$0xff]
        %v6982 = vld [vmem:[%s1208 + $0x18] sm:$0xff]
        %v6983 = vld [vmem:[%s1208 + $0x20] sm:$0xff]
        %v6984 = vld [vmem:[%s1208 + $0x28] sm:$0xff]
        %v6985 = vld [vmem:[%s1208 + $0x30] sm:$0xff]
        %v6986 = vld [vmem:[%s1208 + $0x38] sm:$0xff]
        %v6987 = vld [vmem:[%s1208 + $0x40] sm:$0xff]
        %v6988 = vld [vmem:[%s1208 + $0x48] sm:$0xff]
        %v6989 = vld [vmem:[%s1208 + $0x50] sm:$0xff]
        %v6990 = vld [vmem:[%s1208 + $0x58] sm:$0xff]
        %v6991 = vld [vmem:[%s1208 + $0x60] sm:$0xff]
        %v6992 = vld [vmem:[%s1208 + $0x68] sm:$0xff]
        %v6993 = vld [vmem:[%s1208 + $0x70] sm:$0xff]
        %v6994 = vld [vmem:[%s1208 + $0x78] sm:$0xff]
        %v6995 = vld [vmem:[%s1435] sm:$0x3]
        %v6996 = vld [vmem:[%s1217] sm:$0xf]
        %v6997 = vld [vmem:[%s1217 + $0x4] sm:$0xf]
        %v6998 = vld [vmem:[%s1217 + $0x8] sm:$0xf]
        %v6999 = vld [vmem:[%s1217 + $0xc] sm:$0xf]
        %v7000 = vld [vmem:[%s1217 + $0x10] sm:$0xf]
        %v7001 = vld [vmem:[%s1217 + $0x14] sm:$0xf]
        %v7002 = vld [vmem:[%s1217 + $0x18] sm:$0xf]
        %v7003 = vld [vmem:[%s1217 + $0x1c] sm:$0xf]
        %v7004 = vld [vmem:[%s1217 + $0x20] sm:$0xf]
        %v7005 = vld [vmem:[%s1217 + $0x24] sm:$0xf]
        %v7006 = vld [vmem:[%s1217 + $0x28] sm:$0xf]
        %v7007 = vld [vmem:[%s1217 + $0x2c] sm:$0xf]
        %v7008 = vld [vmem:[%s1217 + $0x30] sm:$0xf]
        %v7009 = vld [vmem:[%s1217 + $0x34] sm:$0xf]
        %v7010 = vld [vmem:[%s1217 + $0x38] sm:$0xf]
        %v7011 = vld [vmem:[%s1217 + $0x3c] sm:$0xf]
        %v7012 = vld [vmem:[%s1217 + $0x40] sm:$0xf]
        %v7013 = vld [vmem:[%s1217 + $0x44] sm:$0xf]
        %v7014 = vld [vmem:[%s1217 + $0x48] sm:$0xf]
        %v7015 = vld [vmem:[%s1217 + $0x4c] sm:$0xf]
        %v7016 = vld [vmem:[%s1217 + $0x50] sm:$0xf]
        %v7017 = vld [vmem:[%s1217 + $0x54] sm:$0xf]
        %v7018 = vld [vmem:[%s1217 + $0x58] sm:$0xf]
        %v7019 = vld [vmem:[%s1217 + $0x5c] sm:$0xf]
        %v7020 = vld [vmem:[%s1217 + $0x60] sm:$0xf]
        %v7021 = vld [vmem:[%s1217 + $0x64] sm:$0xf]
        %v7022 = vld [vmem:[%s1217 + $0x68] sm:$0xf]
        %v7023 = vld [vmem:[%s1217 + $0x6c] sm:$0xf]
        %v7024 = vld [vmem:[%s1217 + $0x70] sm:$0xf]
        %v7025 = vld [vmem:[%s1217 + $0x74] sm:$0xf]
        %v7026 = vld [vmem:[%s1217 + $0x78] sm:$0xf]
        %v7027 = vld [vmem:[%s1217 + $0x7c] sm:$0xf]
        %v7028 = vld [vmem:[%s1225] sm:$0x1]
        %v7029 = vpack.c.bf16 %v6974, %v6974
        %v7031 = vlaneseq
        %v7032 = vshrl.u32 %v7031, 7
        %v7033 = vsub.s32 0, %v7032
        %v7034 = vrot.slane %v6995, %v7033
        %v7035 = vlaneseq
        %v7036 = vshrl.u32 %v7035, 7
        %v7037 = vsub.s32 1, %v7036
        %v7038 = vrot.slane %v6995, %v7037
        %v7057 = vunpack.c.l.b16 %v6979
        %v7058 = vunpack.c.h.b16 %v6979
        %v7059 = vunpack.c.l.b16 %v6980
        %v7060 = vunpack.c.h.b16 %v6980
        %v7061 = vunpack.c.l.b16 %v6981
        %v7062 = vunpack.c.h.b16 %v6981
        %v7063 = vunpack.c.l.b16 %v6982
        %v7064 = vunpack.c.h.b16 %v6982
        %v7065 = vunpack.c.l.b16 %v6983
        %v7066 = vunpack.c.h.b16 %v6983
        %v7067 = vunpack.c.l.b16 %v6984
        %v7068 = vunpack.c.h.b16 %v6984
        %v7069 = vunpack.c.l.b16 %v6985
        %v7070 = vunpack.c.h.b16 %v6985
        %v7071 = vunpack.c.l.b16 %v6986
        %v7072 = vunpack.c.h.b16 %v6986
        %v7073 = vunpack.c.l.b16 %v6987
        %v7074 = vunpack.c.h.b16 %v6987
        %v7075 = vunpack.c.l.b16 %v6988
        %v7076 = vunpack.c.h.b16 %v6988
        %v7077 = vunpack.c.l.b16 %v6989
        %v7078 = vunpack.c.h.b16 %v6989
        %v7079 = vunpack.c.l.b16 %v6990
        %v7080 = vunpack.c.h.b16 %v6990
        %v7081 = vunpack.c.l.b16 %v6991
        %v7082 = vunpack.c.h.b16 %v6991
        %v7083 = vunpack.c.l.b16 %v6992
        %v7084 = vunpack.c.h.b16 %v6992
        %v7085 = vunpack.c.l.b16 %v6993
        %v7086 = vunpack.c.h.b16 %v6993
        %v7087 = vunpack.c.l.b16 %v6994
        %v7088 = vunpack.c.h.b16 %v6994
        %v7089 = vpack.c.b16 %v7059, %v7057
        %v7090 = vpack.c.b16 %v7060, %v7058
        %v7091 = vpack.c.b16 %v7063, %v7061
        %v7092 = vpack.c.b16 %v7064, %v7062
        %v7093 = vpack.c.b16 %v7067, %v7065
        %v7094 = vpack.c.b16 %v7068, %v7066
        %v7095 = vpack.c.b16 %v7071, %v7069
        %v7096 = vpack.c.b16 %v7072, %v7070
        %v7097 = vpack.c.b16 %v7075, %v7073
        %v7098 = vpack.c.b16 %v7076, %v7074
        %v7099 = vpack.c.b16 %v7079, %v7077
        %v7100 = vpack.c.b16 %v7080, %v7078
        %v7101 = vpack.c.b16 %v7083, %v7081
        %v7102 = vpack.c.b16 %v7084, %v7082
        %v7103 = vpack.c.b16 %v7087, %v7085
        %v7104 = vpack.c.b16 %v7088, %v7086
        %7121 = vmatprep.subr.bf16.mxu0 %v7090
        %7122 = vmatpush1.bf16.msra.mxu0 %v7089
        %7123 = vmatprep.subr.bf16.mxu0 %v7092
        %7124 = vmatpush1.bf16.msra.mxu0 %v7091
        %7125 = vmatprep.subr.bf16.mxu0 %v7094
        %7126 = vmatpush1.bf16.msra.mxu0 %v7093
        %7127 = vmatprep.subr.bf16.mxu0 %v7096
        %7128 = vmatpush1.bf16.msra.mxu0 %v7095
        %7129 = vmatprep.subr.bf16.mxu0 %v7098
        %7130 = vmatpush1.bf16.msra.mxu0 %v7097
        %7131 = vmatprep.subr.bf16.mxu0 %v7100
        %7132 = vmatpush1.bf16.msra.mxu0 %v7099
        %7133 = vmatprep.subr.bf16.mxu0 %v7102
        %7134 = vmatpush1.bf16.msra.mxu0 %v7101
        %7135 = vmatprep.subr.bf16.mxu0 %v7104
        %7136 = vmatpush1.bf16.msra.mxu0 %v7103
        %7137 = vmatprep.subr.bf16.mxu0 0
        %7138 = vmatpush1.bf16.msra.mxu0 0
        %7139 = vmatprep.subr.bf16.mxu0 0
        %7140 = vmatpush1.bf16.msra.mxu0 0
        %7141 = vmatprep.subr.bf16.mxu0 0
        %7142 = vmatpush1.bf16.msra.mxu0 0
        %7143 = vmatprep.subr.bf16.mxu0 0
        %7144 = vmatpush1.bf16.msra.mxu0 0
        %7145 = vmatprep.subr.bf16.mxu0 0
        %7146 = vmatpush1.bf16.msra.mxu0 0
        %7147 = vmatprep.subr.bf16.mxu0 0
        %7148 = vmatpush1.bf16.msra.mxu0 0
        %7149 = vmatprep.subr.bf16.mxu0 0
        %7150 = vmatpush1.bf16.msra.mxu0 0
        %7151 = vmatprep.subr.bf16.mxu0 0
        %7152 = vmatpush1.bf16.msra.mxu0 0
        %7153 = vmatprep.mubr.bf16.mxu0 0
        %7154 = vmatmul.mubr.bf16.gmra.mrb[0].mxu0 %v7029
        %v7155 = vpop.f32.mrb[0].mxu0
        %v7156 = vadd.f32 %v7034, %v7155
        %v7157 = vpop.f32.mrb[0].mxu0
        %v7158 = vadd.f32 %v7038, %v7157
        %v7159 = vpop.f32.mrb[0].mxu0
        %v7160 = vpop.f32.mrb[0].mxu0
        %7161 = vdwg.mxu0
        %v7162 = vmax.f32 %v7156, 0.0
        %v7163 = vmax.f32 %v7158, 0.0
        %v7164 = vpack.c.bf16 %v7162, %v7162
        %v7165 = vpack.c.bf16 %v7163, %v7163
        %v7167 = vlaneseq
        %v7168 = vshrl.u32 %v7167, 7
        %v7169 = vsub.s32 0, %v7168
        %v7170 = vrot.slane %v7028, %v7169
        %v7204 = vunpack.c.l.b16 %v6996
        %v7205 = vunpack.c.l.b16 %v6997
        %v7206 = vunpack.c.l.b16 %v6998
        %v7207 = vunpack.c.l.b16 %v6999
        %v7208 = vunpack.c.l.b16 %v7000
        %v7209 = vunpack.c.l.b16 %v7001
        %v7210 = vunpack.c.l.b16 %v7002
        %v7211 = vunpack.c.l.b16 %v7003
        %v7212 = vunpack.c.l.b16 %v7004
        %v7213 = vunpack.c.l.b16 %v7005
        %v7214 = vunpack.c.l.b16 %v7006
        %v7215 = vunpack.c.l.b16 %v7007
        %v7216 = vunpack.c.l.b16 %v7008
        %v7217 = vunpack.c.l.b16 %v7009
        %v7218 = vunpack.c.l.b16 %v7010
        %v7219 = vunpack.c.l.b16 %v7011
        %v7220 = vunpack.c.l.b16 %v7012
        %v7221 = vunpack.c.l.b16 %v7013
        %v7222 = vunpack.c.l.b16 %v7014
        %v7223 = vunpack.c.l.b16 %v7015
        %v7224 = vunpack.c.l.b16 %v7016
        %v7225 = vunpack.c.l.b16 %v7017
        %v7226 = vunpack.c.l.b16 %v7018
        %v7227 = vunpack.c.l.b16 %v7019
        %v7228 = vunpack.c.l.b16 %v7020
        %v7229 = vunpack.c.l.b16 %v7021
        %v7230 = vunpack.c.l.b16 %v7022
        %v7231 = vunpack.c.l.b16 %v7023
        %v7232 = vunpack.c.l.b16 %v7024
        %v7233 = vunpack.c.l.b16 %v7025
        %v7234 = vunpack.c.l.b16 %v7026
        %v7235 = vunpack.c.l.b16 %v7027
        %v7236 = vpack.c.b16 %v7205, %v7204
        %v7237 = vpack.c.b16 %v7207, %v7206
        %v7238 = vpack.c.b16 %v7209, %v7208
        %v7239 = vpack.c.b16 %v7211, %v7210
        %v7240 = vpack.c.b16 %v7213, %v7212
        %v7241 = vpack.c.b16 %v7215, %v7214
        %v7242 = vpack.c.b16 %v7217, %v7216
        %v7243 = vpack.c.b16 %v7219, %v7218
        %v7244 = vpack.c.b16 %v7221, %v7220
        %v7245 = vpack.c.b16 %v7223, %v7222
        %v7246 = vpack.c.b16 %v7225, %v7224
        %v7247 = vpack.c.b16 %v7227, %v7226
        %v7248 = vpack.c.b16 %v7229, %v7228
        %v7249 = vpack.c.b16 %v7231, %v7230
        %v7250 = vpack.c.b16 %v7233, %v7232
        %v7251 = vpack.c.b16 %v7235, %v7234
        %7268 = vmatprep.subr.bf16.mxu0 0
        %7269 = vmatpush1.bf16.msra.mxu0 %v7236
        %7270 = vmatprep.subr.bf16.mxu0 0
        %7271 = vmatpush1.bf16.msra.mxu0 %v7237
        %7272 = vmatprep.subr.bf16.mxu0 0
        %7273 = vmatpush1.bf16.msra.mxu0 %v7238
        %7274 = vmatprep.subr.bf16.mxu0 0
        %7275 = vmatpush1.bf16.msra.mxu0 %v7239
        %7276 = vmatprep.subr.bf16.mxu0 0
        %7277 = vmatpush1.bf16.msra.mxu0 %v7240
        %7278 = vmatprep.subr.bf16.mxu0 0
        %7279 = vmatpush1.bf16.msra.mxu0 %v7241
        %7280 = vmatprep.subr.bf16.mxu0 0
        %7281 = vmatpush1.bf16.msra.mxu0 %v7242
        %7282 = vmatprep.subr.bf16.mxu0 0
        %7283 = vmatpush1.bf16.msra.mxu0 %v7243
        %7284 = vmatprep.subr.bf16.mxu0 0
        %7285 = vmatpush1.bf16.msra.mxu0 %v7244
        %7286 = vmatprep.subr.bf16.mxu0 0
        %7287 = vmatpush1.bf16.msra.mxu0 %v7245
        %7288 = vmatprep.subr.bf16.mxu0 0
        %7289 = vmatpush1.bf16.msra.mxu0 %v7246
        %7290 = vmatprep.subr.bf16.mxu0 0
        %7291 = vmatpush1.bf16.msra.mxu0 %v7247
        %7292 = vmatprep.subr.bf16.mxu0 0
        %7293 = vmatpush1.bf16.msra.mxu0 %v7248
        %7294 = vmatprep.subr.bf16.mxu0 0
        %7295 = vmatpush1.bf16.msra.mxu0 %v7249
        %7296 = vmatprep.subr.bf16.mxu0 0
        %7297 = vmatpush1.bf16.msra.mxu0 %v7250
        %7298 = vmatprep.subr.bf16.mxu0 0
        %7299 = vmatpush1.bf16.msra.mxu0 %v7251
        %7300 = vmatprep.mubr.bf16.mxu0 %v7165
        %7301 = vmatmul.mubr.bf16.gmra.mrb[0].mxu0 %v7164
        %v7302 = vpop.f32.mrb[0].mxu0
        %v7303 = vadd.f32 %v7170, %v7302
        %v7304 = vpop.f32.mrb[0].mxu0
        %v7305 = vpop.f32.mrb[0].mxu0
        %v7306 = vpop.f32.mrb[0].mxu0
        %7307 = vdwg.mxu0
        %v7308 = vadd.f32 %v7303, %v6974
        %v7309 = vld [vmem:[%s1233] sm:$0x1]
        %v7310 = vld [vmem:[%s1241] sm:$0x1]
        %7311 = vadd.xlane.f32.xlu0 %v7308
        %v7312 = vpop.xlane.xlu0 %7311
        %v7313 = vmul.f32 %v7312, %v3157
        %v7314 = vsub.f32 %v7308, %v7313
        %v7315 = vmul.f32 %v7314, %v7314
        %7316 = vadd.xlane.f32.xlu0 %v7315
        %v7317 = vpop.xlane.xlu0 %7316
        %v7318 = vmul.f32 %v7317, %v3157
        %v7319 = vadd.f32 %v7318, 1e-05
        %v7320 = vrsqrt.pop %v7319
        %v7321 = vmul.f32 %v7314, %v7320
        %v7323 = vlaneseq
        %v7324 = vshrl.u32 %v7323, 7
        %v7325 = vsub.s32 0, %v7324
        %v7326 = vrot.slane %v7309, %v7325
        %v7328 = vmul.f32 %v7321, %v7326
        %v7330 = vlaneseq
        %v7331 = vshrl.u32 %v7330, 7
        %v7332 = vsub.s32 0, %v7331
        %v7333 = vrot.slane %v7310, %v7332
        %v7335 = vadd.f32 %v7328, %v7333
        %7336 = vst [vmem:[#allocation3] sm:$0xff] %v7335
        %p7337 = scmp.eq.s32.totalorder %s61, 1
        // Predicated region
        $region189: #{transformer_forward.1} parent=127 // pred_check
          %p7338 = pneg %p7337
        $region190: #{transformer_forward.1} parent=127 // pred_check_branch
          %7340 = sbr.rel (%p7338) target = $region192
        $region191: #{transformer_forward.1} parent=127 // pred_region
          %v7341 = vpack.c.bf16 %v7335, %v7335
          %v7342 = vld [vmem:[#allocation25] sm:$0xf]
          %v7343 = vld [vmem:[#allocation25 + $0x4] sm:$0xf]
          %v7344 = vld [vmem:[#allocation25 + $0x8] sm:$0xf]
          %v7345 = vld [vmem:[#allocation25 + $0xc] sm:$0xf]
          %v7346 = vld [vmem:[#allocation25 + $0x10] sm:$0xf]
          %v7347 = vld [vmem:[#allocation25 + $0x14] sm:$0xf]
          %v7348 = vld [vmem:[#allocation25 + $0x18] sm:$0xf]
          %v7349 = vld [vmem:[#allocation25 + $0x1c] sm:$0xf]
          %v7350 = vld [vmem:[#allocation25 + $0x20] sm:$0xf]
          %v7351 = vld [vmem:[#allocation25 + $0x24] sm:$0xf]
          %v7352 = vld [vmem:[#allocation25 + $0x28] sm:$0xf]
          %v7353 = vld [vmem:[#allocation25 + $0x2c] sm:$0xf]
          %v7354 = vld [vmem:[#allocation25 + $0x30] sm:$0xf]
          %v7355 = vld [vmem:[#allocation25 + $0x34] sm:$0xf]
          %v7356 = vld [vmem:[#allocation25 + $0x38] sm:$0xf]
          %v7357 = vld [vmem:[#allocation25 + $0x3c] sm:$0xf]
          %v7358 = vld [vmem:[%s26] sm:$0x1]
          %v7360 = vlaneseq
          %v7361 = vshrl.u32 %v7360, 7
          %v7362 = vsub.s32 0, %v7361
          %v7363 = vrot.slane %v7358, %v7362
          %v7381 = vunpack.c.l.b16 %v7342
          %v7382 = vunpack.c.l.b16 %v7343
          %v7383 = vunpack.c.l.b16 %v7344
          %v7384 = vunpack.c.l.b16 %v7345
          %v7385 = vunpack.c.l.b16 %v7346
          %v7386 = vunpack.c.l.b16 %v7347
          %v7387 = vunpack.c.l.b16 %v7348
          %v7388 = vunpack.c.l.b16 %v7349
          %v7389 = vunpack.c.l.b16 %v7350
          %v7390 = vunpack.c.l.b16 %v7351
          %v7391 = vunpack.c.l.b16 %v7352
          %v7392 = vunpack.c.l.b16 %v7353
          %v7393 = vunpack.c.l.b16 %v7354
          %v7394 = vunpack.c.l.b16 %v7355
          %v7395 = vunpack.c.l.b16 %v7356
          %v7396 = vunpack.c.l.b16 %v7357
          %v7397 = vpack.c.b16 %v7382, %v7381
          %v7398 = vpack.c.b16 %v7384, %v7383
          %v7399 = vpack.c.b16 %v7386, %v7385
          %v7400 = vpack.c.b16 %v7388, %v7387
          %v7401 = vpack.c.b16 %v7390, %v7389
          %v7402 = vpack.c.b16 %v7392, %v7391
          %v7403 = vpack.c.b16 %v7394, %v7393
          %v7404 = vpack.c.b16 %v7396, %v7395
          %7413 = vmatprep.subr.bf16.mxu0 0
          %7414 = vmatpush1.bf16.msra.mxu0 %v7397
          %7415 = vmatprep.subr.bf16.mxu0 0
          %7416 = vmatpush1.bf16.msra.mxu0 %v7398
          %7417 = vmatprep.subr.bf16.mxu0 0
          %7418 = vmatpush1.bf16.msra.mxu0 %v7399
          %7419 = vmatprep.subr.bf16.mxu0 0
          %7420 = vmatpush1.bf16.msra.mxu0 %v7400
          %7421 = vmatprep.subr.bf16.mxu0 0
          %7422 = vmatpush1.bf16.msra.mxu0 %v7401
          %7423 = vmatprep.subr.bf16.mxu0 0
          %7424 = vmatpush1.bf16.msra.mxu0 %v7402
          %7425 = vmatprep.subr.bf16.mxu0 0
          %7426 = vmatpush1.bf16.msra.mxu0 %v7403
          %7427 = vmatprep.subr.bf16.mxu0 0
          %7428 = vmatpush1.bf16.msra.mxu0 %v7404
          %7429 = vmatprep.subr.bf16.mxu0 0
          %7430 = vmatpush1.bf16.msra.mxu0 0
          %7431 = vmatprep.subr.bf16.mxu0 0
          %7432 = vmatpush1.bf16.msra.mxu0 0
          %7433 = vmatprep.subr.bf16.mxu0 0
          %7434 = vmatpush1.bf16.msra.mxu0 0
          %7435 = vmatprep.subr.bf16.mxu0 0
          %7436 = vmatpush1.bf16.msra.mxu0 0
          %7437 = vmatprep.subr.bf16.mxu0 0
          %7438 = vmatpush1.bf16.msra.mxu0 0
          %7439 = vmatprep.subr.bf16.mxu0 0
          %7440 = vmatpush1.bf16.msra.mxu0 0
          %7441 = vmatprep.subr.bf16.mxu0 0
          %7442 = vmatpush1.bf16.msra.mxu0 0
          %7443 = vmatprep.subr.bf16.mxu0 0
          %7444 = vmatpush1.bf16.msra.mxu0 0
          %7445 = vmatprep.mubr.bf16.mxu0 0
          %7446 = vmatmul.mubr.bf16.gmra.mrb[0].mxu0 %v7341
          %v7447 = vpop.f32.mrb[0].mxu0
          %v7448 = vadd.f32 %v7363, %v7447
          %v7449 = vpop.f32.mrb[0].mxu0
          %v7450 = vpop.f32.mrb[0].mxu0
          %v7451 = vpop.f32.mrb[0].mxu0
          %7452 = vdwg.mxu0
          %7453 = vmax.xlane.f32.xlu0 %v7448
          %v7454 = vpop.xlane.xlu0 %7453
          %v7455 = vsub.f32 %v7448, %v7454
          %v7456 = vmul.f32 %v7455, 1.442695
          %v7457 = vpow.pop %v7456
          %7458 = vadd.xlane.f32.xlu0 %v7457
          %v7459 = vpop.xlane.xlu0 %7458
          %v7460 = vrcp.pop %v7459
          %v7461 = vmul.f32 %v7457, %v7460
          %7462 = vst [vmem:[#allocation27] sm:$0xff] %v7461
        $region192: #{transformer_forward.1} parent=127 // pred_fallthru
          _
        // Predicated region
        $region193: #{transformer_forward.1} parent=127 // pred_check
          %p7463 = pneg %p756
        $region194: #{transformer_forward.1} parent=127 // pred_check_branch
          %7465 = sbr.rel (%p7463) target = $region196
        $region195: #{transformer_forward.1} parent=127 // pred_region
          %s7467 = ssub.s32 128, 128
          %7468 = vsyncadd [#allocation6], %s7467
          %s7470 = sshll.u32 [#allocation27], 4
          %s7471 = int_to_ptr.vmem [resolvable:$true] %s7470
          %7473 = dma.vmem_to_hbm [thread:$0]  %s7471, 128, %s27, [#allocation6]
        $region196: #{transformer_forward.1} parent=127 // pred_fallthru
          _
        // Predicated region
        $region197: #{transformer_forward.1} parent=127 // pred_check
          %p7474 = pneg %p756
        $region198: #{transformer_forward.1} parent=127 // pred_check_branch
          %7476 = sbr.rel (%p7474) target = $region200
        $region199: #{transformer_forward.1} parent=127 // pred_region
          %7477 = dma.done [#allocation6], 128
        $region200: #{transformer_forward.1} parent=127 // pred_fallthru
          _
      $region128: #{transformer_forward.1} parent=5 // pred_fallthru
        _
      %p7478 = scmp.le.s32.totalorder 2, %s56
      // Predicated region
      $region201: #{transformer_forward.1} parent=5 // pred_check
        %p7479 = pneg %p7478
      $region202: #{transformer_forward.1} parent=5 // pred_check_branch
        %7481 = sbr.rel (%p7479) target = $region204
      $region203: #{transformer_forward.1} parent=5 // pred_region
        %s7482 = ssub.s32 %s56, 2
      $region204: #{transformer_forward.1} parent=5 // pred_fallthru
        _
    $region6: #{transformer_forward.1} parent=1 // loop_footer
      %s60 = sadd.s32 1, %s56
    $region7: #{transformer_forward.1} parent=1 // loop_footer_branch
      %55 = sbr.rel target = $region3
    $region8: #{transformer_forward.1} parent=1 // loop_exit
      _
    %7483 = vsyncpa [#allocation5], 1
    %s7484 = scalar_lea.sflag [#allocation5], 1
    %7485 = vsyncpa %s7484, 1
    %7486 = vsyncpa [#allocation8], 1
    %s7487 = scalar_lea.sflag [#allocation8], 1
    %7488 = vsyncpa %s7487, 1
    %7489 = vsyncpa [#allocation11], 1
    %s7490 = scalar_lea.sflag [#allocation11], 1
    %7491 = vsyncpa %s7490, 1
    %7492 = vsyncpa [#allocation14], 1
    %s7493 = scalar_lea.sflag [#allocation14], 1
    %7494 = vsyncpa %s7493, 1
    %7495 = vsyncpa [#allocation17], 1
    %s7496 = scalar_lea.sflag [#allocation17], 1
    %7497 = vsyncpa %s7496, 1
    %7498 = vsyncpa [#allocation20], 1
    %s7499 = scalar_lea.sflag [#allocation20], 1
    %7500 = vsyncpa %s7499, 1
    %7501 = vsyncpa [#allocation23], 1
    %s7502 = scalar_lea.sflag [#allocation23], 1
    %7503 = vsyncpa %s7502, 1
    %7504 = vsyncpa [#allocation26], 1
    %7505 = vsyncpa [#allocation6], 1
    %s7506 = scalar_lea.sflag [#allocation6], 1
    %7507 = vsyncpa %s7506, 1

</llo_original>
